<compile_context>
chip_gen: v5e
topology: v5e:2x2
jax: 0.10.0
libtpu: 0.0.40
codegen_flags: <defaults>
</compile_context>

<pallas_src>
import functools

import jax
import jax.numpy as jnp
from jax.experimental import pallas as pl
from jax.experimental.pallas import tpu as pltpu

N_SAMPLES = 2 ** 14            # module constant
SAMPLERATE = 22050.0           # zounds.SR22050()
NYQUIST = SAMPLERATE / 2.0
NEG_SLOPE = 0.2
LATENT = 128
TIME_FRAMES = 64               # time axis after the up-stack (Conv1d length)

# (cin, cout, kh, kw); 4x4 layers: stride (2,2), pad (1,1);
# the final (4,1) layer: stride (2,1), pad (1,0).
UP_CFG = (
    (128, 64, 4, 4),
    (64, 32, 4, 4),
    (32, 16, 4, 4),
    (16, 8, 4, 4),
    (8, 4, 4, 4),
    (4, 1, 4, 1),
)


def _round_up(a, b):
    return (a + b - 1) // b * b


# ------------------------------ Pallas kernel ------------------------------

def _fused_mm_kernel(x_ref, w_ref, pb_ref, ob_ref, o_ref, *,
                     use_pre_bias, pre_slope, use_post_bias, post_slope):
    """f32 prologue (previous layer's bias + LeakyReLU) -> bf16 MXU matmul with
    f32 accumulation -> f32 epilogue (this layer's bias / activation)."""
    x = x_ref[...]                                   # f32 (tm, K)
    if use_pre_bias:
        x = x + pb_ref[...]
    if pre_slope is not None:
        x = jnp.where(x >= 0.0, x, pre_slope * x)
    acc = jnp.dot(x.astype(jnp.bfloat16), w_ref[...],
                  preferred_element_type=jnp.float32)
    if use_post_bias:
        acc = acc + ob_ref[...]
    if post_slope is not None:
        acc = jnp.where(acc >= 0.0, acc, post_slope * acc)
    o_ref[...] = acc


def fused_mm(x, w_bf16, *, pre_bias=None, pre_slope=None,
             post_bias=None, post_slope=None, tile_m=512):
    """M-tiled, weight-resident fused matmul. x: (M, K) f32, w: (K, N) bf16."""
    m, k = x.shape
    k2, n = w_bf16.shape
    assert k == k2
    tm = min(tile_m, _round_up(m, 8))
    mp = _round_up(m, tm)
    if mp != m:
        x = jnp.pad(x, ((0, mp - m), (0, 0)))
    pb = (jnp.zeros((1, k), jnp.float32) if pre_bias is None
          else pre_bias.reshape(1, k).astype(jnp.float32))
    ob = (jnp.zeros((1, n), jnp.float32) if post_bias is None
          else post_bias.reshape(1, n).astype(jnp.float32))
    kernel = functools.partial(
        _fused_mm_kernel,
        use_pre_bias=pre_bias is not None, pre_slope=pre_slope,
        use_post_bias=post_bias is not None, post_slope=post_slope)
    out = pl.pallas_call(
        kernel,
        out_shape=jax.ShapeDtypeStruct((mp, n), jnp.float32),
        grid=(mp // tm,),
        in_specs=[
            pl.BlockSpec((tm, k), lambda i: (i, 0)),   # activations: M-tiled
            pl.BlockSpec((k, n), lambda i: (0, 0)),    # weight: resident
            pl.BlockSpec((1, k), lambda i: (0, 0)),    # pre-bias: resident
            pl.BlockSpec((1, n), lambda i: (0, 0)),    # post-bias: resident
        ],
        out_specs=pl.BlockSpec((tm, n), lambda i: (i, 0)),
        compiler_params=pltpu.CompilerParams(
            dimension_semantics=("parallel",),
            vmem_limit_bytes=32 * 1024 * 1024),
    )(x, w_bf16, pb, ob)
    return out[:m] if mp != m else out


# ------------------- ConvTranspose2d overlap-add (JAX glue) -------------------

def _col2im_convtranspose(t):
    """Recombine per-input-position tap contributions of ConvTranspose2d with
    kernel (4, kw), stride (2, 2 if kw==4 else 1), padding (1, 1 if kw==4 else 0).
    t: (B, H, W, 4, kw, C).  Output position oy = 2*iy - 1 + ky (same for x).
    Returns the pre-bias, pre-activation output (B, 2H, 2W or W, C)."""
    B, H, W, kh, kw, C = t.shape
    # height axis
    t0, t1, t2, t3 = (t[:, :, :, kk] for kk in range(4))          # (B,H,W,kw,C)
    ev = t1 + jnp.pad(t3, ((0, 0), (1, 0), (0, 0), (0, 0), (0, 0)))[:, :H]
    od = t2 + jnp.pad(t0, ((0, 0), (0, 1), (0, 0), (0, 0), (0, 0)))[:, 1:]
    u = jnp.stack([ev, od], axis=2).reshape(B, 2 * H, W, kw, C)
    if kw == 1:                                                    # the (4,1) layer
        return u[:, :, :, 0, :]
    # width axis
    u0, u1, u2, u3 = (u[:, :, :, kk] for kk in range(4))           # (B,2H,W,C)
    ev = u1 + jnp.pad(u3, ((0, 0), (0, 0), (1, 0), (0, 0)))[:, :, :W]
    od = u2 + jnp.pad(u0, ((0, 0), (0, 0), (0, 1), (0, 0)))[:, :, 1:]
    return jnp.stack([ev, od], axis=3).reshape(B, 2 * H, 2 * W, C)


# ----------------------- osc / noise synth stand-ins -----------------------

# TODO(synk): OscillatorBank's exact (zounds/ddsp) implementation is not in the
# spec; deterministic stand-in: sigmoid-constrained frequency, |amp|, nearest
# upsample to audio rate, cumulative-phase sine bank summed over oscillators.
def _oscillator_bank(h):
    b, n_osc, frames = h.shape
    lowest = 40.0 / NYQUIST
    freq = lowest + (1.0 - lowest) * jax.nn.sigmoid(h)      # normalized [lowest, 1]
    amp = jnp.abs(h)
    up = N_SAMPLES // frames
    freq = jnp.repeat(freq, up, axis=-1)
    amp = jnp.repeat(amp, up, axis=-1)
    phase = jnp.cumsum(freq * jnp.pi, axis=-1)
    return jnp.sum(jnp.sin(phase) * amp, axis=1) / n_osc    # (B, N_SAMPLES)


# TODO(synk): NoiseModel's FFT-based filtered-noise synthesis (mask_after=1) is
# not reproducible from the spec; stand-in modulates fixed white noise with a
# per-frame envelope derived from the input.
def _noise_model(n):
    b, _, frames = n.shape
    env = jnp.mean(jnp.abs(n), axis=1)                      # (B, frames)
    env = jnp.repeat(env, N_SAMPLES // frames, axis=-1)     # (B, N_SAMPLES)
    white = jax.random.uniform(jax.random.PRNGKey(1234), (b, N_SAMPLES),
                               jnp.float32, -1.0, 1.0)
    return env * white


# ------------------------------ params / forward ------------------------------

def init_params(key):
    keys = jax.random.split(key, 8)
    params = {}
    # self.ln = nn.Linear(128, 128 * 4)
    w_ln = jax.random.normal(keys[0], (LATENT, 4 * LATENT), jnp.float32)
    params["ln_w"] = (w_ln / jnp.sqrt(float(LATENT))).astype(jnp.bfloat16)
    params["ln_b"] = jax.random.normal(keys[1], (4 * LATENT,), jnp.float32) * 0.01
    # self.up: block-diagonal (kron) weights -> one lane-dense matmul per layer.
    layers = []
    w_in = 2
    for li, (cin, cout, kh, kw) in enumerate(UP_CFG):
        kk = jax.random.fold_in(keys[2], li)
        wt = jax.random.normal(kk, (cin, kh, kw, cout), jnp.float32)
        wt = wt / jnp.sqrt(float(cin * kh * kw))
        bt = jax.random.normal(jax.random.fold_in(kk, 1), (cout,), jnp.float32) * 0.01
        wtap = wt.reshape(cin, kh * kw * cout)
        w_big = jnp.kron(jnp.eye(w_in, dtype=jnp.float32), wtap).astype(jnp.bfloat16)
        layers.append({"w_big": w_big, "bias": bt})
        w_in = w_in * 2 if kw == 4 else w_in
    params["up"] = layers
    # to_harm / to_noise (Conv1d 1x1) fused into one 256-wide matmul.
    wh = jax.random.normal(keys[3], (128, 128), jnp.float32) / jnp.sqrt(128.0)
    bh = jax.random.normal(keys[4], (128,), jnp.float32) * 0.01
    wn = jax.random.normal(keys[5], (128, 128), jnp.float32) / jnp.sqrt(128.0)
    bn = jax.random.normal(keys[6], (128,), jnp.float32) * 0.01
    params["heads_w"] = jnp.concatenate([wh.T, wn.T], axis=1).astype(jnp.bfloat16)
    params["heads_b"] = jnp.concatenate([bh, bn])
    return params


def generator_forward(x, params):
    b = x.shape[0]
    # x = self.ln(x)
    z = fused_mm(x, params["ln_w"], post_bias=params["ln_b"])          # (B, 512)
    # x = x.reshape(B, 128, 2, 2) (NCHW) -> NHWC for the up stack
    a = z.reshape(b, 128, 2, 2).transpose(0, 2, 3, 1)                   # (B,2,2,128)
    h, w = 2, 2
    carry_bias = None   # pending bias (+ LeakyReLU) of the previous ConvTranspose
    for (cin, cout, kh, kw), layer in zip(UP_CFG, params["up"]):
        xin = a.reshape(b * h, w * cin)                                 # lane-dense K
        pre_b = None if carry_bias is None else jnp.tile(carry_bias, w)
        pre_s = None if carry_bias is None else NEG_SLOPE
        taps = fused_mm(xin, layer["w_big"], pre_bias=pre_b, pre_slope=pre_s)
        taps = taps.reshape(b, h, w, kh, kw, cout)
        a = _col2im_convtranspose(taps)        # pre-bias / pre-activation output
        h *= 2
        w = w * 2 if kw == 4 else w
        carry_bias = layer["bias"]
    # x.view(B, 128, 64): channel axis = former H (128), time axis = former W (64)
    y = a[..., 0]                                                       # (B,128,64)
    xh = y.transpose(0, 2, 1).reshape(b * TIME_FRAMES, 128)
    heads = fused_mm(xh, params["heads_w"],
                     pre_bias=jnp.tile(carry_bias, 128), pre_slope=NEG_SLOPE,
                     post_bias=params["heads_b"])                       # (B*64, 256)
    heads = heads.reshape(b, TIME_FRAMES, 256)
    harm = heads[:, :, :128].transpose(0, 2, 1)                         # to_harm
    nz = heads[:, :, 128:].transpose(0, 2, 1)                           # to_noise
    return _oscillator_bank(harm), _noise_model(nz)


if __name__ == "__main__":
    key = jax.random.PRNGKey(0)
    pkey, xkey = jax.random.split(key)
    params = init_params(pkey)
    x = jax.random.normal(xkey, (2, LATENT), jnp.float32)    # batch=2 latent vectors

    fwd = jax.jit(generator_forward)
    harm_audio, noise_audio = jax.block_until_ready(fwd(x, params))
    assert harm_audio.shape == (2, N_SAMPLES), harm_audio.shape
    assert noise_audio.shape == (2, N_SAMPLES), noise_audio.shape
    assert harm_audio.dtype == jnp.float32 and noise_audio.dtype == jnp.float32
    assert bool(jnp.all(jnp.isfinite(harm_audio)))
    assert bool(jnp.all(jnp.isfinite(noise_audio)))
    print("KERNEL_OK")
</pallas_src>

<mosaic_0001>
module attributes {stable_mosaic.version = 11 : i64} {
  func.func @_fused_mm_kernel(%arg0: i32, %arg1: memref<8x128xf32, #tpu.memory_space<vmem>>, %arg2: memref<128x512xbf16, #tpu.memory_space<vmem>>, %arg3: memref<1x128xf32, #tpu.memory_space<vmem>>, %arg4: memref<1x512xf32, #tpu.memory_space<vmem>>, %arg5: memref<8x512xf32, #tpu.memory_space<vmem>>) attributes {dimension_semantics = [#tpu.dimension_semantics<parallel>], iteration_bounds = array<i64: 1>, scalar_prefetch = 0 : i64, scratch_operands = 0 : i64, tpu.core_type = #tpu.core_type<tc>, window_params = [{transform_indices = @transform_0, window_bounds = array<i64: 8, 128>}, {pipeline_mode = #tpu.pipeline_mode<synchronous>, transform_indices = @transform_1, window_bounds = array<i64: 128, 512>}, {pipeline_mode = #tpu.pipeline_mode<synchronous>, transform_indices = @transform_2, window_bounds = array<i64: 1, 128>}, {pipeline_mode = #tpu.pipeline_mode<synchronous>, transform_indices = @transform_3, window_bounds = array<i64: 1, 512>}, {transform_indices = @transform_4, window_bounds = array<i64: 8, 512>}]} {
    %c0 = arith.constant 0 : index
    %c0_0 = arith.constant 0 : index
    %0 = vector.load %arg1[%c0, %c0_0] : memref<8x128xf32, #tpu.memory_space<vmem>>, vector<8x128xf32>
    %1 = arith.truncf %0 : vector<8x128xf32> to vector<8x128xbf16>
    %c0_1 = arith.constant 0 : index
    %c0_2 = arith.constant 0 : index
    %2 = vector.load %arg2[%c0_1, %c0_2] : memref<128x512xbf16, #tpu.memory_space<vmem>>, vector<128x512xbf16>
    %cst = arith.constant dense<0.000000e+00> : vector<8x512xf32>
    %3 = tpu.matmul %1, %2, %cst {dimension_numbers = #tpu.dot_dimension_numbers<[1], [0], [0], [1], [0, 0, 1, 1], [], []>} : vector<8x128xbf16>, vector<128x512xbf16>, vector<8x512xf32> -> vector<8x512xf32>
    %c0_3 = arith.constant 0 : index
    %c0_4 = arith.constant 0 : index
    %4 = vector.load %arg4[%c0_3, %c0_4] : memref<1x512xf32, #tpu.memory_space<vmem>>, vector<1x512xf32>
    %5 = vector.broadcast %4 : vector<1x512xf32> to vector<8x512xf32>
    %6 = arith.addf %3, %5 : vector<8x512xf32>
    %c0_5 = arith.constant 0 : index
    %c0_6 = arith.constant 0 : index
    %7 = vector.load %arg5[%c0_5, %c0_6] : memref<8x512xf32, #tpu.memory_space<vmem>>, vector<8x512xf32>
    tpu.vector_store %arg5[%c0_5, %c0_6], %6 {strides = array<i32>} : memref<8x512xf32, #tpu.memory_space<vmem>>, vector<8x512xf32>,
    return
  }
  func.func @transform_0(%arg0: i32) -> (i32, i32) {
    %c0_i32 = arith.constant 0 : i32
    %c0_i32_0 = arith.constant 0 : i32
    return %arg0, %c0_i32 : i32, i32
  }
  func.func @transform_1(%arg0: i32) -> (i32, i32) {
    %c0_i32 = arith.constant 0 : i32
    %c0_i32_0 = arith.constant 0 : i32
    %c0_i32_1 = arith.constant 0 : i32
    return %c0_i32, %c0_i32_0 : i32, i32
  }
  func.func @transform_2(%arg0: i32) -> (i32, i32) {
    %c0_i32 = arith.constant 0 : i32
    %c0_i32_0 = arith.constant 0 : i32
    %c0_i32_1 = arith.constant 0 : i32
    return %c0_i32, %c0_i32_0 : i32, i32
  }
  func.func @transform_3(%arg0: i32) -> (i32, i32) {
    %c0_i32 = arith.constant 0 : i32
    %c0_i32_0 = arith.constant 0 : i32
    %c0_i32_1 = arith.constant 0 : i32
    return %c0_i32, %c0_i32_0 : i32, i32
  }
  func.func @transform_4(%arg0: i32) -> (i32, i32) {
    %c0_i32 = arith.constant 0 : i32
    %c0_i32_0 = arith.constant 0 : i32
    return %arg0, %c0_i32 : i32, i32
  }
}

module attributes {stable_mosaic.version = 11 : i64} {
  func.func @_fused_mm_kernel(%arg0: i32, %arg1: memref<8x256xf32, #tpu.memory_space<vmem>>, %arg2: memref<256x2048xbf16, #tpu.memory_space<vmem>>, %arg3: memref<1x256xf32, #tpu.memory_space<vmem>>, %arg4: memref<1x2048xf32, #tpu.memory_space<vmem>>, %arg5: memref<8x2048xf32, #tpu.memory_space<vmem>>) attributes {dimension_semantics = [#tpu.dimension_semantics<parallel>], iteration_bounds = array<i64: 1>, scalar_prefetch = 0 : i64, scratch_operands = 0 : i64, tpu.core_type = #tpu.core_type<tc>, window_params = [{transform_indices = @transform_0, window_bounds = array<i64: 8, 256>}, {pipeline_mode = #tpu.pipeline_mode<synchronous>, transform_indices = @transform_1, window_bounds = array<i64: 256, 2048>}, {pipeline_mode = #tpu.pipeline_mode<synchronous>, transform_indices = @transform_2, window_bounds = array<i64: 1, 256>}, {pipeline_mode = #tpu.pipeline_mode<synchronous>, transform_indices = @transform_3, window_bounds = array<i64: 1, 2048>}, {transform_indices = @transform_4, window_bounds = array<i64: 8, 2048>}]} {
    %c0 = arith.constant 0 : index
    %c0_0 = arith.constant 0 : index
    %0 = vector.load %arg1[%c0, %c0_0] : memref<8x256xf32, #tpu.memory_space<vmem>>, vector<8x256xf32>
    %1 = arith.truncf %0 : vector<8x256xf32> to vector<8x256xbf16>
    %c0_1 = arith.constant 0 : index
    %c0_2 = arith.constant 0 : index
    %2 = vector.load %arg2[%c0_1, %c0_2] : memref<256x2048xbf16, #tpu.memory_space<vmem>>, vector<256x2048xbf16>
    %cst = arith.constant dense<0.000000e+00> : vector<8x2048xf32>
    %3 = tpu.matmul %1, %2, %cst {dimension_numbers = #tpu.dot_dimension_numbers<[1], [0], [0], [1], [0, 0, 1, 1], [], []>} : vector<8x256xbf16>, vector<256x2048xbf16>, vector<8x2048xf32> -> vector<8x2048xf32>
    %c0_3 = arith.constant 0 : index
    %c0_4 = arith.constant 0 : index
    %4 = vector.load %arg5[%c0_3, %c0_4] : memref<8x2048xf32, #tpu.memory_space<vmem>>, vector<8x2048xf32>
    tpu.vector_store %arg5[%c0_3, %c0_4], %3 {strides = array<i32>} : memref<8x2048xf32, #tpu.memory_space<vmem>>, vector<8x2048xf32>,
    return
  }
  func.func @transform_0(%arg0: i32) -> (i32, i32) {
    %c0_i32 = arith.constant 0 : i32
    %c0_i32_0 = arith.constant 0 : i32
    return %arg0, %c0_i32 : i32, i32
  }
  func.func @transform_1(%arg0: i32) -> (i32, i32) {
    %c0_i32 = arith.constant 0 : i32
    %c0_i32_0 = arith.constant 0 : i32
    %c0_i32_1 = arith.constant 0 : i32
    return %c0_i32, %c0_i32_0 : i32, i32
  }
  func.func @transform_2(%arg0: i32) -> (i32, i32) {
    %c0_i32 = arith.constant 0 : i32
    %c0_i32_0 = arith.constant 0 : i32
    %c0_i32_1 = arith.constant 0 : i32
    return %c0_i32, %c0_i32_0 : i32, i32
  }
  func.func @transform_3(%arg0: i32) -> (i32, i32) {
    %c0_i32 = arith.constant 0 : i32
    %c0_i32_0 = arith.constant 0 : i32
    %c0_i32_1 = arith.constant 0 : i32
    return %c0_i32, %c0_i32_0 : i32, i32
  }
  func.func @transform_4(%arg0: i32) -> (i32, i32) {
    %c0_i32 = arith.constant 0 : i32
    %c0_i32_0 = arith.constant 0 : i32
    return %arg0, %c0_i32 : i32, i32
  }
}

module attributes {stable_mosaic.version = 11 : i64} {
  func.func @_fused_mm_kernel(%arg0: i32, %arg1: memref<8x256xf32, #tpu.memory_space<vmem>>, %arg2: memref<256x2048xbf16, #tpu.memory_space<vmem>>, %arg3: memref<1x256xf32, #tpu.memory_space<vmem>>, %arg4: memref<1x2048xf32, #tpu.memory_space<vmem>>, %arg5: memref<8x2048xf32, #tpu.memory_space<vmem>>) attributes {dimension_semantics = [#tpu.dimension_semantics<parallel>], iteration_bounds = array<i64: 1>, scalar_prefetch = 0 : i64, scratch_operands = 0 : i64, tpu.core_type = #tpu.core_type<tc>, window_params = [{transform_indices = @transform_0, window_bounds = array<i64: 8, 256>}, {pipeline_mode = #tpu.pipeline_mode<synchronous>, transform_indices = @transform_1, window_bounds = array<i64: 256, 2048>}, {pipeline_mode = #tpu.pipeline_mode<synchronous>, transform_indices = @transform_2, window_bounds = array<i64: 1, 256>}, {pipeline_mode = #tpu.pipeline_mode<synchronous>, transform_indices = @transform_3, window_bounds = array<i64: 1, 2048>}, {transform_indices = @transform_4, window_bounds = array<i64: 8, 2048>}]} {
    %c0 = arith.constant 0 : index
    %c0_0 = arith.constant 0 : index
    %0 = vector.load %arg1[%c0, %c0_0] : memref<8x256xf32, #tpu.memory_space<vmem>>, vector<8x256xf32>
    %c0_1 = arith.constant 0 : index
    %c0_2 = arith.constant 0 : index
    %1 = vector.load %arg3[%c0_1, %c0_2] : memref<1x256xf32, #tpu.memory_space<vmem>>, vector<1x256xf32>
    %2 = vector.broadcast %1 : vector<1x256xf32> to vector<8x256xf32>
    %3 = arith.addf %0, %2 : vector<8x256xf32>
    %cst = arith.constant 0.000000e+00 : f32
    %4 = vector.broadcast %cst : f32 to vector<8x256xf32>
    %5 = arith.cmpf oge, %3, %4 : vector<8x256xf32>
    %cst_3 = arith.constant 2.000000e-01 : f32
    %6 = vector.broadcast %cst_3 : f32 to vector<8x256xf32>
    %7 = arith.mulf %6, %3 : vector<8x256xf32>
    %8 = arith.select %5, %3, %7 : vector<8x256xi1>, vector<8x256xf32>
    %9 = arith.truncf %8 : vector<8x256xf32> to vector<8x256xbf16>
    %c0_4 = arith.constant 0 : index
    %c0_5 = arith.constant 0 : index
    %10 = vector.load %arg2[%c0_4, %c0_5] : memref<256x2048xbf16, #tpu.memory_space<vmem>>, vector<256x2048xbf16>
    %cst_6 = arith.constant dense<0.000000e+00> : vector<8x2048xf32>
    %11 = tpu.matmul %9, %10, %cst_6 {dimension_numbers = #tpu.dot_dimension_numbers<[1], [0], [0], [1], [0, 0, 1, 1], [], []>} : vector<8x256xbf16>, vector<256x2048xbf16>, vector<8x2048xf32> -> vector<8x2048xf32>
    %c0_7 = arith.constant 0 : index
    %c0_8 = arith.constant 0 : index
    %12 = vector.load %arg5[%c0_7, %c0_8] : memref<8x2048xf32, #tpu.memory_space<vmem>>, vector<8x2048xf32>
    tpu.vector_store %arg5[%c0_7, %c0_8], %11 {strides = array<i32>} : memref<8x2048xf32, #tpu.memory_space<vmem>>, vector<8x2048xf32>,
    return
  }
  func.func @transform_0(%arg0: i32) -> (i32, i32) {
    %c0_i32 = arith.constant 0 : i32
    %c0_i32_0 = arith.constant 0 : i32
    return %arg0, %c0_i32 : i32, i32
  }
  func.func @transform_1(%arg0: i32) -> (i32, i32) {
    %c0_i32 = arith.constant 0 : i32
    %c0_i32_0 = arith.constant 0 : i32
    %c0_i32_1 = arith.constant 0 : i32
    return %c0_i32, %c0_i32_0 : i32, i32
  }
  func.func @transform_2(%arg0: i32) -> (i32, i32) {
    %c0_i32 = arith.constant 0 : i32
    %c0_i32_0 = arith.constant 0 : i32
    %c0_i32_1 = arith.constant 0 : i32
    return %c0_i32, %c0_i32_0 : i32, i32
  }
  func.func @transform_3(%arg0: i32) -> (i32, i32) {
    %c0_i32 = arith.constant 0 : i32
    %c0_i32_0 = arith.constant 0 : i32
    %c0_i32_1 = arith.constant 0 : i32
    return %c0_i32, %c0_i32_0 : i32, i32
  }
  func.func @transform_4(%arg0: i32) -> (i32, i32) {
    %c0_i32 = arith.constant 0 : i32
    %c0_i32_0 = arith.constant 0 : i32
    return %arg0, %c0_i32 : i32, i32
  }
}

module attributes {stable_mosaic.version = 11 : i64} {
  func.func @_fused_mm_kernel(%arg0: i32, %arg1: memref<16x256xf32, #tpu.memory_space<vmem>>, %arg2: memref<256x2048xbf16, #tpu.memory_space<vmem>>, %arg3: memref<1x256xf32, #tpu.memory_space<vmem>>, %arg4: memref<1x2048xf32, #tpu.memory_space<vmem>>, %arg5: memref<16x2048xf32, #tpu.memory_space<vmem>>) attributes {dimension_semantics = [#tpu.dimension_semantics<parallel>], iteration_bounds = array<i64: 1>, scalar_prefetch = 0 : i64, scratch_operands = 0 : i64, tpu.core_type = #tpu.core_type<tc>, window_params = [{transform_indices = @transform_0, window_bounds = array<i64: 16, 256>}, {pipeline_mode = #tpu.pipeline_mode<synchronous>, transform_indices = @transform_1, window_bounds = array<i64: 256, 2048>}, {pipeline_mode = #tpu.pipeline_mode<synchronous>, transform_indices = @transform_2, window_bounds = array<i64: 1, 256>}, {pipeline_mode = #tpu.pipeline_mode<synchronous>, transform_indices = @transform_3, window_bounds = array<i64: 1, 2048>}, {transform_indices = @transform_4, window_bounds = array<i64: 16, 2048>}]} {
    %c0 = arith.constant 0 : index
    %c0_0 = arith.constant 0 : index
    %0 = vector.load %arg1[%c0, %c0_0] : memref<16x256xf32, #tpu.memory_space<vmem>>, vector<16x256xf32>
    %c0_1 = arith.constant 0 : index
    %c0_2 = arith.constant 0 : index
    %1 = vector.load %arg3[%c0_1, %c0_2] : memref<1x256xf32, #tpu.memory_space<vmem>>, vector<1x256xf32>
    %2 = vector.broadcast %1 : vector<1x256xf32> to vector<16x256xf32>
    %3 = arith.addf %0, %2 : vector<16x256xf32>
    %cst = arith.constant 0.000000e+00 : f32
    %4 = vector.broadcast %cst : f32 to vector<16x256xf32>
    %5 = arith.cmpf oge, %3, %4 : vector<16x256xf32>
    %cst_3 = arith.constant 2.000000e-01 : f32
    %6 = vector.broadcast %cst_3 : f32 to vector<16x256xf32>
    %7 = arith.mulf %6, %3 : vector<16x256xf32>
    %8 = arith.select %5, %3, %7 : vector<16x256xi1>, vector<16x256xf32>
    %9 = arith.truncf %8 : vector<16x256xf32> to vector<16x256xbf16>
    %c0_4 = arith.constant 0 : index
    %c0_5 = arith.constant 0 : index
    %10 = vector.load %arg2[%c0_4, %c0_5] : memref<256x2048xbf16, #tpu.memory_space<vmem>>, vector<256x2048xbf16>
    %cst_6 = arith.constant dense<0.000000e+00> : vector<16x2048xf32>
    %11 = tpu.matmul %9, %10, %cst_6 {dimension_numbers = #tpu.dot_dimension_numbers<[1], [0], [0], [1], [0, 0, 1, 1], [], []>} : vector<16x256xbf16>, vector<256x2048xbf16>, vector<16x2048xf32> -> vector<16x2048xf32>
    %c0_7 = arith.constant 0 : index
    %c0_8 = arith.constant 0 : index
    %12 = vector.load %arg5[%c0_7, %c0_8] : memref<16x2048xf32, #tpu.memory_space<vmem>>, vector<16x2048xf32>
    tpu.vector_store %arg5[%c0_7, %c0_8], %11 {strides = array<i32>} : memref<16x2048xf32, #tpu.memory_space<vmem>>, vector<16x2048xf32>,
    return
  }
  func.func @transform_0(%arg0: i32) -> (i32, i32) {
    %c0_i32 = arith.constant 0 : i32
    %c0_i32_0 = arith.constant 0 : i32
    return %arg0, %c0_i32 : i32, i32
  }
  func.func @transform_1(%arg0: i32) -> (i32, i32) {
    %c0_i32 = arith.constant 0 : i32
    %c0_i32_0 = arith.constant 0 : i32
    %c0_i32_1 = arith.constant 0 : i32
    return %c0_i32, %c0_i32_0 : i32, i32
  }
  func.func @transform_2(%arg0: i32) -> (i32, i32) {
    %c0_i32 = arith.constant 0 : i32
    %c0_i32_0 = arith.constant 0 : i32
    %c0_i32_1 = arith.constant 0 : i32
    return %c0_i32, %c0_i32_0 : i32, i32
  }
  func.func @transform_3(%arg0: i32) -> (i32, i32) {
    %c0_i32 = arith.constant 0 : i32
    %c0_i32_0 = arith.constant 0 : i32
    %c0_i32_1 = arith.constant 0 : i32
    return %c0_i32, %c0_i32_0 : i32, i32
  }
  func.func @transform_4(%arg0: i32) -> (i32, i32) {
    %c0_i32 = arith.constant 0 : i32
    %c0_i32_0 = arith.constant 0 : i32
    return %arg0, %c0_i32 : i32, i32
  }
}

module attributes {stable_mosaic.version = 11 : i64} {
  func.func @_fused_mm_kernel(%arg0: i32, %arg1: memref<32x256xf32, #tpu.memory_space<vmem>>, %arg2: memref<256x2048xbf16, #tpu.memory_space<vmem>>, %arg3: memref<1x256xf32, #tpu.memory_space<vmem>>, %arg4: memref<1x2048xf32, #tpu.memory_space<vmem>>, %arg5: memref<32x2048xf32, #tpu.memory_space<vmem>>) attributes {dimension_semantics = [#tpu.dimension_semantics<parallel>], iteration_bounds = array<i64: 1>, scalar_prefetch = 0 : i64, scratch_operands = 0 : i64, tpu.core_type = #tpu.core_type<tc>, window_params = [{transform_indices = @transform_0, window_bounds = array<i64: 32, 256>}, {pipeline_mode = #tpu.pipeline_mode<synchronous>, transform_indices = @transform_1, window_bounds = array<i64: 256, 2048>}, {pipeline_mode = #tpu.pipeline_mode<synchronous>, transform_indices = @transform_2, window_bounds = array<i64: 1, 256>}, {pipeline_mode = #tpu.pipeline_mode<synchronous>, transform_indices = @transform_3, window_bounds = array<i64: 1, 2048>}, {transform_indices = @transform_4, window_bounds = array<i64: 32, 2048>}]} {
    %c0 = arith.constant 0 : index
    %c0_0 = arith.constant 0 : index
    %0 = vector.load %arg1[%c0, %c0_0] : memref<32x256xf32, #tpu.memory_space<vmem>>, vector<32x256xf32>
    %c0_1 = arith.constant 0 : index
    %c0_2 = arith.constant 0 : index
    %1 = vector.load %arg3[%c0_1, %c0_2] : memref<1x256xf32, #tpu.memory_space<vmem>>, vector<1x256xf32>
    %2 = vector.broadcast %1 : vector<1x256xf32> to vector<32x256xf32>
    %3 = arith.addf %0, %2 : vector<32x256xf32>
    %cst = arith.constant 0.000000e+00 : f32
    %4 = vector.broadcast %cst : f32 to vector<32x256xf32>
    %5 = arith.cmpf oge, %3, %4 : vector<32x256xf32>
    %cst_3 = arith.constant 2.000000e-01 : f32
    %6 = vector.broadcast %cst_3 : f32 to vector<32x256xf32>
    %7 = arith.mulf %6, %3 : vector<32x256xf32>
    %8 = arith.select %5, %3, %7 : vector<32x256xi1>, vector<32x256xf32>
    %9 = arith.truncf %8 : vector<32x256xf32> to vector<32x256xbf16>
    %c0_4 = arith.constant 0 : index
    %c0_5 = arith.constant 0 : index
    %10 = vector.load %arg2[%c0_4, %c0_5] : memref<256x2048xbf16, #tpu.memory_space<vmem>>, vector<256x2048xbf16>
    %cst_6 = arith.constant dense<0.000000e+00> : vector<32x2048xf32>
    %11 = tpu.matmul %9, %10, %cst_6 {dimension_numbers = #tpu.dot_dimension_numbers<[1], [0], [0], [1], [0, 0, 1, 1], [], []>} : vector<32x256xbf16>, vector<256x2048xbf16>, vector<32x2048xf32> -> vector<32x2048xf32>
    %c0_7 = arith.constant 0 : index
    %c0_8 = arith.constant 0 : index
    %12 = vector.load %arg5[%c0_7, %c0_8] : memref<32x2048xf32, #tpu.memory_space<vmem>>, vector<32x2048xf32>
    tpu.vector_store %arg5[%c0_7, %c0_8], %11 {strides = array<i32>} : memref<32x2048xf32, #tpu.memory_space<vmem>>, vector<32x2048xf32>,
    return
  }
  func.func @transform_0(%arg0: i32) -> (i32, i32) {
    %c0_i32 = arith.constant 0 : i32
    %c0_i32_0 = arith.constant 0 : i32
    return %arg0, %c0_i32 : i32, i32
  }
  func.func @transform_1(%arg0: i32) -> (i32, i32) {
    %c0_i32 = arith.constant 0 : i32
    %c0_i32_0 = arith.constant 0 : i32
    %c0_i32_1 = arith.constant 0 : i32
    return %c0_i32, %c0_i32_0 : i32, i32
  }
  func.func @transform_2(%arg0: i32) -> (i32, i32) {
    %c0_i32 = arith.constant 0 : i32
    %c0_i32_0 = arith.constant 0 : i32
    %c0_i32_1 = arith.constant 0 : i32
    return %c0_i32, %c0_i32_0 : i32, i32
  }
  func.func @transform_3(%arg0: i32) -> (i32, i32) {
    %c0_i32 = arith.constant 0 : i32
    %c0_i32_0 = arith.constant 0 : i32
    %c0_i32_1 = arith.constant 0 : i32
    return %c0_i32, %c0_i32_0 : i32, i32
  }
  func.func @transform_4(%arg0: i32) -> (i32, i32) {
    %c0_i32 = arith.constant 0 : i32
    %c0_i32_0 = arith.constant 0 : i32
    return %arg0, %c0_i32 : i32, i32
  }
}

module attributes {stable_mosaic.version = 11 : i64} {
  func.func @_fused_mm_kernel(%arg0: i32, %arg1: memref<64x256xf32, #tpu.memory_space<vmem>>, %arg2: memref<256x2048xbf16, #tpu.memory_space<vmem>>, %arg3: memref<1x256xf32, #tpu.memory_space<vmem>>, %arg4: memref<1x2048xf32, #tpu.memory_space<vmem>>, %arg5: memref<64x2048xf32, #tpu.memory_space<vmem>>) attributes {dimension_semantics = [#tpu.dimension_semantics<parallel>], iteration_bounds = array<i64: 1>, scalar_prefetch = 0 : i64, scratch_operands = 0 : i64, tpu.core_type = #tpu.core_type<tc>, window_params = [{transform_indices = @transform_0, window_bounds = array<i64: 64, 256>}, {pipeline_mode = #tpu.pipeline_mode<synchronous>, transform_indices = @transform_1, window_bounds = array<i64: 256, 2048>}, {pipeline_mode = #tpu.pipeline_mode<synchronous>, transform_indices = @transform_2, window_bounds = array<i64: 1, 256>}, {pipeline_mode = #tpu.pipeline_mode<synchronous>, transform_indices = @transform_3, window_bounds = array<i64: 1, 2048>}, {transform_indices = @transform_4, window_bounds = array<i64: 64, 2048>}]} {
    %c0 = arith.constant 0 : index
    %c0_0 = arith.constant 0 : index
    %0 = vector.load %arg1[%c0, %c0_0] : memref<64x256xf32, #tpu.memory_space<vmem>>, vector<64x256xf32>
    %c0_1 = arith.constant 0 : index
    %c0_2 = arith.constant 0 : index
    %1 = vector.load %arg3[%c0_1, %c0_2] : memref<1x256xf32, #tpu.memory_space<vmem>>, vector<1x256xf32>
    %2 = vector.broadcast %1 : vector<1x256xf32> to vector<64x256xf32>
    %3 = arith.addf %0, %2 : vector<64x256xf32>
    %cst = arith.constant 0.000000e+00 : f32
    %4 = vector.broadcast %cst : f32 to vector<64x256xf32>
    %5 = arith.cmpf oge, %3, %4 : vector<64x256xf32>
    %cst_3 = arith.constant 2.000000e-01 : f32
    %6 = vector.broadcast %cst_3 : f32 to vector<64x256xf32>
    %7 = arith.mulf %6, %3 : vector<64x256xf32>
    %8 = arith.select %5, %3, %7 : vector<64x256xi1>, vector<64x256xf32>
    %9 = arith.truncf %8 : vector<64x256xf32> to vector<64x256xbf16>
    %c0_4 = arith.constant 0 : index
    %c0_5 = arith.constant 0 : index
    %10 = vector.load %arg2[%c0_4, %c0_5] : memref<256x2048xbf16, #tpu.memory_space<vmem>>, vector<256x2048xbf16>
    %cst_6 = arith.constant dense<0.000000e+00> : vector<64x2048xf32>
    %11 = tpu.matmul %9, %10, %cst_6 {dimension_numbers = #tpu.dot_dimension_numbers<[1], [0], [0], [1], [0, 0, 1, 1], [], []>} : vector<64x256xbf16>, vector<256x2048xbf16>, vector<64x2048xf32> -> vector<64x2048xf32>
    %c0_7 = arith.constant 0 : index
    %c0_8 = arith.constant 0 : index
    %12 = vector.load %arg5[%c0_7, %c0_8] : memref<64x2048xf32, #tpu.memory_space<vmem>>, vector<64x2048xf32>
    tpu.vector_store %arg5[%c0_7, %c0_8], %11 {strides = array<i32>} : memref<64x2048xf32, #tpu.memory_space<vmem>>, vector<64x2048xf32>,
    return
  }
  func.func @transform_0(%arg0: i32) -> (i32, i32) {
    %c0_i32 = arith.constant 0 : i32
    %c0_i32_0 = arith.constant 0 : i32
    return %arg0, %c0_i32 : i32, i32
  }
  func.func @transform_1(%arg0: i32) -> (i32, i32) {
    %c0_i32 = arith.constant 0 : i32
    %c0_i32_0 = arith.constant 0 : i32
    %c0_i32_1 = arith.constant 0 : i32
    return %c0_i32, %c0_i32_0 : i32, i32
  }
  func.func @transform_2(%arg0: i32) -> (i32, i32) {
    %c0_i32 = arith.constant 0 : i32
    %c0_i32_0 = arith.constant 0 : i32
    %c0_i32_1 = arith.constant 0 : i32
    return %c0_i32, %c0_i32_0 : i32, i32
  }
  func.func @transform_3(%arg0: i32) -> (i32, i32) {
    %c0_i32 = arith.constant 0 : i32
    %c0_i32_0 = arith.constant 0 : i32
    %c0_i32_1 = arith.constant 0 : i32
    return %c0_i32, %c0_i32_0 : i32, i32
  }
  func.func @transform_4(%arg0: i32) -> (i32, i32) {
    %c0_i32 = arith.constant 0 : i32
    %c0_i32_0 = arith.constant 0 : i32
    return %arg0, %c0_i32 : i32, i32
  }
}

module attributes {stable_mosaic.version = 11 : i64} {
  func.func @_fused_mm_kernel(%arg0: i32, %arg1: memref<128x256xf32, #tpu.memory_space<vmem>>, %arg2: memref<256x256xbf16, #tpu.memory_space<vmem>>, %arg3: memref<1x256xf32, #tpu.memory_space<vmem>>, %arg4: memref<1x256xf32, #tpu.memory_space<vmem>>, %arg5: memref<128x256xf32, #tpu.memory_space<vmem>>) attributes {dimension_semantics = [#tpu.dimension_semantics<parallel>], iteration_bounds = array<i64: 1>, scalar_prefetch = 0 : i64, scratch_operands = 0 : i64, tpu.core_type = #tpu.core_type<tc>, window_params = [{transform_indices = @transform_0, window_bounds = array<i64: 128, 256>}, {pipeline_mode = #tpu.pipeline_mode<synchronous>, transform_indices = @transform_1, window_bounds = array<i64: 256, 256>}, {pipeline_mode = #tpu.pipeline_mode<synchronous>, transform_indices = @transform_2, window_bounds = array<i64: 1, 256>}, {pipeline_mode = #tpu.pipeline_mode<synchronous>, transform_indices = @transform_3, window_bounds = array<i64: 1, 256>}, {transform_indices = @transform_4, window_bounds = array<i64: 128, 256>}]} {
    %c0 = arith.constant 0 : index
    %c0_0 = arith.constant 0 : index
    %0 = vector.load %arg1[%c0, %c0_0] : memref<128x256xf32, #tpu.memory_space<vmem>>, vector<128x256xf32>
    %c0_1 = arith.constant 0 : index
    %c0_2 = arith.constant 0 : index
    %1 = vector.load %arg3[%c0_1, %c0_2] : memref<1x256xf32, #tpu.memory_space<vmem>>, vector<1x256xf32>
    %2 = vector.broadcast %1 : vector<1x256xf32> to vector<128x256xf32>
    %3 = arith.addf %0, %2 : vector<128x256xf32>
    %cst = arith.constant 0.000000e+00 : f32
    %4 = vector.broadcast %cst : f32 to vector<128x256xf32>
    %5 = arith.cmpf oge, %3, %4 : vector<128x256xf32>
    %cst_3 = arith.constant 2.000000e-01 : f32
    %6 = vector.broadcast %cst_3 : f32 to vector<128x256xf32>
    %7 = arith.mulf %6, %3 : vector<128x256xf32>
    %8 = arith.select %5, %3, %7 : vector<128x256xi1>, vector<128x256xf32>
    %9 = arith.truncf %8 : vector<128x256xf32> to vector<128x256xbf16>
    %c0_4 = arith.constant 0 : index
    %c0_5 = arith.constant 0 : index
    %10 = vector.load %arg2[%c0_4, %c0_5] : memref<256x256xbf16, #tpu.memory_space<vmem>>, vector<256x256xbf16>
    %cst_6 = arith.constant dense<0.000000e+00> : vector<128x256xf32>
    %11 = tpu.matmul %9, %10, %cst_6 {dimension_numbers = #tpu.dot_dimension_numbers<[1], [0], [0], [1], [0, 0, 1, 1], [], []>} : vector<128x256xbf16>, vector<256x256xbf16>, vector<128x256xf32> -> vector<128x256xf32>
    %c0_7 = arith.constant 0 : index
    %c0_8 = arith.constant 0 : index
    %12 = vector.load %arg5[%c0_7, %c0_8] : memref<128x256xf32, #tpu.memory_space<vmem>>, vector<128x256xf32>
    tpu.vector_store %arg5[%c0_7, %c0_8], %11 {strides = array<i32>} : memref<128x256xf32, #tpu.memory_space<vmem>>, vector<128x256xf32>,
    return
  }
  func.func @transform_0(%arg0: i32) -> (i32, i32) {
    %c0_i32 = arith.constant 0 : i32
    %c0_i32_0 = arith.constant 0 : i32
    return %arg0, %c0_i32 : i32, i32
  }
  func.func @transform_1(%arg0: i32) -> (i32, i32) {
    %c0_i32 = arith.constant 0 : i32
    %c0_i32_0 = arith.constant 0 : i32
    %c0_i32_1 = arith.constant 0 : i32
    return %c0_i32, %c0_i32_0 : i32, i32
  }
  func.func @transform_2(%arg0: i32) -> (i32, i32) {
    %c0_i32 = arith.constant 0 : i32
    %c0_i32_0 = arith.constant 0 : i32
    %c0_i32_1 = arith.constant 0 : i32
    return %c0_i32, %c0_i32_0 : i32, i32
  }
  func.func @transform_3(%arg0: i32) -> (i32, i32) {
    %c0_i32 = arith.constant 0 : i32
    %c0_i32_0 = arith.constant 0 : i32
    %c0_i32_1 = arith.constant 0 : i32
    return %c0_i32, %c0_i32_0 : i32, i32
  }
  func.func @transform_4(%arg0: i32) -> (i32, i32) {
    %c0_i32 = arith.constant 0 : i32
    %c0_i32_0 = arith.constant 0 : i32
    return %arg0, %c0_i32 : i32, i32
  }
}

module attributes {stable_mosaic.version = 11 : i64} {
  func.func @_fused_mm_kernel(%arg0: i32, %arg1: memref<128x128xf32, #tpu.memory_space<vmem>>, %arg2: memref<128x256xbf16, #tpu.memory_space<vmem>>, %arg3: memref<1x128xf32, #tpu.memory_space<vmem>>, %arg4: memref<1x256xf32, #tpu.memory_space<vmem>>, %arg5: memref<128x256xf32, #tpu.memory_space<vmem>>) attributes {dimension_semantics = [#tpu.dimension_semantics<parallel>], iteration_bounds = array<i64: 1>, scalar_prefetch = 0 : i64, scratch_operands = 0 : i64, tpu.core_type = #tpu.core_type<tc>, window_params = [{transform_indices = @transform_0, window_bounds = array<i64: 128, 128>}, {pipeline_mode = #tpu.pipeline_mode<synchronous>, transform_indices = @transform_1, window_bounds = array<i64: 128, 256>}, {pipeline_mode = #tpu.pipeline_mode<synchronous>, transform_indices = @transform_2, window_bounds = array<i64: 1, 128>}, {pipeline_mode = #tpu.pipeline_mode<synchronous>, transform_indices = @transform_3, window_bounds = array<i64: 1, 256>}, {transform_indices = @transform_4, window_bounds = array<i64: 128, 256>}]} {
    %c0 = arith.constant 0 : index
    %c0_0 = arith.constant 0 : index
    %0 = vector.load %arg1[%c0, %c0_0] : memref<128x128xf32, #tpu.memory_space<vmem>>, vector<128x128xf32>
    %c0_1 = arith.constant 0 : index
    %c0_2 = arith.constant 0 : index
    %1 = vector.load %arg3[%c0_1, %c0_2] : memref<1x128xf32, #tpu.memory_space<vmem>>, vector<1x128xf32>
    %2 = vector.broadcast %1 : vector<1x128xf32> to vector<128x128xf32>
    %3 = arith.addf %0, %2 : vector<128x128xf32>
    %cst = arith.constant 0.000000e+00 : f32
    %4 = vector.broadcast %cst : f32 to vector<128x128xf32>
    %5 = arith.cmpf oge, %3, %4 : vector<128x128xf32>
    %cst_3 = arith.constant 2.000000e-01 : f32
    %6 = vector.broadcast %cst_3 : f32 to vector<128x128xf32>
    %7 = arith.mulf %6, %3 : vector<128x128xf32>
    %8 = arith.select %5, %3, %7 : vector<128x128xi1>, vector<128x128xf32>
    %9 = arith.truncf %8 : vector<128x128xf32> to vector<128x128xbf16>
    %c0_4 = arith.constant 0 : index
    %c0_5 = arith.constant 0 : index
    %10 = vector.load %arg2[%c0_4, %c0_5] : memref<128x256xbf16, #tpu.memory_space<vmem>>, vector<128x256xbf16>
    %cst_6 = arith.constant dense<0.000000e+00> : vector<128x256xf32>
    %11 = tpu.matmul %9, %10, %cst_6 {dimension_numbers = #tpu.dot_dimension_numbers<[1], [0], [0], [1], [0, 0, 1, 1], [], []>} : vector<128x128xbf16>, vector<128x256xbf16>, vector<128x256xf32> -> vector<128x256xf32>
    %c0_7 = arith.constant 0 : index
    %c0_8 = arith.constant 0 : index
    %12 = vector.load %arg4[%c0_7, %c0_8] : memref<1x256xf32, #tpu.memory_space<vmem>>, vector<1x256xf32>
    %13 = vector.broadcast %12 : vector<1x256xf32> to vector<128x256xf32>
    %14 = arith.addf %11, %13 : vector<128x256xf32>
    %c0_9 = arith.constant 0 : index
    %c0_10 = arith.constant 0 : index
    %15 = vector.load %arg5[%c0_9, %c0_10] : memref<128x256xf32, #tpu.memory_space<vmem>>, vector<128x256xf32>
    tpu.vector_store %arg5[%c0_9, %c0_10], %14 {strides = array<i32>} : memref<128x256xf32, #tpu.memory_space<vmem>>, vector<128x256xf32>,
    return
  }
  func.func @transform_0(%arg0: i32) -> (i32, i32) {
    %c0_i32 = arith.constant 0 : i32
    %c0_i32_0 = arith.constant 0 : i32
    return %arg0, %c0_i32 : i32, i32
  }
  func.func @transform_1(%arg0: i32) -> (i32, i32) {
    %c0_i32 = arith.constant 0 : i32
    %c0_i32_0 = arith.constant 0 : i32
    %c0_i32_1 = arith.constant 0 : i32
    return %c0_i32, %c0_i32_0 : i32, i32
  }
  func.func @transform_2(%arg0: i32) -> (i32, i32) {
    %c0_i32 = arith.constant 0 : i32
    %c0_i32_0 = arith.constant 0 : i32
    %c0_i32_1 = arith.constant 0 : i32
    return %c0_i32, %c0_i32_0 : i32, i32
  }
  func.func @transform_3(%arg0: i32) -> (i32, i32) {
    %c0_i32 = arith.constant 0 : i32
    %c0_i32_0 = arith.constant 0 : i32
    %c0_i32_1 = arith.constant 0 : i32
    return %c0_i32, %c0_i32_0 : i32, i32
  }
  func.func @transform_4(%arg0: i32) -> (i32, i32) {
    %c0_i32 = arith.constant 0 : i32
    %c0_i32_0 = arith.constant 0 : i32
    return %arg0, %c0_i32 : i32, i32
  }
}

</mosaic_0001>

<llo_original>
// kernel: generator_forward.8
$region0: #{generator_forward.8}
  #allocation0 [shape = 'u32[]', space=smem, size = 0x4, offset = 0x4, fixed_abs, tag = 'smem constant byte address 0x4 - core index']
  #allocation1 [shape = 'u32[72,128]{1,0:T(1,128)}', space=vmem, size = 0x9000, scoped, tag = 'internal scratch']
  %s0 = inlined_call_operand.vmem [shape: f32[8,128], index: 0, kind: input, shape index: {}]
  %s1 = inlined_call_operand.hbm [shape: bf16[128,512], index: 1, kind: input, shape index: {}]
  %s2 = inlined_call_operand.vmem [shape: f32[1,128], index: 2, kind: input, shape index: {}]
  %s3 = inlined_call_operand.hbm [shape: f32[1,512], index: 3, kind: input, shape index: {}]
  %s4 = inlined_call_operand.vmem [shape: f32[8,512], index: 4, kind: output, shape index: {}]
  %s5 = sld [smem:[#allocation0]]
  $region34: #{generator_forward.8} parent=0
    _
  %s7 = ssub.s32 1, %s5
  %s8 = scalar_select 0, %s7, %s5
  $region1: #{generator_forward.8} parent=0
    #allocation2 [shape = 'u8[131072]{0}', space=vmem, size = 0x20000, scoped, tag = 'input window, operand 1, single buffered']
    #allocation3 [shape = 's32[1]{0}', space=sflag, size = 0x4, scoped, tag = 'scoped memory for generator_forward.8']
    #allocation4 [shape = 'u8[2048]{0}', space=vmem, size = 0x800, scoped, tag = 'input window, operand 3, single buffered']
    #allocation5 [shape = 's32[1]{0}', space=sflag, size = 0x4, scoped, tag = 'scoped memory for generator_forward.8']
    %9 = vsyncpa [#allocation3], 0
    %10 = vsyncpa [#allocation5], 0
    // Predicated region
    $region2: #{generator_forward.8} parent=1 // pred_check
      _
    $region3: #{generator_forward.8} parent=1 // pred_check_branch
      %12 = sbr.rel (0) target = $region5
    $region4: #{generator_forward.8} parent=1 // pred_region
      _
    $region5: #{generator_forward.8} parent=1 // pred_fallthru
      _
    // Predicated region
    $region6: #{generator_forward.8} parent=1 // pred_check
      _
    $region7: #{generator_forward.8} parent=1 // pred_check_branch
      %14 = sbr.rel (0) target = $region9
    $region8: #{generator_forward.8} parent=1 // pred_region
      %16 = vsyncadd [#allocation3], 0
      %s17 = sshll.u32 %s1, 4
      %s18 = int_to_ptr.hbm [resolvable:$true] %s17
      %s19 = sshll.u32 [#allocation2], 4
      %s20 = int_to_ptr.vmem [resolvable:$true] %s19
      %25 = dma.hbm_to_vmem [thread:$0]  %s18, 4096, %s20, [#allocation3], 256, 256, 16
    $region9: #{generator_forward.8} parent=1 // pred_fallthru
      _
    // Predicated region
    $region10: #{generator_forward.8} parent=1 // pred_check
      _
    $region11: #{generator_forward.8} parent=1 // pred_check_branch
      %27 = sbr.rel (0) target = $region13
    $region12: #{generator_forward.8} parent=1 // pred_region
      _
    $region13: #{generator_forward.8} parent=1 // pred_fallthru
      _
    // Predicated region
    $region14: #{generator_forward.8} parent=1 // pred_check
      _
    $region15: #{generator_forward.8} parent=1 // pred_check_branch
      %29 = sbr.rel (0) target = $region17
    $region16: #{generator_forward.8} parent=1 // pred_region
      %31 = vsyncadd [#allocation5], 0
      %s33 = sshll.u32 %s3, 4
      %s34 = int_to_ptr.hbm [resolvable:$true] %s33
      %s35 = sshll.u32 [#allocation4], 4
      %s36 = int_to_ptr.vmem [resolvable:$true] %s35
      %38 = dma.hbm_to_vmem [thread:$0]  %s34, 64, %s36, [#allocation5]
    $region17: #{generator_forward.8} parent=1 // pred_fallthru
      _
    // Predicated region
    $region18: #{generator_forward.8} parent=1 // pred_check
      _
    $region19: #{generator_forward.8} parent=1 // pred_check_branch
      %40 = sbr.rel (0) target = $region21
    $region20: #{generator_forward.8} parent=1 // pred_region
      %42 = dma.done [#allocation3], 4096
    $region21: #{generator_forward.8} parent=1 // pred_fallthru
      _
    // Predicated region
    $region22: #{generator_forward.8} parent=1 // pred_check
      _
    $region23: #{generator_forward.8} parent=1 // pred_check_branch
      %44 = sbr.rel (0) target = $region25
    $region24: #{generator_forward.8} parent=1 // pred_region
      %46 = dma.done [#allocation5], 64
    $region25: #{generator_forward.8} parent=1 // pred_fallthru
      _
    %v47 = vld [vmem:[%s0] sm:$0xff]
    %v48 = vpack.c.bf16 %v47, %v47
    %v49 = vld [vmem:[#allocation2] sm:$0xff]
    %v50 = vld [vmem:[#allocation2 + $0x8] sm:$0xff]
    %v51 = vld [vmem:[#allocation2 + $0x10] sm:$0xff]
    %v52 = vld [vmem:[#allocation2 + $0x18] sm:$0xff]
    %v53 = vld [vmem:[#allocation2 + $0x20] sm:$0xff]
    %v54 = vld [vmem:[#allocation2 + $0x28] sm:$0xff]
    %v55 = vld [vmem:[#allocation2 + $0x30] sm:$0xff]
    %v56 = vld [vmem:[#allocation2 + $0x38] sm:$0xff]
    %v57 = vld [vmem:[#allocation2 + $0x40] sm:$0xff]
    %v58 = vld [vmem:[#allocation2 + $0x48] sm:$0xff]
    %v59 = vld [vmem:[#allocation2 + $0x50] sm:$0xff]
    %v60 = vld [vmem:[#allocation2 + $0x58] sm:$0xff]
    %v61 = vld [vmem:[#allocation2 + $0x60] sm:$0xff]
    %v62 = vld [vmem:[#allocation2 + $0x68] sm:$0xff]
    %v63 = vld [vmem:[#allocation2 + $0x70] sm:$0xff]
    %v64 = vld [vmem:[#allocation2 + $0x78] sm:$0xff]
    %v65 = vld [vmem:[#allocation2 + $0x80] sm:$0xff]
    %v66 = vld [vmem:[#allocation2 + $0x88] sm:$0xff]
    %v67 = vld [vmem:[#allocation2 + $0x90] sm:$0xff]
    %v68 = vld [vmem:[#allocation2 + $0x98] sm:$0xff]
    %v69 = vld [vmem:[#allocation2 + $0xa0] sm:$0xff]
    %v70 = vld [vmem:[#allocation2 + $0xa8] sm:$0xff]
    %v71 = vld [vmem:[#allocation2 + $0xb0] sm:$0xff]
    %v72 = vld [vmem:[#allocation2 + $0xb8] sm:$0xff]
    %v73 = vld [vmem:[#allocation2 + $0xc0] sm:$0xff]
    %v74 = vld [vmem:[#allocation2 + $0xc8] sm:$0xff]
    %v75 = vld [vmem:[#allocation2 + $0xd0] sm:$0xff]
    %v76 = vld [vmem:[#allocation2 + $0xd8] sm:$0xff]
    %v77 = vld [vmem:[#allocation2 + $0xe0] sm:$0xff]
    %v78 = vld [vmem:[#allocation2 + $0xe8] sm:$0xff]
    %v79 = vld [vmem:[#allocation2 + $0xf0] sm:$0xff]
    %v80 = vld [vmem:[#allocation2 + $0xf8] sm:$0xff]
    %v81 = vld [vmem:[#allocation4] sm:$0xf]
    %v83 = vperm.slane %v81, 0
    %v84 = vperm.slane %v81, 1
    %v85 = vperm.slane %v81, 2
    %v86 = vperm.slane %v81, 3
    %v123 = vunpack.c.l.b16 %v49
    %v124 = vunpack.c.h.b16 %v49
    %v125 = vunpack.c.l.b16 %v50
    %v126 = vunpack.c.h.b16 %v50
    %v127 = vunpack.c.l.b16 %v51
    %v128 = vunpack.c.h.b16 %v51
    %v129 = vunpack.c.l.b16 %v52
    %v130 = vunpack.c.h.b16 %v52
    %v131 = vunpack.c.l.b16 %v53
    %v132 = vunpack.c.h.b16 %v53
    %v133 = vunpack.c.l.b16 %v54
    %v134 = vunpack.c.h.b16 %v54
    %v135 = vunpack.c.l.b16 %v55
    %v136 = vunpack.c.h.b16 %v55
    %v137 = vunpack.c.l.b16 %v56
    %v138 = vunpack.c.h.b16 %v56
    %v139 = vunpack.c.l.b16 %v57
    %v140 = vunpack.c.h.b16 %v57
    %v141 = vunpack.c.l.b16 %v58
    %v142 = vunpack.c.h.b16 %v58
    %v143 = vunpack.c.l.b16 %v59
    %v144 = vunpack.c.h.b16 %v59
    %v145 = vunpack.c.l.b16 %v60
    %v146 = vunpack.c.h.b16 %v60
    %v147 = vunpack.c.l.b16 %v61
    %v148 = vunpack.c.h.b16 %v61
    %v149 = vunpack.c.l.b16 %v62
    %v150 = vunpack.c.h.b16 %v62
    %v151 = vunpack.c.l.b16 %v63
    %v152 = vunpack.c.h.b16 %v63
    %v153 = vunpack.c.l.b16 %v64
    %v154 = vunpack.c.h.b16 %v64
    %v155 = vunpack.c.l.b16 %v65
    %v156 = vunpack.c.h.b16 %v65
    %v157 = vunpack.c.l.b16 %v66
    %v158 = vunpack.c.h.b16 %v66
    %v159 = vunpack.c.l.b16 %v67
    %v160 = vunpack.c.h.b16 %v67
    %v161 = vunpack.c.l.b16 %v68
    %v162 = vunpack.c.h.b16 %v68
    %v163 = vunpack.c.l.b16 %v69
    %v164 = vunpack.c.h.b16 %v69
    %v165 = vunpack.c.l.b16 %v70
    %v166 = vunpack.c.h.b16 %v70
    %v167 = vunpack.c.l.b16 %v71
    %v168 = vunpack.c.h.b16 %v71
    %v169 = vunpack.c.l.b16 %v72
    %v170 = vunpack.c.h.b16 %v72
    %v171 = vunpack.c.l.b16 %v73
    %v172 = vunpack.c.h.b16 %v73
    %v173 = vunpack.c.l.b16 %v74
    %v174 = vunpack.c.h.b16 %v74
    %v175 = vunpack.c.l.b16 %v75
    %v176 = vunpack.c.h.b16 %v75
    %v177 = vunpack.c.l.b16 %v76
    %v178 = vunpack.c.h.b16 %v76
    %v179 = vunpack.c.l.b16 %v77
    %v180 = vunpack.c.h.b16 %v77
    %v181 = vunpack.c.l.b16 %v78
    %v182 = vunpack.c.h.b16 %v78
    %v183 = vunpack.c.l.b16 %v79
    %v184 = vunpack.c.h.b16 %v79
    %v185 = vunpack.c.l.b16 %v80
    %v186 = vunpack.c.h.b16 %v80
    %v187 = vpack.c.b16 %v127, %v123
    %v188 = vpack.c.b16 %v128, %v124
    %v189 = vpack.c.b16 %v129, %v125
    %v190 = vpack.c.b16 %v130, %v126
    %v191 = vpack.c.b16 %v135, %v131
    %v192 = vpack.c.b16 %v136, %v132
    %v193 = vpack.c.b16 %v137, %v133
    %v194 = vpack.c.b16 %v138, %v134
    %v195 = vpack.c.b16 %v143, %v139
    %v196 = vpack.c.b16 %v144, %v140
    %v197 = vpack.c.b16 %v145, %v141
    %v198 = vpack.c.b16 %v146, %v142
    %v199 = vpack.c.b16 %v151, %v147
    %v200 = vpack.c.b16 %v152, %v148
    %v201 = vpack.c.b16 %v153, %v149
    %v202 = vpack.c.b16 %v154, %v150
    %v203 = vpack.c.b16 %v159, %v155
    %v204 = vpack.c.b16 %v160, %v156
    %v205 = vpack.c.b16 %v161, %v157
    %v206 = vpack.c.b16 %v162, %v158
    %v207 = vpack.c.b16 %v167, %v163
    %v208 = vpack.c.b16 %v168, %v164
    %v209 = vpack.c.b16 %v169, %v165
    %v210 = vpack.c.b16 %v170, %v166
    %v211 = vpack.c.b16 %v175, %v171
    %v212 = vpack.c.b16 %v176, %v172
    %v213 = vpack.c.b16 %v177, %v173
    %v214 = vpack.c.b16 %v178, %v174
    %v215 = vpack.c.b16 %v183, %v179
    %v216 = vpack.c.b16 %v184, %v180
    %v217 = vpack.c.b16 %v185, %v181
    %v218 = vpack.c.b16 %v186, %v182
    %251 = vmatpush.bf16.msra.mxu0 %v215
    %252 = vmatpush.bf16.msra.mxu0 %v211
    %253 = vmatpush.bf16.msra.mxu0 %v207
    %254 = vmatpush.bf16.msra.mxu0 %v203
    %255 = vmatpush.bf16.msra.mxu0 %v199
    %256 = vmatpush.bf16.msra.mxu0 %v195
    %257 = vmatpush.bf16.msra.mxu0 %v191
    %258 = vmatpush.bf16.msra.mxu0 %v187
    %259 = vmatmul.bf16.gmra.mxu0 %v48
    %v260 = vpop.f32.mrf.mxu0
    %v261 = vadd.f32 %v83, %v260
    %v262 = vpop.f32.mrf.mxu0
    %263 = vdwg.mxu0
    %264 = vmatpush.bf16.msra.mxu0 %v216
    %265 = vmatpush.bf16.msra.mxu0 %v212
    %266 = vmatpush.bf16.msra.mxu0 %v208
    %267 = vmatpush.bf16.msra.mxu0 %v204
    %268 = vmatpush.bf16.msra.mxu0 %v200
    %269 = vmatpush.bf16.msra.mxu0 %v196
    %270 = vmatpush.bf16.msra.mxu0 %v192
    %271 = vmatpush.bf16.msra.mxu0 %v188
    %272 = vmatmul.bf16.gmra.mxu0 %v48
    %v273 = vpop.f32.mrf.mxu0
    %v274 = vadd.f32 %v84, %v273
    %v275 = vpop.f32.mrf.mxu0
    %276 = vdwg.mxu0
    %277 = vmatpush.bf16.msra.mxu0 %v217
    %278 = vmatpush.bf16.msra.mxu0 %v213
    %279 = vmatpush.bf16.msra.mxu0 %v209
    %280 = vmatpush.bf16.msra.mxu0 %v205
    %281 = vmatpush.bf16.msra.mxu0 %v201
    %282 = vmatpush.bf16.msra.mxu0 %v197
    %283 = vmatpush.bf16.msra.mxu0 %v193
    %284 = vmatpush.bf16.msra.mxu0 %v189
    %285 = vmatmul.bf16.gmra.mxu0 %v48
    %v286 = vpop.f32.mrf.mxu0
    %v287 = vadd.f32 %v85, %v286
    %v288 = vpop.f32.mrf.mxu0
    %289 = vdwg.mxu0
    %290 = vmatpush.bf16.msra.mxu0 %v218
    %291 = vmatpush.bf16.msra.mxu0 %v214
    %292 = vmatpush.bf16.msra.mxu0 %v210
    %293 = vmatpush.bf16.msra.mxu0 %v206
    %294 = vmatpush.bf16.msra.mxu0 %v202
    %295 = vmatpush.bf16.msra.mxu0 %v198
    %296 = vmatpush.bf16.msra.mxu0 %v194
    %297 = vmatpush.bf16.msra.mxu0 %v190
    %298 = vmatmul.bf16.gmra.mxu0 %v48
    %v299 = vpop.f32.mrf.mxu0
    %v300 = vadd.f32 %v86, %v299
    %v301 = vpop.f32.mrf.mxu0
    %302 = vdwg.mxu0
    %303 = vst [vmem:[%s4] sm:$0xff] %v261
    %304 = vst [vmem:[%s4 + $0x8] sm:$0xff] %v274
    %305 = vst [vmem:[%s4 + $0x10] sm:$0xff] %v287
    %306 = vst [vmem:[%s4 + $0x18] sm:$0xff] %v300
    // Predicated region
    $region26: #{generator_forward.8} parent=1 // pred_check
      _
    $region27: #{generator_forward.8} parent=1 // pred_check_branch
      %308 = sbr.rel (0) target = $region29
    $region28: #{generator_forward.8} parent=1 // pred_region
      _
    $region29: #{generator_forward.8} parent=1 // pred_fallthru
      _
    // Predicated region
    $region30: #{generator_forward.8} parent=1 // pred_check
      _
    $region31: #{generator_forward.8} parent=1 // pred_check_branch
      %310 = sbr.rel (0) target = $region33
    $region32: #{generator_forward.8} parent=1 // pred_region
      _
    $region33: #{generator_forward.8} parent=1 // pred_fallthru
      _
    %311 = vsyncpa [#allocation3], 1
    %312 = vsyncpa [#allocation5], 1

// kernel: tile.33
$region0: #{tile.33}
  #allocation2 [shape = 's32[1]{0}', space=sflag, size = 0x4, scoped, tag = 'scoped memory for tile.33']
  %s0 = inlined_call_operand.hbm [shape: f32[64], index: 0, kind: input, shape index: {}]
  %s1 = inlined_call_operand.vmem [shape: f32[4,64], index: 1, kind: output, shape index: {}]
  $region1: #{tile.33} parent=0
    #allocation0 [shape = 'u8[512]{0}', space=vmem, size = 0x400, scoped, tag = 'operand span for operand 0']
    #allocation1 [shape = 's32[1]{0}', space=sflag, size = 0x4, scoped, tag = 'scoped memory for tile.33']
    %2 = vsyncpa [#allocation1], 0
    // Predicated region
    $region2: #{tile.33} parent=1 // pred_check
      _
    $region3: #{tile.33} parent=1 // pred_check_branch
      %4 = sbr.rel (0) target = $region5
    $region4: #{tile.33} parent=1 // pred_region
      %6 = vsyncadd [#allocation1], 0
      %s8 = sshll.u32 %s0, 4
      %s9 = int_to_ptr.hbm [resolvable:$true] %s8
      %s10 = sshll.u32 [#allocation0], 4
      %s11 = int_to_ptr.vmem [resolvable:$true] %s10
      %13 = dma.hbm_to_vmem [thread:$0]  %s9, 16, %s11, [#allocation1]
    $region5: #{tile.33} parent=1 // pred_fallthru
      _
    // Predicated region
    $region6: #{tile.33} parent=1 // pred_check
      _
    $region7: #{tile.33} parent=1 // pred_check_branch
      %15 = sbr.rel (0) target = $region9
    $region8: #{tile.33} parent=1 // pred_region
      %17 = dma.done [#allocation1], 16
    $region9: #{tile.33} parent=1 // pred_fallthru
      _
    %v18 = vld [vmem:[#allocation0] ss:$0 sm:$0xff]
    %19 = vst [vmem:[%s1] sm:$0xf] %v18
    %20 = vsyncpa [#allocation1], 1

// kernel: tile.34
$region0: #{tile.34}
  %s0 = inlined_call_operand.vmem [shape: f32[4,64], index: 0, kind: input, shape index: {}]
  %s1 = inlined_call_operand.vmem [shape: f32[1,256], index: 1, kind: output, shape index: {}]
  $region1: #{tile.34} parent=0
    #allocation0 [shape = 'u8[8192]{0}', space=vmem, size = 0x2000, scoped, tag = 'scoped mem for output reshape']
    #allocation1 [shape = 'u8[4096]{0}', space=vmem, size = 0x1000, scoped, tag = 'scoped mem for input reshape']
    %s3 = ssub.s32 16, 1
    %v4 = vld [vmem:[%s0] sm:%s3]
    %5 = vst [vmem:[#allocation1] sm:%s3] %v4
    %s6 = smov 3
    %v7 = vld [vmem:[#allocation1] ss:$2 sm:%s6]
    %vm8 = vcmask 523264
    %9 = vst.msk [vmem:[#allocation0] ss:$8 sm:$0x3] %vm8, %v7
    %s10 = scalar_lea.vmem [#allocation1], 1
    %s11 = smov 3
    %v12 = vld [vmem:[%s10] ss:$2 sm:%s11]
    %13 = vrot.lane.b32.xlu0 %v12, 64
    %v14 = vpop.permute.xlu0 %13
    %vm15 = vcmask 1048064
    %16 = vst.msk [vmem:[#allocation0] ss:$8 sm:$0x3] %vm15, %v14
    %s18 = ssub.s32 2, 1
    %v19 = vld [vmem:[#allocation0] sm:%s18]
    %s21 = ssub.s32 2, 1
    %22 = vst [vmem:[%s1] sm:%s21] %v19
    %s23 = scalar_lea.vmem [#allocation0], 8
    %v24 = vld [vmem:[%s23] sm:%s18]
    %s26 = ssub.s32 2, 1
    %s27 = scalar_lea.vmem %s1, 1
    %28 = vst [vmem:[%s27] sm:%s26] %v24

// kernel: generator_forward.9
$region0: #{generator_forward.9}
  #allocation0 [shape = 'u32[]', space=smem, size = 0x4, offset = 0x4, fixed_abs, tag = 'smem constant byte address 0x4 - core index']
  #allocation1 [shape = 'u32[72,128]{1,0:T(1,128)}', space=vmem, size = 0x9000, scoped, tag = 'internal scratch']
  %s0 = inlined_call_operand.vmem [shape: f32[8,256], index: 0, kind: input, shape index: {}]
  %s1 = inlined_call_operand.hbm [shape: bf16[256,2048], index: 1, kind: input, shape index: {}]
  %s2 = inlined_call_operand.vmem [shape: f32[1,256], index: 2, kind: input, shape index: {}]
  %s3 = inlined_call_operand.vmem [shape: f32[1,2048], index: 3, kind: input, shape index: {}]
  %s4 = inlined_call_operand.vmem [shape: f32[8,2048], index: 4, kind: output, shape index: {}]
  %s5 = sld [smem:[#allocation0]]
  $region30: #{generator_forward.9} parent=0
    _
  %s7 = ssub.s32 1, %s5
  %s8 = scalar_select 0, %s7, %s5
  $region1: #{generator_forward.9} parent=0
    #allocation2 [shape = 'u8[1048576]{0}', space=vmem, size = 0x100000, scoped, tag = 'input window, operand 1, single buffered']
    #allocation3 [shape = 's32[1]{0}', space=sflag, size = 0x4, scoped, tag = 'scoped memory for generator_forward.9']
    %9 = vsyncpa [#allocation3], 0
    // Predicated region
    $region2: #{generator_forward.9} parent=1 // pred_check
      _
    $region3: #{generator_forward.9} parent=1 // pred_check_branch
      %11 = sbr.rel (0) target = $region5
    $region4: #{generator_forward.9} parent=1 // pred_region
      _
    $region5: #{generator_forward.9} parent=1 // pred_fallthru
      _
    // Predicated region
    $region6: #{generator_forward.9} parent=1 // pred_check
      _
    $region7: #{generator_forward.9} parent=1 // pred_check_branch
      %13 = sbr.rel (0) target = $region9
    $region8: #{generator_forward.9} parent=1 // pred_region
      %15 = vsyncadd [#allocation3], 0
      %s16 = sshll.u32 %s1, 4
      %s17 = int_to_ptr.hbm [resolvable:$true] %s16
      %s18 = sshll.u32 [#allocation2], 4
      %s19 = int_to_ptr.vmem [resolvable:$true] %s18
      %24 = dma.hbm_to_vmem [thread:$0]  %s17, 32768, %s19, [#allocation3], 1024, 1024, 64
    $region9: #{generator_forward.9} parent=1 // pred_fallthru
      _
    // Predicated region
    $region10: #{generator_forward.9} parent=1 // pred_check
      _
    $region11: #{generator_forward.9} parent=1 // pred_check_branch
      %26 = sbr.rel (0) target = $region13
    $region12: #{generator_forward.9} parent=1 // pred_region
      _
    $region13: #{generator_forward.9} parent=1 // pred_fallthru
      _
    // Predicated region
    $region14: #{generator_forward.9} parent=1 // pred_check
      _
    $region15: #{generator_forward.9} parent=1 // pred_check_branch
      %28 = sbr.rel (0) target = $region17
    $region16: #{generator_forward.9} parent=1 // pred_region
      _
    $region17: #{generator_forward.9} parent=1 // pred_fallthru
      _
    // Predicated region
    $region18: #{generator_forward.9} parent=1 // pred_check
      _
    $region19: #{generator_forward.9} parent=1 // pred_check_branch
      %30 = sbr.rel (0) target = $region21
    $region20: #{generator_forward.9} parent=1 // pred_region
      %32 = dma.done [#allocation3], 32768
    $region21: #{generator_forward.9} parent=1 // pred_fallthru
      _
    %v33 = vld [vmem:[%s0] sm:$0xff]
    %v34 = vld [vmem:[%s0 + $0x8] sm:$0xff]
    %v35 = vpack.c.bf16 %v33, %v33
    %v36 = vpack.c.bf16 %v34, %v34
    %v37 = vld [vmem:[#allocation2] sm:$0xff]
    %v38 = vld [vmem:[#allocation2 + $0x8] sm:$0xff]
    %v39 = vld [vmem:[#allocation2 + $0x10] sm:$0xff]
    %v40 = vld [vmem:[#allocation2 + $0x18] sm:$0xff]
    %v41 = vld [vmem:[#allocation2 + $0x20] sm:$0xff]
    %v42 = vld [vmem:[#allocation2 + $0x28] sm:$0xff]
    %v43 = vld [vmem:[#allocation2 + $0x30] sm:$0xff]
    %v44 = vld [vmem:[#allocation2 + $0x38] sm:$0xff]
    %v45 = vld [vmem:[#allocation2 + $0x40] sm:$0xff]
    %v46 = vld [vmem:[#allocation2 + $0x48] sm:$0xff]
    %v47 = vld [vmem:[#allocation2 + $0x50] sm:$0xff]
    %v48 = vld [vmem:[#allocation2 + $0x58] sm:$0xff]
    %v49 = vld [vmem:[#allocation2 + $0x60] sm:$0xff]
    %v50 = vld [vmem:[#allocation2 + $0x68] sm:$0xff]
    %v51 = vld [vmem:[#allocation2 + $0x70] sm:$0xff]
    %v52 = vld [vmem:[#allocation2 + $0x78] sm:$0xff]
    %v53 = vld [vmem:[#allocation2 + $0x80] sm:$0xff]
    %v54 = vld [vmem:[#allocation2 + $0x88] sm:$0xff]
    %v55 = vld [vmem:[#allocation2 + $0x90] sm:$0xff]
    %v56 = vld [vmem:[#allocation2 + $0x98] sm:$0xff]
    %v57 = vld [vmem:[#allocation2 + $0xa0] sm:$0xff]
    %v58 = vld [vmem:[#allocation2 + $0xa8] sm:$0xff]
    %v59 = vld [vmem:[#allocation2 + $0xb0] sm:$0xff]
    %v60 = vld [vmem:[#allocation2 + $0xb8] sm:$0xff]
    %v61 = vld [vmem:[#allocation2 + $0xc0] sm:$0xff]
    %v62 = vld [vmem:[#allocation2 + $0xc8] sm:$0xff]
    %v63 = vld [vmem:[#allocation2 + $0xd0] sm:$0xff]
    %v64 = vld [vmem:[#allocation2 + $0xd8] sm:$0xff]
    %v65 = vld [vmem:[#allocation2 + $0xe0] sm:$0xff]
    %v66 = vld [vmem:[#allocation2 + $0xe8] sm:$0xff]
    %v67 = vld [vmem:[#allocation2 + $0xf0] sm:$0xff]
    %v68 = vld [vmem:[#allocation2 + $0xf8] sm:$0xff]
    %v69 = vld [vmem:[#allocation2 + $0x100] sm:$0xff]
    %v70 = vld [vmem:[#allocation2 + $0x108] sm:$0xff]
    %v71 = vld [vmem:[#allocation2 + $0x110] sm:$0xff]
    %v72 = vld [vmem:[#allocation2 + $0x118] sm:$0xff]
    %v73 = vld [vmem:[#allocation2 + $0x120] sm:$0xff]
    %v74 = vld [vmem:[#allocation2 + $0x128] sm:$0xff]
    %v75 = vld [vmem:[#allocation2 + $0x130] sm:$0xff]
    %v76 = vld [vmem:[#allocation2 + $0x138] sm:$0xff]
    %v77 = vld [vmem:[#allocation2 + $0x140] sm:$0xff]
    %v78 = vld [vmem:[#allocation2 + $0x148] sm:$0xff]
    %v79 = vld [vmem:[#allocation2 + $0x150] sm:$0xff]
    %v80 = vld [vmem:[#allocation2 + $0x158] sm:$0xff]
    %v81 = vld [vmem:[#allocation2 + $0x160] sm:$0xff]
    %v82 = vld [vmem:[#allocation2 + $0x168] sm:$0xff]
    %v83 = vld [vmem:[#allocation2 + $0x170] sm:$0xff]
    %v84 = vld [vmem:[#allocation2 + $0x178] sm:$0xff]
    %v85 = vld [vmem:[#allocation2 + $0x180] sm:$0xff]
    %v86 = vld [vmem:[#allocation2 + $0x188] sm:$0xff]
    %v87 = vld [vmem:[#allocation2 + $0x190] sm:$0xff]
    %v88 = vld [vmem:[#allocation2 + $0x198] sm:$0xff]
    %v89 = vld [vmem:[#allocation2 + $0x1a0] sm:$0xff]
    %v90 = vld [vmem:[#allocation2 + $0x1a8] sm:$0xff]
    %v91 = vld [vmem:[#allocation2 + $0x1b0] sm:$0xff]
    %v92 = vld [vmem:[#allocation2 + $0x1b8] sm:$0xff]
    %v93 = vld [vmem:[#allocation2 + $0x1c0] sm:$0xff]
    %v94 = vld [vmem:[#allocation2 + $0x1c8] sm:$0xff]
    %v95 = vld [vmem:[#allocation2 + $0x1d0] sm:$0xff]
    %v96 = vld [vmem:[#allocation2 + $0x1d8] sm:$0xff]
    %v97 = vld [vmem:[#allocation2 + $0x1e0] sm:$0xff]
    %v98 = vld [vmem:[#allocation2 + $0x1e8] sm:$0xff]
    %v99 = vld [vmem:[#allocation2 + $0x1f0] sm:$0xff]
    %v100 = vld [vmem:[#allocation2 + $0x1f8] sm:$0xff]
    %v101 = vld [vmem:[#allocation2 + $0x200] sm:$0xff]
    %v102 = vld [vmem:[#allocation2 + $0x208] sm:$0xff]
    %v103 = vld [vmem:[#allocation2 + $0x210] sm:$0xff]
    %v104 = vld [vmem:[#allocation2 + $0x218] sm:$0xff]
    %v105 = vld [vmem:[#allocation2 + $0x220] sm:$0xff]
    %v106 = vld [vmem:[#allocation2 + $0x228] sm:$0xff]
    %v107 = vld [vmem:[#allocation2 + $0x230] sm:$0xff]
    %v108 = vld [vmem:[#allocation2 + $0x238] sm:$0xff]
    %v109 = vld [vmem:[#allocation2 + $0x240] sm:$0xff]
    %v110 = vld [vmem:[#allocation2 + $0x248] sm:$0xff]
    %v111 = vld [vmem:[#allocation2 + $0x250] sm:$0xff]
    %v112 = vld [vmem:[#allocation2 + $0x258] sm:$0xff]
    %v113 = vld [vmem:[#allocation2 + $0x260] sm:$0xff]
    %v114 = vld [vmem:[#allocation2 + $0x268] sm:$0xff]
    %v115 = vld [vmem:[#allocation2 + $0x270] sm:$0xff]
    %v116 = vld [vmem:[#allocation2 + $0x278] sm:$0xff]
    %v117 = vld [vmem:[#allocation2 + $0x280] sm:$0xff]
    %v118 = vld [vmem:[#allocation2 + $0x288] sm:$0xff]
    %v119 = vld [vmem:[#allocation2 + $0x290] sm:$0xff]
    %v120 = vld [vmem:[#allocation2 + $0x298] sm:$0xff]
    %v121 = vld [vmem:[#allocation2 + $0x2a0] sm:$0xff]
    %v122 = vld [vmem:[#allocation2 + $0x2a8] sm:$0xff]
    %v123 = vld [vmem:[#allocation2 + $0x2b0] sm:$0xff]
    %v124 = vld [vmem:[#allocation2 + $0x2b8] sm:$0xff]
    %v125 = vld [vmem:[#allocation2 + $0x2c0] sm:$0xff]
    %v126 = vld [vmem:[#allocation2 + $0x2c8] sm:$0xff]
    %v127 = vld [vmem:[#allocation2 + $0x2d0] sm:$0xff]
    %v128 = vld [vmem:[#allocation2 + $0x2d8] sm:$0xff]
    %v129 = vld [vmem:[#allocation2 + $0x2e0] sm:$0xff]
    %v130 = vld [vmem:[#allocation2 + $0x2e8] sm:$0xff]
    %v131 = vld [vmem:[#allocation2 + $0x2f0] sm:$0xff]
    %v132 = vld [vmem:[#allocation2 + $0x2f8] sm:$0xff]
    %v133 = vld [vmem:[#allocation2 + $0x300] sm:$0xff]
    %v134 = vld [vmem:[#allocation2 + $0x308] sm:$0xff]
    %v135 = vld [vmem:[#allocation2 + $0x310] sm:$0xff]
    %v136 = vld [vmem:[#allocation2 + $0x318] sm:$0xff]
    %v137 = vld [vmem:[#allocation2 + $0x320] sm:$0xff]
    %v138 = vld [vmem:[#allocation2 + $0x328] sm:$0xff]
    %v139 = vld [vmem:[#allocation2 + $0x330] sm:$0xff]
    %v140 = vld [vmem:[#allocation2 + $0x338] sm:$0xff]
    %v141 = vld [vmem:[#allocation2 + $0x340] sm:$0xff]
    %v142 = vld [vmem:[#allocation2 + $0x348] sm:$0xff]
    %v143 = vld [vmem:[#allocation2 + $0x350] sm:$0xff]
    %v144 = vld [vmem:[#allocation2 + $0x358] sm:$0xff]
    %v145 = vld [vmem:[#allocation2 + $0x360] sm:$0xff]
    %v146 = vld [vmem:[#allocation2 + $0x368] sm:$0xff]
    %v147 = vld [vmem:[#allocation2 + $0x370] sm:$0xff]
    %v148 = vld [vmem:[#allocation2 + $0x378] sm:$0xff]
    %v149 = vld [vmem:[#allocation2 + $0x380] sm:$0xff]
    %v150 = vld [vmem:[#allocation2 + $0x388] sm:$0xff]
    %v151 = vld [vmem:[#allocation2 + $0x390] sm:$0xff]
    %v152 = vld [vmem:[#allocation2 + $0x398] sm:$0xff]
    %v153 = vld [vmem:[#allocation2 + $0x3a0] sm:$0xff]
    %v154 = vld [vmem:[#allocation2 + $0x3a8] sm:$0xff]
    %v155 = vld [vmem:[#allocation2 + $0x3b0] sm:$0xff]
    %v156 = vld [vmem:[#allocation2 + $0x3b8] sm:$0xff]
    %v157 = vld [vmem:[#allocation2 + $0x3c0] sm:$0xff]
    %v158 = vld [vmem:[#allocation2 + $0x3c8] sm:$0xff]
    %v159 = vld [vmem:[#allocation2 + $0x3d0] sm:$0xff]
    %v160 = vld [vmem:[#allocation2 + $0x3d8] sm:$0xff]
    %v161 = vld [vmem:[#allocation2 + $0x3e0] sm:$0xff]
    %v162 = vld [vmem:[#allocation2 + $0x3e8] sm:$0xff]
    %v163 = vld [vmem:[#allocation2 + $0x3f0] sm:$0xff]
    %v164 = vld [vmem:[#allocation2 + $0x3f8] sm:$0xff]
    %v165 = vld [vmem:[#allocation2 + $0x400] sm:$0xff]
    %v166 = vld [vmem:[#allocation2 + $0x408] sm:$0xff]
    %v167 = vld [vmem:[#allocation2 + $0x410] sm:$0xff]
    %v168 = vld [vmem:[#allocation2 + $0x418] sm:$0xff]
    %v169 = vld [vmem:[#allocation2 + $0x420] sm:$0xff]
    %v170 = vld [vmem:[#allocation2 + $0x428] sm:$0xff]
    %v171 = vld [vmem:[#allocation2 + $0x430] sm:$0xff]
    %v172 = vld [vmem:[#allocation2 + $0x438] sm:$0xff]
    %v173 = vld [vmem:[#allocation2 + $0x440] sm:$0xff]
    %v174 = vld [vmem:[#allocation2 + $0x448] sm:$0xff]
    %v175 = vld [vmem:[#allocation2 + $0x450] sm:$0xff]
    %v176 = vld [vmem:[#allocation2 + $0x458] sm:$0xff]
    %v177 = vld [vmem:[#allocation2 + $0x460] sm:$0xff]
    %v178 = vld [vmem:[#allocation2 + $0x468] sm:$0xff]
    %v179 = vld [vmem:[#allocation2 + $0x470] sm:$0xff]
    %v180 = vld [vmem:[#allocation2 + $0x478] sm:$0xff]
    %v181 = vld [vmem:[#allocation2 + $0x480] sm:$0xff]
    %v182 = vld [vmem:[#allocation2 + $0x488] sm:$0xff]
    %v183 = vld [vmem:[#allocation2 + $0x490] sm:$0xff]
    %v184 = vld [vmem:[#allocation2 + $0x498] sm:$0xff]
    %v185 = vld [vmem:[#allocation2 + $0x4a0] sm:$0xff]
    %v186 = vld [vmem:[#allocation2 + $0x4a8] sm:$0xff]
    %v187 = vld [vmem:[#allocation2 + $0x4b0] sm:$0xff]
    %v188 = vld [vmem:[#allocation2 + $0x4b8] sm:$0xff]
    %v189 = vld [vmem:[#allocation2 + $0x4c0] sm:$0xff]
    %v190 = vld [vmem:[#allocation2 + $0x4c8] sm:$0xff]
    %v191 = vld [vmem:[#allocation2 + $0x4d0] sm:$0xff]
    %v192 = vld [vmem:[#allocation2 + $0x4d8] sm:$0xff]
    %v193 = vld [vmem:[#allocation2 + $0x4e0] sm:$0xff]
    %v194 = vld [vmem:[#allocation2 + $0x4e8] sm:$0xff]
    %v195 = vld [vmem:[#allocation2 + $0x4f0] sm:$0xff]
    %v196 = vld [vmem:[#allocation2 + $0x4f8] sm:$0xff]
    %v197 = vld [vmem:[#allocation2 + $0x500] sm:$0xff]
    %v198 = vld [vmem:[#allocation2 + $0x508] sm:$0xff]
    %v199 = vld [vmem:[#allocation2 + $0x510] sm:$0xff]
    %v200 = vld [vmem:[#allocation2 + $0x518] sm:$0xff]
    %v201 = vld [vmem:[#allocation2 + $0x520] sm:$0xff]
    %v202 = vld [vmem:[#allocation2 + $0x528] sm:$0xff]
    %v203 = vld [vmem:[#allocation2 + $0x530] sm:$0xff]
    %v204 = vld [vmem:[#allocation2 + $0x538] sm:$0xff]
    %v205 = vld [vmem:[#allocation2 + $0x540] sm:$0xff]
    %v206 = vld [vmem:[#allocation2 + $0x548] sm:$0xff]
    %v207 = vld [vmem:[#allocation2 + $0x550] sm:$0xff]
    %v208 = vld [vmem:[#allocation2 + $0x558] sm:$0xff]
    %v209 = vld [vmem:[#allocation2 + $0x560] sm:$0xff]
    %v210 = vld [vmem:[#allocation2 + $0x568] sm:$0xff]
    %v211 = vld [vmem:[#allocation2 + $0x570] sm:$0xff]
    %v212 = vld [vmem:[#allocation2 + $0x578] sm:$0xff]
    %v213 = vld [vmem:[#allocation2 + $0x580] sm:$0xff]
    %v214 = vld [vmem:[#allocation2 + $0x588] sm:$0xff]
    %v215 = vld [vmem:[#allocation2 + $0x590] sm:$0xff]
    %v216 = vld [vmem:[#allocation2 + $0x598] sm:$0xff]
    %v217 = vld [vmem:[#allocation2 + $0x5a0] sm:$0xff]
    %v218 = vld [vmem:[#allocation2 + $0x5a8] sm:$0xff]
    %v219 = vld [vmem:[#allocation2 + $0x5b0] sm:$0xff]
    %v220 = vld [vmem:[#allocation2 + $0x5b8] sm:$0xff]
    %v221 = vld [vmem:[#allocation2 + $0x5c0] sm:$0xff]
    %v222 = vld [vmem:[#allocation2 + $0x5c8] sm:$0xff]
    %v223 = vld [vmem:[#allocation2 + $0x5d0] sm:$0xff]
    %v224 = vld [vmem:[#allocation2 + $0x5d8] sm:$0xff]
    %v225 = vld [vmem:[#allocation2 + $0x5e0] sm:$0xff]
    %v226 = vld [vmem:[#allocation2 + $0x5e8] sm:$0xff]
    %v227 = vld [vmem:[#allocation2 + $0x5f0] sm:$0xff]
    %v228 = vld [vmem:[#allocation2 + $0x5f8] sm:$0xff]
    %v229 = vld [vmem:[#allocation2 + $0x600] sm:$0xff]
    %v230 = vld [vmem:[#allocation2 + $0x608] sm:$0xff]
    %v231 = vld [vmem:[#allocation2 + $0x610] sm:$0xff]
    %v232 = vld [vmem:[#allocation2 + $0x618] sm:$0xff]
    %v233 = vld [vmem:[#allocation2 + $0x620] sm:$0xff]
    %v234 = vld [vmem:[#allocation2 + $0x628] sm:$0xff]
    %v235 = vld [vmem:[#allocation2 + $0x630] sm:$0xff]
    %v236 = vld [vmem:[#allocation2 + $0x638] sm:$0xff]
    %v237 = vld [vmem:[#allocation2 + $0x640] sm:$0xff]
    %v238 = vld [vmem:[#allocation2 + $0x648] sm:$0xff]
    %v239 = vld [vmem:[#allocation2 + $0x650] sm:$0xff]
    %v240 = vld [vmem:[#allocation2 + $0x658] sm:$0xff]
    %v241 = vld [vmem:[#allocation2 + $0x660] sm:$0xff]
    %v242 = vld [vmem:[#allocation2 + $0x668] sm:$0xff]
    %v243 = vld [vmem:[#allocation2 + $0x670] sm:$0xff]
    %v244 = vld [vmem:[#allocation2 + $0x678] sm:$0xff]
    %v245 = vld [vmem:[#allocation2 + $0x680] sm:$0xff]
    %v246 = vld [vmem:[#allocation2 + $0x688] sm:$0xff]
    %v247 = vld [vmem:[#allocation2 + $0x690] sm:$0xff]
    %v248 = vld [vmem:[#allocation2 + $0x698] sm:$0xff]
    %v249 = vld [vmem:[#allocation2 + $0x6a0] sm:$0xff]
    %v250 = vld [vmem:[#allocation2 + $0x6a8] sm:$0xff]
    %v251 = vld [vmem:[#allocation2 + $0x6b0] sm:$0xff]
    %v252 = vld [vmem:[#allocation2 + $0x6b8] sm:$0xff]
    %v253 = vld [vmem:[#allocation2 + $0x6c0] sm:$0xff]
    %v254 = vld [vmem:[#allocation2 + $0x6c8] sm:$0xff]
    %v255 = vld [vmem:[#allocation2 + $0x6d0] sm:$0xff]
    %v256 = vld [vmem:[#allocation2 + $0x6d8] sm:$0xff]
    %v257 = vld [vmem:[#allocation2 + $0x6e0] sm:$0xff]
    %v258 = vld [vmem:[#allocation2 + $0x6e8] sm:$0xff]
    %v259 = vld [vmem:[#allocation2 + $0x6f0] sm:$0xff]
    %v260 = vld [vmem:[#allocation2 + $0x6f8] sm:$0xff]
    %v261 = vld [vmem:[#allocation2 + $0x700] sm:$0xff]
    %v262 = vld [vmem:[#allocation2 + $0x708] sm:$0xff]
    %v263 = vld [vmem:[#allocation2 + $0x710] sm:$0xff]
    %v264 = vld [vmem:[#allocation2 + $0x718] sm:$0xff]
    %v265 = vld [vmem:[#allocation2 + $0x720] sm:$0xff]
    %v266 = vld [vmem:[#allocation2 + $0x728] sm:$0xff]
    %v267 = vld [vmem:[#allocation2 + $0x730] sm:$0xff]
    %v268 = vld [vmem:[#allocation2 + $0x738] sm:$0xff]
    %v269 = vld [vmem:[#allocation2 + $0x740] sm:$0xff]
    %v270 = vld [vmem:[#allocation2 + $0x748] sm:$0xff]
    %v271 = vld [vmem:[#allocation2 + $0x750] sm:$0xff]
    %v272 = vld [vmem:[#allocation2 + $0x758] sm:$0xff]
    %v273 = vld [vmem:[#allocation2 + $0x760] sm:$0xff]
    %v274 = vld [vmem:[#allocation2 + $0x768] sm:$0xff]
    %v275 = vld [vmem:[#allocation2 + $0x770] sm:$0xff]
    %v276 = vld [vmem:[#allocation2 + $0x778] sm:$0xff]
    %v277 = vld [vmem:[#allocation2 + $0x780] sm:$0xff]
    %v278 = vld [vmem:[#allocation2 + $0x788] sm:$0xff]
    %v279 = vld [vmem:[#allocation2 + $0x790] sm:$0xff]
    %v280 = vld [vmem:[#allocation2 + $0x798] sm:$0xff]
    %v281 = vld [vmem:[#allocation2 + $0x7a0] sm:$0xff]
    %v282 = vld [vmem:[#allocation2 + $0x7a8] sm:$0xff]
    %v283 = vld [vmem:[#allocation2 + $0x7b0] sm:$0xff]
    %v284 = vld [vmem:[#allocation2 + $0x7b8] sm:$0xff]
    %v285 = vld [vmem:[#allocation2 + $0x7c0] sm:$0xff]
    %v286 = vld [vmem:[#allocation2 + $0x7c8] sm:$0xff]
    %v287 = vld [vmem:[#allocation2 + $0x7d0] sm:$0xff]
    %v288 = vld [vmem:[#allocation2 + $0x7d8] sm:$0xff]
    %v289 = vld [vmem:[#allocation2 + $0x7e0] sm:$0xff]
    %v290 = vld [vmem:[#allocation2 + $0x7e8] sm:$0xff]
    %v291 = vld [vmem:[#allocation2 + $0x7f0] sm:$0xff]
    %v292 = vld [vmem:[#allocation2 + $0x7f8] sm:$0xff]
    %v549 = vunpack.c.l.b16 %v37
    %v550 = vunpack.c.h.b16 %v37
    %v551 = vunpack.c.l.b16 %v38
    %v552 = vunpack.c.h.b16 %v38
    %v553 = vunpack.c.l.b16 %v39
    %v554 = vunpack.c.h.b16 %v39
    %v555 = vunpack.c.l.b16 %v40
    %v556 = vunpack.c.h.b16 %v40
    %v557 = vunpack.c.l.b16 %v41
    %v558 = vunpack.c.h.b16 %v41
    %v559 = vunpack.c.l.b16 %v42
    %v560 = vunpack.c.h.b16 %v42
    %v561 = vunpack.c.l.b16 %v43
    %v562 = vunpack.c.h.b16 %v43
    %v563 = vunpack.c.l.b16 %v44
    %v564 = vunpack.c.h.b16 %v44
    %v565 = vunpack.c.l.b16 %v45
    %v566 = vunpack.c.h.b16 %v45
    %v567 = vunpack.c.l.b16 %v46
    %v568 = vunpack.c.h.b16 %v46
    %v569 = vunpack.c.l.b16 %v47
    %v570 = vunpack.c.h.b16 %v47
    %v571 = vunpack.c.l.b16 %v48
    %v572 = vunpack.c.h.b16 %v48
    %v573 = vunpack.c.l.b16 %v49
    %v574 = vunpack.c.h.b16 %v49
    %v575 = vunpack.c.l.b16 %v50
    %v576 = vunpack.c.h.b16 %v50
    %v577 = vunpack.c.l.b16 %v51
    %v578 = vunpack.c.h.b16 %v51
    %v579 = vunpack.c.l.b16 %v52
    %v580 = vunpack.c.h.b16 %v52
    %v581 = vunpack.c.l.b16 %v53
    %v582 = vunpack.c.h.b16 %v53
    %v583 = vunpack.c.l.b16 %v54
    %v584 = vunpack.c.h.b16 %v54
    %v585 = vunpack.c.l.b16 %v55
    %v586 = vunpack.c.h.b16 %v55
    %v587 = vunpack.c.l.b16 %v56
    %v588 = vunpack.c.h.b16 %v56
    %v589 = vunpack.c.l.b16 %v57
    %v590 = vunpack.c.h.b16 %v57
    %v591 = vunpack.c.l.b16 %v58
    %v592 = vunpack.c.h.b16 %v58
    %v593 = vunpack.c.l.b16 %v59
    %v594 = vunpack.c.h.b16 %v59
    %v595 = vunpack.c.l.b16 %v60
    %v596 = vunpack.c.h.b16 %v60
    %v597 = vunpack.c.l.b16 %v61
    %v598 = vunpack.c.h.b16 %v61
    %v599 = vunpack.c.l.b16 %v62
    %v600 = vunpack.c.h.b16 %v62
    %v601 = vunpack.c.l.b16 %v63
    %v602 = vunpack.c.h.b16 %v63
    %v603 = vunpack.c.l.b16 %v64
    %v604 = vunpack.c.h.b16 %v64
    %v605 = vunpack.c.l.b16 %v65
    %v606 = vunpack.c.h.b16 %v65
    %v607 = vunpack.c.l.b16 %v66
    %v608 = vunpack.c.h.b16 %v66
    %v609 = vunpack.c.l.b16 %v67
    %v610 = vunpack.c.h.b16 %v67
    %v611 = vunpack.c.l.b16 %v68
    %v612 = vunpack.c.h.b16 %v68
    %v613 = vunpack.c.l.b16 %v69
    %v614 = vunpack.c.h.b16 %v69
    %v615 = vunpack.c.l.b16 %v70
    %v616 = vunpack.c.h.b16 %v70
    %v617 = vunpack.c.l.b16 %v71
    %v618 = vunpack.c.h.b16 %v71
    %v619 = vunpack.c.l.b16 %v72
    %v620 = vunpack.c.h.b16 %v72
    %v621 = vunpack.c.l.b16 %v73
    %v622 = vunpack.c.h.b16 %v73
    %v623 = vunpack.c.l.b16 %v74
    %v624 = vunpack.c.h.b16 %v74
    %v625 = vunpack.c.l.b16 %v75
    %v626 = vunpack.c.h.b16 %v75
    %v627 = vunpack.c.l.b16 %v76
    %v628 = vunpack.c.h.b16 %v76
    %v629 = vunpack.c.l.b16 %v77
    %v630 = vunpack.c.h.b16 %v77
    %v631 = vunpack.c.l.b16 %v78
    %v632 = vunpack.c.h.b16 %v78
    %v633 = vunpack.c.l.b16 %v79
    %v634 = vunpack.c.h.b16 %v79
    %v635 = vunpack.c.l.b16 %v80
    %v636 = vunpack.c.h.b16 %v80
    %v637 = vunpack.c.l.b16 %v81
    %v638 = vunpack.c.h.b16 %v81
    %v639 = vunpack.c.l.b16 %v82
    %v640 = vunpack.c.h.b16 %v82
    %v641 = vunpack.c.l.b16 %v83
    %v642 = vunpack.c.h.b16 %v83
    %v643 = vunpack.c.l.b16 %v84
    %v644 = vunpack.c.h.b16 %v84
    %v645 = vunpack.c.l.b16 %v85
    %v646 = vunpack.c.h.b16 %v85
    %v647 = vunpack.c.l.b16 %v86
    %v648 = vunpack.c.h.b16 %v86
    %v649 = vunpack.c.l.b16 %v87
    %v650 = vunpack.c.h.b16 %v87
    %v651 = vunpack.c.l.b16 %v88
    %v652 = vunpack.c.h.b16 %v88
    %v653 = vunpack.c.l.b16 %v89
    %v654 = vunpack.c.h.b16 %v89
    %v655 = vunpack.c.l.b16 %v90
    %v656 = vunpack.c.h.b16 %v90
    %v657 = vunpack.c.l.b16 %v91
    %v658 = vunpack.c.h.b16 %v91
    %v659 = vunpack.c.l.b16 %v92
    %v660 = vunpack.c.h.b16 %v92
    %v661 = vunpack.c.l.b16 %v93
    %v662 = vunpack.c.h.b16 %v93
    %v663 = vunpack.c.l.b16 %v94
    %v664 = vunpack.c.h.b16 %v94
    %v665 = vunpack.c.l.b16 %v95
    %v666 = vunpack.c.h.b16 %v95
    %v667 = vunpack.c.l.b16 %v96
    %v668 = vunpack.c.h.b16 %v96
    %v669 = vunpack.c.l.b16 %v97
    %v670 = vunpack.c.h.b16 %v97
    %v671 = vunpack.c.l.b16 %v98
    %v672 = vunpack.c.h.b16 %v98
    %v673 = vunpack.c.l.b16 %v99
    %v674 = vunpack.c.h.b16 %v99
    %v675 = vunpack.c.l.b16 %v100
    %v676 = vunpack.c.h.b16 %v100
    %v677 = vunpack.c.l.b16 %v101
    %v678 = vunpack.c.h.b16 %v101
    %v679 = vunpack.c.l.b16 %v102
    %v680 = vunpack.c.h.b16 %v102
    %v681 = vunpack.c.l.b16 %v103
    %v682 = vunpack.c.h.b16 %v103
    %v683 = vunpack.c.l.b16 %v104
    %v684 = vunpack.c.h.b16 %v104
    %v685 = vunpack.c.l.b16 %v105
    %v686 = vunpack.c.h.b16 %v105
    %v687 = vunpack.c.l.b16 %v106
    %v688 = vunpack.c.h.b16 %v106
    %v689 = vunpack.c.l.b16 %v107
    %v690 = vunpack.c.h.b16 %v107
    %v691 = vunpack.c.l.b16 %v108
    %v692 = vunpack.c.h.b16 %v108
    %v693 = vunpack.c.l.b16 %v109
    %v694 = vunpack.c.h.b16 %v109
    %v695 = vunpack.c.l.b16 %v110
    %v696 = vunpack.c.h.b16 %v110
    %v697 = vunpack.c.l.b16 %v111
    %v698 = vunpack.c.h.b16 %v111
    %v699 = vunpack.c.l.b16 %v112
    %v700 = vunpack.c.h.b16 %v112
    %v701 = vunpack.c.l.b16 %v113
    %v702 = vunpack.c.h.b16 %v113
    %v703 = vunpack.c.l.b16 %v114
    %v704 = vunpack.c.h.b16 %v114
    %v705 = vunpack.c.l.b16 %v115
    %v706 = vunpack.c.h.b16 %v115
    %v707 = vunpack.c.l.b16 %v116
    %v708 = vunpack.c.h.b16 %v116
    %v709 = vunpack.c.l.b16 %v117
    %v710 = vunpack.c.h.b16 %v117
    %v711 = vunpack.c.l.b16 %v118
    %v712 = vunpack.c.h.b16 %v118
    %v713 = vunpack.c.l.b16 %v119
    %v714 = vunpack.c.h.b16 %v119
    %v715 = vunpack.c.l.b16 %v120
    %v716 = vunpack.c.h.b16 %v120
    %v717 = vunpack.c.l.b16 %v121
    %v718 = vunpack.c.h.b16 %v121
    %v719 = vunpack.c.l.b16 %v122
    %v720 = vunpack.c.h.b16 %v122
    %v721 = vunpack.c.l.b16 %v123
    %v722 = vunpack.c.h.b16 %v123
    %v723 = vunpack.c.l.b16 %v124
    %v724 = vunpack.c.h.b16 %v124
    %v725 = vunpack.c.l.b16 %v125
    %v726 = vunpack.c.h.b16 %v125
    %v727 = vunpack.c.l.b16 %v126
    %v728 = vunpack.c.h.b16 %v126
    %v729 = vunpack.c.l.b16 %v127
    %v730 = vunpack.c.h.b16 %v127
    %v731 = vunpack.c.l.b16 %v128
    %v732 = vunpack.c.h.b16 %v128
    %v733 = vunpack.c.l.b16 %v129
    %v734 = vunpack.c.h.b16 %v129
    %v735 = vunpack.c.l.b16 %v130
    %v736 = vunpack.c.h.b16 %v130
    %v737 = vunpack.c.l.b16 %v131
    %v738 = vunpack.c.h.b16 %v131
    %v739 = vunpack.c.l.b16 %v132
    %v740 = vunpack.c.h.b16 %v132
    %v741 = vunpack.c.l.b16 %v133
    %v742 = vunpack.c.h.b16 %v133
    %v743 = vunpack.c.l.b16 %v134
    %v744 = vunpack.c.h.b16 %v134
    %v745 = vunpack.c.l.b16 %v135
    %v746 = vunpack.c.h.b16 %v135
    %v747 = vunpack.c.l.b16 %v136
    %v748 = vunpack.c.h.b16 %v136
    %v749 = vunpack.c.l.b16 %v137
    %v750 = vunpack.c.h.b16 %v137
    %v751 = vunpack.c.l.b16 %v138
    %v752 = vunpack.c.h.b16 %v138
    %v753 = vunpack.c.l.b16 %v139
    %v754 = vunpack.c.h.b16 %v139
    %v755 = vunpack.c.l.b16 %v140
    %v756 = vunpack.c.h.b16 %v140
    %v757 = vunpack.c.l.b16 %v141
    %v758 = vunpack.c.h.b16 %v141
    %v759 = vunpack.c.l.b16 %v142
    %v760 = vunpack.c.h.b16 %v142
    %v761 = vunpack.c.l.b16 %v143
    %v762 = vunpack.c.h.b16 %v143
    %v763 = vunpack.c.l.b16 %v144
    %v764 = vunpack.c.h.b16 %v144
    %v765 = vunpack.c.l.b16 %v145
    %v766 = vunpack.c.h.b16 %v145
    %v767 = vunpack.c.l.b16 %v146
    %v768 = vunpack.c.h.b16 %v146
    %v769 = vunpack.c.l.b16 %v147
    %v770 = vunpack.c.h.b16 %v147
    %v771 = vunpack.c.l.b16 %v148
    %v772 = vunpack.c.h.b16 %v148
    %v773 = vunpack.c.l.b16 %v149
    %v774 = vunpack.c.h.b16 %v149
    %v775 = vunpack.c.l.b16 %v150
    %v776 = vunpack.c.h.b16 %v150
    %v777 = vunpack.c.l.b16 %v151
    %v778 = vunpack.c.h.b16 %v151
    %v779 = vunpack.c.l.b16 %v152
    %v780 = vunpack.c.h.b16 %v152
    %v781 = vunpack.c.l.b16 %v153
    %v782 = vunpack.c.h.b16 %v153
    %v783 = vunpack.c.l.b16 %v154
    %v784 = vunpack.c.h.b16 %v154
    %v785 = vunpack.c.l.b16 %v155
    %v786 = vunpack.c.h.b16 %v155
    %v787 = vunpack.c.l.b16 %v156
    %v788 = vunpack.c.h.b16 %v156
    %v789 = vunpack.c.l.b16 %v157
    %v790 = vunpack.c.h.b16 %v157
    %v791 = vunpack.c.l.b16 %v158
    %v792 = vunpack.c.h.b16 %v158
    %v793 = vunpack.c.l.b16 %v159
    %v794 = vunpack.c.h.b16 %v159
    %v795 = vunpack.c.l.b16 %v160
    %v796 = vunpack.c.h.b16 %v160
    %v797 = vunpack.c.l.b16 %v161
    %v798 = vunpack.c.h.b16 %v161
    %v799 = vunpack.c.l.b16 %v162
    %v800 = vunpack.c.h.b16 %v162
    %v801 = vunpack.c.l.b16 %v163
    %v802 = vunpack.c.h.b16 %v163
    %v803 = vunpack.c.l.b16 %v164
    %v804 = vunpack.c.h.b16 %v164
    %v805 = vunpack.c.l.b16 %v165
    %v806 = vunpack.c.h.b16 %v165
    %v807 = vunpack.c.l.b16 %v166
    %v808 = vunpack.c.h.b16 %v166
    %v809 = vunpack.c.l.b16 %v167
    %v810 = vunpack.c.h.b16 %v167
    %v811 = vunpack.c.l.b16 %v168
    %v812 = vunpack.c.h.b16 %v168
    %v813 = vunpack.c.l.b16 %v169
    %v814 = vunpack.c.h.b16 %v169
    %v815 = vunpack.c.l.b16 %v170
    %v816 = vunpack.c.h.b16 %v170
    %v817 = vunpack.c.l.b16 %v171
    %v818 = vunpack.c.h.b16 %v171
    %v819 = vunpack.c.l.b16 %v172
    %v820 = vunpack.c.h.b16 %v172
    %v821 = vunpack.c.l.b16 %v173
    %v822 = vunpack.c.h.b16 %v173
    %v823 = vunpack.c.l.b16 %v174
    %v824 = vunpack.c.h.b16 %v174
    %v825 = vunpack.c.l.b16 %v175
    %v826 = vunpack.c.h.b16 %v175
    %v827 = vunpack.c.l.b16 %v176
    %v828 = vunpack.c.h.b16 %v176
    %v829 = vunpack.c.l.b16 %v177
    %v830 = vunpack.c.h.b16 %v177
    %v831 = vunpack.c.l.b16 %v178
    %v832 = vunpack.c.h.b16 %v178
    %v833 = vunpack.c.l.b16 %v179
    %v834 = vunpack.c.h.b16 %v179
    %v835 = vunpack.c.l.b16 %v180
    %v836 = vunpack.c.h.b16 %v180
    %v837 = vunpack.c.l.b16 %v181
    %v838 = vunpack.c.h.b16 %v181
    %v839 = vunpack.c.l.b16 %v182
    %v840 = vunpack.c.h.b16 %v182
    %v841 = vunpack.c.l.b16 %v183
    %v842 = vunpack.c.h.b16 %v183
    %v843 = vunpack.c.l.b16 %v184
    %v844 = vunpack.c.h.b16 %v184
    %v845 = vunpack.c.l.b16 %v185
    %v846 = vunpack.c.h.b16 %v185
    %v847 = vunpack.c.l.b16 %v186
    %v848 = vunpack.c.h.b16 %v186
    %v849 = vunpack.c.l.b16 %v187
    %v850 = vunpack.c.h.b16 %v187
    %v851 = vunpack.c.l.b16 %v188
    %v852 = vunpack.c.h.b16 %v188
    %v853 = vunpack.c.l.b16 %v189
    %v854 = vunpack.c.h.b16 %v189
    %v855 = vunpack.c.l.b16 %v190
    %v856 = vunpack.c.h.b16 %v190
    %v857 = vunpack.c.l.b16 %v191
    %v858 = vunpack.c.h.b16 %v191
    %v859 = vunpack.c.l.b16 %v192
    %v860 = vunpack.c.h.b16 %v192
    %v861 = vunpack.c.l.b16 %v193
    %v862 = vunpack.c.h.b16 %v193
    %v863 = vunpack.c.l.b16 %v194
    %v864 = vunpack.c.h.b16 %v194
    %v865 = vunpack.c.l.b16 %v195
    %v866 = vunpack.c.h.b16 %v195
    %v867 = vunpack.c.l.b16 %v196
    %v868 = vunpack.c.h.b16 %v196
    %v869 = vunpack.c.l.b16 %v197
    %v870 = vunpack.c.h.b16 %v197
    %v871 = vunpack.c.l.b16 %v198
    %v872 = vunpack.c.h.b16 %v198
    %v873 = vunpack.c.l.b16 %v199
    %v874 = vunpack.c.h.b16 %v199
    %v875 = vunpack.c.l.b16 %v200
    %v876 = vunpack.c.h.b16 %v200
    %v877 = vunpack.c.l.b16 %v201
    %v878 = vunpack.c.h.b16 %v201
    %v879 = vunpack.c.l.b16 %v202
    %v880 = vunpack.c.h.b16 %v202
    %v881 = vunpack.c.l.b16 %v203
    %v882 = vunpack.c.h.b16 %v203
    %v883 = vunpack.c.l.b16 %v204
    %v884 = vunpack.c.h.b16 %v204
    %v885 = vunpack.c.l.b16 %v205
    %v886 = vunpack.c.h.b16 %v205
    %v887 = vunpack.c.l.b16 %v206
    %v888 = vunpack.c.h.b16 %v206
    %v889 = vunpack.c.l.b16 %v207
    %v890 = vunpack.c.h.b16 %v207
    %v891 = vunpack.c.l.b16 %v208
    %v892 = vunpack.c.h.b16 %v208
    %v893 = vunpack.c.l.b16 %v209
    %v894 = vunpack.c.h.b16 %v209
    %v895 = vunpack.c.l.b16 %v210
    %v896 = vunpack.c.h.b16 %v210
    %v897 = vunpack.c.l.b16 %v211
    %v898 = vunpack.c.h.b16 %v211
    %v899 = vunpack.c.l.b16 %v212
    %v900 = vunpack.c.h.b16 %v212
    %v901 = vunpack.c.l.b16 %v213
    %v902 = vunpack.c.h.b16 %v213
    %v903 = vunpack.c.l.b16 %v214
    %v904 = vunpack.c.h.b16 %v214
    %v905 = vunpack.c.l.b16 %v215
    %v906 = vunpack.c.h.b16 %v215
    %v907 = vunpack.c.l.b16 %v216
    %v908 = vunpack.c.h.b16 %v216
    %v909 = vunpack.c.l.b16 %v217
    %v910 = vunpack.c.h.b16 %v217
    %v911 = vunpack.c.l.b16 %v218
    %v912 = vunpack.c.h.b16 %v218
    %v913 = vunpack.c.l.b16 %v219
    %v914 = vunpack.c.h.b16 %v219
    %v915 = vunpack.c.l.b16 %v220
    %v916 = vunpack.c.h.b16 %v220
    %v917 = vunpack.c.l.b16 %v221
    %v918 = vunpack.c.h.b16 %v221
    %v919 = vunpack.c.l.b16 %v222
    %v920 = vunpack.c.h.b16 %v222
    %v921 = vunpack.c.l.b16 %v223
    %v922 = vunpack.c.h.b16 %v223
    %v923 = vunpack.c.l.b16 %v224
    %v924 = vunpack.c.h.b16 %v224
    %v925 = vunpack.c.l.b16 %v225
    %v926 = vunpack.c.h.b16 %v225
    %v927 = vunpack.c.l.b16 %v226
    %v928 = vunpack.c.h.b16 %v226
    %v929 = vunpack.c.l.b16 %v227
    %v930 = vunpack.c.h.b16 %v227
    %v931 = vunpack.c.l.b16 %v228
    %v932 = vunpack.c.h.b16 %v228
    %v933 = vunpack.c.l.b16 %v229
    %v934 = vunpack.c.h.b16 %v229
    %v935 = vunpack.c.l.b16 %v230
    %v936 = vunpack.c.h.b16 %v230
    %v937 = vunpack.c.l.b16 %v231
    %v938 = vunpack.c.h.b16 %v231
    %v939 = vunpack.c.l.b16 %v232
    %v940 = vunpack.c.h.b16 %v232
    %v941 = vunpack.c.l.b16 %v233
    %v942 = vunpack.c.h.b16 %v233
    %v943 = vunpack.c.l.b16 %v234
    %v944 = vunpack.c.h.b16 %v234
    %v945 = vunpack.c.l.b16 %v235
    %v946 = vunpack.c.h.b16 %v235
    %v947 = vunpack.c.l.b16 %v236
    %v948 = vunpack.c.h.b16 %v236
    %v949 = vunpack.c.l.b16 %v237
    %v950 = vunpack.c.h.b16 %v237
    %v951 = vunpack.c.l.b16 %v238
    %v952 = vunpack.c.h.b16 %v238
    %v953 = vunpack.c.l.b16 %v239
    %v954 = vunpack.c.h.b16 %v239
    %v955 = vunpack.c.l.b16 %v240
    %v956 = vunpack.c.h.b16 %v240
    %v957 = vunpack.c.l.b16 %v241
    %v958 = vunpack.c.h.b16 %v241
    %v959 = vunpack.c.l.b16 %v242
    %v960 = vunpack.c.h.b16 %v242
    %v961 = vunpack.c.l.b16 %v243
    %v962 = vunpack.c.h.b16 %v243
    %v963 = vunpack.c.l.b16 %v244
    %v964 = vunpack.c.h.b16 %v244
    %v965 = vunpack.c.l.b16 %v245
    %v966 = vunpack.c.h.b16 %v245
    %v967 = vunpack.c.l.b16 %v246
    %v968 = vunpack.c.h.b16 %v246
    %v969 = vunpack.c.l.b16 %v247
    %v970 = vunpack.c.h.b16 %v247
    %v971 = vunpack.c.l.b16 %v248
    %v972 = vunpack.c.h.b16 %v248
    %v973 = vunpack.c.l.b16 %v249
    %v974 = vunpack.c.h.b16 %v249
    %v975 = vunpack.c.l.b16 %v250
    %v976 = vunpack.c.h.b16 %v250
    %v977 = vunpack.c.l.b16 %v251
    %v978 = vunpack.c.h.b16 %v251
    %v979 = vunpack.c.l.b16 %v252
    %v980 = vunpack.c.h.b16 %v252
    %v981 = vunpack.c.l.b16 %v253
    %v982 = vunpack.c.h.b16 %v253
    %v983 = vunpack.c.l.b16 %v254
    %v984 = vunpack.c.h.b16 %v254
    %v985 = vunpack.c.l.b16 %v255
    %v986 = vunpack.c.h.b16 %v255
    %v987 = vunpack.c.l.b16 %v256
    %v988 = vunpack.c.h.b16 %v256
    %v989 = vunpack.c.l.b16 %v257
    %v990 = vunpack.c.h.b16 %v257
    %v991 = vunpack.c.l.b16 %v258
    %v992 = vunpack.c.h.b16 %v258
    %v993 = vunpack.c.l.b16 %v259
    %v994 = vunpack.c.h.b16 %v259
    %v995 = vunpack.c.l.b16 %v260
    %v996 = vunpack.c.h.b16 %v260
    %v997 = vunpack.c.l.b16 %v261
    %v998 = vunpack.c.h.b16 %v261
    %v999 = vunpack.c.l.b16 %v262
    %v1000 = vunpack.c.h.b16 %v262
    %v1001 = vunpack.c.l.b16 %v263
    %v1002 = vunpack.c.h.b16 %v263
    %v1003 = vunpack.c.l.b16 %v264
    %v1004 = vunpack.c.h.b16 %v264
    %v1005 = vunpack.c.l.b16 %v265
    %v1006 = vunpack.c.h.b16 %v265
    %v1007 = vunpack.c.l.b16 %v266
    %v1008 = vunpack.c.h.b16 %v266
    %v1009 = vunpack.c.l.b16 %v267
    %v1010 = vunpack.c.h.b16 %v267
    %v1011 = vunpack.c.l.b16 %v268
    %v1012 = vunpack.c.h.b16 %v268
    %v1013 = vunpack.c.l.b16 %v269
    %v1014 = vunpack.c.h.b16 %v269
    %v1015 = vunpack.c.l.b16 %v270
    %v1016 = vunpack.c.h.b16 %v270
    %v1017 = vunpack.c.l.b16 %v271
    %v1018 = vunpack.c.h.b16 %v271
    %v1019 = vunpack.c.l.b16 %v272
    %v1020 = vunpack.c.h.b16 %v272
    %v1021 = vunpack.c.l.b16 %v273
    %v1022 = vunpack.c.h.b16 %v273
    %v1023 = vunpack.c.l.b16 %v274
    %v1024 = vunpack.c.h.b16 %v274
    %v1025 = vunpack.c.l.b16 %v275
    %v1026 = vunpack.c.h.b16 %v275
    %v1027 = vunpack.c.l.b16 %v276
    %v1028 = vunpack.c.h.b16 %v276
    %v1029 = vunpack.c.l.b16 %v277
    %v1030 = vunpack.c.h.b16 %v277
    %v1031 = vunpack.c.l.b16 %v278
    %v1032 = vunpack.c.h.b16 %v278
    %v1033 = vunpack.c.l.b16 %v279
    %v1034 = vunpack.c.h.b16 %v279
    %v1035 = vunpack.c.l.b16 %v280
    %v1036 = vunpack.c.h.b16 %v280
    %v1037 = vunpack.c.l.b16 %v281
    %v1038 = vunpack.c.h.b16 %v281
    %v1039 = vunpack.c.l.b16 %v282
    %v1040 = vunpack.c.h.b16 %v282
    %v1041 = vunpack.c.l.b16 %v283
    %v1042 = vunpack.c.h.b16 %v283
    %v1043 = vunpack.c.l.b16 %v284
    %v1044 = vunpack.c.h.b16 %v284
    %v1045 = vunpack.c.l.b16 %v285
    %v1046 = vunpack.c.h.b16 %v285
    %v1047 = vunpack.c.l.b16 %v286
    %v1048 = vunpack.c.h.b16 %v286
    %v1049 = vunpack.c.l.b16 %v287
    %v1050 = vunpack.c.h.b16 %v287
    %v1051 = vunpack.c.l.b16 %v288
    %v1052 = vunpack.c.h.b16 %v288
    %v1053 = vunpack.c.l.b16 %v289
    %v1054 = vunpack.c.h.b16 %v289
    %v1055 = vunpack.c.l.b16 %v290
    %v1056 = vunpack.c.h.b16 %v290
    %v1057 = vunpack.c.l.b16 %v291
    %v1058 = vunpack.c.h.b16 %v291
    %v1059 = vunpack.c.l.b16 %v292
    %v1060 = vunpack.c.h.b16 %v292
    %v1061 = vpack.c.b16 %v565, %v549
    %v1062 = vpack.c.b16 %v566, %v550
    %v1063 = vpack.c.b16 %v567, %v551
    %v1064 = vpack.c.b16 %v568, %v552
    %v1065 = vpack.c.b16 %v569, %v553
    %v1066 = vpack.c.b16 %v570, %v554
    %v1067 = vpack.c.b16 %v571, %v555
    %v1068 = vpack.c.b16 %v572, %v556
    %v1069 = vpack.c.b16 %v573, %v557
    %v1070 = vpack.c.b16 %v574, %v558
    %v1071 = vpack.c.b16 %v575, %v559
    %v1072 = vpack.c.b16 %v576, %v560
    %v1073 = vpack.c.b16 %v577, %v561
    %v1074 = vpack.c.b16 %v578, %v562
    %v1075 = vpack.c.b16 %v579, %v563
    %v1076 = vpack.c.b16 %v580, %v564
    %v1077 = vpack.c.b16 %v597, %v581
    %v1078 = vpack.c.b16 %v598, %v582
    %v1079 = vpack.c.b16 %v599, %v583
    %v1080 = vpack.c.b16 %v600, %v584
    %v1081 = vpack.c.b16 %v601, %v585
    %v1082 = vpack.c.b16 %v602, %v586
    %v1083 = vpack.c.b16 %v603, %v587
    %v1084 = vpack.c.b16 %v604, %v588
    %v1085 = vpack.c.b16 %v605, %v589
    %v1086 = vpack.c.b16 %v606, %v590
    %v1087 = vpack.c.b16 %v607, %v591
    %v1088 = vpack.c.b16 %v608, %v592
    %v1089 = vpack.c.b16 %v609, %v593
    %v1090 = vpack.c.b16 %v610, %v594
    %v1091 = vpack.c.b16 %v611, %v595
    %v1092 = vpack.c.b16 %v612, %v596
    %v1093 = vpack.c.b16 %v629, %v613
    %v1094 = vpack.c.b16 %v630, %v614
    %v1095 = vpack.c.b16 %v631, %v615
    %v1096 = vpack.c.b16 %v632, %v616
    %v1097 = vpack.c.b16 %v633, %v617
    %v1098 = vpack.c.b16 %v634, %v618
    %v1099 = vpack.c.b16 %v635, %v619
    %v1100 = vpack.c.b16 %v636, %v620
    %v1101 = vpack.c.b16 %v637, %v621
    %v1102 = vpack.c.b16 %v638, %v622
    %v1103 = vpack.c.b16 %v639, %v623
    %v1104 = vpack.c.b16 %v640, %v624
    %v1105 = vpack.c.b16 %v641, %v625
    %v1106 = vpack.c.b16 %v642, %v626
    %v1107 = vpack.c.b16 %v643, %v627
    %v1108 = vpack.c.b16 %v644, %v628
    %v1109 = vpack.c.b16 %v661, %v645
    %v1110 = vpack.c.b16 %v662, %v646
    %v1111 = vpack.c.b16 %v663, %v647
    %v1112 = vpack.c.b16 %v664, %v648
    %v1113 = vpack.c.b16 %v665, %v649
    %v1114 = vpack.c.b16 %v666, %v650
    %v1115 = vpack.c.b16 %v667, %v651
    %v1116 = vpack.c.b16 %v668, %v652
    %v1117 = vpack.c.b16 %v669, %v653
    %v1118 = vpack.c.b16 %v670, %v654
    %v1119 = vpack.c.b16 %v671, %v655
    %v1120 = vpack.c.b16 %v672, %v656
    %v1121 = vpack.c.b16 %v673, %v657
    %v1122 = vpack.c.b16 %v674, %v658
    %v1123 = vpack.c.b16 %v675, %v659
    %v1124 = vpack.c.b16 %v676, %v660
    %v1125 = vpack.c.b16 %v693, %v677
    %v1126 = vpack.c.b16 %v694, %v678
    %v1127 = vpack.c.b16 %v695, %v679
    %v1128 = vpack.c.b16 %v696, %v680
    %v1129 = vpack.c.b16 %v697, %v681
    %v1130 = vpack.c.b16 %v698, %v682
    %v1131 = vpack.c.b16 %v699, %v683
    %v1132 = vpack.c.b16 %v700, %v684
    %v1133 = vpack.c.b16 %v701, %v685
    %v1134 = vpack.c.b16 %v702, %v686
    %v1135 = vpack.c.b16 %v703, %v687
    %v1136 = vpack.c.b16 %v704, %v688
    %v1137 = vpack.c.b16 %v705, %v689
    %v1138 = vpack.c.b16 %v706, %v690
    %v1139 = vpack.c.b16 %v707, %v691
    %v1140 = vpack.c.b16 %v708, %v692
    %v1141 = vpack.c.b16 %v725, %v709
    %v1142 = vpack.c.b16 %v726, %v710
    %v1143 = vpack.c.b16 %v727, %v711
    %v1144 = vpack.c.b16 %v728, %v712
    %v1145 = vpack.c.b16 %v729, %v713
    %v1146 = vpack.c.b16 %v730, %v714
    %v1147 = vpack.c.b16 %v731, %v715
    %v1148 = vpack.c.b16 %v732, %v716
    %v1149 = vpack.c.b16 %v733, %v717
    %v1150 = vpack.c.b16 %v734, %v718
    %v1151 = vpack.c.b16 %v735, %v719
    %v1152 = vpack.c.b16 %v736, %v720
    %v1153 = vpack.c.b16 %v737, %v721
    %v1154 = vpack.c.b16 %v738, %v722
    %v1155 = vpack.c.b16 %v739, %v723
    %v1156 = vpack.c.b16 %v740, %v724
    %v1157 = vpack.c.b16 %v757, %v741
    %v1158 = vpack.c.b16 %v758, %v742
    %v1159 = vpack.c.b16 %v759, %v743
    %v1160 = vpack.c.b16 %v760, %v744
    %v1161 = vpack.c.b16 %v761, %v745
    %v1162 = vpack.c.b16 %v762, %v746
    %v1163 = vpack.c.b16 %v763, %v747
    %v1164 = vpack.c.b16 %v764, %v748
    %v1165 = vpack.c.b16 %v765, %v749
    %v1166 = vpack.c.b16 %v766, %v750
    %v1167 = vpack.c.b16 %v767, %v751
    %v1168 = vpack.c.b16 %v768, %v752
    %v1169 = vpack.c.b16 %v769, %v753
    %v1170 = vpack.c.b16 %v770, %v754
    %v1171 = vpack.c.b16 %v771, %v755
    %v1172 = vpack.c.b16 %v772, %v756
    %v1173 = vpack.c.b16 %v789, %v773
    %v1174 = vpack.c.b16 %v790, %v774
    %v1175 = vpack.c.b16 %v791, %v775
    %v1176 = vpack.c.b16 %v792, %v776
    %v1177 = vpack.c.b16 %v793, %v777
    %v1178 = vpack.c.b16 %v794, %v778
    %v1179 = vpack.c.b16 %v795, %v779
    %v1180 = vpack.c.b16 %v796, %v780
    %v1181 = vpack.c.b16 %v797, %v781
    %v1182 = vpack.c.b16 %v798, %v782
    %v1183 = vpack.c.b16 %v799, %v783
    %v1184 = vpack.c.b16 %v800, %v784
    %v1185 = vpack.c.b16 %v801, %v785
    %v1186 = vpack.c.b16 %v802, %v786
    %v1187 = vpack.c.b16 %v803, %v787
    %v1188 = vpack.c.b16 %v804, %v788
    %v1189 = vpack.c.b16 %v821, %v805
    %v1190 = vpack.c.b16 %v822, %v806
    %v1191 = vpack.c.b16 %v823, %v807
    %v1192 = vpack.c.b16 %v824, %v808
    %v1193 = vpack.c.b16 %v825, %v809
    %v1194 = vpack.c.b16 %v826, %v810
    %v1195 = vpack.c.b16 %v827, %v811
    %v1196 = vpack.c.b16 %v828, %v812
    %v1197 = vpack.c.b16 %v829, %v813
    %v1198 = vpack.c.b16 %v830, %v814
    %v1199 = vpack.c.b16 %v831, %v815
    %v1200 = vpack.c.b16 %v832, %v816
    %v1201 = vpack.c.b16 %v833, %v817
    %v1202 = vpack.c.b16 %v834, %v818
    %v1203 = vpack.c.b16 %v835, %v819
    %v1204 = vpack.c.b16 %v836, %v820
    %v1205 = vpack.c.b16 %v853, %v837
    %v1206 = vpack.c.b16 %v854, %v838
    %v1207 = vpack.c.b16 %v855, %v839
    %v1208 = vpack.c.b16 %v856, %v840
    %v1209 = vpack.c.b16 %v857, %v841
    %v1210 = vpack.c.b16 %v858, %v842
    %v1211 = vpack.c.b16 %v859, %v843
    %v1212 = vpack.c.b16 %v860, %v844
    %v1213 = vpack.c.b16 %v861, %v845
    %v1214 = vpack.c.b16 %v862, %v846
    %v1215 = vpack.c.b16 %v863, %v847
    %v1216 = vpack.c.b16 %v864, %v848
    %v1217 = vpack.c.b16 %v865, %v849
    %v1218 = vpack.c.b16 %v866, %v850
    %v1219 = vpack.c.b16 %v867, %v851
    %v1220 = vpack.c.b16 %v868, %v852
    %v1221 = vpack.c.b16 %v885, %v869
    %v1222 = vpack.c.b16 %v886, %v870
    %v1223 = vpack.c.b16 %v887, %v871
    %v1224 = vpack.c.b16 %v888, %v872
    %v1225 = vpack.c.b16 %v889, %v873
    %v1226 = vpack.c.b16 %v890, %v874
    %v1227 = vpack.c.b16 %v891, %v875
    %v1228 = vpack.c.b16 %v892, %v876
    %v1229 = vpack.c.b16 %v893, %v877
    %v1230 = vpack.c.b16 %v894, %v878
    %v1231 = vpack.c.b16 %v895, %v879
    %v1232 = vpack.c.b16 %v896, %v880
    %v1233 = vpack.c.b16 %v897, %v881
    %v1234 = vpack.c.b16 %v898, %v882
    %v1235 = vpack.c.b16 %v899, %v883
    %v1236 = vpack.c.b16 %v900, %v884
    %v1237 = vpack.c.b16 %v917, %v901
    %v1238 = vpack.c.b16 %v918, %v902
    %v1239 = vpack.c.b16 %v919, %v903
    %v1240 = vpack.c.b16 %v920, %v904
    %v1241 = vpack.c.b16 %v921, %v905
    %v1242 = vpack.c.b16 %v922, %v906
    %v1243 = vpack.c.b16 %v923, %v907
    %v1244 = vpack.c.b16 %v924, %v908
    %v1245 = vpack.c.b16 %v925, %v909
    %v1246 = vpack.c.b16 %v926, %v910
    %v1247 = vpack.c.b16 %v927, %v911
    %v1248 = vpack.c.b16 %v928, %v912
    %v1249 = vpack.c.b16 %v929, %v913
    %v1250 = vpack.c.b16 %v930, %v914
    %v1251 = vpack.c.b16 %v931, %v915
    %v1252 = vpack.c.b16 %v932, %v916
    %v1253 = vpack.c.b16 %v949, %v933
    %v1254 = vpack.c.b16 %v950, %v934
    %v1255 = vpack.c.b16 %v951, %v935
    %v1256 = vpack.c.b16 %v952, %v936
    %v1257 = vpack.c.b16 %v953, %v937
    %v1258 = vpack.c.b16 %v954, %v938
    %v1259 = vpack.c.b16 %v955, %v939
    %v1260 = vpack.c.b16 %v956, %v940
    %v1261 = vpack.c.b16 %v957, %v941
    %v1262 = vpack.c.b16 %v958, %v942
    %v1263 = vpack.c.b16 %v959, %v943
    %v1264 = vpack.c.b16 %v960, %v944
    %v1265 = vpack.c.b16 %v961, %v945
    %v1266 = vpack.c.b16 %v962, %v946
    %v1267 = vpack.c.b16 %v963, %v947
    %v1268 = vpack.c.b16 %v964, %v948
    %v1269 = vpack.c.b16 %v981, %v965
    %v1270 = vpack.c.b16 %v982, %v966
    %v1271 = vpack.c.b16 %v983, %v967
    %v1272 = vpack.c.b16 %v984, %v968
    %v1273 = vpack.c.b16 %v985, %v969
    %v1274 = vpack.c.b16 %v986, %v970
    %v1275 = vpack.c.b16 %v987, %v971
    %v1276 = vpack.c.b16 %v988, %v972
    %v1277 = vpack.c.b16 %v989, %v973
    %v1278 = vpack.c.b16 %v990, %v974
    %v1279 = vpack.c.b16 %v991, %v975
    %v1280 = vpack.c.b16 %v992, %v976
    %v1281 = vpack.c.b16 %v993, %v977
    %v1282 = vpack.c.b16 %v994, %v978
    %v1283 = vpack.c.b16 %v995, %v979
    %v1284 = vpack.c.b16 %v996, %v980
    %v1285 = vpack.c.b16 %v1013, %v997
    %v1286 = vpack.c.b16 %v1014, %v998
    %v1287 = vpack.c.b16 %v1015, %v999
    %v1288 = vpack.c.b16 %v1016, %v1000
    %v1289 = vpack.c.b16 %v1017, %v1001
    %v1290 = vpack.c.b16 %v1018, %v1002
    %v1291 = vpack.c.b16 %v1019, %v1003
    %v1292 = vpack.c.b16 %v1020, %v1004
    %v1293 = vpack.c.b16 %v1021, %v1005
    %v1294 = vpack.c.b16 %v1022, %v1006
    %v1295 = vpack.c.b16 %v1023, %v1007
    %v1296 = vpack.c.b16 %v1024, %v1008
    %v1297 = vpack.c.b16 %v1025, %v1009
    %v1298 = vpack.c.b16 %v1026, %v1010
    %v1299 = vpack.c.b16 %v1027, %v1011
    %v1300 = vpack.c.b16 %v1028, %v1012
    %v1301 = vpack.c.b16 %v1045, %v1029
    %v1302 = vpack.c.b16 %v1046, %v1030
    %v1303 = vpack.c.b16 %v1047, %v1031
    %v1304 = vpack.c.b16 %v1048, %v1032
    %v1305 = vpack.c.b16 %v1049, %v1033
    %v1306 = vpack.c.b16 %v1050, %v1034
    %v1307 = vpack.c.b16 %v1051, %v1035
    %v1308 = vpack.c.b16 %v1052, %v1036
    %v1309 = vpack.c.b16 %v1053, %v1037
    %v1310 = vpack.c.b16 %v1054, %v1038
    %v1311 = vpack.c.b16 %v1055, %v1039
    %v1312 = vpack.c.b16 %v1056, %v1040
    %v1313 = vpack.c.b16 %v1057, %v1041
    %v1314 = vpack.c.b16 %v1058, %v1042
    %v1315 = vpack.c.b16 %v1059, %v1043
    %v1316 = vpack.c.b16 %v1060, %v1044
    %1573 = vmatpush.bf16.msra.mxu0 %v1173
    %1574 = vmatpush.bf16.msra.mxu0 %v1157
    %1575 = vmatpush.bf16.msra.mxu0 %v1141
    %1576 = vmatpush.bf16.msra.mxu0 %v1125
    %1577 = vmatpush.bf16.msra.mxu0 %v1109
    %1578 = vmatpush.bf16.msra.mxu0 %v1093
    %1579 = vmatpush.bf16.msra.mxu0 %v1077
    %1580 = vmatpush.bf16.msra.mxu0 %v1061
    %1581 = vmatmul.bf16.gmra.mxu0 %v35
    %v1582 = vpop.f32.mrf.mxu0
    %v1583 = vadd.f32 0.0, %v1582
    %v1584 = vpop.f32.mrf.mxu0
    %1585 = vdwg.mxu0
    %1586 = vmatpush.bf16.msra.mxu0 %v1301
    %1587 = vmatpush.bf16.msra.mxu0 %v1285
    %1588 = vmatpush.bf16.msra.mxu0 %v1269
    %1589 = vmatpush.bf16.msra.mxu0 %v1253
    %1590 = vmatpush.bf16.msra.mxu0 %v1237
    %1591 = vmatpush.bf16.msra.mxu0 %v1221
    %1592 = vmatpush.bf16.msra.mxu0 %v1205
    %1593 = vmatpush.bf16.msra.mxu0 %v1189
    %1594 = vmatmul.bf16.gmra.mxu0 %v36
    %v1595 = vpop.f32.mrf.mxu0
    %v1596 = vadd.f32 %v1583, %v1595
    %v1597 = vpop.f32.mrf.mxu0
    %1598 = vdwg.mxu0
    %1599 = vmatpush.bf16.msra.mxu0 %v1174
    %1600 = vmatpush.bf16.msra.mxu0 %v1158
    %1601 = vmatpush.bf16.msra.mxu0 %v1142
    %1602 = vmatpush.bf16.msra.mxu0 %v1126
    %1603 = vmatpush.bf16.msra.mxu0 %v1110
    %1604 = vmatpush.bf16.msra.mxu0 %v1094
    %1605 = vmatpush.bf16.msra.mxu0 %v1078
    %1606 = vmatpush.bf16.msra.mxu0 %v1062
    %1607 = vmatmul.bf16.gmra.mxu0 %v35
    %v1608 = vpop.f32.mrf.mxu0
    %v1609 = vadd.f32 0.0, %v1608
    %v1610 = vpop.f32.mrf.mxu0
    %1611 = vdwg.mxu0
    %1612 = vmatpush.bf16.msra.mxu0 %v1302
    %1613 = vmatpush.bf16.msra.mxu0 %v1286
    %1614 = vmatpush.bf16.msra.mxu0 %v1270
    %1615 = vmatpush.bf16.msra.mxu0 %v1254
    %1616 = vmatpush.bf16.msra.mxu0 %v1238
    %1617 = vmatpush.bf16.msra.mxu0 %v1222
    %1618 = vmatpush.bf16.msra.mxu0 %v1206
    %1619 = vmatpush.bf16.msra.mxu0 %v1190
    %1620 = vmatmul.bf16.gmra.mxu0 %v36
    %v1621 = vpop.f32.mrf.mxu0
    %v1622 = vadd.f32 %v1609, %v1621
    %v1623 = vpop.f32.mrf.mxu0
    %1624 = vdwg.mxu0
    %1625 = vmatpush.bf16.msra.mxu0 %v1175
    %1626 = vmatpush.bf16.msra.mxu0 %v1159
    %1627 = vmatpush.bf16.msra.mxu0 %v1143
    %1628 = vmatpush.bf16.msra.mxu0 %v1127
    %1629 = vmatpush.bf16.msra.mxu0 %v1111
    %1630 = vmatpush.bf16.msra.mxu0 %v1095
    %1631 = vmatpush.bf16.msra.mxu0 %v1079
    %1632 = vmatpush.bf16.msra.mxu0 %v1063
    %1633 = vmatmul.bf16.gmra.mxu0 %v35
    %v1634 = vpop.f32.mrf.mxu0
    %v1635 = vadd.f32 0.0, %v1634
    %v1636 = vpop.f32.mrf.mxu0
    %1637 = vdwg.mxu0
    %1638 = vmatpush.bf16.msra.mxu0 %v1303
    %1639 = vmatpush.bf16.msra.mxu0 %v1287
    %1640 = vmatpush.bf16.msra.mxu0 %v1271
    %1641 = vmatpush.bf16.msra.mxu0 %v1255
    %1642 = vmatpush.bf16.msra.mxu0 %v1239
    %1643 = vmatpush.bf16.msra.mxu0 %v1223
    %1644 = vmatpush.bf16.msra.mxu0 %v1207
    %1645 = vmatpush.bf16.msra.mxu0 %v1191
    %1646 = vmatmul.bf16.gmra.mxu0 %v36
    %v1647 = vpop.f32.mrf.mxu0
    %v1648 = vadd.f32 %v1635, %v1647
    %v1649 = vpop.f32.mrf.mxu0
    %1650 = vdwg.mxu0
    %1651 = vmatpush.bf16.msra.mxu0 %v1176
    %1652 = vmatpush.bf16.msra.mxu0 %v1160
    %1653 = vmatpush.bf16.msra.mxu0 %v1144
    %1654 = vmatpush.bf16.msra.mxu0 %v1128
    %1655 = vmatpush.bf16.msra.mxu0 %v1112
    %1656 = vmatpush.bf16.msra.mxu0 %v1096
    %1657 = vmatpush.bf16.msra.mxu0 %v1080
    %1658 = vmatpush.bf16.msra.mxu0 %v1064
    %1659 = vmatmul.bf16.gmra.mxu0 %v35
    %v1660 = vpop.f32.mrf.mxu0
    %v1661 = vadd.f32 0.0, %v1660
    %v1662 = vpop.f32.mrf.mxu0
    %1663 = vdwg.mxu0
    %1664 = vmatpush.bf16.msra.mxu0 %v1304
    %1665 = vmatpush.bf16.msra.mxu0 %v1288
    %1666 = vmatpush.bf16.msra.mxu0 %v1272
    %1667 = vmatpush.bf16.msra.mxu0 %v1256
    %1668 = vmatpush.bf16.msra.mxu0 %v1240
    %1669 = vmatpush.bf16.msra.mxu0 %v1224
    %1670 = vmatpush.bf16.msra.mxu0 %v1208
    %1671 = vmatpush.bf16.msra.mxu0 %v1192
    %1672 = vmatmul.bf16.gmra.mxu0 %v36
    %v1673 = vpop.f32.mrf.mxu0
    %v1674 = vadd.f32 %v1661, %v1673
    %v1675 = vpop.f32.mrf.mxu0
    %1676 = vdwg.mxu0
    %1677 = vmatpush.bf16.msra.mxu0 %v1177
    %1678 = vmatpush.bf16.msra.mxu0 %v1161
    %1679 = vmatpush.bf16.msra.mxu0 %v1145
    %1680 = vmatpush.bf16.msra.mxu0 %v1129
    %1681 = vmatpush.bf16.msra.mxu0 %v1113
    %1682 = vmatpush.bf16.msra.mxu0 %v1097
    %1683 = vmatpush.bf16.msra.mxu0 %v1081
    %1684 = vmatpush.bf16.msra.mxu0 %v1065
    %1685 = vmatmul.bf16.gmra.mxu0 %v35
    %v1686 = vpop.f32.mrf.mxu0
    %v1687 = vadd.f32 0.0, %v1686
    %v1688 = vpop.f32.mrf.mxu0
    %1689 = vdwg.mxu0
    %1690 = vmatpush.bf16.msra.mxu0 %v1305
    %1691 = vmatpush.bf16.msra.mxu0 %v1289
    %1692 = vmatpush.bf16.msra.mxu0 %v1273
    %1693 = vmatpush.bf16.msra.mxu0 %v1257
    %1694 = vmatpush.bf16.msra.mxu0 %v1241
    %1695 = vmatpush.bf16.msra.mxu0 %v1225
    %1696 = vmatpush.bf16.msra.mxu0 %v1209
    %1697 = vmatpush.bf16.msra.mxu0 %v1193
    %1698 = vmatmul.bf16.gmra.mxu0 %v36
    %v1699 = vpop.f32.mrf.mxu0
    %v1700 = vadd.f32 %v1687, %v1699
    %v1701 = vpop.f32.mrf.mxu0
    %1702 = vdwg.mxu0
    %1703 = vmatpush.bf16.msra.mxu0 %v1178
    %1704 = vmatpush.bf16.msra.mxu0 %v1162
    %1705 = vmatpush.bf16.msra.mxu0 %v1146
    %1706 = vmatpush.bf16.msra.mxu0 %v1130
    %1707 = vmatpush.bf16.msra.mxu0 %v1114
    %1708 = vmatpush.bf16.msra.mxu0 %v1098
    %1709 = vmatpush.bf16.msra.mxu0 %v1082
    %1710 = vmatpush.bf16.msra.mxu0 %v1066
    %1711 = vmatmul.bf16.gmra.mxu0 %v35
    %v1712 = vpop.f32.mrf.mxu0
    %v1713 = vadd.f32 0.0, %v1712
    %v1714 = vpop.f32.mrf.mxu0
    %1715 = vdwg.mxu0
    %1716 = vmatpush.bf16.msra.mxu0 %v1306
    %1717 = vmatpush.bf16.msra.mxu0 %v1290
    %1718 = vmatpush.bf16.msra.mxu0 %v1274
    %1719 = vmatpush.bf16.msra.mxu0 %v1258
    %1720 = vmatpush.bf16.msra.mxu0 %v1242
    %1721 = vmatpush.bf16.msra.mxu0 %v1226
    %1722 = vmatpush.bf16.msra.mxu0 %v1210
    %1723 = vmatpush.bf16.msra.mxu0 %v1194
    %1724 = vmatmul.bf16.gmra.mxu0 %v36
    %v1725 = vpop.f32.mrf.mxu0
    %v1726 = vadd.f32 %v1713, %v1725
    %v1727 = vpop.f32.mrf.mxu0
    %1728 = vdwg.mxu0
    %1729 = vmatpush.bf16.msra.mxu0 %v1179
    %1730 = vmatpush.bf16.msra.mxu0 %v1163
    %1731 = vmatpush.bf16.msra.mxu0 %v1147
    %1732 = vmatpush.bf16.msra.mxu0 %v1131
    %1733 = vmatpush.bf16.msra.mxu0 %v1115
    %1734 = vmatpush.bf16.msra.mxu0 %v1099
    %1735 = vmatpush.bf16.msra.mxu0 %v1083
    %1736 = vmatpush.bf16.msra.mxu0 %v1067
    %1737 = vmatmul.bf16.gmra.mxu0 %v35
    %v1738 = vpop.f32.mrf.mxu0
    %v1739 = vadd.f32 0.0, %v1738
    %v1740 = vpop.f32.mrf.mxu0
    %1741 = vdwg.mxu0
    %1742 = vmatpush.bf16.msra.mxu0 %v1307
    %1743 = vmatpush.bf16.msra.mxu0 %v1291
    %1744 = vmatpush.bf16.msra.mxu0 %v1275
    %1745 = vmatpush.bf16.msra.mxu0 %v1259
    %1746 = vmatpush.bf16.msra.mxu0 %v1243
    %1747 = vmatpush.bf16.msra.mxu0 %v1227
    %1748 = vmatpush.bf16.msra.mxu0 %v1211
    %1749 = vmatpush.bf16.msra.mxu0 %v1195
    %1750 = vmatmul.bf16.gmra.mxu0 %v36
    %v1751 = vpop.f32.mrf.mxu0
    %v1752 = vadd.f32 %v1739, %v1751
    %v1753 = vpop.f32.mrf.mxu0
    %1754 = vdwg.mxu0
    %1755 = vmatpush.bf16.msra.mxu0 %v1180
    %1756 = vmatpush.bf16.msra.mxu0 %v1164
    %1757 = vmatpush.bf16.msra.mxu0 %v1148
    %1758 = vmatpush.bf16.msra.mxu0 %v1132
    %1759 = vmatpush.bf16.msra.mxu0 %v1116
    %1760 = vmatpush.bf16.msra.mxu0 %v1100
    %1761 = vmatpush.bf16.msra.mxu0 %v1084
    %1762 = vmatpush.bf16.msra.mxu0 %v1068
    %1763 = vmatmul.bf16.gmra.mxu0 %v35
    %v1764 = vpop.f32.mrf.mxu0
    %v1765 = vadd.f32 0.0, %v1764
    %v1766 = vpop.f32.mrf.mxu0
    %1767 = vdwg.mxu0
    %1768 = vmatpush.bf16.msra.mxu0 %v1308
    %1769 = vmatpush.bf16.msra.mxu0 %v1292
    %1770 = vmatpush.bf16.msra.mxu0 %v1276
    %1771 = vmatpush.bf16.msra.mxu0 %v1260
    %1772 = vmatpush.bf16.msra.mxu0 %v1244
    %1773 = vmatpush.bf16.msra.mxu0 %v1228
    %1774 = vmatpush.bf16.msra.mxu0 %v1212
    %1775 = vmatpush.bf16.msra.mxu0 %v1196
    %1776 = vmatmul.bf16.gmra.mxu0 %v36
    %v1777 = vpop.f32.mrf.mxu0
    %v1778 = vadd.f32 %v1765, %v1777
    %v1779 = vpop.f32.mrf.mxu0
    %1780 = vdwg.mxu0
    %1781 = vmatpush.bf16.msra.mxu0 %v1181
    %1782 = vmatpush.bf16.msra.mxu0 %v1165
    %1783 = vmatpush.bf16.msra.mxu0 %v1149
    %1784 = vmatpush.bf16.msra.mxu0 %v1133
    %1785 = vmatpush.bf16.msra.mxu0 %v1117
    %1786 = vmatpush.bf16.msra.mxu0 %v1101
    %1787 = vmatpush.bf16.msra.mxu0 %v1085
    %1788 = vmatpush.bf16.msra.mxu0 %v1069
    %1789 = vmatmul.bf16.gmra.mxu0 %v35
    %v1790 = vpop.f32.mrf.mxu0
    %v1791 = vadd.f32 0.0, %v1790
    %v1792 = vpop.f32.mrf.mxu0
    %1793 = vdwg.mxu0
    %1794 = vmatpush.bf16.msra.mxu0 %v1309
    %1795 = vmatpush.bf16.msra.mxu0 %v1293
    %1796 = vmatpush.bf16.msra.mxu0 %v1277
    %1797 = vmatpush.bf16.msra.mxu0 %v1261
    %1798 = vmatpush.bf16.msra.mxu0 %v1245
    %1799 = vmatpush.bf16.msra.mxu0 %v1229
    %1800 = vmatpush.bf16.msra.mxu0 %v1213
    %1801 = vmatpush.bf16.msra.mxu0 %v1197
    %1802 = vmatmul.bf16.gmra.mxu0 %v36
    %v1803 = vpop.f32.mrf.mxu0
    %v1804 = vadd.f32 %v1791, %v1803
    %v1805 = vpop.f32.mrf.mxu0
    %1806 = vdwg.mxu0
    %1807 = vmatpush.bf16.msra.mxu0 %v1182
    %1808 = vmatpush.bf16.msra.mxu0 %v1166
    %1809 = vmatpush.bf16.msra.mxu0 %v1150
    %1810 = vmatpush.bf16.msra.mxu0 %v1134
    %1811 = vmatpush.bf16.msra.mxu0 %v1118
    %1812 = vmatpush.bf16.msra.mxu0 %v1102
    %1813 = vmatpush.bf16.msra.mxu0 %v1086
    %1814 = vmatpush.bf16.msra.mxu0 %v1070
    %1815 = vmatmul.bf16.gmra.mxu0 %v35
    %v1816 = vpop.f32.mrf.mxu0
    %v1817 = vadd.f32 0.0, %v1816
    %v1818 = vpop.f32.mrf.mxu0
    %1819 = vdwg.mxu0
    %1820 = vmatpush.bf16.msra.mxu0 %v1310
    %1821 = vmatpush.bf16.msra.mxu0 %v1294
    %1822 = vmatpush.bf16.msra.mxu0 %v1278
    %1823 = vmatpush.bf16.msra.mxu0 %v1262
    %1824 = vmatpush.bf16.msra.mxu0 %v1246
    %1825 = vmatpush.bf16.msra.mxu0 %v1230
    %1826 = vmatpush.bf16.msra.mxu0 %v1214
    %1827 = vmatpush.bf16.msra.mxu0 %v1198
    %1828 = vmatmul.bf16.gmra.mxu0 %v36
    %v1829 = vpop.f32.mrf.mxu0
    %v1830 = vadd.f32 %v1817, %v1829
    %v1831 = vpop.f32.mrf.mxu0
    %1832 = vdwg.mxu0
    %1833 = vmatpush.bf16.msra.mxu0 %v1183
    %1834 = vmatpush.bf16.msra.mxu0 %v1167
    %1835 = vmatpush.bf16.msra.mxu0 %v1151
    %1836 = vmatpush.bf16.msra.mxu0 %v1135
    %1837 = vmatpush.bf16.msra.mxu0 %v1119
    %1838 = vmatpush.bf16.msra.mxu0 %v1103
    %1839 = vmatpush.bf16.msra.mxu0 %v1087
    %1840 = vmatpush.bf16.msra.mxu0 %v1071
    %1841 = vmatmul.bf16.gmra.mxu0 %v35
    %v1842 = vpop.f32.mrf.mxu0
    %v1843 = vadd.f32 0.0, %v1842
    %v1844 = vpop.f32.mrf.mxu0
    %1845 = vdwg.mxu0
    %1846 = vmatpush.bf16.msra.mxu0 %v1311
    %1847 = vmatpush.bf16.msra.mxu0 %v1295
    %1848 = vmatpush.bf16.msra.mxu0 %v1279
    %1849 = vmatpush.bf16.msra.mxu0 %v1263
    %1850 = vmatpush.bf16.msra.mxu0 %v1247
    %1851 = vmatpush.bf16.msra.mxu0 %v1231
    %1852 = vmatpush.bf16.msra.mxu0 %v1215
    %1853 = vmatpush.bf16.msra.mxu0 %v1199
    %1854 = vmatmul.bf16.gmra.mxu0 %v36
    %v1855 = vpop.f32.mrf.mxu0
    %v1856 = vadd.f32 %v1843, %v1855
    %v1857 = vpop.f32.mrf.mxu0
    %1858 = vdwg.mxu0
    %1859 = vmatpush.bf16.msra.mxu0 %v1184
    %1860 = vmatpush.bf16.msra.mxu0 %v1168
    %1861 = vmatpush.bf16.msra.mxu0 %v1152
    %1862 = vmatpush.bf16.msra.mxu0 %v1136
    %1863 = vmatpush.bf16.msra.mxu0 %v1120
    %1864 = vmatpush.bf16.msra.mxu0 %v1104
    %1865 = vmatpush.bf16.msra.mxu0 %v1088
    %1866 = vmatpush.bf16.msra.mxu0 %v1072
    %1867 = vmatmul.bf16.gmra.mxu0 %v35
    %v1868 = vpop.f32.mrf.mxu0
    %v1869 = vadd.f32 0.0, %v1868
    %v1870 = vpop.f32.mrf.mxu0
    %1871 = vdwg.mxu0
    %1872 = vmatpush.bf16.msra.mxu0 %v1312
    %1873 = vmatpush.bf16.msra.mxu0 %v1296
    %1874 = vmatpush.bf16.msra.mxu0 %v1280
    %1875 = vmatpush.bf16.msra.mxu0 %v1264
    %1876 = vmatpush.bf16.msra.mxu0 %v1248
    %1877 = vmatpush.bf16.msra.mxu0 %v1232
    %1878 = vmatpush.bf16.msra.mxu0 %v1216
    %1879 = vmatpush.bf16.msra.mxu0 %v1200
    %1880 = vmatmul.bf16.gmra.mxu0 %v36
    %v1881 = vpop.f32.mrf.mxu0
    %v1882 = vadd.f32 %v1869, %v1881
    %v1883 = vpop.f32.mrf.mxu0
    %1884 = vdwg.mxu0
    %1885 = vmatpush.bf16.msra.mxu0 %v1185
    %1886 = vmatpush.bf16.msra.mxu0 %v1169
    %1887 = vmatpush.bf16.msra.mxu0 %v1153
    %1888 = vmatpush.bf16.msra.mxu0 %v1137
    %1889 = vmatpush.bf16.msra.mxu0 %v1121
    %1890 = vmatpush.bf16.msra.mxu0 %v1105
    %1891 = vmatpush.bf16.msra.mxu0 %v1089
    %1892 = vmatpush.bf16.msra.mxu0 %v1073
    %1893 = vmatmul.bf16.gmra.mxu0 %v35
    %v1894 = vpop.f32.mrf.mxu0
    %v1895 = vadd.f32 0.0, %v1894
    %v1896 = vpop.f32.mrf.mxu0
    %1897 = vdwg.mxu0
    %1898 = vmatpush.bf16.msra.mxu0 %v1313
    %1899 = vmatpush.bf16.msra.mxu0 %v1297
    %1900 = vmatpush.bf16.msra.mxu0 %v1281
    %1901 = vmatpush.bf16.msra.mxu0 %v1265
    %1902 = vmatpush.bf16.msra.mxu0 %v1249
    %1903 = vmatpush.bf16.msra.mxu0 %v1233
    %1904 = vmatpush.bf16.msra.mxu0 %v1217
    %1905 = vmatpush.bf16.msra.mxu0 %v1201
    %1906 = vmatmul.bf16.gmra.mxu0 %v36
    %v1907 = vpop.f32.mrf.mxu0
    %v1908 = vadd.f32 %v1895, %v1907
    %v1909 = vpop.f32.mrf.mxu0
    %1910 = vdwg.mxu0
    %1911 = vmatpush.bf16.msra.mxu0 %v1186
    %1912 = vmatpush.bf16.msra.mxu0 %v1170
    %1913 = vmatpush.bf16.msra.mxu0 %v1154
    %1914 = vmatpush.bf16.msra.mxu0 %v1138
    %1915 = vmatpush.bf16.msra.mxu0 %v1122
    %1916 = vmatpush.bf16.msra.mxu0 %v1106
    %1917 = vmatpush.bf16.msra.mxu0 %v1090
    %1918 = vmatpush.bf16.msra.mxu0 %v1074
    %1919 = vmatmul.bf16.gmra.mxu0 %v35
    %v1920 = vpop.f32.mrf.mxu0
    %v1921 = vadd.f32 0.0, %v1920
    %v1922 = vpop.f32.mrf.mxu0
    %1923 = vdwg.mxu0
    %1924 = vmatpush.bf16.msra.mxu0 %v1314
    %1925 = vmatpush.bf16.msra.mxu0 %v1298
    %1926 = vmatpush.bf16.msra.mxu0 %v1282
    %1927 = vmatpush.bf16.msra.mxu0 %v1266
    %1928 = vmatpush.bf16.msra.mxu0 %v1250
    %1929 = vmatpush.bf16.msra.mxu0 %v1234
    %1930 = vmatpush.bf16.msra.mxu0 %v1218
    %1931 = vmatpush.bf16.msra.mxu0 %v1202
    %1932 = vmatmul.bf16.gmra.mxu0 %v36
    %v1933 = vpop.f32.mrf.mxu0
    %v1934 = vadd.f32 %v1921, %v1933
    %v1935 = vpop.f32.mrf.mxu0
    %1936 = vdwg.mxu0
    %1937 = vmatpush.bf16.msra.mxu0 %v1187
    %1938 = vmatpush.bf16.msra.mxu0 %v1171
    %1939 = vmatpush.bf16.msra.mxu0 %v1155
    %1940 = vmatpush.bf16.msra.mxu0 %v1139
    %1941 = vmatpush.bf16.msra.mxu0 %v1123
    %1942 = vmatpush.bf16.msra.mxu0 %v1107
    %1943 = vmatpush.bf16.msra.mxu0 %v1091
    %1944 = vmatpush.bf16.msra.mxu0 %v1075
    %1945 = vmatmul.bf16.gmra.mxu0 %v35
    %v1946 = vpop.f32.mrf.mxu0
    %v1947 = vadd.f32 0.0, %v1946
    %v1948 = vpop.f32.mrf.mxu0
    %1949 = vdwg.mxu0
    %1950 = vmatpush.bf16.msra.mxu0 %v1315
    %1951 = vmatpush.bf16.msra.mxu0 %v1299
    %1952 = vmatpush.bf16.msra.mxu0 %v1283
    %1953 = vmatpush.bf16.msra.mxu0 %v1267
    %1954 = vmatpush.bf16.msra.mxu0 %v1251
    %1955 = vmatpush.bf16.msra.mxu0 %v1235
    %1956 = vmatpush.bf16.msra.mxu0 %v1219
    %1957 = vmatpush.bf16.msra.mxu0 %v1203
    %1958 = vmatmul.bf16.gmra.mxu0 %v36
    %v1959 = vpop.f32.mrf.mxu0
    %v1960 = vadd.f32 %v1947, %v1959
    %v1961 = vpop.f32.mrf.mxu0
    %1962 = vdwg.mxu0
    %1963 = vmatpush.bf16.msra.mxu0 %v1188
    %1964 = vmatpush.bf16.msra.mxu0 %v1172
    %1965 = vmatpush.bf16.msra.mxu0 %v1156
    %1966 = vmatpush.bf16.msra.mxu0 %v1140
    %1967 = vmatpush.bf16.msra.mxu0 %v1124
    %1968 = vmatpush.bf16.msra.mxu0 %v1108
    %1969 = vmatpush.bf16.msra.mxu0 %v1092
    %1970 = vmatpush.bf16.msra.mxu0 %v1076
    %1971 = vmatmul.bf16.gmra.mxu0 %v35
    %v1972 = vpop.f32.mrf.mxu0
    %v1973 = vadd.f32 0.0, %v1972
    %v1974 = vpop.f32.mrf.mxu0
    %1975 = vdwg.mxu0
    %1976 = vmatpush.bf16.msra.mxu0 %v1316
    %1977 = vmatpush.bf16.msra.mxu0 %v1300
    %1978 = vmatpush.bf16.msra.mxu0 %v1284
    %1979 = vmatpush.bf16.msra.mxu0 %v1268
    %1980 = vmatpush.bf16.msra.mxu0 %v1252
    %1981 = vmatpush.bf16.msra.mxu0 %v1236
    %1982 = vmatpush.bf16.msra.mxu0 %v1220
    %1983 = vmatpush.bf16.msra.mxu0 %v1204
    %1984 = vmatmul.bf16.gmra.mxu0 %v36
    %v1985 = vpop.f32.mrf.mxu0
    %v1986 = vadd.f32 %v1973, %v1985
    %v1987 = vpop.f32.mrf.mxu0
    %1988 = vdwg.mxu0
    %1989 = vst [vmem:[%s4] sm:$0xff] %v1596
    %1990 = vst [vmem:[%s4 + $0x8] sm:$0xff] %v1622
    %1991 = vst [vmem:[%s4 + $0x10] sm:$0xff] %v1648
    %1992 = vst [vmem:[%s4 + $0x18] sm:$0xff] %v1674
    %1993 = vst [vmem:[%s4 + $0x20] sm:$0xff] %v1700
    %1994 = vst [vmem:[%s4 + $0x28] sm:$0xff] %v1726
    %1995 = vst [vmem:[%s4 + $0x30] sm:$0xff] %v1752
    %1996 = vst [vmem:[%s4 + $0x38] sm:$0xff] %v1778
    %1997 = vst [vmem:[%s4 + $0x40] sm:$0xff] %v1804
    %1998 = vst [vmem:[%s4 + $0x48] sm:$0xff] %v1830
    %1999 = vst [vmem:[%s4 + $0x50] sm:$0xff] %v1856
    %2000 = vst [vmem:[%s4 + $0x58] sm:$0xff] %v1882
    %2001 = vst [vmem:[%s4 + $0x60] sm:$0xff] %v1908
    %2002 = vst [vmem:[%s4 + $0x68] sm:$0xff] %v1934
    %2003 = vst [vmem:[%s4 + $0x70] sm:$0xff] %v1960
    %2004 = vst [vmem:[%s4 + $0x78] sm:$0xff] %v1986
    // Predicated region
    $region22: #{generator_forward.9} parent=1 // pred_check
      _
    $region23: #{generator_forward.9} parent=1 // pred_check_branch
      %2006 = sbr.rel (0) target = $region25
    $region24: #{generator_forward.9} parent=1 // pred_region
      _
    $region25: #{generator_forward.9} parent=1 // pred_fallthru
      _
    // Predicated region
    $region26: #{generator_forward.9} parent=1 // pred_check
      _
    $region27: #{generator_forward.9} parent=1 // pred_check_branch
      %2008 = sbr.rel (0) target = $region29
    $region28: #{generator_forward.9} parent=1 // pred_region
      _
    $region29: #{generator_forward.9} parent=1 // pred_fallthru
      _
    %2009 = vsyncpa [#allocation3], 1

// kernel: tile.38
$region0: #{tile.38}
  #allocation0 [shape = 's32[1]{0}', space=sflag, size = 0x4, scoped, tag = 'scoped memory for tile.38']
  %s0 = inlined_call_operand.vmem [shape: f32[32], index: 0, kind: input, shape index: {}]
  %s1 = inlined_call_operand.vmem [shape: f32[8,32], index: 1, kind: output, shape index: {}]
  // Predicated region
  $region2: #{tile.38} parent=0 // pred_check
    _
  $region3: #{tile.38} parent=0 // pred_check_branch
    %3 = sbr.rel (0) target = $region5
  $region4: #{tile.38} parent=0 // pred_region
    _
  $region5: #{tile.38} parent=0 // pred_fallthru
    _
  %v4 = vld [vmem:[%s0] ss:$0 sm:$0xff]
  %5 = vst [vmem:[%s1] sm:$0xff] %v4

// kernel: tile.39
$region0: #{tile.39}
  %s0 = inlined_call_operand.vmem [shape: f32[8,32], index: 0, kind: input, shape index: {}]
  %s1 = inlined_call_operand.vmem [shape: f32[1,256], index: 1, kind: output, shape index: {}]
  $region1: #{tile.39} parent=0
    #allocation0 [shape = 'u8[8192]{0}', space=vmem, size = 0x2000, scoped, tag = 'scoped mem for output reshape']
    %s2 = smov 3
    %v3 = vld [vmem:[%s0] ss:$4 sm:%s2]
    %vm4 = vcmask 261120
    %5 = vst.msk [vmem:[#allocation0] ss:$8 sm:$0x3] %vm4, %v3
    %s6 = scalar_lea.vmem %s0, 3
    %s7 = smov 3
    %v8 = vld [vmem:[%s6] ss:$4 sm:%s7]
    %9 = vrot.lane.b32.xlu0 %v8, 96
    %v10 = vpop.permute.xlu0 %9
    %vm11 = vcmask 1048320
    %12 = vst.msk [vmem:[#allocation0] ss:$8 sm:$0x3] %vm11, %v10
    %s13 = scalar_lea.vmem %s0, 2
    %s14 = smov 3
    %v15 = vld [vmem:[%s13] ss:$4 sm:%s14]
    %16 = vrot.lane.b32.xlu0 %v15, 64
    %v17 = vpop.permute.xlu0 %16
    %vm18 = vcmask 785920
    %19 = vst.msk [vmem:[#allocation0] ss:$8 sm:$0x3] %vm18, %v17
    %s20 = scalar_lea.vmem %s0, 1
    %s21 = smov 3
    %v22 = vld [vmem:[%s20] ss:$4 sm:%s21]
    %23 = vrot.lane.b32.xlu0 %v22, 32
    %v24 = vpop.permute.xlu0 %23
    %vm25 = vcmask 523520
    %26 = vst.msk [vmem:[#allocation0] ss:$8 sm:$0x3] %vm25, %v24
    %s28 = ssub.s32 2, 1
    %v29 = vld [vmem:[#allocation0] sm:%s28]
    %s31 = ssub.s32 2, 1
    %32 = vst [vmem:[%s1] sm:%s31] %v29
    %s33 = scalar_lea.vmem [#allocation0], 8
    %v34 = vld [vmem:[%s33] sm:%s28]
    %s36 = ssub.s32 2, 1
    %s37 = scalar_lea.vmem %s1, 1
    %38 = vst [vmem:[%s37] sm:%s36] %v34

// kernel: generator_forward.10
$region0: #{generator_forward.10}
  #allocation0 [shape = 'u32[]', space=smem, size = 0x4, offset = 0x4, fixed_abs, tag = 'smem constant byte address 0x4 - core index']
  #allocation1 [shape = 'u32[72,128]{1,0:T(1,128)}', space=vmem, size = 0x9000, scoped, tag = 'internal scratch']
  %s0 = inlined_call_operand.vmem [shape: f32[8,256], index: 0, kind: input, shape index: {}]
  %s1 = inlined_call_operand.hbm [shape: bf16[256,2048], index: 1, kind: input, shape index: {}]
  %s2 = inlined_call_operand.vmem [shape: f32[1,256], index: 2, kind: input, shape index: {}]
  %s3 = inlined_call_operand.vmem [shape: f32[1,2048], index: 3, kind: input, shape index: {}]
  %s4 = inlined_call_operand.vmem [shape: f32[8,2048], index: 4, kind: output, shape index: {}]
  %s5 = sld [smem:[#allocation0]]
  $region30: #{generator_forward.10} parent=0
    _
  %s7 = ssub.s32 1, %s5
  %s8 = scalar_select 0, %s7, %s5
  $region1: #{generator_forward.10} parent=0
    #allocation2 [shape = 'u8[1048576]{0}', space=vmem, size = 0x100000, scoped, tag = 'input window, operand 1, single buffered']
    #allocation3 [shape = 's32[1]{0}', space=sflag, size = 0x4, scoped, tag = 'scoped memory for generator_forward.10']
    %9 = vsyncpa [#allocation3], 0
    // Predicated region
    $region2: #{generator_forward.10} parent=1 // pred_check
      _
    $region3: #{generator_forward.10} parent=1 // pred_check_branch
      %11 = sbr.rel (0) target = $region5
    $region4: #{generator_forward.10} parent=1 // pred_region
      _
    $region5: #{generator_forward.10} parent=1 // pred_fallthru
      _
    // Predicated region
    $region6: #{generator_forward.10} parent=1 // pred_check
      _
    $region7: #{generator_forward.10} parent=1 // pred_check_branch
      %13 = sbr.rel (0) target = $region9
    $region8: #{generator_forward.10} parent=1 // pred_region
      %15 = vsyncadd [#allocation3], 0
      %s16 = sshll.u32 %s1, 4
      %s17 = int_to_ptr.hbm [resolvable:$true] %s16
      %s18 = sshll.u32 [#allocation2], 4
      %s19 = int_to_ptr.vmem [resolvable:$true] %s18
      %24 = dma.hbm_to_vmem [thread:$0]  %s17, 32768, %s19, [#allocation3], 1024, 1024, 64
    $region9: #{generator_forward.10} parent=1 // pred_fallthru
      _
    // Predicated region
    $region10: #{generator_forward.10} parent=1 // pred_check
      _
    $region11: #{generator_forward.10} parent=1 // pred_check_branch
      %26 = sbr.rel (0) target = $region13
    $region12: #{generator_forward.10} parent=1 // pred_region
      _
    $region13: #{generator_forward.10} parent=1 // pred_fallthru
      _
    // Predicated region
    $region14: #{generator_forward.10} parent=1 // pred_check
      _
    $region15: #{generator_forward.10} parent=1 // pred_check_branch
      %28 = sbr.rel (0) target = $region17
    $region16: #{generator_forward.10} parent=1 // pred_region
      _
    $region17: #{generator_forward.10} parent=1 // pred_fallthru
      _
    // Predicated region
    $region18: #{generator_forward.10} parent=1 // pred_check
      _
    $region19: #{generator_forward.10} parent=1 // pred_check_branch
      %30 = sbr.rel (0) target = $region21
    $region20: #{generator_forward.10} parent=1 // pred_region
      %32 = dma.done [#allocation3], 32768
    $region21: #{generator_forward.10} parent=1 // pred_fallthru
      _
    %v33 = vld [vmem:[%s0] sm:$0xff]
    %v34 = vld [vmem:[%s0 + $0x8] sm:$0xff]
    %v35 = vld [vmem:[%s2] sm:$0x3]
    %v37 = vperm.slane %v35, 0
    %v38 = vperm.slane %v35, 1
    %v41 = vadd.f32 %v33, %v37
    %v42 = vadd.f32 %v34, %v38
    %vm43 = vcmp.ge.f32.partialorder %v41, 0.0
    %vm44 = vcmp.ge.f32.partialorder %v42, 0.0
    %v45 = vmul.f32 %v41, 0.2
    %v46 = vmul.f32 %v42, 0.2
    %v47 = vsel %vm43, %v41, %v45
    %v48 = vsel %vm44, %v42, %v46
    %v49 = vpack.c.bf16 %v47, %v47
    %v50 = vpack.c.bf16 %v48, %v48
    %v51 = vld [vmem:[#allocation2] sm:$0xff]
    %v52 = vld [vmem:[#allocation2 + $0x8] sm:$0xff]
    %v53 = vld [vmem:[#allocation2 + $0x10] sm:$0xff]
    %v54 = vld [vmem:[#allocation2 + $0x18] sm:$0xff]
    %v55 = vld [vmem:[#allocation2 + $0x20] sm:$0xff]
    %v56 = vld [vmem:[#allocation2 + $0x28] sm:$0xff]
    %v57 = vld [vmem:[#allocation2 + $0x30] sm:$0xff]
    %v58 = vld [vmem:[#allocation2 + $0x38] sm:$0xff]
    %v59 = vld [vmem:[#allocation2 + $0x40] sm:$0xff]
    %v60 = vld [vmem:[#allocation2 + $0x48] sm:$0xff]
    %v61 = vld [vmem:[#allocation2 + $0x50] sm:$0xff]
    %v62 = vld [vmem:[#allocation2 + $0x58] sm:$0xff]
    %v63 = vld [vmem:[#allocation2 + $0x60] sm:$0xff]
    %v64 = vld [vmem:[#allocation2 + $0x68] sm:$0xff]
    %v65 = vld [vmem:[#allocation2 + $0x70] sm:$0xff]
    %v66 = vld [vmem:[#allocation2 + $0x78] sm:$0xff]
    %v67 = vld [vmem:[#allocation2 + $0x80] sm:$0xff]
    %v68 = vld [vmem:[#allocation2 + $0x88] sm:$0xff]
    %v69 = vld [vmem:[#allocation2 + $0x90] sm:$0xff]
    %v70 = vld [vmem:[#allocation2 + $0x98] sm:$0xff]
    %v71 = vld [vmem:[#allocation2 + $0xa0] sm:$0xff]
    %v72 = vld [vmem:[#allocation2 + $0xa8] sm:$0xff]
    %v73 = vld [vmem:[#allocation2 + $0xb0] sm:$0xff]
    %v74 = vld [vmem:[#allocation2 + $0xb8] sm:$0xff]
    %v75 = vld [vmem:[#allocation2 + $0xc0] sm:$0xff]
    %v76 = vld [vmem:[#allocation2 + $0xc8] sm:$0xff]
    %v77 = vld [vmem:[#allocation2 + $0xd0] sm:$0xff]
    %v78 = vld [vmem:[#allocation2 + $0xd8] sm:$0xff]
    %v79 = vld [vmem:[#allocation2 + $0xe0] sm:$0xff]
    %v80 = vld [vmem:[#allocation2 + $0xe8] sm:$0xff]
    %v81 = vld [vmem:[#allocation2 + $0xf0] sm:$0xff]
    %v82 = vld [vmem:[#allocation2 + $0xf8] sm:$0xff]
    %v83 = vld [vmem:[#allocation2 + $0x100] sm:$0xff]
    %v84 = vld [vmem:[#allocation2 + $0x108] sm:$0xff]
    %v85 = vld [vmem:[#allocation2 + $0x110] sm:$0xff]
    %v86 = vld [vmem:[#allocation2 + $0x118] sm:$0xff]
    %v87 = vld [vmem:[#allocation2 + $0x120] sm:$0xff]
    %v88 = vld [vmem:[#allocation2 + $0x128] sm:$0xff]
    %v89 = vld [vmem:[#allocation2 + $0x130] sm:$0xff]
    %v90 = vld [vmem:[#allocation2 + $0x138] sm:$0xff]
    %v91 = vld [vmem:[#allocation2 + $0x140] sm:$0xff]
    %v92 = vld [vmem:[#allocation2 + $0x148] sm:$0xff]
    %v93 = vld [vmem:[#allocation2 + $0x150] sm:$0xff]
    %v94 = vld [vmem:[#allocation2 + $0x158] sm:$0xff]
    %v95 = vld [vmem:[#allocation2 + $0x160] sm:$0xff]
    %v96 = vld [vmem:[#allocation2 + $0x168] sm:$0xff]
    %v97 = vld [vmem:[#allocation2 + $0x170] sm:$0xff]
    %v98 = vld [vmem:[#allocation2 + $0x178] sm:$0xff]
    %v99 = vld [vmem:[#allocation2 + $0x180] sm:$0xff]
    %v100 = vld [vmem:[#allocation2 + $0x188] sm:$0xff]
    %v101 = vld [vmem:[#allocation2 + $0x190] sm:$0xff]
    %v102 = vld [vmem:[#allocation2 + $0x198] sm:$0xff]
    %v103 = vld [vmem:[#allocation2 + $0x1a0] sm:$0xff]
    %v104 = vld [vmem:[#allocation2 + $0x1a8] sm:$0xff]
    %v105 = vld [vmem:[#allocation2 + $0x1b0] sm:$0xff]
    %v106 = vld [vmem:[#allocation2 + $0x1b8] sm:$0xff]
    %v107 = vld [vmem:[#allocation2 + $0x1c0] sm:$0xff]
    %v108 = vld [vmem:[#allocation2 + $0x1c8] sm:$0xff]
    %v109 = vld [vmem:[#allocation2 + $0x1d0] sm:$0xff]
    %v110 = vld [vmem:[#allocation2 + $0x1d8] sm:$0xff]
    %v111 = vld [vmem:[#allocation2 + $0x1e0] sm:$0xff]
    %v112 = vld [vmem:[#allocation2 + $0x1e8] sm:$0xff]
    %v113 = vld [vmem:[#allocation2 + $0x1f0] sm:$0xff]
    %v114 = vld [vmem:[#allocation2 + $0x1f8] sm:$0xff]
    %v115 = vld [vmem:[#allocation2 + $0x200] sm:$0xff]
    %v116 = vld [vmem:[#allocation2 + $0x208] sm:$0xff]
    %v117 = vld [vmem:[#allocation2 + $0x210] sm:$0xff]
    %v118 = vld [vmem:[#allocation2 + $0x218] sm:$0xff]
    %v119 = vld [vmem:[#allocation2 + $0x220] sm:$0xff]
    %v120 = vld [vmem:[#allocation2 + $0x228] sm:$0xff]
    %v121 = vld [vmem:[#allocation2 + $0x230] sm:$0xff]
    %v122 = vld [vmem:[#allocation2 + $0x238] sm:$0xff]
    %v123 = vld [vmem:[#allocation2 + $0x240] sm:$0xff]
    %v124 = vld [vmem:[#allocation2 + $0x248] sm:$0xff]
    %v125 = vld [vmem:[#allocation2 + $0x250] sm:$0xff]
    %v126 = vld [vmem:[#allocation2 + $0x258] sm:$0xff]
    %v127 = vld [vmem:[#allocation2 + $0x260] sm:$0xff]
    %v128 = vld [vmem:[#allocation2 + $0x268] sm:$0xff]
    %v129 = vld [vmem:[#allocation2 + $0x270] sm:$0xff]
    %v130 = vld [vmem:[#allocation2 + $0x278] sm:$0xff]
    %v131 = vld [vmem:[#allocation2 + $0x280] sm:$0xff]
    %v132 = vld [vmem:[#allocation2 + $0x288] sm:$0xff]
    %v133 = vld [vmem:[#allocation2 + $0x290] sm:$0xff]
    %v134 = vld [vmem:[#allocation2 + $0x298] sm:$0xff]
    %v135 = vld [vmem:[#allocation2 + $0x2a0] sm:$0xff]
    %v136 = vld [vmem:[#allocation2 + $0x2a8] sm:$0xff]
    %v137 = vld [vmem:[#allocation2 + $0x2b0] sm:$0xff]
    %v138 = vld [vmem:[#allocation2 + $0x2b8] sm:$0xff]
    %v139 = vld [vmem:[#allocation2 + $0x2c0] sm:$0xff]
    %v140 = vld [vmem:[#allocation2 + $0x2c8] sm:$0xff]
    %v141 = vld [vmem:[#allocation2 + $0x2d0] sm:$0xff]
    %v142 = vld [vmem:[#allocation2 + $0x2d8] sm:$0xff]
    %v143 = vld [vmem:[#allocation2 + $0x2e0] sm:$0xff]
    %v144 = vld [vmem:[#allocation2 + $0x2e8] sm:$0xff]
    %v145 = vld [vmem:[#allocation2 + $0x2f0] sm:$0xff]
    %v146 = vld [vmem:[#allocation2 + $0x2f8] sm:$0xff]
    %v147 = vld [vmem:[#allocation2 + $0x300] sm:$0xff]
    %v148 = vld [vmem:[#allocation2 + $0x308] sm:$0xff]
    %v149 = vld [vmem:[#allocation2 + $0x310] sm:$0xff]
    %v150 = vld [vmem:[#allocation2 + $0x318] sm:$0xff]
    %v151 = vld [vmem:[#allocation2 + $0x320] sm:$0xff]
    %v152 = vld [vmem:[#allocation2 + $0x328] sm:$0xff]
    %v153 = vld [vmem:[#allocation2 + $0x330] sm:$0xff]
    %v154 = vld [vmem:[#allocation2 + $0x338] sm:$0xff]
    %v155 = vld [vmem:[#allocation2 + $0x340] sm:$0xff]
    %v156 = vld [vmem:[#allocation2 + $0x348] sm:$0xff]
    %v157 = vld [vmem:[#allocation2 + $0x350] sm:$0xff]
    %v158 = vld [vmem:[#allocation2 + $0x358] sm:$0xff]
    %v159 = vld [vmem:[#allocation2 + $0x360] sm:$0xff]
    %v160 = vld [vmem:[#allocation2 + $0x368] sm:$0xff]
    %v161 = vld [vmem:[#allocation2 + $0x370] sm:$0xff]
    %v162 = vld [vmem:[#allocation2 + $0x378] sm:$0xff]
    %v163 = vld [vmem:[#allocation2 + $0x380] sm:$0xff]
    %v164 = vld [vmem:[#allocation2 + $0x388] sm:$0xff]
    %v165 = vld [vmem:[#allocation2 + $0x390] sm:$0xff]
    %v166 = vld [vmem:[#allocation2 + $0x398] sm:$0xff]
    %v167 = vld [vmem:[#allocation2 + $0x3a0] sm:$0xff]
    %v168 = vld [vmem:[#allocation2 + $0x3a8] sm:$0xff]
    %v169 = vld [vmem:[#allocation2 + $0x3b0] sm:$0xff]
    %v170 = vld [vmem:[#allocation2 + $0x3b8] sm:$0xff]
    %v171 = vld [vmem:[#allocation2 + $0x3c0] sm:$0xff]
    %v172 = vld [vmem:[#allocation2 + $0x3c8] sm:$0xff]
    %v173 = vld [vmem:[#allocation2 + $0x3d0] sm:$0xff]
    %v174 = vld [vmem:[#allocation2 + $0x3d8] sm:$0xff]
    %v175 = vld [vmem:[#allocation2 + $0x3e0] sm:$0xff]
    %v176 = vld [vmem:[#allocation2 + $0x3e8] sm:$0xff]
    %v177 = vld [vmem:[#allocation2 + $0x3f0] sm:$0xff]
    %v178 = vld [vmem:[#allocation2 + $0x3f8] sm:$0xff]
    %v179 = vld [vmem:[#allocation2 + $0x400] sm:$0xff]
    %v180 = vld [vmem:[#allocation2 + $0x408] sm:$0xff]
    %v181 = vld [vmem:[#allocation2 + $0x410] sm:$0xff]
    %v182 = vld [vmem:[#allocation2 + $0x418] sm:$0xff]
    %v183 = vld [vmem:[#allocation2 + $0x420] sm:$0xff]
    %v184 = vld [vmem:[#allocation2 + $0x428] sm:$0xff]
    %v185 = vld [vmem:[#allocation2 + $0x430] sm:$0xff]
    %v186 = vld [vmem:[#allocation2 + $0x438] sm:$0xff]
    %v187 = vld [vmem:[#allocation2 + $0x440] sm:$0xff]
    %v188 = vld [vmem:[#allocation2 + $0x448] sm:$0xff]
    %v189 = vld [vmem:[#allocation2 + $0x450] sm:$0xff]
    %v190 = vld [vmem:[#allocation2 + $0x458] sm:$0xff]
    %v191 = vld [vmem:[#allocation2 + $0x460] sm:$0xff]
    %v192 = vld [vmem:[#allocation2 + $0x468] sm:$0xff]
    %v193 = vld [vmem:[#allocation2 + $0x470] sm:$0xff]
    %v194 = vld [vmem:[#allocation2 + $0x478] sm:$0xff]
    %v195 = vld [vmem:[#allocation2 + $0x480] sm:$0xff]
    %v196 = vld [vmem:[#allocation2 + $0x488] sm:$0xff]
    %v197 = vld [vmem:[#allocation2 + $0x490] sm:$0xff]
    %v198 = vld [vmem:[#allocation2 + $0x498] sm:$0xff]
    %v199 = vld [vmem:[#allocation2 + $0x4a0] sm:$0xff]
    %v200 = vld [vmem:[#allocation2 + $0x4a8] sm:$0xff]
    %v201 = vld [vmem:[#allocation2 + $0x4b0] sm:$0xff]
    %v202 = vld [vmem:[#allocation2 + $0x4b8] sm:$0xff]
    %v203 = vld [vmem:[#allocation2 + $0x4c0] sm:$0xff]
    %v204 = vld [vmem:[#allocation2 + $0x4c8] sm:$0xff]
    %v205 = vld [vmem:[#allocation2 + $0x4d0] sm:$0xff]
    %v206 = vld [vmem:[#allocation2 + $0x4d8] sm:$0xff]
    %v207 = vld [vmem:[#allocation2 + $0x4e0] sm:$0xff]
    %v208 = vld [vmem:[#allocation2 + $0x4e8] sm:$0xff]
    %v209 = vld [vmem:[#allocation2 + $0x4f0] sm:$0xff]
    %v210 = vld [vmem:[#allocation2 + $0x4f8] sm:$0xff]
    %v211 = vld [vmem:[#allocation2 + $0x500] sm:$0xff]
    %v212 = vld [vmem:[#allocation2 + $0x508] sm:$0xff]
    %v213 = vld [vmem:[#allocation2 + $0x510] sm:$0xff]
    %v214 = vld [vmem:[#allocation2 + $0x518] sm:$0xff]
    %v215 = vld [vmem:[#allocation2 + $0x520] sm:$0xff]
    %v216 = vld [vmem:[#allocation2 + $0x528] sm:$0xff]
    %v217 = vld [vmem:[#allocation2 + $0x530] sm:$0xff]
    %v218 = vld [vmem:[#allocation2 + $0x538] sm:$0xff]
    %v219 = vld [vmem:[#allocation2 + $0x540] sm:$0xff]
    %v220 = vld [vmem:[#allocation2 + $0x548] sm:$0xff]
    %v221 = vld [vmem:[#allocation2 + $0x550] sm:$0xff]
    %v222 = vld [vmem:[#allocation2 + $0x558] sm:$0xff]
    %v223 = vld [vmem:[#allocation2 + $0x560] sm:$0xff]
    %v224 = vld [vmem:[#allocation2 + $0x568] sm:$0xff]
    %v225 = vld [vmem:[#allocation2 + $0x570] sm:$0xff]
    %v226 = vld [vmem:[#allocation2 + $0x578] sm:$0xff]
    %v227 = vld [vmem:[#allocation2 + $0x580] sm:$0xff]
    %v228 = vld [vmem:[#allocation2 + $0x588] sm:$0xff]
    %v229 = vld [vmem:[#allocation2 + $0x590] sm:$0xff]
    %v230 = vld [vmem:[#allocation2 + $0x598] sm:$0xff]
    %v231 = vld [vmem:[#allocation2 + $0x5a0] sm:$0xff]
    %v232 = vld [vmem:[#allocation2 + $0x5a8] sm:$0xff]
    %v233 = vld [vmem:[#allocation2 + $0x5b0] sm:$0xff]
    %v234 = vld [vmem:[#allocation2 + $0x5b8] sm:$0xff]
    %v235 = vld [vmem:[#allocation2 + $0x5c0] sm:$0xff]
    %v236 = vld [vmem:[#allocation2 + $0x5c8] sm:$0xff]
    %v237 = vld [vmem:[#allocation2 + $0x5d0] sm:$0xff]
    %v238 = vld [vmem:[#allocation2 + $0x5d8] sm:$0xff]
    %v239 = vld [vmem:[#allocation2 + $0x5e0] sm:$0xff]
    %v240 = vld [vmem:[#allocation2 + $0x5e8] sm:$0xff]
    %v241 = vld [vmem:[#allocation2 + $0x5f0] sm:$0xff]
    %v242 = vld [vmem:[#allocation2 + $0x5f8] sm:$0xff]
    %v243 = vld [vmem:[#allocation2 + $0x600] sm:$0xff]
    %v244 = vld [vmem:[#allocation2 + $0x608] sm:$0xff]
    %v245 = vld [vmem:[#allocation2 + $0x610] sm:$0xff]
    %v246 = vld [vmem:[#allocation2 + $0x618] sm:$0xff]
    %v247 = vld [vmem:[#allocation2 + $0x620] sm:$0xff]
    %v248 = vld [vmem:[#allocation2 + $0x628] sm:$0xff]
    %v249 = vld [vmem:[#allocation2 + $0x630] sm:$0xff]
    %v250 = vld [vmem:[#allocation2 + $0x638] sm:$0xff]
    %v251 = vld [vmem:[#allocation2 + $0x640] sm:$0xff]
    %v252 = vld [vmem:[#allocation2 + $0x648] sm:$0xff]
    %v253 = vld [vmem:[#allocation2 + $0x650] sm:$0xff]
    %v254 = vld [vmem:[#allocation2 + $0x658] sm:$0xff]
    %v255 = vld [vmem:[#allocation2 + $0x660] sm:$0xff]
    %v256 = vld [vmem:[#allocation2 + $0x668] sm:$0xff]
    %v257 = vld [vmem:[#allocation2 + $0x670] sm:$0xff]
    %v258 = vld [vmem:[#allocation2 + $0x678] sm:$0xff]
    %v259 = vld [vmem:[#allocation2 + $0x680] sm:$0xff]
    %v260 = vld [vmem:[#allocation2 + $0x688] sm:$0xff]
    %v261 = vld [vmem:[#allocation2 + $0x690] sm:$0xff]
    %v262 = vld [vmem:[#allocation2 + $0x698] sm:$0xff]
    %v263 = vld [vmem:[#allocation2 + $0x6a0] sm:$0xff]
    %v264 = vld [vmem:[#allocation2 + $0x6a8] sm:$0xff]
    %v265 = vld [vmem:[#allocation2 + $0x6b0] sm:$0xff]
    %v266 = vld [vmem:[#allocation2 + $0x6b8] sm:$0xff]
    %v267 = vld [vmem:[#allocation2 + $0x6c0] sm:$0xff]
    %v268 = vld [vmem:[#allocation2 + $0x6c8] sm:$0xff]
    %v269 = vld [vmem:[#allocation2 + $0x6d0] sm:$0xff]
    %v270 = vld [vmem:[#allocation2 + $0x6d8] sm:$0xff]
    %v271 = vld [vmem:[#allocation2 + $0x6e0] sm:$0xff]
    %v272 = vld [vmem:[#allocation2 + $0x6e8] sm:$0xff]
    %v273 = vld [vmem:[#allocation2 + $0x6f0] sm:$0xff]
    %v274 = vld [vmem:[#allocation2 + $0x6f8] sm:$0xff]
    %v275 = vld [vmem:[#allocation2 + $0x700] sm:$0xff]
    %v276 = vld [vmem:[#allocation2 + $0x708] sm:$0xff]
    %v277 = vld [vmem:[#allocation2 + $0x710] sm:$0xff]
    %v278 = vld [vmem:[#allocation2 + $0x718] sm:$0xff]
    %v279 = vld [vmem:[#allocation2 + $0x720] sm:$0xff]
    %v280 = vld [vmem:[#allocation2 + $0x728] sm:$0xff]
    %v281 = vld [vmem:[#allocation2 + $0x730] sm:$0xff]
    %v282 = vld [vmem:[#allocation2 + $0x738] sm:$0xff]
    %v283 = vld [vmem:[#allocation2 + $0x740] sm:$0xff]
    %v284 = vld [vmem:[#allocation2 + $0x748] sm:$0xff]
    %v285 = vld [vmem:[#allocation2 + $0x750] sm:$0xff]
    %v286 = vld [vmem:[#allocation2 + $0x758] sm:$0xff]
    %v287 = vld [vmem:[#allocation2 + $0x760] sm:$0xff]
    %v288 = vld [vmem:[#allocation2 + $0x768] sm:$0xff]
    %v289 = vld [vmem:[#allocation2 + $0x770] sm:$0xff]
    %v290 = vld [vmem:[#allocation2 + $0x778] sm:$0xff]
    %v291 = vld [vmem:[#allocation2 + $0x780] sm:$0xff]
    %v292 = vld [vmem:[#allocation2 + $0x788] sm:$0xff]
    %v293 = vld [vmem:[#allocation2 + $0x790] sm:$0xff]
    %v294 = vld [vmem:[#allocation2 + $0x798] sm:$0xff]
    %v295 = vld [vmem:[#allocation2 + $0x7a0] sm:$0xff]
    %v296 = vld [vmem:[#allocation2 + $0x7a8] sm:$0xff]
    %v297 = vld [vmem:[#allocation2 + $0x7b0] sm:$0xff]
    %v298 = vld [vmem:[#allocation2 + $0x7b8] sm:$0xff]
    %v299 = vld [vmem:[#allocation2 + $0x7c0] sm:$0xff]
    %v300 = vld [vmem:[#allocation2 + $0x7c8] sm:$0xff]
    %v301 = vld [vmem:[#allocation2 + $0x7d0] sm:$0xff]
    %v302 = vld [vmem:[#allocation2 + $0x7d8] sm:$0xff]
    %v303 = vld [vmem:[#allocation2 + $0x7e0] sm:$0xff]
    %v304 = vld [vmem:[#allocation2 + $0x7e8] sm:$0xff]
    %v305 = vld [vmem:[#allocation2 + $0x7f0] sm:$0xff]
    %v306 = vld [vmem:[#allocation2 + $0x7f8] sm:$0xff]
    %v563 = vunpack.c.l.b16 %v51
    %v564 = vunpack.c.h.b16 %v51
    %v565 = vunpack.c.l.b16 %v52
    %v566 = vunpack.c.h.b16 %v52
    %v567 = vunpack.c.l.b16 %v53
    %v568 = vunpack.c.h.b16 %v53
    %v569 = vunpack.c.l.b16 %v54
    %v570 = vunpack.c.h.b16 %v54
    %v571 = vunpack.c.l.b16 %v55
    %v572 = vunpack.c.h.b16 %v55
    %v573 = vunpack.c.l.b16 %v56
    %v574 = vunpack.c.h.b16 %v56
    %v575 = vunpack.c.l.b16 %v57
    %v576 = vunpack.c.h.b16 %v57
    %v577 = vunpack.c.l.b16 %v58
    %v578 = vunpack.c.h.b16 %v58
    %v579 = vunpack.c.l.b16 %v59
    %v580 = vunpack.c.h.b16 %v59
    %v581 = vunpack.c.l.b16 %v60
    %v582 = vunpack.c.h.b16 %v60
    %v583 = vunpack.c.l.b16 %v61
    %v584 = vunpack.c.h.b16 %v61
    %v585 = vunpack.c.l.b16 %v62
    %v586 = vunpack.c.h.b16 %v62
    %v587 = vunpack.c.l.b16 %v63
    %v588 = vunpack.c.h.b16 %v63
    %v589 = vunpack.c.l.b16 %v64
    %v590 = vunpack.c.h.b16 %v64
    %v591 = vunpack.c.l.b16 %v65
    %v592 = vunpack.c.h.b16 %v65
    %v593 = vunpack.c.l.b16 %v66
    %v594 = vunpack.c.h.b16 %v66
    %v595 = vunpack.c.l.b16 %v67
    %v596 = vunpack.c.h.b16 %v67
    %v597 = vunpack.c.l.b16 %v68
    %v598 = vunpack.c.h.b16 %v68
    %v599 = vunpack.c.l.b16 %v69
    %v600 = vunpack.c.h.b16 %v69
    %v601 = vunpack.c.l.b16 %v70
    %v602 = vunpack.c.h.b16 %v70
    %v603 = vunpack.c.l.b16 %v71
    %v604 = vunpack.c.h.b16 %v71
    %v605 = vunpack.c.l.b16 %v72
    %v606 = vunpack.c.h.b16 %v72
    %v607 = vunpack.c.l.b16 %v73
    %v608 = vunpack.c.h.b16 %v73
    %v609 = vunpack.c.l.b16 %v74
    %v610 = vunpack.c.h.b16 %v74
    %v611 = vunpack.c.l.b16 %v75
    %v612 = vunpack.c.h.b16 %v75
    %v613 = vunpack.c.l.b16 %v76
    %v614 = vunpack.c.h.b16 %v76
    %v615 = vunpack.c.l.b16 %v77
    %v616 = vunpack.c.h.b16 %v77
    %v617 = vunpack.c.l.b16 %v78
    %v618 = vunpack.c.h.b16 %v78
    %v619 = vunpack.c.l.b16 %v79
    %v620 = vunpack.c.h.b16 %v79
    %v621 = vunpack.c.l.b16 %v80
    %v622 = vunpack.c.h.b16 %v80
    %v623 = vunpack.c.l.b16 %v81
    %v624 = vunpack.c.h.b16 %v81
    %v625 = vunpack.c.l.b16 %v82
    %v626 = vunpack.c.h.b16 %v82
    %v627 = vunpack.c.l.b16 %v83
    %v628 = vunpack.c.h.b16 %v83
    %v629 = vunpack.c.l.b16 %v84
    %v630 = vunpack.c.h.b16 %v84
    %v631 = vunpack.c.l.b16 %v85
    %v632 = vunpack.c.h.b16 %v85
    %v633 = vunpack.c.l.b16 %v86
    %v634 = vunpack.c.h.b16 %v86
    %v635 = vunpack.c.l.b16 %v87
    %v636 = vunpack.c.h.b16 %v87
    %v637 = vunpack.c.l.b16 %v88
    %v638 = vunpack.c.h.b16 %v88
    %v639 = vunpack.c.l.b16 %v89
    %v640 = vunpack.c.h.b16 %v89
    %v641 = vunpack.c.l.b16 %v90
    %v642 = vunpack.c.h.b16 %v90
    %v643 = vunpack.c.l.b16 %v91
    %v644 = vunpack.c.h.b16 %v91
    %v645 = vunpack.c.l.b16 %v92
    %v646 = vunpack.c.h.b16 %v92
    %v647 = vunpack.c.l.b16 %v93
    %v648 = vunpack.c.h.b16 %v93
    %v649 = vunpack.c.l.b16 %v94
    %v650 = vunpack.c.h.b16 %v94
    %v651 = vunpack.c.l.b16 %v95
    %v652 = vunpack.c.h.b16 %v95
    %v653 = vunpack.c.l.b16 %v96
    %v654 = vunpack.c.h.b16 %v96
    %v655 = vunpack.c.l.b16 %v97
    %v656 = vunpack.c.h.b16 %v97
    %v657 = vunpack.c.l.b16 %v98
    %v658 = vunpack.c.h.b16 %v98
    %v659 = vunpack.c.l.b16 %v99
    %v660 = vunpack.c.h.b16 %v99
    %v661 = vunpack.c.l.b16 %v100
    %v662 = vunpack.c.h.b16 %v100
    %v663 = vunpack.c.l.b16 %v101
    %v664 = vunpack.c.h.b16 %v101
    %v665 = vunpack.c.l.b16 %v102
    %v666 = vunpack.c.h.b16 %v102
    %v667 = vunpack.c.l.b16 %v103
    %v668 = vunpack.c.h.b16 %v103
    %v669 = vunpack.c.l.b16 %v104
    %v670 = vunpack.c.h.b16 %v104
    %v671 = vunpack.c.l.b16 %v105
    %v672 = vunpack.c.h.b16 %v105
    %v673 = vunpack.c.l.b16 %v106
    %v674 = vunpack.c.h.b16 %v106
    %v675 = vunpack.c.l.b16 %v107
    %v676 = vunpack.c.h.b16 %v107
    %v677 = vunpack.c.l.b16 %v108
    %v678 = vunpack.c.h.b16 %v108
    %v679 = vunpack.c.l.b16 %v109
    %v680 = vunpack.c.h.b16 %v109
    %v681 = vunpack.c.l.b16 %v110
    %v682 = vunpack.c.h.b16 %v110
    %v683 = vunpack.c.l.b16 %v111
    %v684 = vunpack.c.h.b16 %v111
    %v685 = vunpack.c.l.b16 %v112
    %v686 = vunpack.c.h.b16 %v112
    %v687 = vunpack.c.l.b16 %v113
    %v688 = vunpack.c.h.b16 %v113
    %v689 = vunpack.c.l.b16 %v114
    %v690 = vunpack.c.h.b16 %v114
    %v691 = vunpack.c.l.b16 %v115
    %v692 = vunpack.c.h.b16 %v115
    %v693 = vunpack.c.l.b16 %v116
    %v694 = vunpack.c.h.b16 %v116
    %v695 = vunpack.c.l.b16 %v117
    %v696 = vunpack.c.h.b16 %v117
    %v697 = vunpack.c.l.b16 %v118
    %v698 = vunpack.c.h.b16 %v118
    %v699 = vunpack.c.l.b16 %v119
    %v700 = vunpack.c.h.b16 %v119
    %v701 = vunpack.c.l.b16 %v120
    %v702 = vunpack.c.h.b16 %v120
    %v703 = vunpack.c.l.b16 %v121
    %v704 = vunpack.c.h.b16 %v121
    %v705 = vunpack.c.l.b16 %v122
    %v706 = vunpack.c.h.b16 %v122
    %v707 = vunpack.c.l.b16 %v123
    %v708 = vunpack.c.h.b16 %v123
    %v709 = vunpack.c.l.b16 %v124
    %v710 = vunpack.c.h.b16 %v124
    %v711 = vunpack.c.l.b16 %v125
    %v712 = vunpack.c.h.b16 %v125
    %v713 = vunpack.c.l.b16 %v126
    %v714 = vunpack.c.h.b16 %v126
    %v715 = vunpack.c.l.b16 %v127
    %v716 = vunpack.c.h.b16 %v127
    %v717 = vunpack.c.l.b16 %v128
    %v718 = vunpack.c.h.b16 %v128
    %v719 = vunpack.c.l.b16 %v129
    %v720 = vunpack.c.h.b16 %v129
    %v721 = vunpack.c.l.b16 %v130
    %v722 = vunpack.c.h.b16 %v130
    %v723 = vunpack.c.l.b16 %v131
    %v724 = vunpack.c.h.b16 %v131
    %v725 = vunpack.c.l.b16 %v132
    %v726 = vunpack.c.h.b16 %v132
    %v727 = vunpack.c.l.b16 %v133
    %v728 = vunpack.c.h.b16 %v133
    %v729 = vunpack.c.l.b16 %v134
    %v730 = vunpack.c.h.b16 %v134
    %v731 = vunpack.c.l.b16 %v135
    %v732 = vunpack.c.h.b16 %v135
    %v733 = vunpack.c.l.b16 %v136
    %v734 = vunpack.c.h.b16 %v136
    %v735 = vunpack.c.l.b16 %v137
    %v736 = vunpack.c.h.b16 %v137
    %v737 = vunpack.c.l.b16 %v138
    %v738 = vunpack.c.h.b16 %v138
    %v739 = vunpack.c.l.b16 %v139
    %v740 = vunpack.c.h.b16 %v139
    %v741 = vunpack.c.l.b16 %v140
    %v742 = vunpack.c.h.b16 %v140
    %v743 = vunpack.c.l.b16 %v141
    %v744 = vunpack.c.h.b16 %v141
    %v745 = vunpack.c.l.b16 %v142
    %v746 = vunpack.c.h.b16 %v142
    %v747 = vunpack.c.l.b16 %v143
    %v748 = vunpack.c.h.b16 %v143
    %v749 = vunpack.c.l.b16 %v144
    %v750 = vunpack.c.h.b16 %v144
    %v751 = vunpack.c.l.b16 %v145
    %v752 = vunpack.c.h.b16 %v145
    %v753 = vunpack.c.l.b16 %v146
    %v754 = vunpack.c.h.b16 %v146
    %v755 = vunpack.c.l.b16 %v147
    %v756 = vunpack.c.h.b16 %v147
    %v757 = vunpack.c.l.b16 %v148
    %v758 = vunpack.c.h.b16 %v148
    %v759 = vunpack.c.l.b16 %v149
    %v760 = vunpack.c.h.b16 %v149
    %v761 = vunpack.c.l.b16 %v150
    %v762 = vunpack.c.h.b16 %v150
    %v763 = vunpack.c.l.b16 %v151
    %v764 = vunpack.c.h.b16 %v151
    %v765 = vunpack.c.l.b16 %v152
    %v766 = vunpack.c.h.b16 %v152
    %v767 = vunpack.c.l.b16 %v153
    %v768 = vunpack.c.h.b16 %v153
    %v769 = vunpack.c.l.b16 %v154
    %v770 = vunpack.c.h.b16 %v154
    %v771 = vunpack.c.l.b16 %v155
    %v772 = vunpack.c.h.b16 %v155
    %v773 = vunpack.c.l.b16 %v156
    %v774 = vunpack.c.h.b16 %v156
    %v775 = vunpack.c.l.b16 %v157
    %v776 = vunpack.c.h.b16 %v157
    %v777 = vunpack.c.l.b16 %v158
    %v778 = vunpack.c.h.b16 %v158
    %v779 = vunpack.c.l.b16 %v159
    %v780 = vunpack.c.h.b16 %v159
    %v781 = vunpack.c.l.b16 %v160
    %v782 = vunpack.c.h.b16 %v160
    %v783 = vunpack.c.l.b16 %v161
    %v784 = vunpack.c.h.b16 %v161
    %v785 = vunpack.c.l.b16 %v162
    %v786 = vunpack.c.h.b16 %v162
    %v787 = vunpack.c.l.b16 %v163
    %v788 = vunpack.c.h.b16 %v163
    %v789 = vunpack.c.l.b16 %v164
    %v790 = vunpack.c.h.b16 %v164
    %v791 = vunpack.c.l.b16 %v165
    %v792 = vunpack.c.h.b16 %v165
    %v793 = vunpack.c.l.b16 %v166
    %v794 = vunpack.c.h.b16 %v166
    %v795 = vunpack.c.l.b16 %v167
    %v796 = vunpack.c.h.b16 %v167
    %v797 = vunpack.c.l.b16 %v168
    %v798 = vunpack.c.h.b16 %v168
    %v799 = vunpack.c.l.b16 %v169
    %v800 = vunpack.c.h.b16 %v169
    %v801 = vunpack.c.l.b16 %v170
    %v802 = vunpack.c.h.b16 %v170
    %v803 = vunpack.c.l.b16 %v171
    %v804 = vunpack.c.h.b16 %v171
    %v805 = vunpack.c.l.b16 %v172
    %v806 = vunpack.c.h.b16 %v172
    %v807 = vunpack.c.l.b16 %v173
    %v808 = vunpack.c.h.b16 %v173
    %v809 = vunpack.c.l.b16 %v174
    %v810 = vunpack.c.h.b16 %v174
    %v811 = vunpack.c.l.b16 %v175
    %v812 = vunpack.c.h.b16 %v175
    %v813 = vunpack.c.l.b16 %v176
    %v814 = vunpack.c.h.b16 %v176
    %v815 = vunpack.c.l.b16 %v177
    %v816 = vunpack.c.h.b16 %v177
    %v817 = vunpack.c.l.b16 %v178
    %v818 = vunpack.c.h.b16 %v178
    %v819 = vunpack.c.l.b16 %v179
    %v820 = vunpack.c.h.b16 %v179
    %v821 = vunpack.c.l.b16 %v180
    %v822 = vunpack.c.h.b16 %v180
    %v823 = vunpack.c.l.b16 %v181
    %v824 = vunpack.c.h.b16 %v181
    %v825 = vunpack.c.l.b16 %v182
    %v826 = vunpack.c.h.b16 %v182
    %v827 = vunpack.c.l.b16 %v183
    %v828 = vunpack.c.h.b16 %v183
    %v829 = vunpack.c.l.b16 %v184
    %v830 = vunpack.c.h.b16 %v184
    %v831 = vunpack.c.l.b16 %v185
    %v832 = vunpack.c.h.b16 %v185
    %v833 = vunpack.c.l.b16 %v186
    %v834 = vunpack.c.h.b16 %v186
    %v835 = vunpack.c.l.b16 %v187
    %v836 = vunpack.c.h.b16 %v187
    %v837 = vunpack.c.l.b16 %v188
    %v838 = vunpack.c.h.b16 %v188
    %v839 = vunpack.c.l.b16 %v189
    %v840 = vunpack.c.h.b16 %v189
    %v841 = vunpack.c.l.b16 %v190
    %v842 = vunpack.c.h.b16 %v190
    %v843 = vunpack.c.l.b16 %v191
    %v844 = vunpack.c.h.b16 %v191
    %v845 = vunpack.c.l.b16 %v192
    %v846 = vunpack.c.h.b16 %v192
    %v847 = vunpack.c.l.b16 %v193
    %v848 = vunpack.c.h.b16 %v193
    %v849 = vunpack.c.l.b16 %v194
    %v850 = vunpack.c.h.b16 %v194
    %v851 = vunpack.c.l.b16 %v195
    %v852 = vunpack.c.h.b16 %v195
    %v853 = vunpack.c.l.b16 %v196
    %v854 = vunpack.c.h.b16 %v196
    %v855 = vunpack.c.l.b16 %v197
    %v856 = vunpack.c.h.b16 %v197
    %v857 = vunpack.c.l.b16 %v198
    %v858 = vunpack.c.h.b16 %v198
    %v859 = vunpack.c.l.b16 %v199
    %v860 = vunpack.c.h.b16 %v199
    %v861 = vunpack.c.l.b16 %v200
    %v862 = vunpack.c.h.b16 %v200
    %v863 = vunpack.c.l.b16 %v201
    %v864 = vunpack.c.h.b16 %v201
    %v865 = vunpack.c.l.b16 %v202
    %v866 = vunpack.c.h.b16 %v202
    %v867 = vunpack.c.l.b16 %v203
    %v868 = vunpack.c.h.b16 %v203
    %v869 = vunpack.c.l.b16 %v204
    %v870 = vunpack.c.h.b16 %v204
    %v871 = vunpack.c.l.b16 %v205
    %v872 = vunpack.c.h.b16 %v205
    %v873 = vunpack.c.l.b16 %v206
    %v874 = vunpack.c.h.b16 %v206
    %v875 = vunpack.c.l.b16 %v207
    %v876 = vunpack.c.h.b16 %v207
    %v877 = vunpack.c.l.b16 %v208
    %v878 = vunpack.c.h.b16 %v208
    %v879 = vunpack.c.l.b16 %v209
    %v880 = vunpack.c.h.b16 %v209
    %v881 = vunpack.c.l.b16 %v210
    %v882 = vunpack.c.h.b16 %v210
    %v883 = vunpack.c.l.b16 %v211
    %v884 = vunpack.c.h.b16 %v211
    %v885 = vunpack.c.l.b16 %v212
    %v886 = vunpack.c.h.b16 %v212
    %v887 = vunpack.c.l.b16 %v213
    %v888 = vunpack.c.h.b16 %v213
    %v889 = vunpack.c.l.b16 %v214
    %v890 = vunpack.c.h.b16 %v214
    %v891 = vunpack.c.l.b16 %v215
    %v892 = vunpack.c.h.b16 %v215
    %v893 = vunpack.c.l.b16 %v216
    %v894 = vunpack.c.h.b16 %v216
    %v895 = vunpack.c.l.b16 %v217
    %v896 = vunpack.c.h.b16 %v217
    %v897 = vunpack.c.l.b16 %v218
    %v898 = vunpack.c.h.b16 %v218
    %v899 = vunpack.c.l.b16 %v219
    %v900 = vunpack.c.h.b16 %v219
    %v901 = vunpack.c.l.b16 %v220
    %v902 = vunpack.c.h.b16 %v220
    %v903 = vunpack.c.l.b16 %v221
    %v904 = vunpack.c.h.b16 %v221
    %v905 = vunpack.c.l.b16 %v222
    %v906 = vunpack.c.h.b16 %v222
    %v907 = vunpack.c.l.b16 %v223
    %v908 = vunpack.c.h.b16 %v223
    %v909 = vunpack.c.l.b16 %v224
    %v910 = vunpack.c.h.b16 %v224
    %v911 = vunpack.c.l.b16 %v225
    %v912 = vunpack.c.h.b16 %v225
    %v913 = vunpack.c.l.b16 %v226
    %v914 = vunpack.c.h.b16 %v226
    %v915 = vunpack.c.l.b16 %v227
    %v916 = vunpack.c.h.b16 %v227
    %v917 = vunpack.c.l.b16 %v228
    %v918 = vunpack.c.h.b16 %v228
    %v919 = vunpack.c.l.b16 %v229
    %v920 = vunpack.c.h.b16 %v229
    %v921 = vunpack.c.l.b16 %v230
    %v922 = vunpack.c.h.b16 %v230
    %v923 = vunpack.c.l.b16 %v231
    %v924 = vunpack.c.h.b16 %v231
    %v925 = vunpack.c.l.b16 %v232
    %v926 = vunpack.c.h.b16 %v232
    %v927 = vunpack.c.l.b16 %v233
    %v928 = vunpack.c.h.b16 %v233
    %v929 = vunpack.c.l.b16 %v234
    %v930 = vunpack.c.h.b16 %v234
    %v931 = vunpack.c.l.b16 %v235
    %v932 = vunpack.c.h.b16 %v235
    %v933 = vunpack.c.l.b16 %v236
    %v934 = vunpack.c.h.b16 %v236
    %v935 = vunpack.c.l.b16 %v237
    %v936 = vunpack.c.h.b16 %v237
    %v937 = vunpack.c.l.b16 %v238
    %v938 = vunpack.c.h.b16 %v238
    %v939 = vunpack.c.l.b16 %v239
    %v940 = vunpack.c.h.b16 %v239
    %v941 = vunpack.c.l.b16 %v240
    %v942 = vunpack.c.h.b16 %v240
    %v943 = vunpack.c.l.b16 %v241
    %v944 = vunpack.c.h.b16 %v241
    %v945 = vunpack.c.l.b16 %v242
    %v946 = vunpack.c.h.b16 %v242
    %v947 = vunpack.c.l.b16 %v243
    %v948 = vunpack.c.h.b16 %v243
    %v949 = vunpack.c.l.b16 %v244
    %v950 = vunpack.c.h.b16 %v244
    %v951 = vunpack.c.l.b16 %v245
    %v952 = vunpack.c.h.b16 %v245
    %v953 = vunpack.c.l.b16 %v246
    %v954 = vunpack.c.h.b16 %v246
    %v955 = vunpack.c.l.b16 %v247
    %v956 = vunpack.c.h.b16 %v247
    %v957 = vunpack.c.l.b16 %v248
    %v958 = vunpack.c.h.b16 %v248
    %v959 = vunpack.c.l.b16 %v249
    %v960 = vunpack.c.h.b16 %v249
    %v961 = vunpack.c.l.b16 %v250
    %v962 = vunpack.c.h.b16 %v250
    %v963 = vunpack.c.l.b16 %v251
    %v964 = vunpack.c.h.b16 %v251
    %v965 = vunpack.c.l.b16 %v252
    %v966 = vunpack.c.h.b16 %v252
    %v967 = vunpack.c.l.b16 %v253
    %v968 = vunpack.c.h.b16 %v253
    %v969 = vunpack.c.l.b16 %v254
    %v970 = vunpack.c.h.b16 %v254
    %v971 = vunpack.c.l.b16 %v255
    %v972 = vunpack.c.h.b16 %v255
    %v973 = vunpack.c.l.b16 %v256
    %v974 = vunpack.c.h.b16 %v256
    %v975 = vunpack.c.l.b16 %v257
    %v976 = vunpack.c.h.b16 %v257
    %v977 = vunpack.c.l.b16 %v258
    %v978 = vunpack.c.h.b16 %v258
    %v979 = vunpack.c.l.b16 %v259
    %v980 = vunpack.c.h.b16 %v259
    %v981 = vunpack.c.l.b16 %v260
    %v982 = vunpack.c.h.b16 %v260
    %v983 = vunpack.c.l.b16 %v261
    %v984 = vunpack.c.h.b16 %v261
    %v985 = vunpack.c.l.b16 %v262
    %v986 = vunpack.c.h.b16 %v262
    %v987 = vunpack.c.l.b16 %v263
    %v988 = vunpack.c.h.b16 %v263
    %v989 = vunpack.c.l.b16 %v264
    %v990 = vunpack.c.h.b16 %v264
    %v991 = vunpack.c.l.b16 %v265
    %v992 = vunpack.c.h.b16 %v265
    %v993 = vunpack.c.l.b16 %v266
    %v994 = vunpack.c.h.b16 %v266
    %v995 = vunpack.c.l.b16 %v267
    %v996 = vunpack.c.h.b16 %v267
    %v997 = vunpack.c.l.b16 %v268
    %v998 = vunpack.c.h.b16 %v268
    %v999 = vunpack.c.l.b16 %v269
    %v1000 = vunpack.c.h.b16 %v269
    %v1001 = vunpack.c.l.b16 %v270
    %v1002 = vunpack.c.h.b16 %v270
    %v1003 = vunpack.c.l.b16 %v271
    %v1004 = vunpack.c.h.b16 %v271
    %v1005 = vunpack.c.l.b16 %v272
    %v1006 = vunpack.c.h.b16 %v272
    %v1007 = vunpack.c.l.b16 %v273
    %v1008 = vunpack.c.h.b16 %v273
    %v1009 = vunpack.c.l.b16 %v274
    %v1010 = vunpack.c.h.b16 %v274
    %v1011 = vunpack.c.l.b16 %v275
    %v1012 = vunpack.c.h.b16 %v275
    %v1013 = vunpack.c.l.b16 %v276
    %v1014 = vunpack.c.h.b16 %v276
    %v1015 = vunpack.c.l.b16 %v277
    %v1016 = vunpack.c.h.b16 %v277
    %v1017 = vunpack.c.l.b16 %v278
    %v1018 = vunpack.c.h.b16 %v278
    %v1019 = vunpack.c.l.b16 %v279
    %v1020 = vunpack.c.h.b16 %v279
    %v1021 = vunpack.c.l.b16 %v280
    %v1022 = vunpack.c.h.b16 %v280
    %v1023 = vunpack.c.l.b16 %v281
    %v1024 = vunpack.c.h.b16 %v281
    %v1025 = vunpack.c.l.b16 %v282
    %v1026 = vunpack.c.h.b16 %v282
    %v1027 = vunpack.c.l.b16 %v283
    %v1028 = vunpack.c.h.b16 %v283
    %v1029 = vunpack.c.l.b16 %v284
    %v1030 = vunpack.c.h.b16 %v284
    %v1031 = vunpack.c.l.b16 %v285
    %v1032 = vunpack.c.h.b16 %v285
    %v1033 = vunpack.c.l.b16 %v286
    %v1034 = vunpack.c.h.b16 %v286
    %v1035 = vunpack.c.l.b16 %v287
    %v1036 = vunpack.c.h.b16 %v287
    %v1037 = vunpack.c.l.b16 %v288
    %v1038 = vunpack.c.h.b16 %v288
    %v1039 = vunpack.c.l.b16 %v289
    %v1040 = vunpack.c.h.b16 %v289
    %v1041 = vunpack.c.l.b16 %v290
    %v1042 = vunpack.c.h.b16 %v290
    %v1043 = vunpack.c.l.b16 %v291
    %v1044 = vunpack.c.h.b16 %v291
    %v1045 = vunpack.c.l.b16 %v292
    %v1046 = vunpack.c.h.b16 %v292
    %v1047 = vunpack.c.l.b16 %v293
    %v1048 = vunpack.c.h.b16 %v293
    %v1049 = vunpack.c.l.b16 %v294
    %v1050 = vunpack.c.h.b16 %v294
    %v1051 = vunpack.c.l.b16 %v295
    %v1052 = vunpack.c.h.b16 %v295
    %v1053 = vunpack.c.l.b16 %v296
    %v1054 = vunpack.c.h.b16 %v296
    %v1055 = vunpack.c.l.b16 %v297
    %v1056 = vunpack.c.h.b16 %v297
    %v1057 = vunpack.c.l.b16 %v298
    %v1058 = vunpack.c.h.b16 %v298
    %v1059 = vunpack.c.l.b16 %v299
    %v1060 = vunpack.c.h.b16 %v299
    %v1061 = vunpack.c.l.b16 %v300
    %v1062 = vunpack.c.h.b16 %v300
    %v1063 = vunpack.c.l.b16 %v301
    %v1064 = vunpack.c.h.b16 %v301
    %v1065 = vunpack.c.l.b16 %v302
    %v1066 = vunpack.c.h.b16 %v302
    %v1067 = vunpack.c.l.b16 %v303
    %v1068 = vunpack.c.h.b16 %v303
    %v1069 = vunpack.c.l.b16 %v304
    %v1070 = vunpack.c.h.b16 %v304
    %v1071 = vunpack.c.l.b16 %v305
    %v1072 = vunpack.c.h.b16 %v305
    %v1073 = vunpack.c.l.b16 %v306
    %v1074 = vunpack.c.h.b16 %v306
    %v1075 = vpack.c.b16 %v579, %v563
    %v1076 = vpack.c.b16 %v580, %v564
    %v1077 = vpack.c.b16 %v581, %v565
    %v1078 = vpack.c.b16 %v582, %v566
    %v1079 = vpack.c.b16 %v583, %v567
    %v1080 = vpack.c.b16 %v584, %v568
    %v1081 = vpack.c.b16 %v585, %v569
    %v1082 = vpack.c.b16 %v586, %v570
    %v1083 = vpack.c.b16 %v587, %v571
    %v1084 = vpack.c.b16 %v588, %v572
    %v1085 = vpack.c.b16 %v589, %v573
    %v1086 = vpack.c.b16 %v590, %v574
    %v1087 = vpack.c.b16 %v591, %v575
    %v1088 = vpack.c.b16 %v592, %v576
    %v1089 = vpack.c.b16 %v593, %v577
    %v1090 = vpack.c.b16 %v594, %v578
    %v1091 = vpack.c.b16 %v611, %v595
    %v1092 = vpack.c.b16 %v612, %v596
    %v1093 = vpack.c.b16 %v613, %v597
    %v1094 = vpack.c.b16 %v614, %v598
    %v1095 = vpack.c.b16 %v615, %v599
    %v1096 = vpack.c.b16 %v616, %v600
    %v1097 = vpack.c.b16 %v617, %v601
    %v1098 = vpack.c.b16 %v618, %v602
    %v1099 = vpack.c.b16 %v619, %v603
    %v1100 = vpack.c.b16 %v620, %v604
    %v1101 = vpack.c.b16 %v621, %v605
    %v1102 = vpack.c.b16 %v622, %v606
    %v1103 = vpack.c.b16 %v623, %v607
    %v1104 = vpack.c.b16 %v624, %v608
    %v1105 = vpack.c.b16 %v625, %v609
    %v1106 = vpack.c.b16 %v626, %v610
    %v1107 = vpack.c.b16 %v643, %v627
    %v1108 = vpack.c.b16 %v644, %v628
    %v1109 = vpack.c.b16 %v645, %v629
    %v1110 = vpack.c.b16 %v646, %v630
    %v1111 = vpack.c.b16 %v647, %v631
    %v1112 = vpack.c.b16 %v648, %v632
    %v1113 = vpack.c.b16 %v649, %v633
    %v1114 = vpack.c.b16 %v650, %v634
    %v1115 = vpack.c.b16 %v651, %v635
    %v1116 = vpack.c.b16 %v652, %v636
    %v1117 = vpack.c.b16 %v653, %v637
    %v1118 = vpack.c.b16 %v654, %v638
    %v1119 = vpack.c.b16 %v655, %v639
    %v1120 = vpack.c.b16 %v656, %v640
    %v1121 = vpack.c.b16 %v657, %v641
    %v1122 = vpack.c.b16 %v658, %v642
    %v1123 = vpack.c.b16 %v675, %v659
    %v1124 = vpack.c.b16 %v676, %v660
    %v1125 = vpack.c.b16 %v677, %v661
    %v1126 = vpack.c.b16 %v678, %v662
    %v1127 = vpack.c.b16 %v679, %v663
    %v1128 = vpack.c.b16 %v680, %v664
    %v1129 = vpack.c.b16 %v681, %v665
    %v1130 = vpack.c.b16 %v682, %v666
    %v1131 = vpack.c.b16 %v683, %v667
    %v1132 = vpack.c.b16 %v684, %v668
    %v1133 = vpack.c.b16 %v685, %v669
    %v1134 = vpack.c.b16 %v686, %v670
    %v1135 = vpack.c.b16 %v687, %v671
    %v1136 = vpack.c.b16 %v688, %v672
    %v1137 = vpack.c.b16 %v689, %v673
    %v1138 = vpack.c.b16 %v690, %v674
    %v1139 = vpack.c.b16 %v707, %v691
    %v1140 = vpack.c.b16 %v708, %v692
    %v1141 = vpack.c.b16 %v709, %v693
    %v1142 = vpack.c.b16 %v710, %v694
    %v1143 = vpack.c.b16 %v711, %v695
    %v1144 = vpack.c.b16 %v712, %v696
    %v1145 = vpack.c.b16 %v713, %v697
    %v1146 = vpack.c.b16 %v714, %v698
    %v1147 = vpack.c.b16 %v715, %v699
    %v1148 = vpack.c.b16 %v716, %v700
    %v1149 = vpack.c.b16 %v717, %v701
    %v1150 = vpack.c.b16 %v718, %v702
    %v1151 = vpack.c.b16 %v719, %v703
    %v1152 = vpack.c.b16 %v720, %v704
    %v1153 = vpack.c.b16 %v721, %v705
    %v1154 = vpack.c.b16 %v722, %v706
    %v1155 = vpack.c.b16 %v739, %v723
    %v1156 = vpack.c.b16 %v740, %v724
    %v1157 = vpack.c.b16 %v741, %v725
    %v1158 = vpack.c.b16 %v742, %v726
    %v1159 = vpack.c.b16 %v743, %v727
    %v1160 = vpack.c.b16 %v744, %v728
    %v1161 = vpack.c.b16 %v745, %v729
    %v1162 = vpack.c.b16 %v746, %v730
    %v1163 = vpack.c.b16 %v747, %v731
    %v1164 = vpack.c.b16 %v748, %v732
    %v1165 = vpack.c.b16 %v749, %v733
    %v1166 = vpack.c.b16 %v750, %v734
    %v1167 = vpack.c.b16 %v751, %v735
    %v1168 = vpack.c.b16 %v752, %v736
    %v1169 = vpack.c.b16 %v753, %v737
    %v1170 = vpack.c.b16 %v754, %v738
    %v1171 = vpack.c.b16 %v771, %v755
    %v1172 = vpack.c.b16 %v772, %v756
    %v1173 = vpack.c.b16 %v773, %v757
    %v1174 = vpack.c.b16 %v774, %v758
    %v1175 = vpack.c.b16 %v775, %v759
    %v1176 = vpack.c.b16 %v776, %v760
    %v1177 = vpack.c.b16 %v777, %v761
    %v1178 = vpack.c.b16 %v778, %v762
    %v1179 = vpack.c.b16 %v779, %v763
    %v1180 = vpack.c.b16 %v780, %v764
    %v1181 = vpack.c.b16 %v781, %v765
    %v1182 = vpack.c.b16 %v782, %v766
    %v1183 = vpack.c.b16 %v783, %v767
    %v1184 = vpack.c.b16 %v784, %v768
    %v1185 = vpack.c.b16 %v785, %v769
    %v1186 = vpack.c.b16 %v786, %v770
    %v1187 = vpack.c.b16 %v803, %v787
    %v1188 = vpack.c.b16 %v804, %v788
    %v1189 = vpack.c.b16 %v805, %v789
    %v1190 = vpack.c.b16 %v806, %v790
    %v1191 = vpack.c.b16 %v807, %v791
    %v1192 = vpack.c.b16 %v808, %v792
    %v1193 = vpack.c.b16 %v809, %v793
    %v1194 = vpack.c.b16 %v810, %v794
    %v1195 = vpack.c.b16 %v811, %v795
    %v1196 = vpack.c.b16 %v812, %v796
    %v1197 = vpack.c.b16 %v813, %v797
    %v1198 = vpack.c.b16 %v814, %v798
    %v1199 = vpack.c.b16 %v815, %v799
    %v1200 = vpack.c.b16 %v816, %v800
    %v1201 = vpack.c.b16 %v817, %v801
    %v1202 = vpack.c.b16 %v818, %v802
    %v1203 = vpack.c.b16 %v835, %v819
    %v1204 = vpack.c.b16 %v836, %v820
    %v1205 = vpack.c.b16 %v837, %v821
    %v1206 = vpack.c.b16 %v838, %v822
    %v1207 = vpack.c.b16 %v839, %v823
    %v1208 = vpack.c.b16 %v840, %v824
    %v1209 = vpack.c.b16 %v841, %v825
    %v1210 = vpack.c.b16 %v842, %v826
    %v1211 = vpack.c.b16 %v843, %v827
    %v1212 = vpack.c.b16 %v844, %v828
    %v1213 = vpack.c.b16 %v845, %v829
    %v1214 = vpack.c.b16 %v846, %v830
    %v1215 = vpack.c.b16 %v847, %v831
    %v1216 = vpack.c.b16 %v848, %v832
    %v1217 = vpack.c.b16 %v849, %v833
    %v1218 = vpack.c.b16 %v850, %v834
    %v1219 = vpack.c.b16 %v867, %v851
    %v1220 = vpack.c.b16 %v868, %v852
    %v1221 = vpack.c.b16 %v869, %v853
    %v1222 = vpack.c.b16 %v870, %v854
    %v1223 = vpack.c.b16 %v871, %v855
    %v1224 = vpack.c.b16 %v872, %v856
    %v1225 = vpack.c.b16 %v873, %v857
    %v1226 = vpack.c.b16 %v874, %v858
    %v1227 = vpack.c.b16 %v875, %v859
    %v1228 = vpack.c.b16 %v876, %v860
    %v1229 = vpack.c.b16 %v877, %v861
    %v1230 = vpack.c.b16 %v878, %v862
    %v1231 = vpack.c.b16 %v879, %v863
    %v1232 = vpack.c.b16 %v880, %v864
    %v1233 = vpack.c.b16 %v881, %v865
    %v1234 = vpack.c.b16 %v882, %v866
    %v1235 = vpack.c.b16 %v899, %v883
    %v1236 = vpack.c.b16 %v900, %v884
    %v1237 = vpack.c.b16 %v901, %v885
    %v1238 = vpack.c.b16 %v902, %v886
    %v1239 = vpack.c.b16 %v903, %v887
    %v1240 = vpack.c.b16 %v904, %v888
    %v1241 = vpack.c.b16 %v905, %v889
    %v1242 = vpack.c.b16 %v906, %v890
    %v1243 = vpack.c.b16 %v907, %v891
    %v1244 = vpack.c.b16 %v908, %v892
    %v1245 = vpack.c.b16 %v909, %v893
    %v1246 = vpack.c.b16 %v910, %v894
    %v1247 = vpack.c.b16 %v911, %v895
    %v1248 = vpack.c.b16 %v912, %v896
    %v1249 = vpack.c.b16 %v913, %v897
    %v1250 = vpack.c.b16 %v914, %v898
    %v1251 = vpack.c.b16 %v931, %v915
    %v1252 = vpack.c.b16 %v932, %v916
    %v1253 = vpack.c.b16 %v933, %v917
    %v1254 = vpack.c.b16 %v934, %v918
    %v1255 = vpack.c.b16 %v935, %v919
    %v1256 = vpack.c.b16 %v936, %v920
    %v1257 = vpack.c.b16 %v937, %v921
    %v1258 = vpack.c.b16 %v938, %v922
    %v1259 = vpack.c.b16 %v939, %v923
    %v1260 = vpack.c.b16 %v940, %v924
    %v1261 = vpack.c.b16 %v941, %v925
    %v1262 = vpack.c.b16 %v942, %v926
    %v1263 = vpack.c.b16 %v943, %v927
    %v1264 = vpack.c.b16 %v944, %v928
    %v1265 = vpack.c.b16 %v945, %v929
    %v1266 = vpack.c.b16 %v946, %v930
    %v1267 = vpack.c.b16 %v963, %v947
    %v1268 = vpack.c.b16 %v964, %v948
    %v1269 = vpack.c.b16 %v965, %v949
    %v1270 = vpack.c.b16 %v966, %v950
    %v1271 = vpack.c.b16 %v967, %v951
    %v1272 = vpack.c.b16 %v968, %v952
    %v1273 = vpack.c.b16 %v969, %v953
    %v1274 = vpack.c.b16 %v970, %v954
    %v1275 = vpack.c.b16 %v971, %v955
    %v1276 = vpack.c.b16 %v972, %v956
    %v1277 = vpack.c.b16 %v973, %v957
    %v1278 = vpack.c.b16 %v974, %v958
    %v1279 = vpack.c.b16 %v975, %v959
    %v1280 = vpack.c.b16 %v976, %v960
    %v1281 = vpack.c.b16 %v977, %v961
    %v1282 = vpack.c.b16 %v978, %v962
    %v1283 = vpack.c.b16 %v995, %v979
    %v1284 = vpack.c.b16 %v996, %v980
    %v1285 = vpack.c.b16 %v997, %v981
    %v1286 = vpack.c.b16 %v998, %v982
    %v1287 = vpack.c.b16 %v999, %v983
    %v1288 = vpack.c.b16 %v1000, %v984
    %v1289 = vpack.c.b16 %v1001, %v985
    %v1290 = vpack.c.b16 %v1002, %v986
    %v1291 = vpack.c.b16 %v1003, %v987
    %v1292 = vpack.c.b16 %v1004, %v988
    %v1293 = vpack.c.b16 %v1005, %v989
    %v1294 = vpack.c.b16 %v1006, %v990
    %v1295 = vpack.c.b16 %v1007, %v991
    %v1296 = vpack.c.b16 %v1008, %v992
    %v1297 = vpack.c.b16 %v1009, %v993
    %v1298 = vpack.c.b16 %v1010, %v994
    %v1299 = vpack.c.b16 %v1027, %v1011
    %v1300 = vpack.c.b16 %v1028, %v1012
    %v1301 = vpack.c.b16 %v1029, %v1013
    %v1302 = vpack.c.b16 %v1030, %v1014
    %v1303 = vpack.c.b16 %v1031, %v1015
    %v1304 = vpack.c.b16 %v1032, %v1016
    %v1305 = vpack.c.b16 %v1033, %v1017
    %v1306 = vpack.c.b16 %v1034, %v1018
    %v1307 = vpack.c.b16 %v1035, %v1019
    %v1308 = vpack.c.b16 %v1036, %v1020
    %v1309 = vpack.c.b16 %v1037, %v1021
    %v1310 = vpack.c.b16 %v1038, %v1022
    %v1311 = vpack.c.b16 %v1039, %v1023
    %v1312 = vpack.c.b16 %v1040, %v1024
    %v1313 = vpack.c.b16 %v1041, %v1025
    %v1314 = vpack.c.b16 %v1042, %v1026
    %v1315 = vpack.c.b16 %v1059, %v1043
    %v1316 = vpack.c.b16 %v1060, %v1044
    %v1317 = vpack.c.b16 %v1061, %v1045
    %v1318 = vpack.c.b16 %v1062, %v1046
    %v1319 = vpack.c.b16 %v1063, %v1047
    %v1320 = vpack.c.b16 %v1064, %v1048
    %v1321 = vpack.c.b16 %v1065, %v1049
    %v1322 = vpack.c.b16 %v1066, %v1050
    %v1323 = vpack.c.b16 %v1067, %v1051
    %v1324 = vpack.c.b16 %v1068, %v1052
    %v1325 = vpack.c.b16 %v1069, %v1053
    %v1326 = vpack.c.b16 %v1070, %v1054
    %v1327 = vpack.c.b16 %v1071, %v1055
    %v1328 = vpack.c.b16 %v1072, %v1056
    %v1329 = vpack.c.b16 %v1073, %v1057
    %v1330 = vpack.c.b16 %v1074, %v1058
    %1587 = vmatpush.bf16.msra.mxu0 %v1187
    %1588 = vmatpush.bf16.msra.mxu0 %v1171
    %1589 = vmatpush.bf16.msra.mxu0 %v1155
    %1590 = vmatpush.bf16.msra.mxu0 %v1139
    %1591 = vmatpush.bf16.msra.mxu0 %v1123
    %1592 = vmatpush.bf16.msra.mxu0 %v1107
    %1593 = vmatpush.bf16.msra.mxu0 %v1091
    %1594 = vmatpush.bf16.msra.mxu0 %v1075
    %1595 = vmatmul.bf16.gmra.mxu0 %v49
    %v1596 = vpop.f32.mrf.mxu0
    %v1597 = vadd.f32 0.0, %v1596
    %v1598 = vpop.f32.mrf.mxu0
    %1599 = vdwg.mxu0
    %1600 = vmatpush.bf16.msra.mxu0 %v1315
    %1601 = vmatpush.bf16.msra.mxu0 %v1299
    %1602 = vmatpush.bf16.msra.mxu0 %v1283
    %1603 = vmatpush.bf16.msra.mxu0 %v1267
    %1604 = vmatpush.bf16.msra.mxu0 %v1251
    %1605 = vmatpush.bf16.msra.mxu0 %v1235
    %1606 = vmatpush.bf16.msra.mxu0 %v1219
    %1607 = vmatpush.bf16.msra.mxu0 %v1203
    %1608 = vmatmul.bf16.gmra.mxu0 %v50
    %v1609 = vpop.f32.mrf.mxu0
    %v1610 = vadd.f32 %v1597, %v1609
    %v1611 = vpop.f32.mrf.mxu0
    %1612 = vdwg.mxu0
    %1613 = vmatpush.bf16.msra.mxu0 %v1188
    %1614 = vmatpush.bf16.msra.mxu0 %v1172
    %1615 = vmatpush.bf16.msra.mxu0 %v1156
    %1616 = vmatpush.bf16.msra.mxu0 %v1140
    %1617 = vmatpush.bf16.msra.mxu0 %v1124
    %1618 = vmatpush.bf16.msra.mxu0 %v1108
    %1619 = vmatpush.bf16.msra.mxu0 %v1092
    %1620 = vmatpush.bf16.msra.mxu0 %v1076
    %1621 = vmatmul.bf16.gmra.mxu0 %v49
    %v1622 = vpop.f32.mrf.mxu0
    %v1623 = vadd.f32 0.0, %v1622
    %v1624 = vpop.f32.mrf.mxu0
    %1625 = vdwg.mxu0
    %1626 = vmatpush.bf16.msra.mxu0 %v1316
    %1627 = vmatpush.bf16.msra.mxu0 %v1300
    %1628 = vmatpush.bf16.msra.mxu0 %v1284
    %1629 = vmatpush.bf16.msra.mxu0 %v1268
    %1630 = vmatpush.bf16.msra.mxu0 %v1252
    %1631 = vmatpush.bf16.msra.mxu0 %v1236
    %1632 = vmatpush.bf16.msra.mxu0 %v1220
    %1633 = vmatpush.bf16.msra.mxu0 %v1204
    %1634 = vmatmul.bf16.gmra.mxu0 %v50
    %v1635 = vpop.f32.mrf.mxu0
    %v1636 = vadd.f32 %v1623, %v1635
    %v1637 = vpop.f32.mrf.mxu0
    %1638 = vdwg.mxu0
    %1639 = vmatpush.bf16.msra.mxu0 %v1189
    %1640 = vmatpush.bf16.msra.mxu0 %v1173
    %1641 = vmatpush.bf16.msra.mxu0 %v1157
    %1642 = vmatpush.bf16.msra.mxu0 %v1141
    %1643 = vmatpush.bf16.msra.mxu0 %v1125
    %1644 = vmatpush.bf16.msra.mxu0 %v1109
    %1645 = vmatpush.bf16.msra.mxu0 %v1093
    %1646 = vmatpush.bf16.msra.mxu0 %v1077
    %1647 = vmatmul.bf16.gmra.mxu0 %v49
    %v1648 = vpop.f32.mrf.mxu0
    %v1649 = vadd.f32 0.0, %v1648
    %v1650 = vpop.f32.mrf.mxu0
    %1651 = vdwg.mxu0
    %1652 = vmatpush.bf16.msra.mxu0 %v1317
    %1653 = vmatpush.bf16.msra.mxu0 %v1301
    %1654 = vmatpush.bf16.msra.mxu0 %v1285
    %1655 = vmatpush.bf16.msra.mxu0 %v1269
    %1656 = vmatpush.bf16.msra.mxu0 %v1253
    %1657 = vmatpush.bf16.msra.mxu0 %v1237
    %1658 = vmatpush.bf16.msra.mxu0 %v1221
    %1659 = vmatpush.bf16.msra.mxu0 %v1205
    %1660 = vmatmul.bf16.gmra.mxu0 %v50
    %v1661 = vpop.f32.mrf.mxu0
    %v1662 = vadd.f32 %v1649, %v1661
    %v1663 = vpop.f32.mrf.mxu0
    %1664 = vdwg.mxu0
    %1665 = vmatpush.bf16.msra.mxu0 %v1190
    %1666 = vmatpush.bf16.msra.mxu0 %v1174
    %1667 = vmatpush.bf16.msra.mxu0 %v1158
    %1668 = vmatpush.bf16.msra.mxu0 %v1142
    %1669 = vmatpush.bf16.msra.mxu0 %v1126
    %1670 = vmatpush.bf16.msra.mxu0 %v1110
    %1671 = vmatpush.bf16.msra.mxu0 %v1094
    %1672 = vmatpush.bf16.msra.mxu0 %v1078
    %1673 = vmatmul.bf16.gmra.mxu0 %v49
    %v1674 = vpop.f32.mrf.mxu0
    %v1675 = vadd.f32 0.0, %v1674
    %v1676 = vpop.f32.mrf.mxu0
    %1677 = vdwg.mxu0
    %1678 = vmatpush.bf16.msra.mxu0 %v1318
    %1679 = vmatpush.bf16.msra.mxu0 %v1302
    %1680 = vmatpush.bf16.msra.mxu0 %v1286
    %1681 = vmatpush.bf16.msra.mxu0 %v1270
    %1682 = vmatpush.bf16.msra.mxu0 %v1254
    %1683 = vmatpush.bf16.msra.mxu0 %v1238
    %1684 = vmatpush.bf16.msra.mxu0 %v1222
    %1685 = vmatpush.bf16.msra.mxu0 %v1206
    %1686 = vmatmul.bf16.gmra.mxu0 %v50
    %v1687 = vpop.f32.mrf.mxu0
    %v1688 = vadd.f32 %v1675, %v1687
    %v1689 = vpop.f32.mrf.mxu0
    %1690 = vdwg.mxu0
    %1691 = vmatpush.bf16.msra.mxu0 %v1191
    %1692 = vmatpush.bf16.msra.mxu0 %v1175
    %1693 = vmatpush.bf16.msra.mxu0 %v1159
    %1694 = vmatpush.bf16.msra.mxu0 %v1143
    %1695 = vmatpush.bf16.msra.mxu0 %v1127
    %1696 = vmatpush.bf16.msra.mxu0 %v1111
    %1697 = vmatpush.bf16.msra.mxu0 %v1095
    %1698 = vmatpush.bf16.msra.mxu0 %v1079
    %1699 = vmatmul.bf16.gmra.mxu0 %v49
    %v1700 = vpop.f32.mrf.mxu0
    %v1701 = vadd.f32 0.0, %v1700
    %v1702 = vpop.f32.mrf.mxu0
    %1703 = vdwg.mxu0
    %1704 = vmatpush.bf16.msra.mxu0 %v1319
    %1705 = vmatpush.bf16.msra.mxu0 %v1303
    %1706 = vmatpush.bf16.msra.mxu0 %v1287
    %1707 = vmatpush.bf16.msra.mxu0 %v1271
    %1708 = vmatpush.bf16.msra.mxu0 %v1255
    %1709 = vmatpush.bf16.msra.mxu0 %v1239
    %1710 = vmatpush.bf16.msra.mxu0 %v1223
    %1711 = vmatpush.bf16.msra.mxu0 %v1207
    %1712 = vmatmul.bf16.gmra.mxu0 %v50
    %v1713 = vpop.f32.mrf.mxu0
    %v1714 = vadd.f32 %v1701, %v1713
    %v1715 = vpop.f32.mrf.mxu0
    %1716 = vdwg.mxu0
    %1717 = vmatpush.bf16.msra.mxu0 %v1192
    %1718 = vmatpush.bf16.msra.mxu0 %v1176
    %1719 = vmatpush.bf16.msra.mxu0 %v1160
    %1720 = vmatpush.bf16.msra.mxu0 %v1144
    %1721 = vmatpush.bf16.msra.mxu0 %v1128
    %1722 = vmatpush.bf16.msra.mxu0 %v1112
    %1723 = vmatpush.bf16.msra.mxu0 %v1096
    %1724 = vmatpush.bf16.msra.mxu0 %v1080
    %1725 = vmatmul.bf16.gmra.mxu0 %v49
    %v1726 = vpop.f32.mrf.mxu0
    %v1727 = vadd.f32 0.0, %v1726
    %v1728 = vpop.f32.mrf.mxu0
    %1729 = vdwg.mxu0
    %1730 = vmatpush.bf16.msra.mxu0 %v1320
    %1731 = vmatpush.bf16.msra.mxu0 %v1304
    %1732 = vmatpush.bf16.msra.mxu0 %v1288
    %1733 = vmatpush.bf16.msra.mxu0 %v1272
    %1734 = vmatpush.bf16.msra.mxu0 %v1256
    %1735 = vmatpush.bf16.msra.mxu0 %v1240
    %1736 = vmatpush.bf16.msra.mxu0 %v1224
    %1737 = vmatpush.bf16.msra.mxu0 %v1208
    %1738 = vmatmul.bf16.gmra.mxu0 %v50
    %v1739 = vpop.f32.mrf.mxu0
    %v1740 = vadd.f32 %v1727, %v1739
    %v1741 = vpop.f32.mrf.mxu0
    %1742 = vdwg.mxu0
    %1743 = vmatpush.bf16.msra.mxu0 %v1193
    %1744 = vmatpush.bf16.msra.mxu0 %v1177
    %1745 = vmatpush.bf16.msra.mxu0 %v1161
    %1746 = vmatpush.bf16.msra.mxu0 %v1145
    %1747 = vmatpush.bf16.msra.mxu0 %v1129
    %1748 = vmatpush.bf16.msra.mxu0 %v1113
    %1749 = vmatpush.bf16.msra.mxu0 %v1097
    %1750 = vmatpush.bf16.msra.mxu0 %v1081
    %1751 = vmatmul.bf16.gmra.mxu0 %v49
    %v1752 = vpop.f32.mrf.mxu0
    %v1753 = vadd.f32 0.0, %v1752
    %v1754 = vpop.f32.mrf.mxu0
    %1755 = vdwg.mxu0
    %1756 = vmatpush.bf16.msra.mxu0 %v1321
    %1757 = vmatpush.bf16.msra.mxu0 %v1305
    %1758 = vmatpush.bf16.msra.mxu0 %v1289
    %1759 = vmatpush.bf16.msra.mxu0 %v1273
    %1760 = vmatpush.bf16.msra.mxu0 %v1257
    %1761 = vmatpush.bf16.msra.mxu0 %v1241
    %1762 = vmatpush.bf16.msra.mxu0 %v1225
    %1763 = vmatpush.bf16.msra.mxu0 %v1209
    %1764 = vmatmul.bf16.gmra.mxu0 %v50
    %v1765 = vpop.f32.mrf.mxu0
    %v1766 = vadd.f32 %v1753, %v1765
    %v1767 = vpop.f32.mrf.mxu0
    %1768 = vdwg.mxu0
    %1769 = vmatpush.bf16.msra.mxu0 %v1194
    %1770 = vmatpush.bf16.msra.mxu0 %v1178
    %1771 = vmatpush.bf16.msra.mxu0 %v1162
    %1772 = vmatpush.bf16.msra.mxu0 %v1146
    %1773 = vmatpush.bf16.msra.mxu0 %v1130
    %1774 = vmatpush.bf16.msra.mxu0 %v1114
    %1775 = vmatpush.bf16.msra.mxu0 %v1098
    %1776 = vmatpush.bf16.msra.mxu0 %v1082
    %1777 = vmatmul.bf16.gmra.mxu0 %v49
    %v1778 = vpop.f32.mrf.mxu0
    %v1779 = vadd.f32 0.0, %v1778
    %v1780 = vpop.f32.mrf.mxu0
    %1781 = vdwg.mxu0
    %1782 = vmatpush.bf16.msra.mxu0 %v1322
    %1783 = vmatpush.bf16.msra.mxu0 %v1306
    %1784 = vmatpush.bf16.msra.mxu0 %v1290
    %1785 = vmatpush.bf16.msra.mxu0 %v1274
    %1786 = vmatpush.bf16.msra.mxu0 %v1258
    %1787 = vmatpush.bf16.msra.mxu0 %v1242
    %1788 = vmatpush.bf16.msra.mxu0 %v1226
    %1789 = vmatpush.bf16.msra.mxu0 %v1210
    %1790 = vmatmul.bf16.gmra.mxu0 %v50
    %v1791 = vpop.f32.mrf.mxu0
    %v1792 = vadd.f32 %v1779, %v1791
    %v1793 = vpop.f32.mrf.mxu0
    %1794 = vdwg.mxu0
    %1795 = vmatpush.bf16.msra.mxu0 %v1195
    %1796 = vmatpush.bf16.msra.mxu0 %v1179
    %1797 = vmatpush.bf16.msra.mxu0 %v1163
    %1798 = vmatpush.bf16.msra.mxu0 %v1147
    %1799 = vmatpush.bf16.msra.mxu0 %v1131
    %1800 = vmatpush.bf16.msra.mxu0 %v1115
    %1801 = vmatpush.bf16.msra.mxu0 %v1099
    %1802 = vmatpush.bf16.msra.mxu0 %v1083
    %1803 = vmatmul.bf16.gmra.mxu0 %v49
    %v1804 = vpop.f32.mrf.mxu0
    %v1805 = vadd.f32 0.0, %v1804
    %v1806 = vpop.f32.mrf.mxu0
    %1807 = vdwg.mxu0
    %1808 = vmatpush.bf16.msra.mxu0 %v1323
    %1809 = vmatpush.bf16.msra.mxu0 %v1307
    %1810 = vmatpush.bf16.msra.mxu0 %v1291
    %1811 = vmatpush.bf16.msra.mxu0 %v1275
    %1812 = vmatpush.bf16.msra.mxu0 %v1259
    %1813 = vmatpush.bf16.msra.mxu0 %v1243
    %1814 = vmatpush.bf16.msra.mxu0 %v1227
    %1815 = vmatpush.bf16.msra.mxu0 %v1211
    %1816 = vmatmul.bf16.gmra.mxu0 %v50
    %v1817 = vpop.f32.mrf.mxu0
    %v1818 = vadd.f32 %v1805, %v1817
    %v1819 = vpop.f32.mrf.mxu0
    %1820 = vdwg.mxu0
    %1821 = vmatpush.bf16.msra.mxu0 %v1196
    %1822 = vmatpush.bf16.msra.mxu0 %v1180
    %1823 = vmatpush.bf16.msra.mxu0 %v1164
    %1824 = vmatpush.bf16.msra.mxu0 %v1148
    %1825 = vmatpush.bf16.msra.mxu0 %v1132
    %1826 = vmatpush.bf16.msra.mxu0 %v1116
    %1827 = vmatpush.bf16.msra.mxu0 %v1100
    %1828 = vmatpush.bf16.msra.mxu0 %v1084
    %1829 = vmatmul.bf16.gmra.mxu0 %v49
    %v1830 = vpop.f32.mrf.mxu0
    %v1831 = vadd.f32 0.0, %v1830
    %v1832 = vpop.f32.mrf.mxu0
    %1833 = vdwg.mxu0
    %1834 = vmatpush.bf16.msra.mxu0 %v1324
    %1835 = vmatpush.bf16.msra.mxu0 %v1308
    %1836 = vmatpush.bf16.msra.mxu0 %v1292
    %1837 = vmatpush.bf16.msra.mxu0 %v1276
    %1838 = vmatpush.bf16.msra.mxu0 %v1260
    %1839 = vmatpush.bf16.msra.mxu0 %v1244
    %1840 = vmatpush.bf16.msra.mxu0 %v1228
    %1841 = vmatpush.bf16.msra.mxu0 %v1212
    %1842 = vmatmul.bf16.gmra.mxu0 %v50
    %v1843 = vpop.f32.mrf.mxu0
    %v1844 = vadd.f32 %v1831, %v1843
    %v1845 = vpop.f32.mrf.mxu0
    %1846 = vdwg.mxu0
    %1847 = vmatpush.bf16.msra.mxu0 %v1197
    %1848 = vmatpush.bf16.msra.mxu0 %v1181
    %1849 = vmatpush.bf16.msra.mxu0 %v1165
    %1850 = vmatpush.bf16.msra.mxu0 %v1149
    %1851 = vmatpush.bf16.msra.mxu0 %v1133
    %1852 = vmatpush.bf16.msra.mxu0 %v1117
    %1853 = vmatpush.bf16.msra.mxu0 %v1101
    %1854 = vmatpush.bf16.msra.mxu0 %v1085
    %1855 = vmatmul.bf16.gmra.mxu0 %v49
    %v1856 = vpop.f32.mrf.mxu0
    %v1857 = vadd.f32 0.0, %v1856
    %v1858 = vpop.f32.mrf.mxu0
    %1859 = vdwg.mxu0
    %1860 = vmatpush.bf16.msra.mxu0 %v1325
    %1861 = vmatpush.bf16.msra.mxu0 %v1309
    %1862 = vmatpush.bf16.msra.mxu0 %v1293
    %1863 = vmatpush.bf16.msra.mxu0 %v1277
    %1864 = vmatpush.bf16.msra.mxu0 %v1261
    %1865 = vmatpush.bf16.msra.mxu0 %v1245
    %1866 = vmatpush.bf16.msra.mxu0 %v1229
    %1867 = vmatpush.bf16.msra.mxu0 %v1213
    %1868 = vmatmul.bf16.gmra.mxu0 %v50
    %v1869 = vpop.f32.mrf.mxu0
    %v1870 = vadd.f32 %v1857, %v1869
    %v1871 = vpop.f32.mrf.mxu0
    %1872 = vdwg.mxu0
    %1873 = vmatpush.bf16.msra.mxu0 %v1198
    %1874 = vmatpush.bf16.msra.mxu0 %v1182
    %1875 = vmatpush.bf16.msra.mxu0 %v1166
    %1876 = vmatpush.bf16.msra.mxu0 %v1150
    %1877 = vmatpush.bf16.msra.mxu0 %v1134
    %1878 = vmatpush.bf16.msra.mxu0 %v1118
    %1879 = vmatpush.bf16.msra.mxu0 %v1102
    %1880 = vmatpush.bf16.msra.mxu0 %v1086
    %1881 = vmatmul.bf16.gmra.mxu0 %v49
    %v1882 = vpop.f32.mrf.mxu0
    %v1883 = vadd.f32 0.0, %v1882
    %v1884 = vpop.f32.mrf.mxu0
    %1885 = vdwg.mxu0
    %1886 = vmatpush.bf16.msra.mxu0 %v1326
    %1887 = vmatpush.bf16.msra.mxu0 %v1310
    %1888 = vmatpush.bf16.msra.mxu0 %v1294
    %1889 = vmatpush.bf16.msra.mxu0 %v1278
    %1890 = vmatpush.bf16.msra.mxu0 %v1262
    %1891 = vmatpush.bf16.msra.mxu0 %v1246
    %1892 = vmatpush.bf16.msra.mxu0 %v1230
    %1893 = vmatpush.bf16.msra.mxu0 %v1214
    %1894 = vmatmul.bf16.gmra.mxu0 %v50
    %v1895 = vpop.f32.mrf.mxu0
    %v1896 = vadd.f32 %v1883, %v1895
    %v1897 = vpop.f32.mrf.mxu0
    %1898 = vdwg.mxu0
    %1899 = vmatpush.bf16.msra.mxu0 %v1199
    %1900 = vmatpush.bf16.msra.mxu0 %v1183
    %1901 = vmatpush.bf16.msra.mxu0 %v1167
    %1902 = vmatpush.bf16.msra.mxu0 %v1151
    %1903 = vmatpush.bf16.msra.mxu0 %v1135
    %1904 = vmatpush.bf16.msra.mxu0 %v1119
    %1905 = vmatpush.bf16.msra.mxu0 %v1103
    %1906 = vmatpush.bf16.msra.mxu0 %v1087
    %1907 = vmatmul.bf16.gmra.mxu0 %v49
    %v1908 = vpop.f32.mrf.mxu0
    %v1909 = vadd.f32 0.0, %v1908
    %v1910 = vpop.f32.mrf.mxu0
    %1911 = vdwg.mxu0
    %1912 = vmatpush.bf16.msra.mxu0 %v1327
    %1913 = vmatpush.bf16.msra.mxu0 %v1311
    %1914 = vmatpush.bf16.msra.mxu0 %v1295
    %1915 = vmatpush.bf16.msra.mxu0 %v1279
    %1916 = vmatpush.bf16.msra.mxu0 %v1263
    %1917 = vmatpush.bf16.msra.mxu0 %v1247
    %1918 = vmatpush.bf16.msra.mxu0 %v1231
    %1919 = vmatpush.bf16.msra.mxu0 %v1215
    %1920 = vmatmul.bf16.gmra.mxu0 %v50
    %v1921 = vpop.f32.mrf.mxu0
    %v1922 = vadd.f32 %v1909, %v1921
    %v1923 = vpop.f32.mrf.mxu0
    %1924 = vdwg.mxu0
    %1925 = vmatpush.bf16.msra.mxu0 %v1200
    %1926 = vmatpush.bf16.msra.mxu0 %v1184
    %1927 = vmatpush.bf16.msra.mxu0 %v1168
    %1928 = vmatpush.bf16.msra.mxu0 %v1152
    %1929 = vmatpush.bf16.msra.mxu0 %v1136
    %1930 = vmatpush.bf16.msra.mxu0 %v1120
    %1931 = vmatpush.bf16.msra.mxu0 %v1104
    %1932 = vmatpush.bf16.msra.mxu0 %v1088
    %1933 = vmatmul.bf16.gmra.mxu0 %v49
    %v1934 = vpop.f32.mrf.mxu0
    %v1935 = vadd.f32 0.0, %v1934
    %v1936 = vpop.f32.mrf.mxu0
    %1937 = vdwg.mxu0
    %1938 = vmatpush.bf16.msra.mxu0 %v1328
    %1939 = vmatpush.bf16.msra.mxu0 %v1312
    %1940 = vmatpush.bf16.msra.mxu0 %v1296
    %1941 = vmatpush.bf16.msra.mxu0 %v1280
    %1942 = vmatpush.bf16.msra.mxu0 %v1264
    %1943 = vmatpush.bf16.msra.mxu0 %v1248
    %1944 = vmatpush.bf16.msra.mxu0 %v1232
    %1945 = vmatpush.bf16.msra.mxu0 %v1216
    %1946 = vmatmul.bf16.gmra.mxu0 %v50
    %v1947 = vpop.f32.mrf.mxu0
    %v1948 = vadd.f32 %v1935, %v1947
    %v1949 = vpop.f32.mrf.mxu0
    %1950 = vdwg.mxu0
    %1951 = vmatpush.bf16.msra.mxu0 %v1201
    %1952 = vmatpush.bf16.msra.mxu0 %v1185
    %1953 = vmatpush.bf16.msra.mxu0 %v1169
    %1954 = vmatpush.bf16.msra.mxu0 %v1153
    %1955 = vmatpush.bf16.msra.mxu0 %v1137
    %1956 = vmatpush.bf16.msra.mxu0 %v1121
    %1957 = vmatpush.bf16.msra.mxu0 %v1105
    %1958 = vmatpush.bf16.msra.mxu0 %v1089
    %1959 = vmatmul.bf16.gmra.mxu0 %v49
    %v1960 = vpop.f32.mrf.mxu0
    %v1961 = vadd.f32 0.0, %v1960
    %v1962 = vpop.f32.mrf.mxu0
    %1963 = vdwg.mxu0
    %1964 = vmatpush.bf16.msra.mxu0 %v1329
    %1965 = vmatpush.bf16.msra.mxu0 %v1313
    %1966 = vmatpush.bf16.msra.mxu0 %v1297
    %1967 = vmatpush.bf16.msra.mxu0 %v1281
    %1968 = vmatpush.bf16.msra.mxu0 %v1265
    %1969 = vmatpush.bf16.msra.mxu0 %v1249
    %1970 = vmatpush.bf16.msra.mxu0 %v1233
    %1971 = vmatpush.bf16.msra.mxu0 %v1217
    %1972 = vmatmul.bf16.gmra.mxu0 %v50
    %v1973 = vpop.f32.mrf.mxu0
    %v1974 = vadd.f32 %v1961, %v1973
    %v1975 = vpop.f32.mrf.mxu0
    %1976 = vdwg.mxu0
    %1977 = vmatpush.bf16.msra.mxu0 %v1202
    %1978 = vmatpush.bf16.msra.mxu0 %v1186
    %1979 = vmatpush.bf16.msra.mxu0 %v1170
    %1980 = vmatpush.bf16.msra.mxu0 %v1154
    %1981 = vmatpush.bf16.msra.mxu0 %v1138
    %1982 = vmatpush.bf16.msra.mxu0 %v1122
    %1983 = vmatpush.bf16.msra.mxu0 %v1106
    %1984 = vmatpush.bf16.msra.mxu0 %v1090
    %1985 = vmatmul.bf16.gmra.mxu0 %v49
    %v1986 = vpop.f32.mrf.mxu0
    %v1987 = vadd.f32 0.0, %v1986
    %v1988 = vpop.f32.mrf.mxu0
    %1989 = vdwg.mxu0
    %1990 = vmatpush.bf16.msra.mxu0 %v1330
    %1991 = vmatpush.bf16.msra.mxu0 %v1314
    %1992 = vmatpush.bf16.msra.mxu0 %v1298
    %1993 = vmatpush.bf16.msra.mxu0 %v1282
    %1994 = vmatpush.bf16.msra.mxu0 %v1266
    %1995 = vmatpush.bf16.msra.mxu0 %v1250
    %1996 = vmatpush.bf16.msra.mxu0 %v1234
    %1997 = vmatpush.bf16.msra.mxu0 %v1218
    %1998 = vmatmul.bf16.gmra.mxu0 %v50
    %v1999 = vpop.f32.mrf.mxu0
    %v2000 = vadd.f32 %v1987, %v1999
    %v2001 = vpop.f32.mrf.mxu0
    %2002 = vdwg.mxu0
    %2003 = vst [vmem:[%s4] sm:$0xff] %v1610
    %2004 = vst [vmem:[%s4 + $0x8] sm:$0xff] %v1636
    %2005 = vst [vmem:[%s4 + $0x10] sm:$0xff] %v1662
    %2006 = vst [vmem:[%s4 + $0x18] sm:$0xff] %v1688
    %2007 = vst [vmem:[%s4 + $0x20] sm:$0xff] %v1714
    %2008 = vst [vmem:[%s4 + $0x28] sm:$0xff] %v1740
    %2009 = vst [vmem:[%s4 + $0x30] sm:$0xff] %v1766
    %2010 = vst [vmem:[%s4 + $0x38] sm:$0xff] %v1792
    %2011 = vst [vmem:[%s4 + $0x40] sm:$0xff] %v1818
    %2012 = vst [vmem:[%s4 + $0x48] sm:$0xff] %v1844
    %2013 = vst [vmem:[%s4 + $0x50] sm:$0xff] %v1870
    %2014 = vst [vmem:[%s4 + $0x58] sm:$0xff] %v1896
    %2015 = vst [vmem:[%s4 + $0x60] sm:$0xff] %v1922
    %2016 = vst [vmem:[%s4 + $0x68] sm:$0xff] %v1948
    %2017 = vst [vmem:[%s4 + $0x70] sm:$0xff] %v1974
    %2018 = vst [vmem:[%s4 + $0x78] sm:$0xff] %v2000
    // Predicated region
    $region22: #{generator_forward.10} parent=1 // pred_check
      _
    $region23: #{generator_forward.10} parent=1 // pred_check_branch
      %2020 = sbr.rel (0) target = $region25
    $region24: #{generator_forward.10} parent=1 // pred_region
      _
    $region25: #{generator_forward.10} parent=1 // pred_fallthru
      _
    // Predicated region
    $region26: #{generator_forward.10} parent=1 // pred_check
      _
    $region27: #{generator_forward.10} parent=1 // pred_check_branch
      %2022 = sbr.rel (0) target = $region29
    $region28: #{generator_forward.10} parent=1 // pred_region
      _
    $region29: #{generator_forward.10} parent=1 // pred_fallthru
      _
    %2023 = vsyncpa [#allocation3], 1

// kernel: generator_forward.11
$region0: #{generator_forward.11}
  #allocation0 [shape = 'u32[]', space=smem, size = 0x4, offset = 0x4, fixed_abs, tag = 'smem constant byte address 0x4 - core index']
  #allocation1 [shape = 'u32[72,128]{1,0:T(1,128)}', space=vmem, size = 0x9000, scoped, tag = 'internal scratch']
  %s0 = inlined_call_operand.vmem [shape: f32[16,256], index: 0, kind: input, shape index: {}]
  %s1 = inlined_call_operand.vmem [shape: bf16[256,2048], index: 1, kind: input, shape index: {}]
  %s2 = inlined_call_operand.vmem [shape: f32[1,256], index: 2, kind: input, shape index: {}]
  %s3 = inlined_call_operand.vmem [shape: f32[1,2048], index: 3, kind: input, shape index: {}]
  %s4 = inlined_call_operand.vmem [shape: f32[16,2048], index: 4, kind: output, shape index: {}]
  %s5 = sld [smem:[#allocation0]]
  $region26: #{generator_forward.11} parent=0
    _
  %s7 = ssub.s32 1, %s5
  %s8 = scalar_select 0, %s7, %s5
  // Predicated region
  $region2: #{generator_forward.11} parent=0 // pred_check
    _
  $region3: #{generator_forward.11} parent=0 // pred_check_branch
    %10 = sbr.rel (0) target = $region5
  $region4: #{generator_forward.11} parent=0 // pred_region
    _
  $region5: #{generator_forward.11} parent=0 // pred_fallthru
    _
  // Predicated region
  $region6: #{generator_forward.11} parent=0 // pred_check
    _
  $region7: #{generator_forward.11} parent=0 // pred_check_branch
    %12 = sbr.rel (0) target = $region9
  $region8: #{generator_forward.11} parent=0 // pred_region
    _
  $region9: #{generator_forward.11} parent=0 // pred_fallthru
    _
  // Predicated region
  $region10: #{generator_forward.11} parent=0 // pred_check
    _
  $region11: #{generator_forward.11} parent=0 // pred_check_branch
    %14 = sbr.rel (0) target = $region13
  $region12: #{generator_forward.11} parent=0 // pred_region
    _
  $region13: #{generator_forward.11} parent=0 // pred_fallthru
    _
  // Predicated region
  $region14: #{generator_forward.11} parent=0 // pred_check
    _
  $region15: #{generator_forward.11} parent=0 // pred_check_branch
    %16 = sbr.rel (0) target = $region17
  $region16: #{generator_forward.11} parent=0 // pred_region
    _
  $region17: #{generator_forward.11} parent=0 // pred_fallthru
    _
  %v17 = vld [vmem:[%s0] sm:$0xff]
  %v18 = vld [vmem:[%s0 + $0x8] sm:$0xff]
  %v19 = vld [vmem:[%s0 + $0x10] sm:$0xff]
  %v20 = vld [vmem:[%s0 + $0x18] sm:$0xff]
  %v21 = vld [vmem:[%s2] sm:$0x3]
  %v23 = vperm.slane %v21, 0
  %v24 = vperm.slane %v21, 1
  %v27 = vadd.f32 %v17, %v23
  %v28 = vadd.f32 %v18, %v24
  %v29 = vadd.f32 %v19, %v23
  %v30 = vadd.f32 %v20, %v24
  %vm31 = vcmp.ge.f32.partialorder %v27, 0.0
  %vm32 = vcmp.ge.f32.partialorder %v28, 0.0
  %vm33 = vcmp.ge.f32.partialorder %v29, 0.0
  %vm34 = vcmp.ge.f32.partialorder %v30, 0.0
  %v35 = vmul.f32 %v27, 0.2
  %v36 = vmul.f32 %v28, 0.2
  %v37 = vmul.f32 %v29, 0.2
  %v38 = vmul.f32 %v30, 0.2
  %v39 = vsel %vm31, %v27, %v35
  %v40 = vsel %vm32, %v28, %v36
  %v41 = vsel %vm33, %v29, %v37
  %v42 = vsel %vm34, %v30, %v38
  %v43 = vpack.c.bf16 %v41, %v39
  %v44 = vpack.c.bf16 %v42, %v40
  %v45 = vld [vmem:[%s1] sm:$0xff]
  %v46 = vld [vmem:[%s1 + $0x8] sm:$0xff]
  %v47 = vld [vmem:[%s1 + $0x10] sm:$0xff]
  %v48 = vld [vmem:[%s1 + $0x18] sm:$0xff]
  %v49 = vld [vmem:[%s1 + $0x20] sm:$0xff]
  %v50 = vld [vmem:[%s1 + $0x28] sm:$0xff]
  %v51 = vld [vmem:[%s1 + $0x30] sm:$0xff]
  %v52 = vld [vmem:[%s1 + $0x38] sm:$0xff]
  %v53 = vld [vmem:[%s1 + $0x40] sm:$0xff]
  %v54 = vld [vmem:[%s1 + $0x48] sm:$0xff]
  %v55 = vld [vmem:[%s1 + $0x50] sm:$0xff]
  %v56 = vld [vmem:[%s1 + $0x58] sm:$0xff]
  %v57 = vld [vmem:[%s1 + $0x60] sm:$0xff]
  %v58 = vld [vmem:[%s1 + $0x68] sm:$0xff]
  %v59 = vld [vmem:[%s1 + $0x70] sm:$0xff]
  %v60 = vld [vmem:[%s1 + $0x78] sm:$0xff]
  %v61 = vld [vmem:[%s1 + $0x80] sm:$0xff]
  %v62 = vld [vmem:[%s1 + $0x88] sm:$0xff]
  %v63 = vld [vmem:[%s1 + $0x90] sm:$0xff]
  %v64 = vld [vmem:[%s1 + $0x98] sm:$0xff]
  %v65 = vld [vmem:[%s1 + $0xa0] sm:$0xff]
  %v66 = vld [vmem:[%s1 + $0xa8] sm:$0xff]
  %v67 = vld [vmem:[%s1 + $0xb0] sm:$0xff]
  %v68 = vld [vmem:[%s1 + $0xb8] sm:$0xff]
  %v69 = vld [vmem:[%s1 + $0xc0] sm:$0xff]
  %v70 = vld [vmem:[%s1 + $0xc8] sm:$0xff]
  %v71 = vld [vmem:[%s1 + $0xd0] sm:$0xff]
  %v72 = vld [vmem:[%s1 + $0xd8] sm:$0xff]
  %v73 = vld [vmem:[%s1 + $0xe0] sm:$0xff]
  %v74 = vld [vmem:[%s1 + $0xe8] sm:$0xff]
  %v75 = vld [vmem:[%s1 + $0xf0] sm:$0xff]
  %v76 = vld [vmem:[%s1 + $0xf8] sm:$0xff]
  %v77 = vld [vmem:[%s1 + $0x100] sm:$0xff]
  %v78 = vld [vmem:[%s1 + $0x108] sm:$0xff]
  %v79 = vld [vmem:[%s1 + $0x110] sm:$0xff]
  %v80 = vld [vmem:[%s1 + $0x118] sm:$0xff]
  %v81 = vld [vmem:[%s1 + $0x120] sm:$0xff]
  %v82 = vld [vmem:[%s1 + $0x128] sm:$0xff]
  %v83 = vld [vmem:[%s1 + $0x130] sm:$0xff]
  %v84 = vld [vmem:[%s1 + $0x138] sm:$0xff]
  %v85 = vld [vmem:[%s1 + $0x140] sm:$0xff]
  %v86 = vld [vmem:[%s1 + $0x148] sm:$0xff]
  %v87 = vld [vmem:[%s1 + $0x150] sm:$0xff]
  %v88 = vld [vmem:[%s1 + $0x158] sm:$0xff]
  %v89 = vld [vmem:[%s1 + $0x160] sm:$0xff]
  %v90 = vld [vmem:[%s1 + $0x168] sm:$0xff]
  %v91 = vld [vmem:[%s1 + $0x170] sm:$0xff]
  %v92 = vld [vmem:[%s1 + $0x178] sm:$0xff]
  %v93 = vld [vmem:[%s1 + $0x180] sm:$0xff]
  %v94 = vld [vmem:[%s1 + $0x188] sm:$0xff]
  %v95 = vld [vmem:[%s1 + $0x190] sm:$0xff]
  %v96 = vld [vmem:[%s1 + $0x198] sm:$0xff]
  %v97 = vld [vmem:[%s1 + $0x1a0] sm:$0xff]
  %v98 = vld [vmem:[%s1 + $0x1a8] sm:$0xff]
  %v99 = vld [vmem:[%s1 + $0x1b0] sm:$0xff]
  %v100 = vld [vmem:[%s1 + $0x1b8] sm:$0xff]
  %v101 = vld [vmem:[%s1 + $0x1c0] sm:$0xff]
  %v102 = vld [vmem:[%s1 + $0x1c8] sm:$0xff]
  %v103 = vld [vmem:[%s1 + $0x1d0] sm:$0xff]
  %v104 = vld [vmem:[%s1 + $0x1d8] sm:$0xff]
  %v105 = vld [vmem:[%s1 + $0x1e0] sm:$0xff]
  %v106 = vld [vmem:[%s1 + $0x1e8] sm:$0xff]
  %v107 = vld [vmem:[%s1 + $0x1f0] sm:$0xff]
  %v108 = vld [vmem:[%s1 + $0x1f8] sm:$0xff]
  %v109 = vld [vmem:[%s1 + $0x200] sm:$0xff]
  %v110 = vld [vmem:[%s1 + $0x208] sm:$0xff]
  %v111 = vld [vmem:[%s1 + $0x210] sm:$0xff]
  %v112 = vld [vmem:[%s1 + $0x218] sm:$0xff]
  %v113 = vld [vmem:[%s1 + $0x220] sm:$0xff]
  %v114 = vld [vmem:[%s1 + $0x228] sm:$0xff]
  %v115 = vld [vmem:[%s1 + $0x230] sm:$0xff]
  %v116 = vld [vmem:[%s1 + $0x238] sm:$0xff]
  %v117 = vld [vmem:[%s1 + $0x240] sm:$0xff]
  %v118 = vld [vmem:[%s1 + $0x248] sm:$0xff]
  %v119 = vld [vmem:[%s1 + $0x250] sm:$0xff]
  %v120 = vld [vmem:[%s1 + $0x258] sm:$0xff]
  %v121 = vld [vmem:[%s1 + $0x260] sm:$0xff]
  %v122 = vld [vmem:[%s1 + $0x268] sm:$0xff]
  %v123 = vld [vmem:[%s1 + $0x270] sm:$0xff]
  %v124 = vld [vmem:[%s1 + $0x278] sm:$0xff]
  %v125 = vld [vmem:[%s1 + $0x280] sm:$0xff]
  %v126 = vld [vmem:[%s1 + $0x288] sm:$0xff]
  %v127 = vld [vmem:[%s1 + $0x290] sm:$0xff]
  %v128 = vld [vmem:[%s1 + $0x298] sm:$0xff]
  %v129 = vld [vmem:[%s1 + $0x2a0] sm:$0xff]
  %v130 = vld [vmem:[%s1 + $0x2a8] sm:$0xff]
  %v131 = vld [vmem:[%s1 + $0x2b0] sm:$0xff]
  %v132 = vld [vmem:[%s1 + $0x2b8] sm:$0xff]
  %v133 = vld [vmem:[%s1 + $0x2c0] sm:$0xff]
  %v134 = vld [vmem:[%s1 + $0x2c8] sm:$0xff]
  %v135 = vld [vmem:[%s1 + $0x2d0] sm:$0xff]
  %v136 = vld [vmem:[%s1 + $0x2d8] sm:$0xff]
  %v137 = vld [vmem:[%s1 + $0x2e0] sm:$0xff]
  %v138 = vld [vmem:[%s1 + $0x2e8] sm:$0xff]
  %v139 = vld [vmem:[%s1 + $0x2f0] sm:$0xff]
  %v140 = vld [vmem:[%s1 + $0x2f8] sm:$0xff]
  %v141 = vld [vmem:[%s1 + $0x300] sm:$0xff]
  %v142 = vld [vmem:[%s1 + $0x308] sm:$0xff]
  %v143 = vld [vmem:[%s1 + $0x310] sm:$0xff]
  %v144 = vld [vmem:[%s1 + $0x318] sm:$0xff]
  %v145 = vld [vmem:[%s1 + $0x320] sm:$0xff]
  %v146 = vld [vmem:[%s1 + $0x328] sm:$0xff]
  %v147 = vld [vmem:[%s1 + $0x330] sm:$0xff]
  %v148 = vld [vmem:[%s1 + $0x338] sm:$0xff]
  %v149 = vld [vmem:[%s1 + $0x340] sm:$0xff]
  %v150 = vld [vmem:[%s1 + $0x348] sm:$0xff]
  %v151 = vld [vmem:[%s1 + $0x350] sm:$0xff]
  %v152 = vld [vmem:[%s1 + $0x358] sm:$0xff]
  %v153 = vld [vmem:[%s1 + $0x360] sm:$0xff]
  %v154 = vld [vmem:[%s1 + $0x368] sm:$0xff]
  %v155 = vld [vmem:[%s1 + $0x370] sm:$0xff]
  %v156 = vld [vmem:[%s1 + $0x378] sm:$0xff]
  %v157 = vld [vmem:[%s1 + $0x380] sm:$0xff]
  %v158 = vld [vmem:[%s1 + $0x388] sm:$0xff]
  %v159 = vld [vmem:[%s1 + $0x390] sm:$0xff]
  %v160 = vld [vmem:[%s1 + $0x398] sm:$0xff]
  %v161 = vld [vmem:[%s1 + $0x3a0] sm:$0xff]
  %v162 = vld [vmem:[%s1 + $0x3a8] sm:$0xff]
  %v163 = vld [vmem:[%s1 + $0x3b0] sm:$0xff]
  %v164 = vld [vmem:[%s1 + $0x3b8] sm:$0xff]
  %v165 = vld [vmem:[%s1 + $0x3c0] sm:$0xff]
  %v166 = vld [vmem:[%s1 + $0x3c8] sm:$0xff]
  %v167 = vld [vmem:[%s1 + $0x3d0] sm:$0xff]
  %v168 = vld [vmem:[%s1 + $0x3d8] sm:$0xff]
  %v169 = vld [vmem:[%s1 + $0x3e0] sm:$0xff]
  %v170 = vld [vmem:[%s1 + $0x3e8] sm:$0xff]
  %v171 = vld [vmem:[%s1 + $0x3f0] sm:$0xff]
  %v172 = vld [vmem:[%s1 + $0x3f8] sm:$0xff]
  %v173 = vld [vmem:[%s1 + $0x400] sm:$0xff]
  %v174 = vld [vmem:[%s1 + $0x408] sm:$0xff]
  %v175 = vld [vmem:[%s1 + $0x410] sm:$0xff]
  %v176 = vld [vmem:[%s1 + $0x418] sm:$0xff]
  %v177 = vld [vmem:[%s1 + $0x420] sm:$0xff]
  %v178 = vld [vmem:[%s1 + $0x428] sm:$0xff]
  %v179 = vld [vmem:[%s1 + $0x430] sm:$0xff]
  %v180 = vld [vmem:[%s1 + $0x438] sm:$0xff]
  %v181 = vld [vmem:[%s1 + $0x440] sm:$0xff]
  %v182 = vld [vmem:[%s1 + $0x448] sm:$0xff]
  %v183 = vld [vmem:[%s1 + $0x450] sm:$0xff]
  %v184 = vld [vmem:[%s1 + $0x458] sm:$0xff]
  %v185 = vld [vmem:[%s1 + $0x460] sm:$0xff]
  %v186 = vld [vmem:[%s1 + $0x468] sm:$0xff]
  %v187 = vld [vmem:[%s1 + $0x470] sm:$0xff]
  %v188 = vld [vmem:[%s1 + $0x478] sm:$0xff]
  %v189 = vld [vmem:[%s1 + $0x480] sm:$0xff]
  %v190 = vld [vmem:[%s1 + $0x488] sm:$0xff]
  %v191 = vld [vmem:[%s1 + $0x490] sm:$0xff]
  %v192 = vld [vmem:[%s1 + $0x498] sm:$0xff]
  %v193 = vld [vmem:[%s1 + $0x4a0] sm:$0xff]
  %v194 = vld [vmem:[%s1 + $0x4a8] sm:$0xff]
  %v195 = vld [vmem:[%s1 + $0x4b0] sm:$0xff]
  %v196 = vld [vmem:[%s1 + $0x4b8] sm:$0xff]
  %v197 = vld [vmem:[%s1 + $0x4c0] sm:$0xff]
  %v198 = vld [vmem:[%s1 + $0x4c8] sm:$0xff]
  %v199 = vld [vmem:[%s1 + $0x4d0] sm:$0xff]
  %v200 = vld [vmem:[%s1 + $0x4d8] sm:$0xff]
  %v201 = vld [vmem:[%s1 + $0x4e0] sm:$0xff]
  %v202 = vld [vmem:[%s1 + $0x4e8] sm:$0xff]
  %v203 = vld [vmem:[%s1 + $0x4f0] sm:$0xff]
  %v204 = vld [vmem:[%s1 + $0x4f8] sm:$0xff]
  %v205 = vld [vmem:[%s1 + $0x500] sm:$0xff]
  %v206 = vld [vmem:[%s1 + $0x508] sm:$0xff]
  %v207 = vld [vmem:[%s1 + $0x510] sm:$0xff]
  %v208 = vld [vmem:[%s1 + $0x518] sm:$0xff]
  %v209 = vld [vmem:[%s1 + $0x520] sm:$0xff]
  %v210 = vld [vmem:[%s1 + $0x528] sm:$0xff]
  %v211 = vld [vmem:[%s1 + $0x530] sm:$0xff]
  %v212 = vld [vmem:[%s1 + $0x538] sm:$0xff]
  %v213 = vld [vmem:[%s1 + $0x540] sm:$0xff]
  %v214 = vld [vmem:[%s1 + $0x548] sm:$0xff]
  %v215 = vld [vmem:[%s1 + $0x550] sm:$0xff]
  %v216 = vld [vmem:[%s1 + $0x558] sm:$0xff]
  %v217 = vld [vmem:[%s1 + $0x560] sm:$0xff]
  %v218 = vld [vmem:[%s1 + $0x568] sm:$0xff]
  %v219 = vld [vmem:[%s1 + $0x570] sm:$0xff]
  %v220 = vld [vmem:[%s1 + $0x578] sm:$0xff]
  %v221 = vld [vmem:[%s1 + $0x580] sm:$0xff]
  %v222 = vld [vmem:[%s1 + $0x588] sm:$0xff]
  %v223 = vld [vmem:[%s1 + $0x590] sm:$0xff]
  %v224 = vld [vmem:[%s1 + $0x598] sm:$0xff]
  %v225 = vld [vmem:[%s1 + $0x5a0] sm:$0xff]
  %v226 = vld [vmem:[%s1 + $0x5a8] sm:$0xff]
  %v227 = vld [vmem:[%s1 + $0x5b0] sm:$0xff]
  %v228 = vld [vmem:[%s1 + $0x5b8] sm:$0xff]
  %v229 = vld [vmem:[%s1 + $0x5c0] sm:$0xff]
  %v230 = vld [vmem:[%s1 + $0x5c8] sm:$0xff]
  %v231 = vld [vmem:[%s1 + $0x5d0] sm:$0xff]
  %v232 = vld [vmem:[%s1 + $0x5d8] sm:$0xff]
  %v233 = vld [vmem:[%s1 + $0x5e0] sm:$0xff]
  %v234 = vld [vmem:[%s1 + $0x5e8] sm:$0xff]
  %v235 = vld [vmem:[%s1 + $0x5f0] sm:$0xff]
  %v236 = vld [vmem:[%s1 + $0x5f8] sm:$0xff]
  %v237 = vld [vmem:[%s1 + $0x600] sm:$0xff]
  %v238 = vld [vmem:[%s1 + $0x608] sm:$0xff]
  %v239 = vld [vmem:[%s1 + $0x610] sm:$0xff]
  %v240 = vld [vmem:[%s1 + $0x618] sm:$0xff]
  %v241 = vld [vmem:[%s1 + $0x620] sm:$0xff]
  %v242 = vld [vmem:[%s1 + $0x628] sm:$0xff]
  %v243 = vld [vmem:[%s1 + $0x630] sm:$0xff]
  %v244 = vld [vmem:[%s1 + $0x638] sm:$0xff]
  %v245 = vld [vmem:[%s1 + $0x640] sm:$0xff]
  %v246 = vld [vmem:[%s1 + $0x648] sm:$0xff]
  %v247 = vld [vmem:[%s1 + $0x650] sm:$0xff]
  %v248 = vld [vmem:[%s1 + $0x658] sm:$0xff]
  %v249 = vld [vmem:[%s1 + $0x660] sm:$0xff]
  %v250 = vld [vmem:[%s1 + $0x668] sm:$0xff]
  %v251 = vld [vmem:[%s1 + $0x670] sm:$0xff]
  %v252 = vld [vmem:[%s1 + $0x678] sm:$0xff]
  %v253 = vld [vmem:[%s1 + $0x680] sm:$0xff]
  %v254 = vld [vmem:[%s1 + $0x688] sm:$0xff]
  %v255 = vld [vmem:[%s1 + $0x690] sm:$0xff]
  %v256 = vld [vmem:[%s1 + $0x698] sm:$0xff]
  %v257 = vld [vmem:[%s1 + $0x6a0] sm:$0xff]
  %v258 = vld [vmem:[%s1 + $0x6a8] sm:$0xff]
  %v259 = vld [vmem:[%s1 + $0x6b0] sm:$0xff]
  %v260 = vld [vmem:[%s1 + $0x6b8] sm:$0xff]
  %v261 = vld [vmem:[%s1 + $0x6c0] sm:$0xff]
  %v262 = vld [vmem:[%s1 + $0x6c8] sm:$0xff]
  %v263 = vld [vmem:[%s1 + $0x6d0] sm:$0xff]
  %v264 = vld [vmem:[%s1 + $0x6d8] sm:$0xff]
  %v265 = vld [vmem:[%s1 + $0x6e0] sm:$0xff]
  %v266 = vld [vmem:[%s1 + $0x6e8] sm:$0xff]
  %v267 = vld [vmem:[%s1 + $0x6f0] sm:$0xff]
  %v268 = vld [vmem:[%s1 + $0x6f8] sm:$0xff]
  %v269 = vld [vmem:[%s1 + $0x700] sm:$0xff]
  %v270 = vld [vmem:[%s1 + $0x708] sm:$0xff]
  %v271 = vld [vmem:[%s1 + $0x710] sm:$0xff]
  %v272 = vld [vmem:[%s1 + $0x718] sm:$0xff]
  %v273 = vld [vmem:[%s1 + $0x720] sm:$0xff]
  %v274 = vld [vmem:[%s1 + $0x728] sm:$0xff]
  %v275 = vld [vmem:[%s1 + $0x730] sm:$0xff]
  %v276 = vld [vmem:[%s1 + $0x738] sm:$0xff]
  %v277 = vld [vmem:[%s1 + $0x740] sm:$0xff]
  %v278 = vld [vmem:[%s1 + $0x748] sm:$0xff]
  %v279 = vld [vmem:[%s1 + $0x750] sm:$0xff]
  %v280 = vld [vmem:[%s1 + $0x758] sm:$0xff]
  %v281 = vld [vmem:[%s1 + $0x760] sm:$0xff]
  %v282 = vld [vmem:[%s1 + $0x768] sm:$0xff]
  %v283 = vld [vmem:[%s1 + $0x770] sm:$0xff]
  %v284 = vld [vmem:[%s1 + $0x778] sm:$0xff]
  %v285 = vld [vmem:[%s1 + $0x780] sm:$0xff]
  %v286 = vld [vmem:[%s1 + $0x788] sm:$0xff]
  %v287 = vld [vmem:[%s1 + $0x790] sm:$0xff]
  %v288 = vld [vmem:[%s1 + $0x798] sm:$0xff]
  %v289 = vld [vmem:[%s1 + $0x7a0] sm:$0xff]
  %v290 = vld [vmem:[%s1 + $0x7a8] sm:$0xff]
  %v291 = vld [vmem:[%s1 + $0x7b0] sm:$0xff]
  %v292 = vld [vmem:[%s1 + $0x7b8] sm:$0xff]
  %v293 = vld [vmem:[%s1 + $0x7c0] sm:$0xff]
  %v294 = vld [vmem:[%s1 + $0x7c8] sm:$0xff]
  %v295 = vld [vmem:[%s1 + $0x7d0] sm:$0xff]
  %v296 = vld [vmem:[%s1 + $0x7d8] sm:$0xff]
  %v297 = vld [vmem:[%s1 + $0x7e0] sm:$0xff]
  %v298 = vld [vmem:[%s1 + $0x7e8] sm:$0xff]
  %v299 = vld [vmem:[%s1 + $0x7f0] sm:$0xff]
  %v300 = vld [vmem:[%s1 + $0x7f8] sm:$0xff]
  %v557 = vunpack.c.l.b16 %v45
  %v558 = vunpack.c.h.b16 %v45
  %v559 = vunpack.c.l.b16 %v46
  %v560 = vunpack.c.h.b16 %v46
  %v561 = vunpack.c.l.b16 %v47
  %v562 = vunpack.c.h.b16 %v47
  %v563 = vunpack.c.l.b16 %v48
  %v564 = vunpack.c.h.b16 %v48
  %v565 = vunpack.c.l.b16 %v49
  %v566 = vunpack.c.h.b16 %v49
  %v567 = vunpack.c.l.b16 %v50
  %v568 = vunpack.c.h.b16 %v50
  %v569 = vunpack.c.l.b16 %v51
  %v570 = vunpack.c.h.b16 %v51
  %v571 = vunpack.c.l.b16 %v52
  %v572 = vunpack.c.h.b16 %v52
  %v573 = vunpack.c.l.b16 %v53
  %v574 = vunpack.c.h.b16 %v53
  %v575 = vunpack.c.l.b16 %v54
  %v576 = vunpack.c.h.b16 %v54
  %v577 = vunpack.c.l.b16 %v55
  %v578 = vunpack.c.h.b16 %v55
  %v579 = vunpack.c.l.b16 %v56
  %v580 = vunpack.c.h.b16 %v56
  %v581 = vunpack.c.l.b16 %v57
  %v582 = vunpack.c.h.b16 %v57
  %v583 = vunpack.c.l.b16 %v58
  %v584 = vunpack.c.h.b16 %v58
  %v585 = vunpack.c.l.b16 %v59
  %v586 = vunpack.c.h.b16 %v59
  %v587 = vunpack.c.l.b16 %v60
  %v588 = vunpack.c.h.b16 %v60
  %v589 = vunpack.c.l.b16 %v61
  %v590 = vunpack.c.h.b16 %v61
  %v591 = vunpack.c.l.b16 %v62
  %v592 = vunpack.c.h.b16 %v62
  %v593 = vunpack.c.l.b16 %v63
  %v594 = vunpack.c.h.b16 %v63
  %v595 = vunpack.c.l.b16 %v64
  %v596 = vunpack.c.h.b16 %v64
  %v597 = vunpack.c.l.b16 %v65
  %v598 = vunpack.c.h.b16 %v65
  %v599 = vunpack.c.l.b16 %v66
  %v600 = vunpack.c.h.b16 %v66
  %v601 = vunpack.c.l.b16 %v67
  %v602 = vunpack.c.h.b16 %v67
  %v603 = vunpack.c.l.b16 %v68
  %v604 = vunpack.c.h.b16 %v68
  %v605 = vunpack.c.l.b16 %v69
  %v606 = vunpack.c.h.b16 %v69
  %v607 = vunpack.c.l.b16 %v70
  %v608 = vunpack.c.h.b16 %v70
  %v609 = vunpack.c.l.b16 %v71
  %v610 = vunpack.c.h.b16 %v71
  %v611 = vunpack.c.l.b16 %v72
  %v612 = vunpack.c.h.b16 %v72
  %v613 = vunpack.c.l.b16 %v73
  %v614 = vunpack.c.h.b16 %v73
  %v615 = vunpack.c.l.b16 %v74
  %v616 = vunpack.c.h.b16 %v74
  %v617 = vunpack.c.l.b16 %v75
  %v618 = vunpack.c.h.b16 %v75
  %v619 = vunpack.c.l.b16 %v76
  %v620 = vunpack.c.h.b16 %v76
  %v621 = vunpack.c.l.b16 %v77
  %v622 = vunpack.c.h.b16 %v77
  %v623 = vunpack.c.l.b16 %v78
  %v624 = vunpack.c.h.b16 %v78
  %v625 = vunpack.c.l.b16 %v79
  %v626 = vunpack.c.h.b16 %v79
  %v627 = vunpack.c.l.b16 %v80
  %v628 = vunpack.c.h.b16 %v80
  %v629 = vunpack.c.l.b16 %v81
  %v630 = vunpack.c.h.b16 %v81
  %v631 = vunpack.c.l.b16 %v82
  %v632 = vunpack.c.h.b16 %v82
  %v633 = vunpack.c.l.b16 %v83
  %v634 = vunpack.c.h.b16 %v83
  %v635 = vunpack.c.l.b16 %v84
  %v636 = vunpack.c.h.b16 %v84
  %v637 = vunpack.c.l.b16 %v85
  %v638 = vunpack.c.h.b16 %v85
  %v639 = vunpack.c.l.b16 %v86
  %v640 = vunpack.c.h.b16 %v86
  %v641 = vunpack.c.l.b16 %v87
  %v642 = vunpack.c.h.b16 %v87
  %v643 = vunpack.c.l.b16 %v88
  %v644 = vunpack.c.h.b16 %v88
  %v645 = vunpack.c.l.b16 %v89
  %v646 = vunpack.c.h.b16 %v89
  %v647 = vunpack.c.l.b16 %v90
  %v648 = vunpack.c.h.b16 %v90
  %v649 = vunpack.c.l.b16 %v91
  %v650 = vunpack.c.h.b16 %v91
  %v651 = vunpack.c.l.b16 %v92
  %v652 = vunpack.c.h.b16 %v92
  %v653 = vunpack.c.l.b16 %v93
  %v654 = vunpack.c.h.b16 %v93
  %v655 = vunpack.c.l.b16 %v94
  %v656 = vunpack.c.h.b16 %v94
  %v657 = vunpack.c.l.b16 %v95
  %v658 = vunpack.c.h.b16 %v95
  %v659 = vunpack.c.l.b16 %v96
  %v660 = vunpack.c.h.b16 %v96
  %v661 = vunpack.c.l.b16 %v97
  %v662 = vunpack.c.h.b16 %v97
  %v663 = vunpack.c.l.b16 %v98
  %v664 = vunpack.c.h.b16 %v98
  %v665 = vunpack.c.l.b16 %v99
  %v666 = vunpack.c.h.b16 %v99
  %v667 = vunpack.c.l.b16 %v100
  %v668 = vunpack.c.h.b16 %v100
  %v669 = vunpack.c.l.b16 %v101
  %v670 = vunpack.c.h.b16 %v101
  %v671 = vunpack.c.l.b16 %v102
  %v672 = vunpack.c.h.b16 %v102
  %v673 = vunpack.c.l.b16 %v103
  %v674 = vunpack.c.h.b16 %v103
  %v675 = vunpack.c.l.b16 %v104
  %v676 = vunpack.c.h.b16 %v104
  %v677 = vunpack.c.l.b16 %v105
  %v678 = vunpack.c.h.b16 %v105
  %v679 = vunpack.c.l.b16 %v106
  %v680 = vunpack.c.h.b16 %v106
  %v681 = vunpack.c.l.b16 %v107
  %v682 = vunpack.c.h.b16 %v107
  %v683 = vunpack.c.l.b16 %v108
  %v684 = vunpack.c.h.b16 %v108
  %v685 = vunpack.c.l.b16 %v109
  %v686 = vunpack.c.h.b16 %v109
  %v687 = vunpack.c.l.b16 %v110
  %v688 = vunpack.c.h.b16 %v110
  %v689 = vunpack.c.l.b16 %v111
  %v690 = vunpack.c.h.b16 %v111
  %v691 = vunpack.c.l.b16 %v112
  %v692 = vunpack.c.h.b16 %v112
  %v693 = vunpack.c.l.b16 %v113
  %v694 = vunpack.c.h.b16 %v113
  %v695 = vunpack.c.l.b16 %v114
  %v696 = vunpack.c.h.b16 %v114
  %v697 = vunpack.c.l.b16 %v115
  %v698 = vunpack.c.h.b16 %v115
  %v699 = vunpack.c.l.b16 %v116
  %v700 = vunpack.c.h.b16 %v116
  %v701 = vunpack.c.l.b16 %v117
  %v702 = vunpack.c.h.b16 %v117
  %v703 = vunpack.c.l.b16 %v118
  %v704 = vunpack.c.h.b16 %v118
  %v705 = vunpack.c.l.b16 %v119
  %v706 = vunpack.c.h.b16 %v119
  %v707 = vunpack.c.l.b16 %v120
  %v708 = vunpack.c.h.b16 %v120
  %v709 = vunpack.c.l.b16 %v121
  %v710 = vunpack.c.h.b16 %v121
  %v711 = vunpack.c.l.b16 %v122
  %v712 = vunpack.c.h.b16 %v122
  %v713 = vunpack.c.l.b16 %v123
  %v714 = vunpack.c.h.b16 %v123
  %v715 = vunpack.c.l.b16 %v124
  %v716 = vunpack.c.h.b16 %v124
  %v717 = vunpack.c.l.b16 %v125
  %v718 = vunpack.c.h.b16 %v125
  %v719 = vunpack.c.l.b16 %v126
  %v720 = vunpack.c.h.b16 %v126
  %v721 = vunpack.c.l.b16 %v127
  %v722 = vunpack.c.h.b16 %v127
  %v723 = vunpack.c.l.b16 %v128
  %v724 = vunpack.c.h.b16 %v128
  %v725 = vunpack.c.l.b16 %v129
  %v726 = vunpack.c.h.b16 %v129
  %v727 = vunpack.c.l.b16 %v130
  %v728 = vunpack.c.h.b16 %v130
  %v729 = vunpack.c.l.b16 %v131
  %v730 = vunpack.c.h.b16 %v131
  %v731 = vunpack.c.l.b16 %v132
  %v732 = vunpack.c.h.b16 %v132
  %v733 = vunpack.c.l.b16 %v133
  %v734 = vunpack.c.h.b16 %v133
  %v735 = vunpack.c.l.b16 %v134
  %v736 = vunpack.c.h.b16 %v134
  %v737 = vunpack.c.l.b16 %v135
  %v738 = vunpack.c.h.b16 %v135
  %v739 = vunpack.c.l.b16 %v136
  %v740 = vunpack.c.h.b16 %v136
  %v741 = vunpack.c.l.b16 %v137
  %v742 = vunpack.c.h.b16 %v137
  %v743 = vunpack.c.l.b16 %v138
  %v744 = vunpack.c.h.b16 %v138
  %v745 = vunpack.c.l.b16 %v139
  %v746 = vunpack.c.h.b16 %v139
  %v747 = vunpack.c.l.b16 %v140
  %v748 = vunpack.c.h.b16 %v140
  %v749 = vunpack.c.l.b16 %v141
  %v750 = vunpack.c.h.b16 %v141
  %v751 = vunpack.c.l.b16 %v142
  %v752 = vunpack.c.h.b16 %v142
  %v753 = vunpack.c.l.b16 %v143
  %v754 = vunpack.c.h.b16 %v143
  %v755 = vunpack.c.l.b16 %v144
  %v756 = vunpack.c.h.b16 %v144
  %v757 = vunpack.c.l.b16 %v145
  %v758 = vunpack.c.h.b16 %v145
  %v759 = vunpack.c.l.b16 %v146
  %v760 = vunpack.c.h.b16 %v146
  %v761 = vunpack.c.l.b16 %v147
  %v762 = vunpack.c.h.b16 %v147
  %v763 = vunpack.c.l.b16 %v148
  %v764 = vunpack.c.h.b16 %v148
  %v765 = vunpack.c.l.b16 %v149
  %v766 = vunpack.c.h.b16 %v149
  %v767 = vunpack.c.l.b16 %v150
  %v768 = vunpack.c.h.b16 %v150
  %v769 = vunpack.c.l.b16 %v151
  %v770 = vunpack.c.h.b16 %v151
  %v771 = vunpack.c.l.b16 %v152
  %v772 = vunpack.c.h.b16 %v152
  %v773 = vunpack.c.l.b16 %v153
  %v774 = vunpack.c.h.b16 %v153
  %v775 = vunpack.c.l.b16 %v154
  %v776 = vunpack.c.h.b16 %v154
  %v777 = vunpack.c.l.b16 %v155
  %v778 = vunpack.c.h.b16 %v155
  %v779 = vunpack.c.l.b16 %v156
  %v780 = vunpack.c.h.b16 %v156
  %v781 = vunpack.c.l.b16 %v157
  %v782 = vunpack.c.h.b16 %v157
  %v783 = vunpack.c.l.b16 %v158
  %v784 = vunpack.c.h.b16 %v158
  %v785 = vunpack.c.l.b16 %v159
  %v786 = vunpack.c.h.b16 %v159
  %v787 = vunpack.c.l.b16 %v160
  %v788 = vunpack.c.h.b16 %v160
  %v789 = vunpack.c.l.b16 %v161
  %v790 = vunpack.c.h.b16 %v161
  %v791 = vunpack.c.l.b16 %v162
  %v792 = vunpack.c.h.b16 %v162
  %v793 = vunpack.c.l.b16 %v163
  %v794 = vunpack.c.h.b16 %v163
  %v795 = vunpack.c.l.b16 %v164
  %v796 = vunpack.c.h.b16 %v164
  %v797 = vunpack.c.l.b16 %v165
  %v798 = vunpack.c.h.b16 %v165
  %v799 = vunpack.c.l.b16 %v166
  %v800 = vunpack.c.h.b16 %v166
  %v801 = vunpack.c.l.b16 %v167
  %v802 = vunpack.c.h.b16 %v167
  %v803 = vunpack.c.l.b16 %v168
  %v804 = vunpack.c.h.b16 %v168
  %v805 = vunpack.c.l.b16 %v169
  %v806 = vunpack.c.h.b16 %v169
  %v807 = vunpack.c.l.b16 %v170
  %v808 = vunpack.c.h.b16 %v170
  %v809 = vunpack.c.l.b16 %v171
  %v810 = vunpack.c.h.b16 %v171
  %v811 = vunpack.c.l.b16 %v172
  %v812 = vunpack.c.h.b16 %v172
  %v813 = vunpack.c.l.b16 %v173
  %v814 = vunpack.c.h.b16 %v173
  %v815 = vunpack.c.l.b16 %v174
  %v816 = vunpack.c.h.b16 %v174
  %v817 = vunpack.c.l.b16 %v175
  %v818 = vunpack.c.h.b16 %v175
  %v819 = vunpack.c.l.b16 %v176
  %v820 = vunpack.c.h.b16 %v176
  %v821 = vunpack.c.l.b16 %v177
  %v822 = vunpack.c.h.b16 %v177
  %v823 = vunpack.c.l.b16 %v178
  %v824 = vunpack.c.h.b16 %v178
  %v825 = vunpack.c.l.b16 %v179
  %v826 = vunpack.c.h.b16 %v179
  %v827 = vunpack.c.l.b16 %v180
  %v828 = vunpack.c.h.b16 %v180
  %v829 = vunpack.c.l.b16 %v181
  %v830 = vunpack.c.h.b16 %v181
  %v831 = vunpack.c.l.b16 %v182
  %v832 = vunpack.c.h.b16 %v182
  %v833 = vunpack.c.l.b16 %v183
  %v834 = vunpack.c.h.b16 %v183
  %v835 = vunpack.c.l.b16 %v184
  %v836 = vunpack.c.h.b16 %v184
  %v837 = vunpack.c.l.b16 %v185
  %v838 = vunpack.c.h.b16 %v185
  %v839 = vunpack.c.l.b16 %v186
  %v840 = vunpack.c.h.b16 %v186
  %v841 = vunpack.c.l.b16 %v187
  %v842 = vunpack.c.h.b16 %v187
  %v843 = vunpack.c.l.b16 %v188
  %v844 = vunpack.c.h.b16 %v188
  %v845 = vunpack.c.l.b16 %v189
  %v846 = vunpack.c.h.b16 %v189
  %v847 = vunpack.c.l.b16 %v190
  %v848 = vunpack.c.h.b16 %v190
  %v849 = vunpack.c.l.b16 %v191
  %v850 = vunpack.c.h.b16 %v191
  %v851 = vunpack.c.l.b16 %v192
  %v852 = vunpack.c.h.b16 %v192
  %v853 = vunpack.c.l.b16 %v193
  %v854 = vunpack.c.h.b16 %v193
  %v855 = vunpack.c.l.b16 %v194
  %v856 = vunpack.c.h.b16 %v194
  %v857 = vunpack.c.l.b16 %v195
  %v858 = vunpack.c.h.b16 %v195
  %v859 = vunpack.c.l.b16 %v196
  %v860 = vunpack.c.h.b16 %v196
  %v861 = vunpack.c.l.b16 %v197
  %v862 = vunpack.c.h.b16 %v197
  %v863 = vunpack.c.l.b16 %v198
  %v864 = vunpack.c.h.b16 %v198
  %v865 = vunpack.c.l.b16 %v199
  %v866 = vunpack.c.h.b16 %v199
  %v867 = vunpack.c.l.b16 %v200
  %v868 = vunpack.c.h.b16 %v200
  %v869 = vunpack.c.l.b16 %v201
  %v870 = vunpack.c.h.b16 %v201
  %v871 = vunpack.c.l.b16 %v202
  %v872 = vunpack.c.h.b16 %v202
  %v873 = vunpack.c.l.b16 %v203
  %v874 = vunpack.c.h.b16 %v203
  %v875 = vunpack.c.l.b16 %v204
  %v876 = vunpack.c.h.b16 %v204
  %v877 = vunpack.c.l.b16 %v205
  %v878 = vunpack.c.h.b16 %v205
  %v879 = vunpack.c.l.b16 %v206
  %v880 = vunpack.c.h.b16 %v206
  %v881 = vunpack.c.l.b16 %v207
  %v882 = vunpack.c.h.b16 %v207
  %v883 = vunpack.c.l.b16 %v208
  %v884 = vunpack.c.h.b16 %v208
  %v885 = vunpack.c.l.b16 %v209
  %v886 = vunpack.c.h.b16 %v209
  %v887 = vunpack.c.l.b16 %v210
  %v888 = vunpack.c.h.b16 %v210
  %v889 = vunpack.c.l.b16 %v211
  %v890 = vunpack.c.h.b16 %v211
  %v891 = vunpack.c.l.b16 %v212
  %v892 = vunpack.c.h.b16 %v212
  %v893 = vunpack.c.l.b16 %v213
  %v894 = vunpack.c.h.b16 %v213
  %v895 = vunpack.c.l.b16 %v214
  %v896 = vunpack.c.h.b16 %v214
  %v897 = vunpack.c.l.b16 %v215
  %v898 = vunpack.c.h.b16 %v215
  %v899 = vunpack.c.l.b16 %v216
  %v900 = vunpack.c.h.b16 %v216
  %v901 = vunpack.c.l.b16 %v217
  %v902 = vunpack.c.h.b16 %v217
  %v903 = vunpack.c.l.b16 %v218
  %v904 = vunpack.c.h.b16 %v218
  %v905 = vunpack.c.l.b16 %v219
  %v906 = vunpack.c.h.b16 %v219
  %v907 = vunpack.c.l.b16 %v220
  %v908 = vunpack.c.h.b16 %v220
  %v909 = vunpack.c.l.b16 %v221
  %v910 = vunpack.c.h.b16 %v221
  %v911 = vunpack.c.l.b16 %v222
  %v912 = vunpack.c.h.b16 %v222
  %v913 = vunpack.c.l.b16 %v223
  %v914 = vunpack.c.h.b16 %v223
  %v915 = vunpack.c.l.b16 %v224
  %v916 = vunpack.c.h.b16 %v224
  %v917 = vunpack.c.l.b16 %v225
  %v918 = vunpack.c.h.b16 %v225
  %v919 = vunpack.c.l.b16 %v226
  %v920 = vunpack.c.h.b16 %v226
  %v921 = vunpack.c.l.b16 %v227
  %v922 = vunpack.c.h.b16 %v227
  %v923 = vunpack.c.l.b16 %v228
  %v924 = vunpack.c.h.b16 %v228
  %v925 = vunpack.c.l.b16 %v229
  %v926 = vunpack.c.h.b16 %v229
  %v927 = vunpack.c.l.b16 %v230
  %v928 = vunpack.c.h.b16 %v230
  %v929 = vunpack.c.l.b16 %v231
  %v930 = vunpack.c.h.b16 %v231
  %v931 = vunpack.c.l.b16 %v232
  %v932 = vunpack.c.h.b16 %v232
  %v933 = vunpack.c.l.b16 %v233
  %v934 = vunpack.c.h.b16 %v233
  %v935 = vunpack.c.l.b16 %v234
  %v936 = vunpack.c.h.b16 %v234
  %v937 = vunpack.c.l.b16 %v235
  %v938 = vunpack.c.h.b16 %v235
  %v939 = vunpack.c.l.b16 %v236
  %v940 = vunpack.c.h.b16 %v236
  %v941 = vunpack.c.l.b16 %v237
  %v942 = vunpack.c.h.b16 %v237
  %v943 = vunpack.c.l.b16 %v238
  %v944 = vunpack.c.h.b16 %v238
  %v945 = vunpack.c.l.b16 %v239
  %v946 = vunpack.c.h.b16 %v239
  %v947 = vunpack.c.l.b16 %v240
  %v948 = vunpack.c.h.b16 %v240
  %v949 = vunpack.c.l.b16 %v241
  %v950 = vunpack.c.h.b16 %v241
  %v951 = vunpack.c.l.b16 %v242
  %v952 = vunpack.c.h.b16 %v242
  %v953 = vunpack.c.l.b16 %v243
  %v954 = vunpack.c.h.b16 %v243
  %v955 = vunpack.c.l.b16 %v244
  %v956 = vunpack.c.h.b16 %v244
  %v957 = vunpack.c.l.b16 %v245
  %v958 = vunpack.c.h.b16 %v245
  %v959 = vunpack.c.l.b16 %v246
  %v960 = vunpack.c.h.b16 %v246
  %v961 = vunpack.c.l.b16 %v247
  %v962 = vunpack.c.h.b16 %v247
  %v963 = vunpack.c.l.b16 %v248
  %v964 = vunpack.c.h.b16 %v248
  %v965 = vunpack.c.l.b16 %v249
  %v966 = vunpack.c.h.b16 %v249
  %v967 = vunpack.c.l.b16 %v250
  %v968 = vunpack.c.h.b16 %v250
  %v969 = vunpack.c.l.b16 %v251
  %v970 = vunpack.c.h.b16 %v251
  %v971 = vunpack.c.l.b16 %v252
  %v972 = vunpack.c.h.b16 %v252
  %v973 = vunpack.c.l.b16 %v253
  %v974 = vunpack.c.h.b16 %v253
  %v975 = vunpack.c.l.b16 %v254
  %v976 = vunpack.c.h.b16 %v254
  %v977 = vunpack.c.l.b16 %v255
  %v978 = vunpack.c.h.b16 %v255
  %v979 = vunpack.c.l.b16 %v256
  %v980 = vunpack.c.h.b16 %v256
  %v981 = vunpack.c.l.b16 %v257
  %v982 = vunpack.c.h.b16 %v257
  %v983 = vunpack.c.l.b16 %v258
  %v984 = vunpack.c.h.b16 %v258
  %v985 = vunpack.c.l.b16 %v259
  %v986 = vunpack.c.h.b16 %v259
  %v987 = vunpack.c.l.b16 %v260
  %v988 = vunpack.c.h.b16 %v260
  %v989 = vunpack.c.l.b16 %v261
  %v990 = vunpack.c.h.b16 %v261
  %v991 = vunpack.c.l.b16 %v262
  %v992 = vunpack.c.h.b16 %v262
  %v993 = vunpack.c.l.b16 %v263
  %v994 = vunpack.c.h.b16 %v263
  %v995 = vunpack.c.l.b16 %v264
  %v996 = vunpack.c.h.b16 %v264
  %v997 = vunpack.c.l.b16 %v265
  %v998 = vunpack.c.h.b16 %v265
  %v999 = vunpack.c.l.b16 %v266
  %v1000 = vunpack.c.h.b16 %v266
  %v1001 = vunpack.c.l.b16 %v267
  %v1002 = vunpack.c.h.b16 %v267
  %v1003 = vunpack.c.l.b16 %v268
  %v1004 = vunpack.c.h.b16 %v268
  %v1005 = vunpack.c.l.b16 %v269
  %v1006 = vunpack.c.h.b16 %v269
  %v1007 = vunpack.c.l.b16 %v270
  %v1008 = vunpack.c.h.b16 %v270
  %v1009 = vunpack.c.l.b16 %v271
  %v1010 = vunpack.c.h.b16 %v271
  %v1011 = vunpack.c.l.b16 %v272
  %v1012 = vunpack.c.h.b16 %v272
  %v1013 = vunpack.c.l.b16 %v273
  %v1014 = vunpack.c.h.b16 %v273
  %v1015 = vunpack.c.l.b16 %v274
  %v1016 = vunpack.c.h.b16 %v274
  %v1017 = vunpack.c.l.b16 %v275
  %v1018 = vunpack.c.h.b16 %v275
  %v1019 = vunpack.c.l.b16 %v276
  %v1020 = vunpack.c.h.b16 %v276
  %v1021 = vunpack.c.l.b16 %v277
  %v1022 = vunpack.c.h.b16 %v277
  %v1023 = vunpack.c.l.b16 %v278
  %v1024 = vunpack.c.h.b16 %v278
  %v1025 = vunpack.c.l.b16 %v279
  %v1026 = vunpack.c.h.b16 %v279
  %v1027 = vunpack.c.l.b16 %v280
  %v1028 = vunpack.c.h.b16 %v280
  %v1029 = vunpack.c.l.b16 %v281
  %v1030 = vunpack.c.h.b16 %v281
  %v1031 = vunpack.c.l.b16 %v282
  %v1032 = vunpack.c.h.b16 %v282
  %v1033 = vunpack.c.l.b16 %v283
  %v1034 = vunpack.c.h.b16 %v283
  %v1035 = vunpack.c.l.b16 %v284
  %v1036 = vunpack.c.h.b16 %v284
  %v1037 = vunpack.c.l.b16 %v285
  %v1038 = vunpack.c.h.b16 %v285
  %v1039 = vunpack.c.l.b16 %v286
  %v1040 = vunpack.c.h.b16 %v286
  %v1041 = vunpack.c.l.b16 %v287
  %v1042 = vunpack.c.h.b16 %v287
  %v1043 = vunpack.c.l.b16 %v288
  %v1044 = vunpack.c.h.b16 %v288
  %v1045 = vunpack.c.l.b16 %v289
  %v1046 = vunpack.c.h.b16 %v289
  %v1047 = vunpack.c.l.b16 %v290
  %v1048 = vunpack.c.h.b16 %v290
  %v1049 = vunpack.c.l.b16 %v291
  %v1050 = vunpack.c.h.b16 %v291
  %v1051 = vunpack.c.l.b16 %v292
  %v1052 = vunpack.c.h.b16 %v292
  %v1053 = vunpack.c.l.b16 %v293
  %v1054 = vunpack.c.h.b16 %v293
  %v1055 = vunpack.c.l.b16 %v294
  %v1056 = vunpack.c.h.b16 %v294
  %v1057 = vunpack.c.l.b16 %v295
  %v1058 = vunpack.c.h.b16 %v295
  %v1059 = vunpack.c.l.b16 %v296
  %v1060 = vunpack.c.h.b16 %v296
  %v1061 = vunpack.c.l.b16 %v297
  %v1062 = vunpack.c.h.b16 %v297
  %v1063 = vunpack.c.l.b16 %v298
  %v1064 = vunpack.c.h.b16 %v298
  %v1065 = vunpack.c.l.b16 %v299
  %v1066 = vunpack.c.h.b16 %v299
  %v1067 = vunpack.c.l.b16 %v300
  %v1068 = vunpack.c.h.b16 %v300
  %v1069 = vpack.c.b16 %v573, %v557
  %v1070 = vpack.c.b16 %v574, %v558
  %v1071 = vpack.c.b16 %v575, %v559
  %v1072 = vpack.c.b16 %v576, %v560
  %v1073 = vpack.c.b16 %v577, %v561
  %v1074 = vpack.c.b16 %v578, %v562
  %v1075 = vpack.c.b16 %v579, %v563
  %v1076 = vpack.c.b16 %v580, %v564
  %v1077 = vpack.c.b16 %v581, %v565
  %v1078 = vpack.c.b16 %v582, %v566
  %v1079 = vpack.c.b16 %v583, %v567
  %v1080 = vpack.c.b16 %v584, %v568
  %v1081 = vpack.c.b16 %v585, %v569
  %v1082 = vpack.c.b16 %v586, %v570
  %v1083 = vpack.c.b16 %v587, %v571
  %v1084 = vpack.c.b16 %v588, %v572
  %v1085 = vpack.c.b16 %v605, %v589
  %v1086 = vpack.c.b16 %v606, %v590
  %v1087 = vpack.c.b16 %v607, %v591
  %v1088 = vpack.c.b16 %v608, %v592
  %v1089 = vpack.c.b16 %v609, %v593
  %v1090 = vpack.c.b16 %v610, %v594
  %v1091 = vpack.c.b16 %v611, %v595
  %v1092 = vpack.c.b16 %v612, %v596
  %v1093 = vpack.c.b16 %v613, %v597
  %v1094 = vpack.c.b16 %v614, %v598
  %v1095 = vpack.c.b16 %v615, %v599
  %v1096 = vpack.c.b16 %v616, %v600
  %v1097 = vpack.c.b16 %v617, %v601
  %v1098 = vpack.c.b16 %v618, %v602
  %v1099 = vpack.c.b16 %v619, %v603
  %v1100 = vpack.c.b16 %v620, %v604
  %v1101 = vpack.c.b16 %v637, %v621
  %v1102 = vpack.c.b16 %v638, %v622
  %v1103 = vpack.c.b16 %v639, %v623
  %v1104 = vpack.c.b16 %v640, %v624
  %v1105 = vpack.c.b16 %v641, %v625
  %v1106 = vpack.c.b16 %v642, %v626
  %v1107 = vpack.c.b16 %v643, %v627
  %v1108 = vpack.c.b16 %v644, %v628
  %v1109 = vpack.c.b16 %v645, %v629
  %v1110 = vpack.c.b16 %v646, %v630
  %v1111 = vpack.c.b16 %v647, %v631
  %v1112 = vpack.c.b16 %v648, %v632
  %v1113 = vpack.c.b16 %v649, %v633
  %v1114 = vpack.c.b16 %v650, %v634
  %v1115 = vpack.c.b16 %v651, %v635
  %v1116 = vpack.c.b16 %v652, %v636
  %v1117 = vpack.c.b16 %v669, %v653
  %v1118 = vpack.c.b16 %v670, %v654
  %v1119 = vpack.c.b16 %v671, %v655
  %v1120 = vpack.c.b16 %v672, %v656
  %v1121 = vpack.c.b16 %v673, %v657
  %v1122 = vpack.c.b16 %v674, %v658
  %v1123 = vpack.c.b16 %v675, %v659
  %v1124 = vpack.c.b16 %v676, %v660
  %v1125 = vpack.c.b16 %v677, %v661
  %v1126 = vpack.c.b16 %v678, %v662
  %v1127 = vpack.c.b16 %v679, %v663
  %v1128 = vpack.c.b16 %v680, %v664
  %v1129 = vpack.c.b16 %v681, %v665
  %v1130 = vpack.c.b16 %v682, %v666
  %v1131 = vpack.c.b16 %v683, %v667
  %v1132 = vpack.c.b16 %v684, %v668
  %v1133 = vpack.c.b16 %v701, %v685
  %v1134 = vpack.c.b16 %v702, %v686
  %v1135 = vpack.c.b16 %v703, %v687
  %v1136 = vpack.c.b16 %v704, %v688
  %v1137 = vpack.c.b16 %v705, %v689
  %v1138 = vpack.c.b16 %v706, %v690
  %v1139 = vpack.c.b16 %v707, %v691
  %v1140 = vpack.c.b16 %v708, %v692
  %v1141 = vpack.c.b16 %v709, %v693
  %v1142 = vpack.c.b16 %v710, %v694
  %v1143 = vpack.c.b16 %v711, %v695
  %v1144 = vpack.c.b16 %v712, %v696
  %v1145 = vpack.c.b16 %v713, %v697
  %v1146 = vpack.c.b16 %v714, %v698
  %v1147 = vpack.c.b16 %v715, %v699
  %v1148 = vpack.c.b16 %v716, %v700
  %v1149 = vpack.c.b16 %v733, %v717
  %v1150 = vpack.c.b16 %v734, %v718
  %v1151 = vpack.c.b16 %v735, %v719
  %v1152 = vpack.c.b16 %v736, %v720
  %v1153 = vpack.c.b16 %v737, %v721
  %v1154 = vpack.c.b16 %v738, %v722
  %v1155 = vpack.c.b16 %v739, %v723
  %v1156 = vpack.c.b16 %v740, %v724
  %v1157 = vpack.c.b16 %v741, %v725
  %v1158 = vpack.c.b16 %v742, %v726
  %v1159 = vpack.c.b16 %v743, %v727
  %v1160 = vpack.c.b16 %v744, %v728
  %v1161 = vpack.c.b16 %v745, %v729
  %v1162 = vpack.c.b16 %v746, %v730
  %v1163 = vpack.c.b16 %v747, %v731
  %v1164 = vpack.c.b16 %v748, %v732
  %v1165 = vpack.c.b16 %v765, %v749
  %v1166 = vpack.c.b16 %v766, %v750
  %v1167 = vpack.c.b16 %v767, %v751
  %v1168 = vpack.c.b16 %v768, %v752
  %v1169 = vpack.c.b16 %v769, %v753
  %v1170 = vpack.c.b16 %v770, %v754
  %v1171 = vpack.c.b16 %v771, %v755
  %v1172 = vpack.c.b16 %v772, %v756
  %v1173 = vpack.c.b16 %v773, %v757
  %v1174 = vpack.c.b16 %v774, %v758
  %v1175 = vpack.c.b16 %v775, %v759
  %v1176 = vpack.c.b16 %v776, %v760
  %v1177 = vpack.c.b16 %v777, %v761
  %v1178 = vpack.c.b16 %v778, %v762
  %v1179 = vpack.c.b16 %v779, %v763
  %v1180 = vpack.c.b16 %v780, %v764
  %v1181 = vpack.c.b16 %v797, %v781
  %v1182 = vpack.c.b16 %v798, %v782
  %v1183 = vpack.c.b16 %v799, %v783
  %v1184 = vpack.c.b16 %v800, %v784
  %v1185 = vpack.c.b16 %v801, %v785
  %v1186 = vpack.c.b16 %v802, %v786
  %v1187 = vpack.c.b16 %v803, %v787
  %v1188 = vpack.c.b16 %v804, %v788
  %v1189 = vpack.c.b16 %v805, %v789
  %v1190 = vpack.c.b16 %v806, %v790
  %v1191 = vpack.c.b16 %v807, %v791
  %v1192 = vpack.c.b16 %v808, %v792
  %v1193 = vpack.c.b16 %v809, %v793
  %v1194 = vpack.c.b16 %v810, %v794
  %v1195 = vpack.c.b16 %v811, %v795
  %v1196 = vpack.c.b16 %v812, %v796
  %v1197 = vpack.c.b16 %v829, %v813
  %v1198 = vpack.c.b16 %v830, %v814
  %v1199 = vpack.c.b16 %v831, %v815
  %v1200 = vpack.c.b16 %v832, %v816
  %v1201 = vpack.c.b16 %v833, %v817
  %v1202 = vpack.c.b16 %v834, %v818
  %v1203 = vpack.c.b16 %v835, %v819
  %v1204 = vpack.c.b16 %v836, %v820
  %v1205 = vpack.c.b16 %v837, %v821
  %v1206 = vpack.c.b16 %v838, %v822
  %v1207 = vpack.c.b16 %v839, %v823
  %v1208 = vpack.c.b16 %v840, %v824
  %v1209 = vpack.c.b16 %v841, %v825
  %v1210 = vpack.c.b16 %v842, %v826
  %v1211 = vpack.c.b16 %v843, %v827
  %v1212 = vpack.c.b16 %v844, %v828
  %v1213 = vpack.c.b16 %v861, %v845
  %v1214 = vpack.c.b16 %v862, %v846
  %v1215 = vpack.c.b16 %v863, %v847
  %v1216 = vpack.c.b16 %v864, %v848
  %v1217 = vpack.c.b16 %v865, %v849
  %v1218 = vpack.c.b16 %v866, %v850
  %v1219 = vpack.c.b16 %v867, %v851
  %v1220 = vpack.c.b16 %v868, %v852
  %v1221 = vpack.c.b16 %v869, %v853
  %v1222 = vpack.c.b16 %v870, %v854
  %v1223 = vpack.c.b16 %v871, %v855
  %v1224 = vpack.c.b16 %v872, %v856
  %v1225 = vpack.c.b16 %v873, %v857
  %v1226 = vpack.c.b16 %v874, %v858
  %v1227 = vpack.c.b16 %v875, %v859
  %v1228 = vpack.c.b16 %v876, %v860
  %v1229 = vpack.c.b16 %v893, %v877
  %v1230 = vpack.c.b16 %v894, %v878
  %v1231 = vpack.c.b16 %v895, %v879
  %v1232 = vpack.c.b16 %v896, %v880
  %v1233 = vpack.c.b16 %v897, %v881
  %v1234 = vpack.c.b16 %v898, %v882
  %v1235 = vpack.c.b16 %v899, %v883
  %v1236 = vpack.c.b16 %v900, %v884
  %v1237 = vpack.c.b16 %v901, %v885
  %v1238 = vpack.c.b16 %v902, %v886
  %v1239 = vpack.c.b16 %v903, %v887
  %v1240 = vpack.c.b16 %v904, %v888
  %v1241 = vpack.c.b16 %v905, %v889
  %v1242 = vpack.c.b16 %v906, %v890
  %v1243 = vpack.c.b16 %v907, %v891
  %v1244 = vpack.c.b16 %v908, %v892
  %v1245 = vpack.c.b16 %v925, %v909
  %v1246 = vpack.c.b16 %v926, %v910
  %v1247 = vpack.c.b16 %v927, %v911
  %v1248 = vpack.c.b16 %v928, %v912
  %v1249 = vpack.c.b16 %v929, %v913
  %v1250 = vpack.c.b16 %v930, %v914
  %v1251 = vpack.c.b16 %v931, %v915
  %v1252 = vpack.c.b16 %v932, %v916
  %v1253 = vpack.c.b16 %v933, %v917
  %v1254 = vpack.c.b16 %v934, %v918
  %v1255 = vpack.c.b16 %v935, %v919
  %v1256 = vpack.c.b16 %v936, %v920
  %v1257 = vpack.c.b16 %v937, %v921
  %v1258 = vpack.c.b16 %v938, %v922
  %v1259 = vpack.c.b16 %v939, %v923
  %v1260 = vpack.c.b16 %v940, %v924
  %v1261 = vpack.c.b16 %v957, %v941
  %v1262 = vpack.c.b16 %v958, %v942
  %v1263 = vpack.c.b16 %v959, %v943
  %v1264 = vpack.c.b16 %v960, %v944
  %v1265 = vpack.c.b16 %v961, %v945
  %v1266 = vpack.c.b16 %v962, %v946
  %v1267 = vpack.c.b16 %v963, %v947
  %v1268 = vpack.c.b16 %v964, %v948
  %v1269 = vpack.c.b16 %v965, %v949
  %v1270 = vpack.c.b16 %v966, %v950
  %v1271 = vpack.c.b16 %v967, %v951
  %v1272 = vpack.c.b16 %v968, %v952
  %v1273 = vpack.c.b16 %v969, %v953
  %v1274 = vpack.c.b16 %v970, %v954
  %v1275 = vpack.c.b16 %v971, %v955
  %v1276 = vpack.c.b16 %v972, %v956
  %v1277 = vpack.c.b16 %v989, %v973
  %v1278 = vpack.c.b16 %v990, %v974
  %v1279 = vpack.c.b16 %v991, %v975
  %v1280 = vpack.c.b16 %v992, %v976
  %v1281 = vpack.c.b16 %v993, %v977
  %v1282 = vpack.c.b16 %v994, %v978
  %v1283 = vpack.c.b16 %v995, %v979
  %v1284 = vpack.c.b16 %v996, %v980
  %v1285 = vpack.c.b16 %v997, %v981
  %v1286 = vpack.c.b16 %v998, %v982
  %v1287 = vpack.c.b16 %v999, %v983
  %v1288 = vpack.c.b16 %v1000, %v984
  %v1289 = vpack.c.b16 %v1001, %v985
  %v1290 = vpack.c.b16 %v1002, %v986
  %v1291 = vpack.c.b16 %v1003, %v987
  %v1292 = vpack.c.b16 %v1004, %v988
  %v1293 = vpack.c.b16 %v1021, %v1005
  %v1294 = vpack.c.b16 %v1022, %v1006
  %v1295 = vpack.c.b16 %v1023, %v1007
  %v1296 = vpack.c.b16 %v1024, %v1008
  %v1297 = vpack.c.b16 %v1025, %v1009
  %v1298 = vpack.c.b16 %v1026, %v1010
  %v1299 = vpack.c.b16 %v1027, %v1011
  %v1300 = vpack.c.b16 %v1028, %v1012
  %v1301 = vpack.c.b16 %v1029, %v1013
  %v1302 = vpack.c.b16 %v1030, %v1014
  %v1303 = vpack.c.b16 %v1031, %v1015
  %v1304 = vpack.c.b16 %v1032, %v1016
  %v1305 = vpack.c.b16 %v1033, %v1017
  %v1306 = vpack.c.b16 %v1034, %v1018
  %v1307 = vpack.c.b16 %v1035, %v1019
  %v1308 = vpack.c.b16 %v1036, %v1020
  %v1309 = vpack.c.b16 %v1053, %v1037
  %v1310 = vpack.c.b16 %v1054, %v1038
  %v1311 = vpack.c.b16 %v1055, %v1039
  %v1312 = vpack.c.b16 %v1056, %v1040
  %v1313 = vpack.c.b16 %v1057, %v1041
  %v1314 = vpack.c.b16 %v1058, %v1042
  %v1315 = vpack.c.b16 %v1059, %v1043
  %v1316 = vpack.c.b16 %v1060, %v1044
  %v1317 = vpack.c.b16 %v1061, %v1045
  %v1318 = vpack.c.b16 %v1062, %v1046
  %v1319 = vpack.c.b16 %v1063, %v1047
  %v1320 = vpack.c.b16 %v1064, %v1048
  %v1321 = vpack.c.b16 %v1065, %v1049
  %v1322 = vpack.c.b16 %v1066, %v1050
  %v1323 = vpack.c.b16 %v1067, %v1051
  %v1324 = vpack.c.b16 %v1068, %v1052
  %1581 = vmatpush.bf16.msra.mxu0 %v1181
  %1582 = vmatpush.bf16.msra.mxu0 %v1165
  %1583 = vmatpush.bf16.msra.mxu0 %v1149
  %1584 = vmatpush.bf16.msra.mxu0 %v1133
  %1585 = vmatpush.bf16.msra.mxu0 %v1117
  %1586 = vmatpush.bf16.msra.mxu0 %v1101
  %1587 = vmatpush.bf16.msra.mxu0 %v1085
  %1588 = vmatpush.bf16.msra.mxu0 %v1069
  %1589 = vmatmul.bf16.gmra.mxu0 %v43
  %v1590 = vpop.f32.mrf.mxu0
  %v1591 = vadd.f32 0.0, %v1590
  %v1592 = vpop.f32.mrf.mxu0
  %v1593 = vadd.f32 0.0, %v1592
  %1594 = vdwg.mxu0
  %1595 = vmatpush.bf16.msra.mxu0 %v1309
  %1596 = vmatpush.bf16.msra.mxu0 %v1293
  %1597 = vmatpush.bf16.msra.mxu0 %v1277
  %1598 = vmatpush.bf16.msra.mxu0 %v1261
  %1599 = vmatpush.bf16.msra.mxu0 %v1245
  %1600 = vmatpush.bf16.msra.mxu0 %v1229
  %1601 = vmatpush.bf16.msra.mxu0 %v1213
  %1602 = vmatpush.bf16.msra.mxu0 %v1197
  %1603 = vmatmul.bf16.gmra.mxu0 %v44
  %v1604 = vpop.f32.mrf.mxu0
  %v1605 = vadd.f32 %v1591, %v1604
  %v1606 = vpop.f32.mrf.mxu0
  %v1607 = vadd.f32 %v1593, %v1606
  %1608 = vdwg.mxu0
  %1609 = vmatpush.bf16.msra.mxu0 %v1182
  %1610 = vmatpush.bf16.msra.mxu0 %v1166
  %1611 = vmatpush.bf16.msra.mxu0 %v1150
  %1612 = vmatpush.bf16.msra.mxu0 %v1134
  %1613 = vmatpush.bf16.msra.mxu0 %v1118
  %1614 = vmatpush.bf16.msra.mxu0 %v1102
  %1615 = vmatpush.bf16.msra.mxu0 %v1086
  %1616 = vmatpush.bf16.msra.mxu0 %v1070
  %1617 = vmatmul.bf16.gmra.mxu0 %v43
  %v1618 = vpop.f32.mrf.mxu0
  %v1619 = vadd.f32 0.0, %v1618
  %v1620 = vpop.f32.mrf.mxu0
  %v1621 = vadd.f32 0.0, %v1620
  %1622 = vdwg.mxu0
  %1623 = vmatpush.bf16.msra.mxu0 %v1310
  %1624 = vmatpush.bf16.msra.mxu0 %v1294
  %1625 = vmatpush.bf16.msra.mxu0 %v1278
  %1626 = vmatpush.bf16.msra.mxu0 %v1262
  %1627 = vmatpush.bf16.msra.mxu0 %v1246
  %1628 = vmatpush.bf16.msra.mxu0 %v1230
  %1629 = vmatpush.bf16.msra.mxu0 %v1214
  %1630 = vmatpush.bf16.msra.mxu0 %v1198
  %1631 = vmatmul.bf16.gmra.mxu0 %v44
  %v1632 = vpop.f32.mrf.mxu0
  %v1633 = vadd.f32 %v1619, %v1632
  %v1634 = vpop.f32.mrf.mxu0
  %v1635 = vadd.f32 %v1621, %v1634
  %1636 = vdwg.mxu0
  %1637 = vmatpush.bf16.msra.mxu0 %v1183
  %1638 = vmatpush.bf16.msra.mxu0 %v1167
  %1639 = vmatpush.bf16.msra.mxu0 %v1151
  %1640 = vmatpush.bf16.msra.mxu0 %v1135
  %1641 = vmatpush.bf16.msra.mxu0 %v1119
  %1642 = vmatpush.bf16.msra.mxu0 %v1103
  %1643 = vmatpush.bf16.msra.mxu0 %v1087
  %1644 = vmatpush.bf16.msra.mxu0 %v1071
  %1645 = vmatmul.bf16.gmra.mxu0 %v43
  %v1646 = vpop.f32.mrf.mxu0
  %v1647 = vadd.f32 0.0, %v1646
  %v1648 = vpop.f32.mrf.mxu0
  %v1649 = vadd.f32 0.0, %v1648
  %1650 = vdwg.mxu0
  %1651 = vmatpush.bf16.msra.mxu0 %v1311
  %1652 = vmatpush.bf16.msra.mxu0 %v1295
  %1653 = vmatpush.bf16.msra.mxu0 %v1279
  %1654 = vmatpush.bf16.msra.mxu0 %v1263
  %1655 = vmatpush.bf16.msra.mxu0 %v1247
  %1656 = vmatpush.bf16.msra.mxu0 %v1231
  %1657 = vmatpush.bf16.msra.mxu0 %v1215
  %1658 = vmatpush.bf16.msra.mxu0 %v1199
  %1659 = vmatmul.bf16.gmra.mxu0 %v44
  %v1660 = vpop.f32.mrf.mxu0
  %v1661 = vadd.f32 %v1647, %v1660
  %v1662 = vpop.f32.mrf.mxu0
  %v1663 = vadd.f32 %v1649, %v1662
  %1664 = vdwg.mxu0
  %1665 = vmatpush.bf16.msra.mxu0 %v1184
  %1666 = vmatpush.bf16.msra.mxu0 %v1168
  %1667 = vmatpush.bf16.msra.mxu0 %v1152
  %1668 = vmatpush.bf16.msra.mxu0 %v1136
  %1669 = vmatpush.bf16.msra.mxu0 %v1120
  %1670 = vmatpush.bf16.msra.mxu0 %v1104
  %1671 = vmatpush.bf16.msra.mxu0 %v1088
  %1672 = vmatpush.bf16.msra.mxu0 %v1072
  %1673 = vmatmul.bf16.gmra.mxu0 %v43
  %v1674 = vpop.f32.mrf.mxu0
  %v1675 = vadd.f32 0.0, %v1674
  %v1676 = vpop.f32.mrf.mxu0
  %v1677 = vadd.f32 0.0, %v1676
  %1678 = vdwg.mxu0
  %1679 = vmatpush.bf16.msra.mxu0 %v1312
  %1680 = vmatpush.bf16.msra.mxu0 %v1296
  %1681 = vmatpush.bf16.msra.mxu0 %v1280
  %1682 = vmatpush.bf16.msra.mxu0 %v1264
  %1683 = vmatpush.bf16.msra.mxu0 %v1248
  %1684 = vmatpush.bf16.msra.mxu0 %v1232
  %1685 = vmatpush.bf16.msra.mxu0 %v1216
  %1686 = vmatpush.bf16.msra.mxu0 %v1200
  %1687 = vmatmul.bf16.gmra.mxu0 %v44
  %v1688 = vpop.f32.mrf.mxu0
  %v1689 = vadd.f32 %v1675, %v1688
  %v1690 = vpop.f32.mrf.mxu0
  %v1691 = vadd.f32 %v1677, %v1690
  %1692 = vdwg.mxu0
  %1693 = vmatpush.bf16.msra.mxu0 %v1185
  %1694 = vmatpush.bf16.msra.mxu0 %v1169
  %1695 = vmatpush.bf16.msra.mxu0 %v1153
  %1696 = vmatpush.bf16.msra.mxu0 %v1137
  %1697 = vmatpush.bf16.msra.mxu0 %v1121
  %1698 = vmatpush.bf16.msra.mxu0 %v1105
  %1699 = vmatpush.bf16.msra.mxu0 %v1089
  %1700 = vmatpush.bf16.msra.mxu0 %v1073
  %1701 = vmatmul.bf16.gmra.mxu0 %v43
  %v1702 = vpop.f32.mrf.mxu0
  %v1703 = vadd.f32 0.0, %v1702
  %v1704 = vpop.f32.mrf.mxu0
  %v1705 = vadd.f32 0.0, %v1704
  %1706 = vdwg.mxu0
  %1707 = vmatpush.bf16.msra.mxu0 %v1313
  %1708 = vmatpush.bf16.msra.mxu0 %v1297
  %1709 = vmatpush.bf16.msra.mxu0 %v1281
  %1710 = vmatpush.bf16.msra.mxu0 %v1265
  %1711 = vmatpush.bf16.msra.mxu0 %v1249
  %1712 = vmatpush.bf16.msra.mxu0 %v1233
  %1713 = vmatpush.bf16.msra.mxu0 %v1217
  %1714 = vmatpush.bf16.msra.mxu0 %v1201
  %1715 = vmatmul.bf16.gmra.mxu0 %v44
  %v1716 = vpop.f32.mrf.mxu0
  %v1717 = vadd.f32 %v1703, %v1716
  %v1718 = vpop.f32.mrf.mxu0
  %v1719 = vadd.f32 %v1705, %v1718
  %1720 = vdwg.mxu0
  %1721 = vmatpush.bf16.msra.mxu0 %v1186
  %1722 = vmatpush.bf16.msra.mxu0 %v1170
  %1723 = vmatpush.bf16.msra.mxu0 %v1154
  %1724 = vmatpush.bf16.msra.mxu0 %v1138
  %1725 = vmatpush.bf16.msra.mxu0 %v1122
  %1726 = vmatpush.bf16.msra.mxu0 %v1106
  %1727 = vmatpush.bf16.msra.mxu0 %v1090
  %1728 = vmatpush.bf16.msra.mxu0 %v1074
  %1729 = vmatmul.bf16.gmra.mxu0 %v43
  %v1730 = vpop.f32.mrf.mxu0
  %v1731 = vadd.f32 0.0, %v1730
  %v1732 = vpop.f32.mrf.mxu0
  %v1733 = vadd.f32 0.0, %v1732
  %1734 = vdwg.mxu0
  %1735 = vmatpush.bf16.msra.mxu0 %v1314
  %1736 = vmatpush.bf16.msra.mxu0 %v1298
  %1737 = vmatpush.bf16.msra.mxu0 %v1282
  %1738 = vmatpush.bf16.msra.mxu0 %v1266
  %1739 = vmatpush.bf16.msra.mxu0 %v1250
  %1740 = vmatpush.bf16.msra.mxu0 %v1234
  %1741 = vmatpush.bf16.msra.mxu0 %v1218
  %1742 = vmatpush.bf16.msra.mxu0 %v1202
  %1743 = vmatmul.bf16.gmra.mxu0 %v44
  %v1744 = vpop.f32.mrf.mxu0
  %v1745 = vadd.f32 %v1731, %v1744
  %v1746 = vpop.f32.mrf.mxu0
  %v1747 = vadd.f32 %v1733, %v1746
  %1748 = vdwg.mxu0
  %1749 = vmatpush.bf16.msra.mxu0 %v1187
  %1750 = vmatpush.bf16.msra.mxu0 %v1171
  %1751 = vmatpush.bf16.msra.mxu0 %v1155
  %1752 = vmatpush.bf16.msra.mxu0 %v1139
  %1753 = vmatpush.bf16.msra.mxu0 %v1123
  %1754 = vmatpush.bf16.msra.mxu0 %v1107
  %1755 = vmatpush.bf16.msra.mxu0 %v1091
  %1756 = vmatpush.bf16.msra.mxu0 %v1075
  %1757 = vmatmul.bf16.gmra.mxu0 %v43
  %v1758 = vpop.f32.mrf.mxu0
  %v1759 = vadd.f32 0.0, %v1758
  %v1760 = vpop.f32.mrf.mxu0
  %v1761 = vadd.f32 0.0, %v1760
  %1762 = vdwg.mxu0
  %1763 = vmatpush.bf16.msra.mxu0 %v1315
  %1764 = vmatpush.bf16.msra.mxu0 %v1299
  %1765 = vmatpush.bf16.msra.mxu0 %v1283
  %1766 = vmatpush.bf16.msra.mxu0 %v1267
  %1767 = vmatpush.bf16.msra.mxu0 %v1251
  %1768 = vmatpush.bf16.msra.mxu0 %v1235
  %1769 = vmatpush.bf16.msra.mxu0 %v1219
  %1770 = vmatpush.bf16.msra.mxu0 %v1203
  %1771 = vmatmul.bf16.gmra.mxu0 %v44
  %v1772 = vpop.f32.mrf.mxu0
  %v1773 = vadd.f32 %v1759, %v1772
  %v1774 = vpop.f32.mrf.mxu0
  %v1775 = vadd.f32 %v1761, %v1774
  %1776 = vdwg.mxu0
  %1777 = vmatpush.bf16.msra.mxu0 %v1188
  %1778 = vmatpush.bf16.msra.mxu0 %v1172
  %1779 = vmatpush.bf16.msra.mxu0 %v1156
  %1780 = vmatpush.bf16.msra.mxu0 %v1140
  %1781 = vmatpush.bf16.msra.mxu0 %v1124
  %1782 = vmatpush.bf16.msra.mxu0 %v1108
  %1783 = vmatpush.bf16.msra.mxu0 %v1092
  %1784 = vmatpush.bf16.msra.mxu0 %v1076
  %1785 = vmatmul.bf16.gmra.mxu0 %v43
  %v1786 = vpop.f32.mrf.mxu0
  %v1787 = vadd.f32 0.0, %v1786
  %v1788 = vpop.f32.mrf.mxu0
  %v1789 = vadd.f32 0.0, %v1788
  %1790 = vdwg.mxu0
  %1791 = vmatpush.bf16.msra.mxu0 %v1316
  %1792 = vmatpush.bf16.msra.mxu0 %v1300
  %1793 = vmatpush.bf16.msra.mxu0 %v1284
  %1794 = vmatpush.bf16.msra.mxu0 %v1268
  %1795 = vmatpush.bf16.msra.mxu0 %v1252
  %1796 = vmatpush.bf16.msra.mxu0 %v1236
  %1797 = vmatpush.bf16.msra.mxu0 %v1220
  %1798 = vmatpush.bf16.msra.mxu0 %v1204
  %1799 = vmatmul.bf16.gmra.mxu0 %v44
  %v1800 = vpop.f32.mrf.mxu0
  %v1801 = vadd.f32 %v1787, %v1800
  %v1802 = vpop.f32.mrf.mxu0
  %v1803 = vadd.f32 %v1789, %v1802
  %1804 = vdwg.mxu0
  %1805 = vmatpush.bf16.msra.mxu0 %v1189
  %1806 = vmatpush.bf16.msra.mxu0 %v1173
  %1807 = vmatpush.bf16.msra.mxu0 %v1157
  %1808 = vmatpush.bf16.msra.mxu0 %v1141
  %1809 = vmatpush.bf16.msra.mxu0 %v1125
  %1810 = vmatpush.bf16.msra.mxu0 %v1109
  %1811 = vmatpush.bf16.msra.mxu0 %v1093
  %1812 = vmatpush.bf16.msra.mxu0 %v1077
  %1813 = vmatmul.bf16.gmra.mxu0 %v43
  %v1814 = vpop.f32.mrf.mxu0
  %v1815 = vadd.f32 0.0, %v1814
  %v1816 = vpop.f32.mrf.mxu0
  %v1817 = vadd.f32 0.0, %v1816
  %1818 = vdwg.mxu0
  %1819 = vmatpush.bf16.msra.mxu0 %v1317
  %1820 = vmatpush.bf16.msra.mxu0 %v1301
  %1821 = vmatpush.bf16.msra.mxu0 %v1285
  %1822 = vmatpush.bf16.msra.mxu0 %v1269
  %1823 = vmatpush.bf16.msra.mxu0 %v1253
  %1824 = vmatpush.bf16.msra.mxu0 %v1237
  %1825 = vmatpush.bf16.msra.mxu0 %v1221
  %1826 = vmatpush.bf16.msra.mxu0 %v1205
  %1827 = vmatmul.bf16.gmra.mxu0 %v44
  %v1828 = vpop.f32.mrf.mxu0
  %v1829 = vadd.f32 %v1815, %v1828
  %v1830 = vpop.f32.mrf.mxu0
  %v1831 = vadd.f32 %v1817, %v1830
  %1832 = vdwg.mxu0
  %1833 = vmatpush.bf16.msra.mxu0 %v1190
  %1834 = vmatpush.bf16.msra.mxu0 %v1174
  %1835 = vmatpush.bf16.msra.mxu0 %v1158
  %1836 = vmatpush.bf16.msra.mxu0 %v1142
  %1837 = vmatpush.bf16.msra.mxu0 %v1126
  %1838 = vmatpush.bf16.msra.mxu0 %v1110
  %1839 = vmatpush.bf16.msra.mxu0 %v1094
  %1840 = vmatpush.bf16.msra.mxu0 %v1078
  %1841 = vmatmul.bf16.gmra.mxu0 %v43
  %v1842 = vpop.f32.mrf.mxu0
  %v1843 = vadd.f32 0.0, %v1842
  %v1844 = vpop.f32.mrf.mxu0
  %v1845 = vadd.f32 0.0, %v1844
  %1846 = vdwg.mxu0
  %1847 = vmatpush.bf16.msra.mxu0 %v1318
  %1848 = vmatpush.bf16.msra.mxu0 %v1302
  %1849 = vmatpush.bf16.msra.mxu0 %v1286
  %1850 = vmatpush.bf16.msra.mxu0 %v1270
  %1851 = vmatpush.bf16.msra.mxu0 %v1254
  %1852 = vmatpush.bf16.msra.mxu0 %v1238
  %1853 = vmatpush.bf16.msra.mxu0 %v1222
  %1854 = vmatpush.bf16.msra.mxu0 %v1206
  %1855 = vmatmul.bf16.gmra.mxu0 %v44
  %v1856 = vpop.f32.mrf.mxu0
  %v1857 = vadd.f32 %v1843, %v1856
  %v1858 = vpop.f32.mrf.mxu0
  %v1859 = vadd.f32 %v1845, %v1858
  %1860 = vdwg.mxu0
  %1861 = vmatpush.bf16.msra.mxu0 %v1191
  %1862 = vmatpush.bf16.msra.mxu0 %v1175
  %1863 = vmatpush.bf16.msra.mxu0 %v1159
  %1864 = vmatpush.bf16.msra.mxu0 %v1143
  %1865 = vmatpush.bf16.msra.mxu0 %v1127
  %1866 = vmatpush.bf16.msra.mxu0 %v1111
  %1867 = vmatpush.bf16.msra.mxu0 %v1095
  %1868 = vmatpush.bf16.msra.mxu0 %v1079
  %1869 = vmatmul.bf16.gmra.mxu0 %v43
  %v1870 = vpop.f32.mrf.mxu0
  %v1871 = vadd.f32 0.0, %v1870
  %v1872 = vpop.f32.mrf.mxu0
  %v1873 = vadd.f32 0.0, %v1872
  %1874 = vdwg.mxu0
  %1875 = vmatpush.bf16.msra.mxu0 %v1319
  %1876 = vmatpush.bf16.msra.mxu0 %v1303
  %1877 = vmatpush.bf16.msra.mxu0 %v1287
  %1878 = vmatpush.bf16.msra.mxu0 %v1271
  %1879 = vmatpush.bf16.msra.mxu0 %v1255
  %1880 = vmatpush.bf16.msra.mxu0 %v1239
  %1881 = vmatpush.bf16.msra.mxu0 %v1223
  %1882 = vmatpush.bf16.msra.mxu0 %v1207
  %1883 = vmatmul.bf16.gmra.mxu0 %v44
  %v1884 = vpop.f32.mrf.mxu0
  %v1885 = vadd.f32 %v1871, %v1884
  %v1886 = vpop.f32.mrf.mxu0
  %v1887 = vadd.f32 %v1873, %v1886
  %1888 = vdwg.mxu0
  %1889 = vmatpush.bf16.msra.mxu0 %v1192
  %1890 = vmatpush.bf16.msra.mxu0 %v1176
  %1891 = vmatpush.bf16.msra.mxu0 %v1160
  %1892 = vmatpush.bf16.msra.mxu0 %v1144
  %1893 = vmatpush.bf16.msra.mxu0 %v1128
  %1894 = vmatpush.bf16.msra.mxu0 %v1112
  %1895 = vmatpush.bf16.msra.mxu0 %v1096
  %1896 = vmatpush.bf16.msra.mxu0 %v1080
  %1897 = vmatmul.bf16.gmra.mxu0 %v43
  %v1898 = vpop.f32.mrf.mxu0
  %v1899 = vadd.f32 0.0, %v1898
  %v1900 = vpop.f32.mrf.mxu0
  %v1901 = vadd.f32 0.0, %v1900
  %1902 = vdwg.mxu0
  %1903 = vmatpush.bf16.msra.mxu0 %v1320
  %1904 = vmatpush.bf16.msra.mxu0 %v1304
  %1905 = vmatpush.bf16.msra.mxu0 %v1288
  %1906 = vmatpush.bf16.msra.mxu0 %v1272
  %1907 = vmatpush.bf16.msra.mxu0 %v1256
  %1908 = vmatpush.bf16.msra.mxu0 %v1240
  %1909 = vmatpush.bf16.msra.mxu0 %v1224
  %1910 = vmatpush.bf16.msra.mxu0 %v1208
  %1911 = vmatmul.bf16.gmra.mxu0 %v44
  %v1912 = vpop.f32.mrf.mxu0
  %v1913 = vadd.f32 %v1899, %v1912
  %v1914 = vpop.f32.mrf.mxu0
  %v1915 = vadd.f32 %v1901, %v1914
  %1916 = vdwg.mxu0
  %1917 = vmatpush.bf16.msra.mxu0 %v1193
  %1918 = vmatpush.bf16.msra.mxu0 %v1177
  %1919 = vmatpush.bf16.msra.mxu0 %v1161
  %1920 = vmatpush.bf16.msra.mxu0 %v1145
  %1921 = vmatpush.bf16.msra.mxu0 %v1129
  %1922 = vmatpush.bf16.msra.mxu0 %v1113
  %1923 = vmatpush.bf16.msra.mxu0 %v1097
  %1924 = vmatpush.bf16.msra.mxu0 %v1081
  %1925 = vmatmul.bf16.gmra.mxu0 %v43
  %v1926 = vpop.f32.mrf.mxu0
  %v1927 = vadd.f32 0.0, %v1926
  %v1928 = vpop.f32.mrf.mxu0
  %v1929 = vadd.f32 0.0, %v1928
  %1930 = vdwg.mxu0
  %1931 = vmatpush.bf16.msra.mxu0 %v1321
  %1932 = vmatpush.bf16.msra.mxu0 %v1305
  %1933 = vmatpush.bf16.msra.mxu0 %v1289
  %1934 = vmatpush.bf16.msra.mxu0 %v1273
  %1935 = vmatpush.bf16.msra.mxu0 %v1257
  %1936 = vmatpush.bf16.msra.mxu0 %v1241
  %1937 = vmatpush.bf16.msra.mxu0 %v1225
  %1938 = vmatpush.bf16.msra.mxu0 %v1209
  %1939 = vmatmul.bf16.gmra.mxu0 %v44
  %v1940 = vpop.f32.mrf.mxu0
  %v1941 = vadd.f32 %v1927, %v1940
  %v1942 = vpop.f32.mrf.mxu0
  %v1943 = vadd.f32 %v1929, %v1942
  %1944 = vdwg.mxu0
  %1945 = vmatpush.bf16.msra.mxu0 %v1194
  %1946 = vmatpush.bf16.msra.mxu0 %v1178
  %1947 = vmatpush.bf16.msra.mxu0 %v1162
  %1948 = vmatpush.bf16.msra.mxu0 %v1146
  %1949 = vmatpush.bf16.msra.mxu0 %v1130
  %1950 = vmatpush.bf16.msra.mxu0 %v1114
  %1951 = vmatpush.bf16.msra.mxu0 %v1098
  %1952 = vmatpush.bf16.msra.mxu0 %v1082
  %1953 = vmatmul.bf16.gmra.mxu0 %v43
  %v1954 = vpop.f32.mrf.mxu0
  %v1955 = vadd.f32 0.0, %v1954
  %v1956 = vpop.f32.mrf.mxu0
  %v1957 = vadd.f32 0.0, %v1956
  %1958 = vdwg.mxu0
  %1959 = vmatpush.bf16.msra.mxu0 %v1322
  %1960 = vmatpush.bf16.msra.mxu0 %v1306
  %1961 = vmatpush.bf16.msra.mxu0 %v1290
  %1962 = vmatpush.bf16.msra.mxu0 %v1274
  %1963 = vmatpush.bf16.msra.mxu0 %v1258
  %1964 = vmatpush.bf16.msra.mxu0 %v1242
  %1965 = vmatpush.bf16.msra.mxu0 %v1226
  %1966 = vmatpush.bf16.msra.mxu0 %v1210
  %1967 = vmatmul.bf16.gmra.mxu0 %v44
  %v1968 = vpop.f32.mrf.mxu0
  %v1969 = vadd.f32 %v1955, %v1968
  %v1970 = vpop.f32.mrf.mxu0
  %v1971 = vadd.f32 %v1957, %v1970
  %1972 = vdwg.mxu0
  %1973 = vmatpush.bf16.msra.mxu0 %v1195
  %1974 = vmatpush.bf16.msra.mxu0 %v1179
  %1975 = vmatpush.bf16.msra.mxu0 %v1163
  %1976 = vmatpush.bf16.msra.mxu0 %v1147
  %1977 = vmatpush.bf16.msra.mxu0 %v1131
  %1978 = vmatpush.bf16.msra.mxu0 %v1115
  %1979 = vmatpush.bf16.msra.mxu0 %v1099
  %1980 = vmatpush.bf16.msra.mxu0 %v1083
  %1981 = vmatmul.bf16.gmra.mxu0 %v43
  %v1982 = vpop.f32.mrf.mxu0
  %v1983 = vadd.f32 0.0, %v1982
  %v1984 = vpop.f32.mrf.mxu0
  %v1985 = vadd.f32 0.0, %v1984
  %1986 = vdwg.mxu0
  %1987 = vmatpush.bf16.msra.mxu0 %v1323
  %1988 = vmatpush.bf16.msra.mxu0 %v1307
  %1989 = vmatpush.bf16.msra.mxu0 %v1291
  %1990 = vmatpush.bf16.msra.mxu0 %v1275
  %1991 = vmatpush.bf16.msra.mxu0 %v1259
  %1992 = vmatpush.bf16.msra.mxu0 %v1243
  %1993 = vmatpush.bf16.msra.mxu0 %v1227
  %1994 = vmatpush.bf16.msra.mxu0 %v1211
  %1995 = vmatmul.bf16.gmra.mxu0 %v44
  %v1996 = vpop.f32.mrf.mxu0
  %v1997 = vadd.f32 %v1983, %v1996
  %v1998 = vpop.f32.mrf.mxu0
  %v1999 = vadd.f32 %v1985, %v1998
  %2000 = vdwg.mxu0
  %2001 = vmatpush.bf16.msra.mxu0 %v1196
  %2002 = vmatpush.bf16.msra.mxu0 %v1180
  %2003 = vmatpush.bf16.msra.mxu0 %v1164
  %2004 = vmatpush.bf16.msra.mxu0 %v1148
  %2005 = vmatpush.bf16.msra.mxu0 %v1132
  %2006 = vmatpush.bf16.msra.mxu0 %v1116
  %2007 = vmatpush.bf16.msra.mxu0 %v1100
  %2008 = vmatpush.bf16.msra.mxu0 %v1084
  %2009 = vmatmul.bf16.gmra.mxu0 %v43
  %v2010 = vpop.f32.mrf.mxu0
  %v2011 = vadd.f32 0.0, %v2010
  %v2012 = vpop.f32.mrf.mxu0
  %v2013 = vadd.f32 0.0, %v2012
  %2014 = vdwg.mxu0
  %2015 = vmatpush.bf16.msra.mxu0 %v1324
  %2016 = vmatpush.bf16.msra.mxu0 %v1308
  %2017 = vmatpush.bf16.msra.mxu0 %v1292
  %2018 = vmatpush.bf16.msra.mxu0 %v1276
  %2019 = vmatpush.bf16.msra.mxu0 %v1260
  %2020 = vmatpush.bf16.msra.mxu0 %v1244
  %2021 = vmatpush.bf16.msra.mxu0 %v1228
  %2022 = vmatpush.bf16.msra.mxu0 %v1212
  %2023 = vmatmul.bf16.gmra.mxu0 %v44
  %v2024 = vpop.f32.mrf.mxu0
  %v2025 = vadd.f32 %v2011, %v2024
  %v2026 = vpop.f32.mrf.mxu0
  %v2027 = vadd.f32 %v2013, %v2026
  %2028 = vdwg.mxu0
  %2029 = vst [vmem:[%s4] sm:$0xff] %v1605
  %2030 = vst [vmem:[%s4 + $0x8] sm:$0xff] %v1633
  %2031 = vst [vmem:[%s4 + $0x10] sm:$0xff] %v1661
  %2032 = vst [vmem:[%s4 + $0x18] sm:$0xff] %v1689
  %2033 = vst [vmem:[%s4 + $0x20] sm:$0xff] %v1717
  %2034 = vst [vmem:[%s4 + $0x28] sm:$0xff] %v1745
  %2035 = vst [vmem:[%s4 + $0x30] sm:$0xff] %v1773
  %2036 = vst [vmem:[%s4 + $0x38] sm:$0xff] %v1801
  %2037 = vst [vmem:[%s4 + $0x40] sm:$0xff] %v1829
  %2038 = vst [vmem:[%s4 + $0x48] sm:$0xff] %v1857
  %2039 = vst [vmem:[%s4 + $0x50] sm:$0xff] %v1885
  %2040 = vst [vmem:[%s4 + $0x58] sm:$0xff] %v1913
  %2041 = vst [vmem:[%s4 + $0x60] sm:$0xff] %v1941
  %2042 = vst [vmem:[%s4 + $0x68] sm:$0xff] %v1969
  %2043 = vst [vmem:[%s4 + $0x70] sm:$0xff] %v1997
  %2044 = vst [vmem:[%s4 + $0x78] sm:$0xff] %v2025
  %2045 = vst [vmem:[%s4 + $0x80] sm:$0xff] %v1607
  %2046 = vst [vmem:[%s4 + $0x88] sm:$0xff] %v1635
  %2047 = vst [vmem:[%s4 + $0x90] sm:$0xff] %v1663
  %2048 = vst [vmem:[%s4 + $0x98] sm:$0xff] %v1691
  %2049 = vst [vmem:[%s4 + $0xa0] sm:$0xff] %v1719
  %2050 = vst [vmem:[%s4 + $0xa8] sm:$0xff] %v1747
  %2051 = vst [vmem:[%s4 + $0xb0] sm:$0xff] %v1775
  %2052 = vst [vmem:[%s4 + $0xb8] sm:$0xff] %v1803
  %2053 = vst [vmem:[%s4 + $0xc0] sm:$0xff] %v1831
  %2054 = vst [vmem:[%s4 + $0xc8] sm:$0xff] %v1859
  %2055 = vst [vmem:[%s4 + $0xd0] sm:$0xff] %v1887
  %2056 = vst [vmem:[%s4 + $0xd8] sm:$0xff] %v1915
  %2057 = vst [vmem:[%s4 + $0xe0] sm:$0xff] %v1943
  %2058 = vst [vmem:[%s4 + $0xe8] sm:$0xff] %v1971
  %2059 = vst [vmem:[%s4 + $0xf0] sm:$0xff] %v1999
  %2060 = vst [vmem:[%s4 + $0xf8] sm:$0xff] %v2027
  // Predicated region
  $region18: #{generator_forward.11} parent=0 // pred_check
    _
  $region19: #{generator_forward.11} parent=0 // pred_check_branch
    %2062 = sbr.rel (0) target = $region21
  $region20: #{generator_forward.11} parent=0 // pred_region
    _
  $region21: #{generator_forward.11} parent=0 // pred_fallthru
    _
  // Predicated region
  $region22: #{generator_forward.11} parent=0 // pred_check
    _
  $region23: #{generator_forward.11} parent=0 // pred_check_branch
    %2064 = sbr.rel (0) target = $region25
  $region24: #{generator_forward.11} parent=0 // pred_region
    _
  $region25: #{generator_forward.11} parent=0 // pred_fallthru
    _

// kernel: tile.43
$region0: #{tile.43}
  #allocation0 [shape = 's32[1]{0}', space=sflag, size = 0x4, scoped, tag = 'scoped memory for tile.43']
  %s0 = inlined_call_operand.vmem [shape: f32[16], index: 0, kind: input, shape index: {}]
  %s1 = inlined_call_operand.vmem [shape: f32[16,16], index: 1, kind: output, shape index: {}]
  // Predicated region
  $region2: #{tile.43} parent=0 // pred_check
    _
  $region3: #{tile.43} parent=0 // pred_check_branch
    %3 = sbr.rel (0) target = $region5
  $region4: #{tile.43} parent=0 // pred_region
    _
  $region5: #{tile.43} parent=0 // pred_fallthru
    _
  %v4 = vld [vmem:[%s0] ss:$0 sm:$0xff]
  %5 = vst [vmem:[%s1] sm:$0xff] %v4
  %s6 = scalar_lea.vmem %s1, 8
  %7 = vst [vmem:[%s6] sm:$0xff] %v4

// kernel: tile.44
$region0: #{tile.44}
  %s0 = inlined_call_operand.vmem [shape: f32[16,16], index: 0, kind: input, shape index: {}]
  %s1 = inlined_call_operand.vmem [shape: f32[1,256], index: 1, kind: output, shape index: {}]
  $region1: #{tile.44} parent=0
    #allocation0 [shape = 'u8[8192]{0}', space=vmem, size = 0x2000, scoped, tag = 'scoped mem for output reshape']
    %s2 = smov 3
    %v3 = vld [vmem:[%s0] ss:$8 sm:%s2]
    %vm4 = vcmask 130048
    %5 = vst.msk [vmem:[#allocation0] ss:$8 sm:$0x3] %vm4, %v3
    %s6 = scalar_lea.vmem %s0, 7
    %s7 = smov 3
    %v8 = vld [vmem:[%s6] ss:$8 sm:%s7]
    %9 = vrot.lane.b32.xlu0 %v8, 112
    %v10 = vpop.permute.xlu0 %9
    %vm11 = vcmask 1048448
    %12 = vst.msk [vmem:[#allocation0] ss:$8 sm:$0x3] %vm11, %v10
    %s13 = scalar_lea.vmem %s0, 6
    %s14 = smov 3
    %v15 = vld [vmem:[%s13] ss:$8 sm:%s14]
    %16 = vrot.lane.b32.xlu0 %v15, 96
    %v17 = vpop.permute.xlu0 %16
    %vm18 = vcmask 917248
    %19 = vst.msk [vmem:[#allocation0] ss:$8 sm:$0x3] %vm18, %v17
    %s20 = scalar_lea.vmem %s0, 5
    %s21 = smov 3
    %v22 = vld [vmem:[%s20] ss:$8 sm:%s21]
    %23 = vrot.lane.b32.xlu0 %v22, 80
    %v24 = vpop.permute.xlu0 %23
    %vm25 = vcmask 786048
    %26 = vst.msk [vmem:[#allocation0] ss:$8 sm:$0x3] %vm25, %v24
    %s27 = scalar_lea.vmem %s0, 4
    %s28 = smov 3
    %v29 = vld [vmem:[%s27] ss:$8 sm:%s28]
    %30 = vrot.lane.b32.xlu0 %v29, 64
    %v31 = vpop.permute.xlu0 %30
    %vm32 = vcmask 654848
    %33 = vst.msk [vmem:[#allocation0] ss:$8 sm:$0x3] %vm32, %v31
    %s34 = scalar_lea.vmem %s0, 3
    %s35 = smov 3
    %v36 = vld [vmem:[%s34] ss:$8 sm:%s35]
    %37 = vrot.lane.b32.xlu0 %v36, 48
    %v38 = vpop.permute.xlu0 %37
    %vm39 = vcmask 523648
    %40 = vst.msk [vmem:[#allocation0] ss:$8 sm:$0x3] %vm39, %v38
    %s41 = scalar_lea.vmem %s0, 2
    %s42 = smov 3
    %v43 = vld [vmem:[%s41] ss:$8 sm:%s42]
    %44 = vrot.lane.b32.xlu0 %v43, 32
    %v45 = vpop.permute.xlu0 %44
    %vm46 = vcmask 392448
    %47 = vst.msk [vmem:[#allocation0] ss:$8 sm:$0x3] %vm46, %v45
    %s48 = scalar_lea.vmem %s0, 1
    %s49 = smov 3
    %v50 = vld [vmem:[%s48] ss:$8 sm:%s49]
    %51 = vrot.lane.b32.xlu0 %v50, 16
    %v52 = vpop.permute.xlu0 %51
    %vm53 = vcmask 261248
    %54 = vst.msk [vmem:[#allocation0] ss:$8 sm:$0x3] %vm53, %v52
    %s56 = ssub.s32 2, 1
    %v57 = vld [vmem:[#allocation0] sm:%s56]
    %s59 = ssub.s32 2, 1
    %60 = vst [vmem:[%s1] sm:%s59] %v57
    %s61 = scalar_lea.vmem [#allocation0], 8
    %v62 = vld [vmem:[%s61] sm:%s56]
    %s64 = ssub.s32 2, 1
    %s65 = scalar_lea.vmem %s1, 1
    %66 = vst [vmem:[%s65] sm:%s64] %v62

// kernel: generator_forward.12
$region0: #{generator_forward.12}
  #allocation0 [shape = 'u32[]', space=smem, size = 0x4, offset = 0x4, fixed_abs, tag = 'smem constant byte address 0x4 - core index']
  #allocation1 [shape = 'u32[72,128]{1,0:T(1,128)}', space=vmem, size = 0x9000, scoped, tag = 'internal scratch']
  %s0 = inlined_call_operand.vmem [shape: f32[32,256], index: 0, kind: input, shape index: {}]
  %s1 = inlined_call_operand.vmem [shape: bf16[256,2048], index: 1, kind: input, shape index: {}]
  %s2 = inlined_call_operand.vmem [shape: f32[1,256], index: 2, kind: input, shape index: {}]
  %s3 = inlined_call_operand.vmem [shape: f32[1,2048], index: 3, kind: input, shape index: {}]
  %s4 = inlined_call_operand.vmem [shape: f32[32,2048], index: 4, kind: output, shape index: {}]
  %s5 = sld [smem:[#allocation0]]
  $region26: #{generator_forward.12} parent=0
    _
  %s7 = ssub.s32 1, %s5
  %s8 = scalar_select 0, %s7, %s5
  // Predicated region
  $region2: #{generator_forward.12} parent=0 // pred_check
    _
  $region3: #{generator_forward.12} parent=0 // pred_check_branch
    %10 = sbr.rel (0) target = $region5
  $region4: #{generator_forward.12} parent=0 // pred_region
    _
  $region5: #{generator_forward.12} parent=0 // pred_fallthru
    _
  // Predicated region
  $region6: #{generator_forward.12} parent=0 // pred_check
    _
  $region7: #{generator_forward.12} parent=0 // pred_check_branch
    %12 = sbr.rel (0) target = $region9
  $region8: #{generator_forward.12} parent=0 // pred_region
    _
  $region9: #{generator_forward.12} parent=0 // pred_fallthru
    _
  // Predicated region
  $region10: #{generator_forward.12} parent=0 // pred_check
    _
  $region11: #{generator_forward.12} parent=0 // pred_check_branch
    %14 = sbr.rel (0) target = $region13
  $region12: #{generator_forward.12} parent=0 // pred_region
    _
  $region13: #{generator_forward.12} parent=0 // pred_fallthru
    _
  // Predicated region
  $region14: #{generator_forward.12} parent=0 // pred_check
    _
  $region15: #{generator_forward.12} parent=0 // pred_check_branch
    %16 = sbr.rel (0) target = $region17
  $region16: #{generator_forward.12} parent=0 // pred_region
    _
  $region17: #{generator_forward.12} parent=0 // pred_fallthru
    _
  %v17 = vld [vmem:[%s0] sm:$0xff]
  %v18 = vld [vmem:[%s0 + $0x8] sm:$0xff]
  %v19 = vld [vmem:[%s0 + $0x10] sm:$0xff]
  %v20 = vld [vmem:[%s0 + $0x18] sm:$0xff]
  %v21 = vld [vmem:[%s0 + $0x20] sm:$0xff]
  %v22 = vld [vmem:[%s0 + $0x28] sm:$0xff]
  %v23 = vld [vmem:[%s0 + $0x30] sm:$0xff]
  %v24 = vld [vmem:[%s0 + $0x38] sm:$0xff]
  %v25 = vld [vmem:[%s2] sm:$0x3]
  %v27 = vperm.slane %v25, 0
  %v28 = vperm.slane %v25, 1
  %v31 = vadd.f32 %v17, %v27
  %v32 = vadd.f32 %v18, %v28
  %v33 = vadd.f32 %v19, %v27
  %v34 = vadd.f32 %v20, %v28
  %v35 = vadd.f32 %v21, %v27
  %v36 = vadd.f32 %v22, %v28
  %v37 = vadd.f32 %v23, %v27
  %v38 = vadd.f32 %v24, %v28
  %vm39 = vcmp.ge.f32.partialorder %v31, 0.0
  %vm40 = vcmp.ge.f32.partialorder %v32, 0.0
  %vm41 = vcmp.ge.f32.partialorder %v33, 0.0
  %vm42 = vcmp.ge.f32.partialorder %v34, 0.0
  %vm43 = vcmp.ge.f32.partialorder %v35, 0.0
  %vm44 = vcmp.ge.f32.partialorder %v36, 0.0
  %vm45 = vcmp.ge.f32.partialorder %v37, 0.0
  %vm46 = vcmp.ge.f32.partialorder %v38, 0.0
  %v47 = vmul.f32 %v31, 0.2
  %v48 = vmul.f32 %v32, 0.2
  %v49 = vmul.f32 %v33, 0.2
  %v50 = vmul.f32 %v34, 0.2
  %v51 = vmul.f32 %v35, 0.2
  %v52 = vmul.f32 %v36, 0.2
  %v53 = vmul.f32 %v37, 0.2
  %v54 = vmul.f32 %v38, 0.2
  %v55 = vsel %vm39, %v31, %v47
  %v56 = vsel %vm40, %v32, %v48
  %v57 = vsel %vm41, %v33, %v49
  %v58 = vsel %vm42, %v34, %v50
  %v59 = vsel %vm43, %v35, %v51
  %v60 = vsel %vm44, %v36, %v52
  %v61 = vsel %vm45, %v37, %v53
  %v62 = vsel %vm46, %v38, %v54
  %v63 = vpack.c.bf16 %v57, %v55
  %v64 = vpack.c.bf16 %v58, %v56
  %v65 = vpack.c.bf16 %v61, %v59
  %v66 = vpack.c.bf16 %v62, %v60
  %v67 = vld [vmem:[%s1] sm:$0xff]
  %v68 = vld [vmem:[%s1 + $0x8] sm:$0xff]
  %v69 = vld [vmem:[%s1 + $0x10] sm:$0xff]
  %v70 = vld [vmem:[%s1 + $0x18] sm:$0xff]
  %v71 = vld [vmem:[%s1 + $0x20] sm:$0xff]
  %v72 = vld [vmem:[%s1 + $0x28] sm:$0xff]
  %v73 = vld [vmem:[%s1 + $0x30] sm:$0xff]
  %v74 = vld [vmem:[%s1 + $0x38] sm:$0xff]
  %v75 = vld [vmem:[%s1 + $0x40] sm:$0xff]
  %v76 = vld [vmem:[%s1 + $0x48] sm:$0xff]
  %v77 = vld [vmem:[%s1 + $0x50] sm:$0xff]
  %v78 = vld [vmem:[%s1 + $0x58] sm:$0xff]
  %v79 = vld [vmem:[%s1 + $0x60] sm:$0xff]
  %v80 = vld [vmem:[%s1 + $0x68] sm:$0xff]
  %v81 = vld [vmem:[%s1 + $0x70] sm:$0xff]
  %v82 = vld [vmem:[%s1 + $0x78] sm:$0xff]
  %v83 = vld [vmem:[%s1 + $0x80] sm:$0xff]
  %v84 = vld [vmem:[%s1 + $0x88] sm:$0xff]
  %v85 = vld [vmem:[%s1 + $0x90] sm:$0xff]
  %v86 = vld [vmem:[%s1 + $0x98] sm:$0xff]
  %v87 = vld [vmem:[%s1 + $0xa0] sm:$0xff]
  %v88 = vld [vmem:[%s1 + $0xa8] sm:$0xff]
  %v89 = vld [vmem:[%s1 + $0xb0] sm:$0xff]
  %v90 = vld [vmem:[%s1 + $0xb8] sm:$0xff]
  %v91 = vld [vmem:[%s1 + $0xc0] sm:$0xff]
  %v92 = vld [vmem:[%s1 + $0xc8] sm:$0xff]
  %v93 = vld [vmem:[%s1 + $0xd0] sm:$0xff]
  %v94 = vld [vmem:[%s1 + $0xd8] sm:$0xff]
  %v95 = vld [vmem:[%s1 + $0xe0] sm:$0xff]
  %v96 = vld [vmem:[%s1 + $0xe8] sm:$0xff]
  %v97 = vld [vmem:[%s1 + $0xf0] sm:$0xff]
  %v98 = vld [vmem:[%s1 + $0xf8] sm:$0xff]
  %v99 = vld [vmem:[%s1 + $0x100] sm:$0xff]
  %v100 = vld [vmem:[%s1 + $0x108] sm:$0xff]
  %v101 = vld [vmem:[%s1 + $0x110] sm:$0xff]
  %v102 = vld [vmem:[%s1 + $0x118] sm:$0xff]
  %v103 = vld [vmem:[%s1 + $0x120] sm:$0xff]
  %v104 = vld [vmem:[%s1 + $0x128] sm:$0xff]
  %v105 = vld [vmem:[%s1 + $0x130] sm:$0xff]
  %v106 = vld [vmem:[%s1 + $0x138] sm:$0xff]
  %v107 = vld [vmem:[%s1 + $0x140] sm:$0xff]
  %v108 = vld [vmem:[%s1 + $0x148] sm:$0xff]
  %v109 = vld [vmem:[%s1 + $0x150] sm:$0xff]
  %v110 = vld [vmem:[%s1 + $0x158] sm:$0xff]
  %v111 = vld [vmem:[%s1 + $0x160] sm:$0xff]
  %v112 = vld [vmem:[%s1 + $0x168] sm:$0xff]
  %v113 = vld [vmem:[%s1 + $0x170] sm:$0xff]
  %v114 = vld [vmem:[%s1 + $0x178] sm:$0xff]
  %v115 = vld [vmem:[%s1 + $0x180] sm:$0xff]
  %v116 = vld [vmem:[%s1 + $0x188] sm:$0xff]
  %v117 = vld [vmem:[%s1 + $0x190] sm:$0xff]
  %v118 = vld [vmem:[%s1 + $0x198] sm:$0xff]
  %v119 = vld [vmem:[%s1 + $0x1a0] sm:$0xff]
  %v120 = vld [vmem:[%s1 + $0x1a8] sm:$0xff]
  %v121 = vld [vmem:[%s1 + $0x1b0] sm:$0xff]
  %v122 = vld [vmem:[%s1 + $0x1b8] sm:$0xff]
  %v123 = vld [vmem:[%s1 + $0x1c0] sm:$0xff]
  %v124 = vld [vmem:[%s1 + $0x1c8] sm:$0xff]
  %v125 = vld [vmem:[%s1 + $0x1d0] sm:$0xff]
  %v126 = vld [vmem:[%s1 + $0x1d8] sm:$0xff]
  %v127 = vld [vmem:[%s1 + $0x1e0] sm:$0xff]
  %v128 = vld [vmem:[%s1 + $0x1e8] sm:$0xff]
  %v129 = vld [vmem:[%s1 + $0x1f0] sm:$0xff]
  %v130 = vld [vmem:[%s1 + $0x1f8] sm:$0xff]
  %v131 = vld [vmem:[%s1 + $0x200] sm:$0xff]
  %v132 = vld [vmem:[%s1 + $0x208] sm:$0xff]
  %v133 = vld [vmem:[%s1 + $0x210] sm:$0xff]
  %v134 = vld [vmem:[%s1 + $0x218] sm:$0xff]
  %v135 = vld [vmem:[%s1 + $0x220] sm:$0xff]
  %v136 = vld [vmem:[%s1 + $0x228] sm:$0xff]
  %v137 = vld [vmem:[%s1 + $0x230] sm:$0xff]
  %v138 = vld [vmem:[%s1 + $0x238] sm:$0xff]
  %v139 = vld [vmem:[%s1 + $0x240] sm:$0xff]
  %v140 = vld [vmem:[%s1 + $0x248] sm:$0xff]
  %v141 = vld [vmem:[%s1 + $0x250] sm:$0xff]
  %v142 = vld [vmem:[%s1 + $0x258] sm:$0xff]
  %v143 = vld [vmem:[%s1 + $0x260] sm:$0xff]
  %v144 = vld [vmem:[%s1 + $0x268] sm:$0xff]
  %v145 = vld [vmem:[%s1 + $0x270] sm:$0xff]
  %v146 = vld [vmem:[%s1 + $0x278] sm:$0xff]
  %v147 = vld [vmem:[%s1 + $0x280] sm:$0xff]
  %v148 = vld [vmem:[%s1 + $0x288] sm:$0xff]
  %v149 = vld [vmem:[%s1 + $0x290] sm:$0xff]
  %v150 = vld [vmem:[%s1 + $0x298] sm:$0xff]
  %v151 = vld [vmem:[%s1 + $0x2a0] sm:$0xff]
  %v152 = vld [vmem:[%s1 + $0x2a8] sm:$0xff]
  %v153 = vld [vmem:[%s1 + $0x2b0] sm:$0xff]
  %v154 = vld [vmem:[%s1 + $0x2b8] sm:$0xff]
  %v155 = vld [vmem:[%s1 + $0x2c0] sm:$0xff]
  %v156 = vld [vmem:[%s1 + $0x2c8] sm:$0xff]
  %v157 = vld [vmem:[%s1 + $0x2d0] sm:$0xff]
  %v158 = vld [vmem:[%s1 + $0x2d8] sm:$0xff]
  %v159 = vld [vmem:[%s1 + $0x2e0] sm:$0xff]
  %v160 = vld [vmem:[%s1 + $0x2e8] sm:$0xff]
  %v161 = vld [vmem:[%s1 + $0x2f0] sm:$0xff]
  %v162 = vld [vmem:[%s1 + $0x2f8] sm:$0xff]
  %v163 = vld [vmem:[%s1 + $0x300] sm:$0xff]
  %v164 = vld [vmem:[%s1 + $0x308] sm:$0xff]
  %v165 = vld [vmem:[%s1 + $0x310] sm:$0xff]
  %v166 = vld [vmem:[%s1 + $0x318] sm:$0xff]
  %v167 = vld [vmem:[%s1 + $0x320] sm:$0xff]
  %v168 = vld [vmem:[%s1 + $0x328] sm:$0xff]
  %v169 = vld [vmem:[%s1 + $0x330] sm:$0xff]
  %v170 = vld [vmem:[%s1 + $0x338] sm:$0xff]
  %v171 = vld [vmem:[%s1 + $0x340] sm:$0xff]
  %v172 = vld [vmem:[%s1 + $0x348] sm:$0xff]
  %v173 = vld [vmem:[%s1 + $0x350] sm:$0xff]
  %v174 = vld [vmem:[%s1 + $0x358] sm:$0xff]
  %v175 = vld [vmem:[%s1 + $0x360] sm:$0xff]
  %v176 = vld [vmem:[%s1 + $0x368] sm:$0xff]
  %v177 = vld [vmem:[%s1 + $0x370] sm:$0xff]
  %v178 = vld [vmem:[%s1 + $0x378] sm:$0xff]
  %v179 = vld [vmem:[%s1 + $0x380] sm:$0xff]
  %v180 = vld [vmem:[%s1 + $0x388] sm:$0xff]
  %v181 = vld [vmem:[%s1 + $0x390] sm:$0xff]
  %v182 = vld [vmem:[%s1 + $0x398] sm:$0xff]
  %v183 = vld [vmem:[%s1 + $0x3a0] sm:$0xff]
  %v184 = vld [vmem:[%s1 + $0x3a8] sm:$0xff]
  %v185 = vld [vmem:[%s1 + $0x3b0] sm:$0xff]
  %v186 = vld [vmem:[%s1 + $0x3b8] sm:$0xff]
  %v187 = vld [vmem:[%s1 + $0x3c0] sm:$0xff]
  %v188 = vld [vmem:[%s1 + $0x3c8] sm:$0xff]
  %v189 = vld [vmem:[%s1 + $0x3d0] sm:$0xff]
  %v190 = vld [vmem:[%s1 + $0x3d8] sm:$0xff]
  %v191 = vld [vmem:[%s1 + $0x3e0] sm:$0xff]
  %v192 = vld [vmem:[%s1 + $0x3e8] sm:$0xff]
  %v193 = vld [vmem:[%s1 + $0x3f0] sm:$0xff]
  %v194 = vld [vmem:[%s1 + $0x3f8] sm:$0xff]
  %v195 = vld [vmem:[%s1 + $0x400] sm:$0xff]
  %v196 = vld [vmem:[%s1 + $0x408] sm:$0xff]
  %v197 = vld [vmem:[%s1 + $0x410] sm:$0xff]
  %v198 = vld [vmem:[%s1 + $0x418] sm:$0xff]
  %v199 = vld [vmem:[%s1 + $0x420] sm:$0xff]
  %v200 = vld [vmem:[%s1 + $0x428] sm:$0xff]
  %v201 = vld [vmem:[%s1 + $0x430] sm:$0xff]
  %v202 = vld [vmem:[%s1 + $0x438] sm:$0xff]
  %v203 = vld [vmem:[%s1 + $0x440] sm:$0xff]
  %v204 = vld [vmem:[%s1 + $0x448] sm:$0xff]
  %v205 = vld [vmem:[%s1 + $0x450] sm:$0xff]
  %v206 = vld [vmem:[%s1 + $0x458] sm:$0xff]
  %v207 = vld [vmem:[%s1 + $0x460] sm:$0xff]
  %v208 = vld [vmem:[%s1 + $0x468] sm:$0xff]
  %v209 = vld [vmem:[%s1 + $0x470] sm:$0xff]
  %v210 = vld [vmem:[%s1 + $0x478] sm:$0xff]
  %v211 = vld [vmem:[%s1 + $0x480] sm:$0xff]
  %v212 = vld [vmem:[%s1 + $0x488] sm:$0xff]
  %v213 = vld [vmem:[%s1 + $0x490] sm:$0xff]
  %v214 = vld [vmem:[%s1 + $0x498] sm:$0xff]
  %v215 = vld [vmem:[%s1 + $0x4a0] sm:$0xff]
  %v216 = vld [vmem:[%s1 + $0x4a8] sm:$0xff]
  %v217 = vld [vmem:[%s1 + $0x4b0] sm:$0xff]
  %v218 = vld [vmem:[%s1 + $0x4b8] sm:$0xff]
  %v219 = vld [vmem:[%s1 + $0x4c0] sm:$0xff]
  %v220 = vld [vmem:[%s1 + $0x4c8] sm:$0xff]
  %v221 = vld [vmem:[%s1 + $0x4d0] sm:$0xff]
  %v222 = vld [vmem:[%s1 + $0x4d8] sm:$0xff]
  %v223 = vld [vmem:[%s1 + $0x4e0] sm:$0xff]
  %v224 = vld [vmem:[%s1 + $0x4e8] sm:$0xff]
  %v225 = vld [vmem:[%s1 + $0x4f0] sm:$0xff]
  %v226 = vld [vmem:[%s1 + $0x4f8] sm:$0xff]
  %v227 = vld [vmem:[%s1 + $0x500] sm:$0xff]
  %v228 = vld [vmem:[%s1 + $0x508] sm:$0xff]
  %v229 = vld [vmem:[%s1 + $0x510] sm:$0xff]
  %v230 = vld [vmem:[%s1 + $0x518] sm:$0xff]
  %v231 = vld [vmem:[%s1 + $0x520] sm:$0xff]
  %v232 = vld [vmem:[%s1 + $0x528] sm:$0xff]
  %v233 = vld [vmem:[%s1 + $0x530] sm:$0xff]
  %v234 = vld [vmem:[%s1 + $0x538] sm:$0xff]
  %v235 = vld [vmem:[%s1 + $0x540] sm:$0xff]
  %v236 = vld [vmem:[%s1 + $0x548] sm:$0xff]
  %v237 = vld [vmem:[%s1 + $0x550] sm:$0xff]
  %v238 = vld [vmem:[%s1 + $0x558] sm:$0xff]
  %v239 = vld [vmem:[%s1 + $0x560] sm:$0xff]
  %v240 = vld [vmem:[%s1 + $0x568] sm:$0xff]
  %v241 = vld [vmem:[%s1 + $0x570] sm:$0xff]
  %v242 = vld [vmem:[%s1 + $0x578] sm:$0xff]
  %v243 = vld [vmem:[%s1 + $0x580] sm:$0xff]
  %v244 = vld [vmem:[%s1 + $0x588] sm:$0xff]
  %v245 = vld [vmem:[%s1 + $0x590] sm:$0xff]
  %v246 = vld [vmem:[%s1 + $0x598] sm:$0xff]
  %v247 = vld [vmem:[%s1 + $0x5a0] sm:$0xff]
  %v248 = vld [vmem:[%s1 + $0x5a8] sm:$0xff]
  %v249 = vld [vmem:[%s1 + $0x5b0] sm:$0xff]
  %v250 = vld [vmem:[%s1 + $0x5b8] sm:$0xff]
  %v251 = vld [vmem:[%s1 + $0x5c0] sm:$0xff]
  %v252 = vld [vmem:[%s1 + $0x5c8] sm:$0xff]
  %v253 = vld [vmem:[%s1 + $0x5d0] sm:$0xff]
  %v254 = vld [vmem:[%s1 + $0x5d8] sm:$0xff]
  %v255 = vld [vmem:[%s1 + $0x5e0] sm:$0xff]
  %v256 = vld [vmem:[%s1 + $0x5e8] sm:$0xff]
  %v257 = vld [vmem:[%s1 + $0x5f0] sm:$0xff]
  %v258 = vld [vmem:[%s1 + $0x5f8] sm:$0xff]
  %v259 = vld [vmem:[%s1 + $0x600] sm:$0xff]
  %v260 = vld [vmem:[%s1 + $0x608] sm:$0xff]
  %v261 = vld [vmem:[%s1 + $0x610] sm:$0xff]
  %v262 = vld [vmem:[%s1 + $0x618] sm:$0xff]
  %v263 = vld [vmem:[%s1 + $0x620] sm:$0xff]
  %v264 = vld [vmem:[%s1 + $0x628] sm:$0xff]
  %v265 = vld [vmem:[%s1 + $0x630] sm:$0xff]
  %v266 = vld [vmem:[%s1 + $0x638] sm:$0xff]
  %v267 = vld [vmem:[%s1 + $0x640] sm:$0xff]
  %v268 = vld [vmem:[%s1 + $0x648] sm:$0xff]
  %v269 = vld [vmem:[%s1 + $0x650] sm:$0xff]
  %v270 = vld [vmem:[%s1 + $0x658] sm:$0xff]
  %v271 = vld [vmem:[%s1 + $0x660] sm:$0xff]
  %v272 = vld [vmem:[%s1 + $0x668] sm:$0xff]
  %v273 = vld [vmem:[%s1 + $0x670] sm:$0xff]
  %v274 = vld [vmem:[%s1 + $0x678] sm:$0xff]
  %v275 = vld [vmem:[%s1 + $0x680] sm:$0xff]
  %v276 = vld [vmem:[%s1 + $0x688] sm:$0xff]
  %v277 = vld [vmem:[%s1 + $0x690] sm:$0xff]
  %v278 = vld [vmem:[%s1 + $0x698] sm:$0xff]
  %v279 = vld [vmem:[%s1 + $0x6a0] sm:$0xff]
  %v280 = vld [vmem:[%s1 + $0x6a8] sm:$0xff]
  %v281 = vld [vmem:[%s1 + $0x6b0] sm:$0xff]
  %v282 = vld [vmem:[%s1 + $0x6b8] sm:$0xff]
  %v283 = vld [vmem:[%s1 + $0x6c0] sm:$0xff]
  %v284 = vld [vmem:[%s1 + $0x6c8] sm:$0xff]
  %v285 = vld [vmem:[%s1 + $0x6d0] sm:$0xff]
  %v286 = vld [vmem:[%s1 + $0x6d8] sm:$0xff]
  %v287 = vld [vmem:[%s1 + $0x6e0] sm:$0xff]
  %v288 = vld [vmem:[%s1 + $0x6e8] sm:$0xff]
  %v289 = vld [vmem:[%s1 + $0x6f0] sm:$0xff]
  %v290 = vld [vmem:[%s1 + $0x6f8] sm:$0xff]
  %v291 = vld [vmem:[%s1 + $0x700] sm:$0xff]
  %v292 = vld [vmem:[%s1 + $0x708] sm:$0xff]
  %v293 = vld [vmem:[%s1 + $0x710] sm:$0xff]
  %v294 = vld [vmem:[%s1 + $0x718] sm:$0xff]
  %v295 = vld [vmem:[%s1 + $0x720] sm:$0xff]
  %v296 = vld [vmem:[%s1 + $0x728] sm:$0xff]
  %v297 = vld [vmem:[%s1 + $0x730] sm:$0xff]
  %v298 = vld [vmem:[%s1 + $0x738] sm:$0xff]
  %v299 = vld [vmem:[%s1 + $0x740] sm:$0xff]
  %v300 = vld [vmem:[%s1 + $0x748] sm:$0xff]
  %v301 = vld [vmem:[%s1 + $0x750] sm:$0xff]
  %v302 = vld [vmem:[%s1 + $0x758] sm:$0xff]
  %v303 = vld [vmem:[%s1 + $0x760] sm:$0xff]
  %v304 = vld [vmem:[%s1 + $0x768] sm:$0xff]
  %v305 = vld [vmem:[%s1 + $0x770] sm:$0xff]
  %v306 = vld [vmem:[%s1 + $0x778] sm:$0xff]
  %v307 = vld [vmem:[%s1 + $0x780] sm:$0xff]
  %v308 = vld [vmem:[%s1 + $0x788] sm:$0xff]
  %v309 = vld [vmem:[%s1 + $0x790] sm:$0xff]
  %v310 = vld [vmem:[%s1 + $0x798] sm:$0xff]
  %v311 = vld [vmem:[%s1 + $0x7a0] sm:$0xff]
  %v312 = vld [vmem:[%s1 + $0x7a8] sm:$0xff]
  %v313 = vld [vmem:[%s1 + $0x7b0] sm:$0xff]
  %v314 = vld [vmem:[%s1 + $0x7b8] sm:$0xff]
  %v315 = vld [vmem:[%s1 + $0x7c0] sm:$0xff]
  %v316 = vld [vmem:[%s1 + $0x7c8] sm:$0xff]
  %v317 = vld [vmem:[%s1 + $0x7d0] sm:$0xff]
  %v318 = vld [vmem:[%s1 + $0x7d8] sm:$0xff]
  %v319 = vld [vmem:[%s1 + $0x7e0] sm:$0xff]
  %v320 = vld [vmem:[%s1 + $0x7e8] sm:$0xff]
  %v321 = vld [vmem:[%s1 + $0x7f0] sm:$0xff]
  %v322 = vld [vmem:[%s1 + $0x7f8] sm:$0xff]
  %v579 = vunpack.c.l.b16 %v67
  %v580 = vunpack.c.h.b16 %v67
  %v581 = vunpack.c.l.b16 %v68
  %v582 = vunpack.c.h.b16 %v68
  %v583 = vunpack.c.l.b16 %v69
  %v584 = vunpack.c.h.b16 %v69
  %v585 = vunpack.c.l.b16 %v70
  %v586 = vunpack.c.h.b16 %v70
  %v587 = vunpack.c.l.b16 %v71
  %v588 = vunpack.c.h.b16 %v71
  %v589 = vunpack.c.l.b16 %v72
  %v590 = vunpack.c.h.b16 %v72
  %v591 = vunpack.c.l.b16 %v73
  %v592 = vunpack.c.h.b16 %v73
  %v593 = vunpack.c.l.b16 %v74
  %v594 = vunpack.c.h.b16 %v74
  %v595 = vunpack.c.l.b16 %v75
  %v596 = vunpack.c.h.b16 %v75
  %v597 = vunpack.c.l.b16 %v76
  %v598 = vunpack.c.h.b16 %v76
  %v599 = vunpack.c.l.b16 %v77
  %v600 = vunpack.c.h.b16 %v77
  %v601 = vunpack.c.l.b16 %v78
  %v602 = vunpack.c.h.b16 %v78
  %v603 = vunpack.c.l.b16 %v79
  %v604 = vunpack.c.h.b16 %v79
  %v605 = vunpack.c.l.b16 %v80
  %v606 = vunpack.c.h.b16 %v80
  %v607 = vunpack.c.l.b16 %v81
  %v608 = vunpack.c.h.b16 %v81
  %v609 = vunpack.c.l.b16 %v82
  %v610 = vunpack.c.h.b16 %v82
  %v611 = vunpack.c.l.b16 %v83
  %v612 = vunpack.c.h.b16 %v83
  %v613 = vunpack.c.l.b16 %v84
  %v614 = vunpack.c.h.b16 %v84
  %v615 = vunpack.c.l.b16 %v85
  %v616 = vunpack.c.h.b16 %v85
  %v617 = vunpack.c.l.b16 %v86
  %v618 = vunpack.c.h.b16 %v86
  %v619 = vunpack.c.l.b16 %v87
  %v620 = vunpack.c.h.b16 %v87
  %v621 = vunpack.c.l.b16 %v88
  %v622 = vunpack.c.h.b16 %v88
  %v623 = vunpack.c.l.b16 %v89
  %v624 = vunpack.c.h.b16 %v89
  %v625 = vunpack.c.l.b16 %v90
  %v626 = vunpack.c.h.b16 %v90
  %v627 = vunpack.c.l.b16 %v91
  %v628 = vunpack.c.h.b16 %v91
  %v629 = vunpack.c.l.b16 %v92
  %v630 = vunpack.c.h.b16 %v92
  %v631 = vunpack.c.l.b16 %v93
  %v632 = vunpack.c.h.b16 %v93
  %v633 = vunpack.c.l.b16 %v94
  %v634 = vunpack.c.h.b16 %v94
  %v635 = vunpack.c.l.b16 %v95
  %v636 = vunpack.c.h.b16 %v95
  %v637 = vunpack.c.l.b16 %v96
  %v638 = vunpack.c.h.b16 %v96
  %v639 = vunpack.c.l.b16 %v97
  %v640 = vunpack.c.h.b16 %v97
  %v641 = vunpack.c.l.b16 %v98
  %v642 = vunpack.c.h.b16 %v98
  %v643 = vunpack.c.l.b16 %v99
  %v644 = vunpack.c.h.b16 %v99
  %v645 = vunpack.c.l.b16 %v100
  %v646 = vunpack.c.h.b16 %v100
  %v647 = vunpack.c.l.b16 %v101
  %v648 = vunpack.c.h.b16 %v101
  %v649 = vunpack.c.l.b16 %v102
  %v650 = vunpack.c.h.b16 %v102
  %v651 = vunpack.c.l.b16 %v103
  %v652 = vunpack.c.h.b16 %v103
  %v653 = vunpack.c.l.b16 %v104
  %v654 = vunpack.c.h.b16 %v104
  %v655 = vunpack.c.l.b16 %v105
  %v656 = vunpack.c.h.b16 %v105
  %v657 = vunpack.c.l.b16 %v106
  %v658 = vunpack.c.h.b16 %v106
  %v659 = vunpack.c.l.b16 %v107
  %v660 = vunpack.c.h.b16 %v107
  %v661 = vunpack.c.l.b16 %v108
  %v662 = vunpack.c.h.b16 %v108
  %v663 = vunpack.c.l.b16 %v109
  %v664 = vunpack.c.h.b16 %v109
  %v665 = vunpack.c.l.b16 %v110
  %v666 = vunpack.c.h.b16 %v110
  %v667 = vunpack.c.l.b16 %v111
  %v668 = vunpack.c.h.b16 %v111
  %v669 = vunpack.c.l.b16 %v112
  %v670 = vunpack.c.h.b16 %v112
  %v671 = vunpack.c.l.b16 %v113
  %v672 = vunpack.c.h.b16 %v113
  %v673 = vunpack.c.l.b16 %v114
  %v674 = vunpack.c.h.b16 %v114
  %v675 = vunpack.c.l.b16 %v115
  %v676 = vunpack.c.h.b16 %v115
  %v677 = vunpack.c.l.b16 %v116
  %v678 = vunpack.c.h.b16 %v116
  %v679 = vunpack.c.l.b16 %v117
  %v680 = vunpack.c.h.b16 %v117
  %v681 = vunpack.c.l.b16 %v118
  %v682 = vunpack.c.h.b16 %v118
  %v683 = vunpack.c.l.b16 %v119
  %v684 = vunpack.c.h.b16 %v119
  %v685 = vunpack.c.l.b16 %v120
  %v686 = vunpack.c.h.b16 %v120
  %v687 = vunpack.c.l.b16 %v121
  %v688 = vunpack.c.h.b16 %v121
  %v689 = vunpack.c.l.b16 %v122
  %v690 = vunpack.c.h.b16 %v122
  %v691 = vunpack.c.l.b16 %v123
  %v692 = vunpack.c.h.b16 %v123
  %v693 = vunpack.c.l.b16 %v124
  %v694 = vunpack.c.h.b16 %v124
  %v695 = vunpack.c.l.b16 %v125
  %v696 = vunpack.c.h.b16 %v125
  %v697 = vunpack.c.l.b16 %v126
  %v698 = vunpack.c.h.b16 %v126
  %v699 = vunpack.c.l.b16 %v127
  %v700 = vunpack.c.h.b16 %v127
  %v701 = vunpack.c.l.b16 %v128
  %v702 = vunpack.c.h.b16 %v128
  %v703 = vunpack.c.l.b16 %v129
  %v704 = vunpack.c.h.b16 %v129
  %v705 = vunpack.c.l.b16 %v130
  %v706 = vunpack.c.h.b16 %v130
  %v707 = vunpack.c.l.b16 %v131
  %v708 = vunpack.c.h.b16 %v131
  %v709 = vunpack.c.l.b16 %v132
  %v710 = vunpack.c.h.b16 %v132
  %v711 = vunpack.c.l.b16 %v133
  %v712 = vunpack.c.h.b16 %v133
  %v713 = vunpack.c.l.b16 %v134
  %v714 = vunpack.c.h.b16 %v134
  %v715 = vunpack.c.l.b16 %v135
  %v716 = vunpack.c.h.b16 %v135
  %v717 = vunpack.c.l.b16 %v136
  %v718 = vunpack.c.h.b16 %v136
  %v719 = vunpack.c.l.b16 %v137
  %v720 = vunpack.c.h.b16 %v137
  %v721 = vunpack.c.l.b16 %v138
  %v722 = vunpack.c.h.b16 %v138
  %v723 = vunpack.c.l.b16 %v139
  %v724 = vunpack.c.h.b16 %v139
  %v725 = vunpack.c.l.b16 %v140
  %v726 = vunpack.c.h.b16 %v140
  %v727 = vunpack.c.l.b16 %v141
  %v728 = vunpack.c.h.b16 %v141
  %v729 = vunpack.c.l.b16 %v142
  %v730 = vunpack.c.h.b16 %v142
  %v731 = vunpack.c.l.b16 %v143
  %v732 = vunpack.c.h.b16 %v143
  %v733 = vunpack.c.l.b16 %v144
  %v734 = vunpack.c.h.b16 %v144
  %v735 = vunpack.c.l.b16 %v145
  %v736 = vunpack.c.h.b16 %v145
  %v737 = vunpack.c.l.b16 %v146
  %v738 = vunpack.c.h.b16 %v146
  %v739 = vunpack.c.l.b16 %v147
  %v740 = vunpack.c.h.b16 %v147
  %v741 = vunpack.c.l.b16 %v148
  %v742 = vunpack.c.h.b16 %v148
  %v743 = vunpack.c.l.b16 %v149
  %v744 = vunpack.c.h.b16 %v149
  %v745 = vunpack.c.l.b16 %v150
  %v746 = vunpack.c.h.b16 %v150
  %v747 = vunpack.c.l.b16 %v151
  %v748 = vunpack.c.h.b16 %v151
  %v749 = vunpack.c.l.b16 %v152
  %v750 = vunpack.c.h.b16 %v152
  %v751 = vunpack.c.l.b16 %v153
  %v752 = vunpack.c.h.b16 %v153
  %v753 = vunpack.c.l.b16 %v154
  %v754 = vunpack.c.h.b16 %v154
  %v755 = vunpack.c.l.b16 %v155
  %v756 = vunpack.c.h.b16 %v155
  %v757 = vunpack.c.l.b16 %v156
  %v758 = vunpack.c.h.b16 %v156
  %v759 = vunpack.c.l.b16 %v157
  %v760 = vunpack.c.h.b16 %v157
  %v761 = vunpack.c.l.b16 %v158
  %v762 = vunpack.c.h.b16 %v158
  %v763 = vunpack.c.l.b16 %v159
  %v764 = vunpack.c.h.b16 %v159
  %v765 = vunpack.c.l.b16 %v160
  %v766 = vunpack.c.h.b16 %v160
  %v767 = vunpack.c.l.b16 %v161
  %v768 = vunpack.c.h.b16 %v161
  %v769 = vunpack.c.l.b16 %v162
  %v770 = vunpack.c.h.b16 %v162
  %v771 = vunpack.c.l.b16 %v163
  %v772 = vunpack.c.h.b16 %v163
  %v773 = vunpack.c.l.b16 %v164
  %v774 = vunpack.c.h.b16 %v164
  %v775 = vunpack.c.l.b16 %v165
  %v776 = vunpack.c.h.b16 %v165
  %v777 = vunpack.c.l.b16 %v166
  %v778 = vunpack.c.h.b16 %v166
  %v779 = vunpack.c.l.b16 %v167
  %v780 = vunpack.c.h.b16 %v167
  %v781 = vunpack.c.l.b16 %v168
  %v782 = vunpack.c.h.b16 %v168
  %v783 = vunpack.c.l.b16 %v169
  %v784 = vunpack.c.h.b16 %v169
  %v785 = vunpack.c.l.b16 %v170
  %v786 = vunpack.c.h.b16 %v170
  %v787 = vunpack.c.l.b16 %v171
  %v788 = vunpack.c.h.b16 %v171
  %v789 = vunpack.c.l.b16 %v172
  %v790 = vunpack.c.h.b16 %v172
  %v791 = vunpack.c.l.b16 %v173
  %v792 = vunpack.c.h.b16 %v173
  %v793 = vunpack.c.l.b16 %v174
  %v794 = vunpack.c.h.b16 %v174
  %v795 = vunpack.c.l.b16 %v175
  %v796 = vunpack.c.h.b16 %v175
  %v797 = vunpack.c.l.b16 %v176
  %v798 = vunpack.c.h.b16 %v176
  %v799 = vunpack.c.l.b16 %v177
  %v800 = vunpack.c.h.b16 %v177
  %v801 = vunpack.c.l.b16 %v178
  %v802 = vunpack.c.h.b16 %v178
  %v803 = vunpack.c.l.b16 %v179
  %v804 = vunpack.c.h.b16 %v179
  %v805 = vunpack.c.l.b16 %v180
  %v806 = vunpack.c.h.b16 %v180
  %v807 = vunpack.c.l.b16 %v181
  %v808 = vunpack.c.h.b16 %v181
  %v809 = vunpack.c.l.b16 %v182
  %v810 = vunpack.c.h.b16 %v182
  %v811 = vunpack.c.l.b16 %v183
  %v812 = vunpack.c.h.b16 %v183
  %v813 = vunpack.c.l.b16 %v184
  %v814 = vunpack.c.h.b16 %v184
  %v815 = vunpack.c.l.b16 %v185
  %v816 = vunpack.c.h.b16 %v185
  %v817 = vunpack.c.l.b16 %v186
  %v818 = vunpack.c.h.b16 %v186
  %v819 = vunpack.c.l.b16 %v187
  %v820 = vunpack.c.h.b16 %v187
  %v821 = vunpack.c.l.b16 %v188
  %v822 = vunpack.c.h.b16 %v188
  %v823 = vunpack.c.l.b16 %v189
  %v824 = vunpack.c.h.b16 %v189
  %v825 = vunpack.c.l.b16 %v190
  %v826 = vunpack.c.h.b16 %v190
  %v827 = vunpack.c.l.b16 %v191
  %v828 = vunpack.c.h.b16 %v191
  %v829 = vunpack.c.l.b16 %v192
  %v830 = vunpack.c.h.b16 %v192
  %v831 = vunpack.c.l.b16 %v193
  %v832 = vunpack.c.h.b16 %v193
  %v833 = vunpack.c.l.b16 %v194
  %v834 = vunpack.c.h.b16 %v194
  %v835 = vunpack.c.l.b16 %v195
  %v836 = vunpack.c.h.b16 %v195
  %v837 = vunpack.c.l.b16 %v196
  %v838 = vunpack.c.h.b16 %v196
  %v839 = vunpack.c.l.b16 %v197
  %v840 = vunpack.c.h.b16 %v197
  %v841 = vunpack.c.l.b16 %v198
  %v842 = vunpack.c.h.b16 %v198
  %v843 = vunpack.c.l.b16 %v199
  %v844 = vunpack.c.h.b16 %v199
  %v845 = vunpack.c.l.b16 %v200
  %v846 = vunpack.c.h.b16 %v200
  %v847 = vunpack.c.l.b16 %v201
  %v848 = vunpack.c.h.b16 %v201
  %v849 = vunpack.c.l.b16 %v202
  %v850 = vunpack.c.h.b16 %v202
  %v851 = vunpack.c.l.b16 %v203
  %v852 = vunpack.c.h.b16 %v203
  %v853 = vunpack.c.l.b16 %v204
  %v854 = vunpack.c.h.b16 %v204
  %v855 = vunpack.c.l.b16 %v205
  %v856 = vunpack.c.h.b16 %v205
  %v857 = vunpack.c.l.b16 %v206
  %v858 = vunpack.c.h.b16 %v206
  %v859 = vunpack.c.l.b16 %v207
  %v860 = vunpack.c.h.b16 %v207
  %v861 = vunpack.c.l.b16 %v208
  %v862 = vunpack.c.h.b16 %v208
  %v863 = vunpack.c.l.b16 %v209
  %v864 = vunpack.c.h.b16 %v209
  %v865 = vunpack.c.l.b16 %v210
  %v866 = vunpack.c.h.b16 %v210
  %v867 = vunpack.c.l.b16 %v211
  %v868 = vunpack.c.h.b16 %v211
  %v869 = vunpack.c.l.b16 %v212
  %v870 = vunpack.c.h.b16 %v212
  %v871 = vunpack.c.l.b16 %v213
  %v872 = vunpack.c.h.b16 %v213
  %v873 = vunpack.c.l.b16 %v214
  %v874 = vunpack.c.h.b16 %v214
  %v875 = vunpack.c.l.b16 %v215
  %v876 = vunpack.c.h.b16 %v215
  %v877 = vunpack.c.l.b16 %v216
  %v878 = vunpack.c.h.b16 %v216
  %v879 = vunpack.c.l.b16 %v217
  %v880 = vunpack.c.h.b16 %v217
  %v881 = vunpack.c.l.b16 %v218
  %v882 = vunpack.c.h.b16 %v218
  %v883 = vunpack.c.l.b16 %v219
  %v884 = vunpack.c.h.b16 %v219
  %v885 = vunpack.c.l.b16 %v220
  %v886 = vunpack.c.h.b16 %v220
  %v887 = vunpack.c.l.b16 %v221
  %v888 = vunpack.c.h.b16 %v221
  %v889 = vunpack.c.l.b16 %v222
  %v890 = vunpack.c.h.b16 %v222
  %v891 = vunpack.c.l.b16 %v223
  %v892 = vunpack.c.h.b16 %v223
  %v893 = vunpack.c.l.b16 %v224
  %v894 = vunpack.c.h.b16 %v224
  %v895 = vunpack.c.l.b16 %v225
  %v896 = vunpack.c.h.b16 %v225
  %v897 = vunpack.c.l.b16 %v226
  %v898 = vunpack.c.h.b16 %v226
  %v899 = vunpack.c.l.b16 %v227
  %v900 = vunpack.c.h.b16 %v227
  %v901 = vunpack.c.l.b16 %v228
  %v902 = vunpack.c.h.b16 %v228
  %v903 = vunpack.c.l.b16 %v229
  %v904 = vunpack.c.h.b16 %v229
  %v905 = vunpack.c.l.b16 %v230
  %v906 = vunpack.c.h.b16 %v230
  %v907 = vunpack.c.l.b16 %v231
  %v908 = vunpack.c.h.b16 %v231
  %v909 = vunpack.c.l.b16 %v232
  %v910 = vunpack.c.h.b16 %v232
  %v911 = vunpack.c.l.b16 %v233
  %v912 = vunpack.c.h.b16 %v233
  %v913 = vunpack.c.l.b16 %v234
  %v914 = vunpack.c.h.b16 %v234
  %v915 = vunpack.c.l.b16 %v235
  %v916 = vunpack.c.h.b16 %v235
  %v917 = vunpack.c.l.b16 %v236
  %v918 = vunpack.c.h.b16 %v236
  %v919 = vunpack.c.l.b16 %v237
  %v920 = vunpack.c.h.b16 %v237
  %v921 = vunpack.c.l.b16 %v238
  %v922 = vunpack.c.h.b16 %v238
  %v923 = vunpack.c.l.b16 %v239
  %v924 = vunpack.c.h.b16 %v239
  %v925 = vunpack.c.l.b16 %v240
  %v926 = vunpack.c.h.b16 %v240
  %v927 = vunpack.c.l.b16 %v241
  %v928 = vunpack.c.h.b16 %v241
  %v929 = vunpack.c.l.b16 %v242
  %v930 = vunpack.c.h.b16 %v242
  %v931 = vunpack.c.l.b16 %v243
  %v932 = vunpack.c.h.b16 %v243
  %v933 = vunpack.c.l.b16 %v244
  %v934 = vunpack.c.h.b16 %v244
  %v935 = vunpack.c.l.b16 %v245
  %v936 = vunpack.c.h.b16 %v245
  %v937 = vunpack.c.l.b16 %v246
  %v938 = vunpack.c.h.b16 %v246
  %v939 = vunpack.c.l.b16 %v247
  %v940 = vunpack.c.h.b16 %v247
  %v941 = vunpack.c.l.b16 %v248
  %v942 = vunpack.c.h.b16 %v248
  %v943 = vunpack.c.l.b16 %v249
  %v944 = vunpack.c.h.b16 %v249
  %v945 = vunpack.c.l.b16 %v250
  %v946 = vunpack.c.h.b16 %v250
  %v947 = vunpack.c.l.b16 %v251
  %v948 = vunpack.c.h.b16 %v251
  %v949 = vunpack.c.l.b16 %v252
  %v950 = vunpack.c.h.b16 %v252
  %v951 = vunpack.c.l.b16 %v253
  %v952 = vunpack.c.h.b16 %v253
  %v953 = vunpack.c.l.b16 %v254
  %v954 = vunpack.c.h.b16 %v254
  %v955 = vunpack.c.l.b16 %v255
  %v956 = vunpack.c.h.b16 %v255
  %v957 = vunpack.c.l.b16 %v256
  %v958 = vunpack.c.h.b16 %v256
  %v959 = vunpack.c.l.b16 %v257
  %v960 = vunpack.c.h.b16 %v257
  %v961 = vunpack.c.l.b16 %v258
  %v962 = vunpack.c.h.b16 %v258
  %v963 = vunpack.c.l.b16 %v259
  %v964 = vunpack.c.h.b16 %v259
  %v965 = vunpack.c.l.b16 %v260
  %v966 = vunpack.c.h.b16 %v260
  %v967 = vunpack.c.l.b16 %v261
  %v968 = vunpack.c.h.b16 %v261
  %v969 = vunpack.c.l.b16 %v262
  %v970 = vunpack.c.h.b16 %v262
  %v971 = vunpack.c.l.b16 %v263
  %v972 = vunpack.c.h.b16 %v263
  %v973 = vunpack.c.l.b16 %v264
  %v974 = vunpack.c.h.b16 %v264
  %v975 = vunpack.c.l.b16 %v265
  %v976 = vunpack.c.h.b16 %v265
  %v977 = vunpack.c.l.b16 %v266
  %v978 = vunpack.c.h.b16 %v266
  %v979 = vunpack.c.l.b16 %v267
  %v980 = vunpack.c.h.b16 %v267
  %v981 = vunpack.c.l.b16 %v268
  %v982 = vunpack.c.h.b16 %v268
  %v983 = vunpack.c.l.b16 %v269
  %v984 = vunpack.c.h.b16 %v269
  %v985 = vunpack.c.l.b16 %v270
  %v986 = vunpack.c.h.b16 %v270
  %v987 = vunpack.c.l.b16 %v271
  %v988 = vunpack.c.h.b16 %v271
  %v989 = vunpack.c.l.b16 %v272
  %v990 = vunpack.c.h.b16 %v272
  %v991 = vunpack.c.l.b16 %v273
  %v992 = vunpack.c.h.b16 %v273
  %v993 = vunpack.c.l.b16 %v274
  %v994 = vunpack.c.h.b16 %v274
  %v995 = vunpack.c.l.b16 %v275
  %v996 = vunpack.c.h.b16 %v275
  %v997 = vunpack.c.l.b16 %v276
  %v998 = vunpack.c.h.b16 %v276
  %v999 = vunpack.c.l.b16 %v277
  %v1000 = vunpack.c.h.b16 %v277
  %v1001 = vunpack.c.l.b16 %v278
  %v1002 = vunpack.c.h.b16 %v278
  %v1003 = vunpack.c.l.b16 %v279
  %v1004 = vunpack.c.h.b16 %v279
  %v1005 = vunpack.c.l.b16 %v280
  %v1006 = vunpack.c.h.b16 %v280
  %v1007 = vunpack.c.l.b16 %v281
  %v1008 = vunpack.c.h.b16 %v281
  %v1009 = vunpack.c.l.b16 %v282
  %v1010 = vunpack.c.h.b16 %v282
  %v1011 = vunpack.c.l.b16 %v283
  %v1012 = vunpack.c.h.b16 %v283
  %v1013 = vunpack.c.l.b16 %v284
  %v1014 = vunpack.c.h.b16 %v284
  %v1015 = vunpack.c.l.b16 %v285
  %v1016 = vunpack.c.h.b16 %v285
  %v1017 = vunpack.c.l.b16 %v286
  %v1018 = vunpack.c.h.b16 %v286
  %v1019 = vunpack.c.l.b16 %v287
  %v1020 = vunpack.c.h.b16 %v287
  %v1021 = vunpack.c.l.b16 %v288
  %v1022 = vunpack.c.h.b16 %v288
  %v1023 = vunpack.c.l.b16 %v289
  %v1024 = vunpack.c.h.b16 %v289
  %v1025 = vunpack.c.l.b16 %v290
  %v1026 = vunpack.c.h.b16 %v290
  %v1027 = vunpack.c.l.b16 %v291
  %v1028 = vunpack.c.h.b16 %v291
  %v1029 = vunpack.c.l.b16 %v292
  %v1030 = vunpack.c.h.b16 %v292
  %v1031 = vunpack.c.l.b16 %v293
  %v1032 = vunpack.c.h.b16 %v293
  %v1033 = vunpack.c.l.b16 %v294
  %v1034 = vunpack.c.h.b16 %v294
  %v1035 = vunpack.c.l.b16 %v295
  %v1036 = vunpack.c.h.b16 %v295
  %v1037 = vunpack.c.l.b16 %v296
  %v1038 = vunpack.c.h.b16 %v296
  %v1039 = vunpack.c.l.b16 %v297
  %v1040 = vunpack.c.h.b16 %v297
  %v1041 = vunpack.c.l.b16 %v298
  %v1042 = vunpack.c.h.b16 %v298
  %v1043 = vunpack.c.l.b16 %v299
  %v1044 = vunpack.c.h.b16 %v299
  %v1045 = vunpack.c.l.b16 %v300
  %v1046 = vunpack.c.h.b16 %v300
  %v1047 = vunpack.c.l.b16 %v301
  %v1048 = vunpack.c.h.b16 %v301
  %v1049 = vunpack.c.l.b16 %v302
  %v1050 = vunpack.c.h.b16 %v302
  %v1051 = vunpack.c.l.b16 %v303
  %v1052 = vunpack.c.h.b16 %v303
  %v1053 = vunpack.c.l.b16 %v304
  %v1054 = vunpack.c.h.b16 %v304
  %v1055 = vunpack.c.l.b16 %v305
  %v1056 = vunpack.c.h.b16 %v305
  %v1057 = vunpack.c.l.b16 %v306
  %v1058 = vunpack.c.h.b16 %v306
  %v1059 = vunpack.c.l.b16 %v307
  %v1060 = vunpack.c.h.b16 %v307
  %v1061 = vunpack.c.l.b16 %v308
  %v1062 = vunpack.c.h.b16 %v308
  %v1063 = vunpack.c.l.b16 %v309
  %v1064 = vunpack.c.h.b16 %v309
  %v1065 = vunpack.c.l.b16 %v310
  %v1066 = vunpack.c.h.b16 %v310
  %v1067 = vunpack.c.l.b16 %v311
  %v1068 = vunpack.c.h.b16 %v311
  %v1069 = vunpack.c.l.b16 %v312
  %v1070 = vunpack.c.h.b16 %v312
  %v1071 = vunpack.c.l.b16 %v313
  %v1072 = vunpack.c.h.b16 %v313
  %v1073 = vunpack.c.l.b16 %v314
  %v1074 = vunpack.c.h.b16 %v314
  %v1075 = vunpack.c.l.b16 %v315
  %v1076 = vunpack.c.h.b16 %v315
  %v1077 = vunpack.c.l.b16 %v316
  %v1078 = vunpack.c.h.b16 %v316
  %v1079 = vunpack.c.l.b16 %v317
  %v1080 = vunpack.c.h.b16 %v317
  %v1081 = vunpack.c.l.b16 %v318
  %v1082 = vunpack.c.h.b16 %v318
  %v1083 = vunpack.c.l.b16 %v319
  %v1084 = vunpack.c.h.b16 %v319
  %v1085 = vunpack.c.l.b16 %v320
  %v1086 = vunpack.c.h.b16 %v320
  %v1087 = vunpack.c.l.b16 %v321
  %v1088 = vunpack.c.h.b16 %v321
  %v1089 = vunpack.c.l.b16 %v322
  %v1090 = vunpack.c.h.b16 %v322
  %v1091 = vpack.c.b16 %v595, %v579
  %v1092 = vpack.c.b16 %v596, %v580
  %v1093 = vpack.c.b16 %v597, %v581
  %v1094 = vpack.c.b16 %v598, %v582
  %v1095 = vpack.c.b16 %v599, %v583
  %v1096 = vpack.c.b16 %v600, %v584
  %v1097 = vpack.c.b16 %v601, %v585
  %v1098 = vpack.c.b16 %v602, %v586
  %v1099 = vpack.c.b16 %v603, %v587
  %v1100 = vpack.c.b16 %v604, %v588
  %v1101 = vpack.c.b16 %v605, %v589
  %v1102 = vpack.c.b16 %v606, %v590
  %v1103 = vpack.c.b16 %v607, %v591
  %v1104 = vpack.c.b16 %v608, %v592
  %v1105 = vpack.c.b16 %v609, %v593
  %v1106 = vpack.c.b16 %v610, %v594
  %v1107 = vpack.c.b16 %v627, %v611
  %v1108 = vpack.c.b16 %v628, %v612
  %v1109 = vpack.c.b16 %v629, %v613
  %v1110 = vpack.c.b16 %v630, %v614
  %v1111 = vpack.c.b16 %v631, %v615
  %v1112 = vpack.c.b16 %v632, %v616
  %v1113 = vpack.c.b16 %v633, %v617
  %v1114 = vpack.c.b16 %v634, %v618
  %v1115 = vpack.c.b16 %v635, %v619
  %v1116 = vpack.c.b16 %v636, %v620
  %v1117 = vpack.c.b16 %v637, %v621
  %v1118 = vpack.c.b16 %v638, %v622
  %v1119 = vpack.c.b16 %v639, %v623
  %v1120 = vpack.c.b16 %v640, %v624
  %v1121 = vpack.c.b16 %v641, %v625
  %v1122 = vpack.c.b16 %v642, %v626
  %v1123 = vpack.c.b16 %v659, %v643
  %v1124 = vpack.c.b16 %v660, %v644
  %v1125 = vpack.c.b16 %v661, %v645
  %v1126 = vpack.c.b16 %v662, %v646
  %v1127 = vpack.c.b16 %v663, %v647
  %v1128 = vpack.c.b16 %v664, %v648
  %v1129 = vpack.c.b16 %v665, %v649
  %v1130 = vpack.c.b16 %v666, %v650
  %v1131 = vpack.c.b16 %v667, %v651
  %v1132 = vpack.c.b16 %v668, %v652
  %v1133 = vpack.c.b16 %v669, %v653
  %v1134 = vpack.c.b16 %v670, %v654
  %v1135 = vpack.c.b16 %v671, %v655
  %v1136 = vpack.c.b16 %v672, %v656
  %v1137 = vpack.c.b16 %v673, %v657
  %v1138 = vpack.c.b16 %v674, %v658
  %v1139 = vpack.c.b16 %v691, %v675
  %v1140 = vpack.c.b16 %v692, %v676
  %v1141 = vpack.c.b16 %v693, %v677
  %v1142 = vpack.c.b16 %v694, %v678
  %v1143 = vpack.c.b16 %v695, %v679
  %v1144 = vpack.c.b16 %v696, %v680
  %v1145 = vpack.c.b16 %v697, %v681
  %v1146 = vpack.c.b16 %v698, %v682
  %v1147 = vpack.c.b16 %v699, %v683
  %v1148 = vpack.c.b16 %v700, %v684
  %v1149 = vpack.c.b16 %v701, %v685
  %v1150 = vpack.c.b16 %v702, %v686
  %v1151 = vpack.c.b16 %v703, %v687
  %v1152 = vpack.c.b16 %v704, %v688
  %v1153 = vpack.c.b16 %v705, %v689
  %v1154 = vpack.c.b16 %v706, %v690
  %v1155 = vpack.c.b16 %v723, %v707
  %v1156 = vpack.c.b16 %v724, %v708
  %v1157 = vpack.c.b16 %v725, %v709
  %v1158 = vpack.c.b16 %v726, %v710
  %v1159 = vpack.c.b16 %v727, %v711
  %v1160 = vpack.c.b16 %v728, %v712
  %v1161 = vpack.c.b16 %v729, %v713
  %v1162 = vpack.c.b16 %v730, %v714
  %v1163 = vpack.c.b16 %v731, %v715
  %v1164 = vpack.c.b16 %v732, %v716
  %v1165 = vpack.c.b16 %v733, %v717
  %v1166 = vpack.c.b16 %v734, %v718
  %v1167 = vpack.c.b16 %v735, %v719
  %v1168 = vpack.c.b16 %v736, %v720
  %v1169 = vpack.c.b16 %v737, %v721
  %v1170 = vpack.c.b16 %v738, %v722
  %v1171 = vpack.c.b16 %v755, %v739
  %v1172 = vpack.c.b16 %v756, %v740
  %v1173 = vpack.c.b16 %v757, %v741
  %v1174 = vpack.c.b16 %v758, %v742
  %v1175 = vpack.c.b16 %v759, %v743
  %v1176 = vpack.c.b16 %v760, %v744
  %v1177 = vpack.c.b16 %v761, %v745
  %v1178 = vpack.c.b16 %v762, %v746
  %v1179 = vpack.c.b16 %v763, %v747
  %v1180 = vpack.c.b16 %v764, %v748
  %v1181 = vpack.c.b16 %v765, %v749
  %v1182 = vpack.c.b16 %v766, %v750
  %v1183 = vpack.c.b16 %v767, %v751
  %v1184 = vpack.c.b16 %v768, %v752
  %v1185 = vpack.c.b16 %v769, %v753
  %v1186 = vpack.c.b16 %v770, %v754
  %v1187 = vpack.c.b16 %v787, %v771
  %v1188 = vpack.c.b16 %v788, %v772
  %v1189 = vpack.c.b16 %v789, %v773
  %v1190 = vpack.c.b16 %v790, %v774
  %v1191 = vpack.c.b16 %v791, %v775
  %v1192 = vpack.c.b16 %v792, %v776
  %v1193 = vpack.c.b16 %v793, %v777
  %v1194 = vpack.c.b16 %v794, %v778
  %v1195 = vpack.c.b16 %v795, %v779
  %v1196 = vpack.c.b16 %v796, %v780
  %v1197 = vpack.c.b16 %v797, %v781
  %v1198 = vpack.c.b16 %v798, %v782
  %v1199 = vpack.c.b16 %v799, %v783
  %v1200 = vpack.c.b16 %v800, %v784
  %v1201 = vpack.c.b16 %v801, %v785
  %v1202 = vpack.c.b16 %v802, %v786
  %v1203 = vpack.c.b16 %v819, %v803
  %v1204 = vpack.c.b16 %v820, %v804
  %v1205 = vpack.c.b16 %v821, %v805
  %v1206 = vpack.c.b16 %v822, %v806
  %v1207 = vpack.c.b16 %v823, %v807
  %v1208 = vpack.c.b16 %v824, %v808
  %v1209 = vpack.c.b16 %v825, %v809
  %v1210 = vpack.c.b16 %v826, %v810
  %v1211 = vpack.c.b16 %v827, %v811
  %v1212 = vpack.c.b16 %v828, %v812
  %v1213 = vpack.c.b16 %v829, %v813
  %v1214 = vpack.c.b16 %v830, %v814
  %v1215 = vpack.c.b16 %v831, %v815
  %v1216 = vpack.c.b16 %v832, %v816
  %v1217 = vpack.c.b16 %v833, %v817
  %v1218 = vpack.c.b16 %v834, %v818
  %v1219 = vpack.c.b16 %v851, %v835
  %v1220 = vpack.c.b16 %v852, %v836
  %v1221 = vpack.c.b16 %v853, %v837
  %v1222 = vpack.c.b16 %v854, %v838
  %v1223 = vpack.c.b16 %v855, %v839
  %v1224 = vpack.c.b16 %v856, %v840
  %v1225 = vpack.c.b16 %v857, %v841
  %v1226 = vpack.c.b16 %v858, %v842
  %v1227 = vpack.c.b16 %v859, %v843
  %v1228 = vpack.c.b16 %v860, %v844
  %v1229 = vpack.c.b16 %v861, %v845
  %v1230 = vpack.c.b16 %v862, %v846
  %v1231 = vpack.c.b16 %v863, %v847
  %v1232 = vpack.c.b16 %v864, %v848
  %v1233 = vpack.c.b16 %v865, %v849
  %v1234 = vpack.c.b16 %v866, %v850
  %v1235 = vpack.c.b16 %v883, %v867
  %v1236 = vpack.c.b16 %v884, %v868
  %v1237 = vpack.c.b16 %v885, %v869
  %v1238 = vpack.c.b16 %v886, %v870
  %v1239 = vpack.c.b16 %v887, %v871
  %v1240 = vpack.c.b16 %v888, %v872
  %v1241 = vpack.c.b16 %v889, %v873
  %v1242 = vpack.c.b16 %v890, %v874
  %v1243 = vpack.c.b16 %v891, %v875
  %v1244 = vpack.c.b16 %v892, %v876
  %v1245 = vpack.c.b16 %v893, %v877
  %v1246 = vpack.c.b16 %v894, %v878
  %v1247 = vpack.c.b16 %v895, %v879
  %v1248 = vpack.c.b16 %v896, %v880
  %v1249 = vpack.c.b16 %v897, %v881
  %v1250 = vpack.c.b16 %v898, %v882
  %v1251 = vpack.c.b16 %v915, %v899
  %v1252 = vpack.c.b16 %v916, %v900
  %v1253 = vpack.c.b16 %v917, %v901
  %v1254 = vpack.c.b16 %v918, %v902
  %v1255 = vpack.c.b16 %v919, %v903
  %v1256 = vpack.c.b16 %v920, %v904
  %v1257 = vpack.c.b16 %v921, %v905
  %v1258 = vpack.c.b16 %v922, %v906
  %v1259 = vpack.c.b16 %v923, %v907
  %v1260 = vpack.c.b16 %v924, %v908
  %v1261 = vpack.c.b16 %v925, %v909
  %v1262 = vpack.c.b16 %v926, %v910
  %v1263 = vpack.c.b16 %v927, %v911
  %v1264 = vpack.c.b16 %v928, %v912
  %v1265 = vpack.c.b16 %v929, %v913
  %v1266 = vpack.c.b16 %v930, %v914
  %v1267 = vpack.c.b16 %v947, %v931
  %v1268 = vpack.c.b16 %v948, %v932
  %v1269 = vpack.c.b16 %v949, %v933
  %v1270 = vpack.c.b16 %v950, %v934
  %v1271 = vpack.c.b16 %v951, %v935
  %v1272 = vpack.c.b16 %v952, %v936
  %v1273 = vpack.c.b16 %v953, %v937
  %v1274 = vpack.c.b16 %v954, %v938
  %v1275 = vpack.c.b16 %v955, %v939
  %v1276 = vpack.c.b16 %v956, %v940
  %v1277 = vpack.c.b16 %v957, %v941
  %v1278 = vpack.c.b16 %v958, %v942
  %v1279 = vpack.c.b16 %v959, %v943
  %v1280 = vpack.c.b16 %v960, %v944
  %v1281 = vpack.c.b16 %v961, %v945
  %v1282 = vpack.c.b16 %v962, %v946
  %v1283 = vpack.c.b16 %v979, %v963
  %v1284 = vpack.c.b16 %v980, %v964
  %v1285 = vpack.c.b16 %v981, %v965
  %v1286 = vpack.c.b16 %v982, %v966
  %v1287 = vpack.c.b16 %v983, %v967
  %v1288 = vpack.c.b16 %v984, %v968
  %v1289 = vpack.c.b16 %v985, %v969
  %v1290 = vpack.c.b16 %v986, %v970
  %v1291 = vpack.c.b16 %v987, %v971
  %v1292 = vpack.c.b16 %v988, %v972
  %v1293 = vpack.c.b16 %v989, %v973
  %v1294 = vpack.c.b16 %v990, %v974
  %v1295 = vpack.c.b16 %v991, %v975
  %v1296 = vpack.c.b16 %v992, %v976
  %v1297 = vpack.c.b16 %v993, %v977
  %v1298 = vpack.c.b16 %v994, %v978
  %v1299 = vpack.c.b16 %v1011, %v995
  %v1300 = vpack.c.b16 %v1012, %v996
  %v1301 = vpack.c.b16 %v1013, %v997
  %v1302 = vpack.c.b16 %v1014, %v998
  %v1303 = vpack.c.b16 %v1015, %v999
  %v1304 = vpack.c.b16 %v1016, %v1000
  %v1305 = vpack.c.b16 %v1017, %v1001
  %v1306 = vpack.c.b16 %v1018, %v1002
  %v1307 = vpack.c.b16 %v1019, %v1003
  %v1308 = vpack.c.b16 %v1020, %v1004
  %v1309 = vpack.c.b16 %v1021, %v1005
  %v1310 = vpack.c.b16 %v1022, %v1006
  %v1311 = vpack.c.b16 %v1023, %v1007
  %v1312 = vpack.c.b16 %v1024, %v1008
  %v1313 = vpack.c.b16 %v1025, %v1009
  %v1314 = vpack.c.b16 %v1026, %v1010
  %v1315 = vpack.c.b16 %v1043, %v1027
  %v1316 = vpack.c.b16 %v1044, %v1028
  %v1317 = vpack.c.b16 %v1045, %v1029
  %v1318 = vpack.c.b16 %v1046, %v1030
  %v1319 = vpack.c.b16 %v1047, %v1031
  %v1320 = vpack.c.b16 %v1048, %v1032
  %v1321 = vpack.c.b16 %v1049, %v1033
  %v1322 = vpack.c.b16 %v1050, %v1034
  %v1323 = vpack.c.b16 %v1051, %v1035
  %v1324 = vpack.c.b16 %v1052, %v1036
  %v1325 = vpack.c.b16 %v1053, %v1037
  %v1326 = vpack.c.b16 %v1054, %v1038
  %v1327 = vpack.c.b16 %v1055, %v1039
  %v1328 = vpack.c.b16 %v1056, %v1040
  %v1329 = vpack.c.b16 %v1057, %v1041
  %v1330 = vpack.c.b16 %v1058, %v1042
  %v1331 = vpack.c.b16 %v1075, %v1059
  %v1332 = vpack.c.b16 %v1076, %v1060
  %v1333 = vpack.c.b16 %v1077, %v1061
  %v1334 = vpack.c.b16 %v1078, %v1062
  %v1335 = vpack.c.b16 %v1079, %v1063
  %v1336 = vpack.c.b16 %v1080, %v1064
  %v1337 = vpack.c.b16 %v1081, %v1065
  %v1338 = vpack.c.b16 %v1082, %v1066
  %v1339 = vpack.c.b16 %v1083, %v1067
  %v1340 = vpack.c.b16 %v1084, %v1068
  %v1341 = vpack.c.b16 %v1085, %v1069
  %v1342 = vpack.c.b16 %v1086, %v1070
  %v1343 = vpack.c.b16 %v1087, %v1071
  %v1344 = vpack.c.b16 %v1088, %v1072
  %v1345 = vpack.c.b16 %v1089, %v1073
  %v1346 = vpack.c.b16 %v1090, %v1074
  %1603 = vmatpush.bf16.msra.mxu0 %v1203
  %1604 = vmatpush.bf16.msra.mxu0 %v1187
  %1605 = vmatpush.bf16.msra.mxu0 %v1171
  %1606 = vmatpush.bf16.msra.mxu0 %v1155
  %1607 = vmatpush.bf16.msra.mxu0 %v1139
  %1608 = vmatpush.bf16.msra.mxu0 %v1123
  %1609 = vmatpush.bf16.msra.mxu0 %v1107
  %1610 = vmatpush.bf16.msra.mxu0 %v1091
  %1611 = vmatmul.bf16.gmra.mxu0 %v63
  %v1612 = vpop.f32.mrf.mxu0
  %v1613 = vadd.f32 0.0, %v1612
  %v1614 = vpop.f32.mrf.mxu0
  %v1615 = vadd.f32 0.0, %v1614
  %1616 = vmatmul.bf16.gmra.mxu0 %v65
  %v1617 = vpop.f32.mrf.mxu0
  %v1618 = vadd.f32 0.0, %v1617
  %v1619 = vpop.f32.mrf.mxu0
  %v1620 = vadd.f32 0.0, %v1619
  %1621 = vdwg.mxu0
  %1622 = vmatpush.bf16.msra.mxu0 %v1331
  %1623 = vmatpush.bf16.msra.mxu0 %v1315
  %1624 = vmatpush.bf16.msra.mxu0 %v1299
  %1625 = vmatpush.bf16.msra.mxu0 %v1283
  %1626 = vmatpush.bf16.msra.mxu0 %v1267
  %1627 = vmatpush.bf16.msra.mxu0 %v1251
  %1628 = vmatpush.bf16.msra.mxu0 %v1235
  %1629 = vmatpush.bf16.msra.mxu0 %v1219
  %1630 = vmatmul.bf16.gmra.mxu0 %v64
  %v1631 = vpop.f32.mrf.mxu0
  %v1632 = vadd.f32 %v1613, %v1631
  %v1633 = vpop.f32.mrf.mxu0
  %v1634 = vadd.f32 %v1615, %v1633
  %1635 = vmatmul.bf16.gmra.mxu0 %v66
  %v1636 = vpop.f32.mrf.mxu0
  %v1637 = vadd.f32 %v1618, %v1636
  %v1638 = vpop.f32.mrf.mxu0
  %v1639 = vadd.f32 %v1620, %v1638
  %1640 = vdwg.mxu0
  %1641 = vmatpush.bf16.msra.mxu0 %v1204
  %1642 = vmatpush.bf16.msra.mxu0 %v1188
  %1643 = vmatpush.bf16.msra.mxu0 %v1172
  %1644 = vmatpush.bf16.msra.mxu0 %v1156
  %1645 = vmatpush.bf16.msra.mxu0 %v1140
  %1646 = vmatpush.bf16.msra.mxu0 %v1124
  %1647 = vmatpush.bf16.msra.mxu0 %v1108
  %1648 = vmatpush.bf16.msra.mxu0 %v1092
  %1649 = vmatmul.bf16.gmra.mxu0 %v63
  %v1650 = vpop.f32.mrf.mxu0
  %v1651 = vadd.f32 0.0, %v1650
  %v1652 = vpop.f32.mrf.mxu0
  %v1653 = vadd.f32 0.0, %v1652
  %1654 = vmatmul.bf16.gmra.mxu0 %v65
  %v1655 = vpop.f32.mrf.mxu0
  %v1656 = vadd.f32 0.0, %v1655
  %v1657 = vpop.f32.mrf.mxu0
  %v1658 = vadd.f32 0.0, %v1657
  %1659 = vdwg.mxu0
  %1660 = vmatpush.bf16.msra.mxu0 %v1332
  %1661 = vmatpush.bf16.msra.mxu0 %v1316
  %1662 = vmatpush.bf16.msra.mxu0 %v1300
  %1663 = vmatpush.bf16.msra.mxu0 %v1284
  %1664 = vmatpush.bf16.msra.mxu0 %v1268
  %1665 = vmatpush.bf16.msra.mxu0 %v1252
  %1666 = vmatpush.bf16.msra.mxu0 %v1236
  %1667 = vmatpush.bf16.msra.mxu0 %v1220
  %1668 = vmatmul.bf16.gmra.mxu0 %v64
  %v1669 = vpop.f32.mrf.mxu0
  %v1670 = vadd.f32 %v1651, %v1669
  %v1671 = vpop.f32.mrf.mxu0
  %v1672 = vadd.f32 %v1653, %v1671
  %1673 = vmatmul.bf16.gmra.mxu0 %v66
  %v1674 = vpop.f32.mrf.mxu0
  %v1675 = vadd.f32 %v1656, %v1674
  %v1676 = vpop.f32.mrf.mxu0
  %v1677 = vadd.f32 %v1658, %v1676
  %1678 = vdwg.mxu0
  %1679 = vmatpush.bf16.msra.mxu0 %v1205
  %1680 = vmatpush.bf16.msra.mxu0 %v1189
  %1681 = vmatpush.bf16.msra.mxu0 %v1173
  %1682 = vmatpush.bf16.msra.mxu0 %v1157
  %1683 = vmatpush.bf16.msra.mxu0 %v1141
  %1684 = vmatpush.bf16.msra.mxu0 %v1125
  %1685 = vmatpush.bf16.msra.mxu0 %v1109
  %1686 = vmatpush.bf16.msra.mxu0 %v1093
  %1687 = vmatmul.bf16.gmra.mxu0 %v63
  %v1688 = vpop.f32.mrf.mxu0
  %v1689 = vadd.f32 0.0, %v1688
  %v1690 = vpop.f32.mrf.mxu0
  %v1691 = vadd.f32 0.0, %v1690
  %1692 = vmatmul.bf16.gmra.mxu0 %v65
  %v1693 = vpop.f32.mrf.mxu0
  %v1694 = vadd.f32 0.0, %v1693
  %v1695 = vpop.f32.mrf.mxu0
  %v1696 = vadd.f32 0.0, %v1695
  %1697 = vdwg.mxu0
  %1698 = vmatpush.bf16.msra.mxu0 %v1333
  %1699 = vmatpush.bf16.msra.mxu0 %v1317
  %1700 = vmatpush.bf16.msra.mxu0 %v1301
  %1701 = vmatpush.bf16.msra.mxu0 %v1285
  %1702 = vmatpush.bf16.msra.mxu0 %v1269
  %1703 = vmatpush.bf16.msra.mxu0 %v1253
  %1704 = vmatpush.bf16.msra.mxu0 %v1237
  %1705 = vmatpush.bf16.msra.mxu0 %v1221
  %1706 = vmatmul.bf16.gmra.mxu0 %v64
  %v1707 = vpop.f32.mrf.mxu0
  %v1708 = vadd.f32 %v1689, %v1707
  %v1709 = vpop.f32.mrf.mxu0
  %v1710 = vadd.f32 %v1691, %v1709
  %1711 = vmatmul.bf16.gmra.mxu0 %v66
  %v1712 = vpop.f32.mrf.mxu0
  %v1713 = vadd.f32 %v1694, %v1712
  %v1714 = vpop.f32.mrf.mxu0
  %v1715 = vadd.f32 %v1696, %v1714
  %1716 = vdwg.mxu0
  %1717 = vmatpush.bf16.msra.mxu0 %v1206
  %1718 = vmatpush.bf16.msra.mxu0 %v1190
  %1719 = vmatpush.bf16.msra.mxu0 %v1174
  %1720 = vmatpush.bf16.msra.mxu0 %v1158
  %1721 = vmatpush.bf16.msra.mxu0 %v1142
  %1722 = vmatpush.bf16.msra.mxu0 %v1126
  %1723 = vmatpush.bf16.msra.mxu0 %v1110
  %1724 = vmatpush.bf16.msra.mxu0 %v1094
  %1725 = vmatmul.bf16.gmra.mxu0 %v63
  %v1726 = vpop.f32.mrf.mxu0
  %v1727 = vadd.f32 0.0, %v1726
  %v1728 = vpop.f32.mrf.mxu0
  %v1729 = vadd.f32 0.0, %v1728
  %1730 = vmatmul.bf16.gmra.mxu0 %v65
  %v1731 = vpop.f32.mrf.mxu0
  %v1732 = vadd.f32 0.0, %v1731
  %v1733 = vpop.f32.mrf.mxu0
  %v1734 = vadd.f32 0.0, %v1733
  %1735 = vdwg.mxu0
  %1736 = vmatpush.bf16.msra.mxu0 %v1334
  %1737 = vmatpush.bf16.msra.mxu0 %v1318
  %1738 = vmatpush.bf16.msra.mxu0 %v1302
  %1739 = vmatpush.bf16.msra.mxu0 %v1286
  %1740 = vmatpush.bf16.msra.mxu0 %v1270
  %1741 = vmatpush.bf16.msra.mxu0 %v1254
  %1742 = vmatpush.bf16.msra.mxu0 %v1238
  %1743 = vmatpush.bf16.msra.mxu0 %v1222
  %1744 = vmatmul.bf16.gmra.mxu0 %v64
  %v1745 = vpop.f32.mrf.mxu0
  %v1746 = vadd.f32 %v1727, %v1745
  %v1747 = vpop.f32.mrf.mxu0
  %v1748 = vadd.f32 %v1729, %v1747
  %1749 = vmatmul.bf16.gmra.mxu0 %v66
  %v1750 = vpop.f32.mrf.mxu0
  %v1751 = vadd.f32 %v1732, %v1750
  %v1752 = vpop.f32.mrf.mxu0
  %v1753 = vadd.f32 %v1734, %v1752
  %1754 = vdwg.mxu0
  %1755 = vmatpush.bf16.msra.mxu0 %v1207
  %1756 = vmatpush.bf16.msra.mxu0 %v1191
  %1757 = vmatpush.bf16.msra.mxu0 %v1175
  %1758 = vmatpush.bf16.msra.mxu0 %v1159
  %1759 = vmatpush.bf16.msra.mxu0 %v1143
  %1760 = vmatpush.bf16.msra.mxu0 %v1127
  %1761 = vmatpush.bf16.msra.mxu0 %v1111
  %1762 = vmatpush.bf16.msra.mxu0 %v1095
  %1763 = vmatmul.bf16.gmra.mxu0 %v63
  %v1764 = vpop.f32.mrf.mxu0
  %v1765 = vadd.f32 0.0, %v1764
  %v1766 = vpop.f32.mrf.mxu0
  %v1767 = vadd.f32 0.0, %v1766
  %1768 = vmatmul.bf16.gmra.mxu0 %v65
  %v1769 = vpop.f32.mrf.mxu0
  %v1770 = vadd.f32 0.0, %v1769
  %v1771 = vpop.f32.mrf.mxu0
  %v1772 = vadd.f32 0.0, %v1771
  %1773 = vdwg.mxu0
  %1774 = vmatpush.bf16.msra.mxu0 %v1335
  %1775 = vmatpush.bf16.msra.mxu0 %v1319
  %1776 = vmatpush.bf16.msra.mxu0 %v1303
  %1777 = vmatpush.bf16.msra.mxu0 %v1287
  %1778 = vmatpush.bf16.msra.mxu0 %v1271
  %1779 = vmatpush.bf16.msra.mxu0 %v1255
  %1780 = vmatpush.bf16.msra.mxu0 %v1239
  %1781 = vmatpush.bf16.msra.mxu0 %v1223
  %1782 = vmatmul.bf16.gmra.mxu0 %v64
  %v1783 = vpop.f32.mrf.mxu0
  %v1784 = vadd.f32 %v1765, %v1783
  %v1785 = vpop.f32.mrf.mxu0
  %v1786 = vadd.f32 %v1767, %v1785
  %1787 = vmatmul.bf16.gmra.mxu0 %v66
  %v1788 = vpop.f32.mrf.mxu0
  %v1789 = vadd.f32 %v1770, %v1788
  %v1790 = vpop.f32.mrf.mxu0
  %v1791 = vadd.f32 %v1772, %v1790
  %1792 = vdwg.mxu0
  %1793 = vmatpush.bf16.msra.mxu0 %v1208
  %1794 = vmatpush.bf16.msra.mxu0 %v1192
  %1795 = vmatpush.bf16.msra.mxu0 %v1176
  %1796 = vmatpush.bf16.msra.mxu0 %v1160
  %1797 = vmatpush.bf16.msra.mxu0 %v1144
  %1798 = vmatpush.bf16.msra.mxu0 %v1128
  %1799 = vmatpush.bf16.msra.mxu0 %v1112
  %1800 = vmatpush.bf16.msra.mxu0 %v1096
  %1801 = vmatmul.bf16.gmra.mxu0 %v63
  %v1802 = vpop.f32.mrf.mxu0
  %v1803 = vadd.f32 0.0, %v1802
  %v1804 = vpop.f32.mrf.mxu0
  %v1805 = vadd.f32 0.0, %v1804
  %1806 = vmatmul.bf16.gmra.mxu0 %v65
  %v1807 = vpop.f32.mrf.mxu0
  %v1808 = vadd.f32 0.0, %v1807
  %v1809 = vpop.f32.mrf.mxu0
  %v1810 = vadd.f32 0.0, %v1809
  %1811 = vdwg.mxu0
  %1812 = vmatpush.bf16.msra.mxu0 %v1336
  %1813 = vmatpush.bf16.msra.mxu0 %v1320
  %1814 = vmatpush.bf16.msra.mxu0 %v1304
  %1815 = vmatpush.bf16.msra.mxu0 %v1288
  %1816 = vmatpush.bf16.msra.mxu0 %v1272
  %1817 = vmatpush.bf16.msra.mxu0 %v1256
  %1818 = vmatpush.bf16.msra.mxu0 %v1240
  %1819 = vmatpush.bf16.msra.mxu0 %v1224
  %1820 = vmatmul.bf16.gmra.mxu0 %v64
  %v1821 = vpop.f32.mrf.mxu0
  %v1822 = vadd.f32 %v1803, %v1821
  %v1823 = vpop.f32.mrf.mxu0
  %v1824 = vadd.f32 %v1805, %v1823
  %1825 = vmatmul.bf16.gmra.mxu0 %v66
  %v1826 = vpop.f32.mrf.mxu0
  %v1827 = vadd.f32 %v1808, %v1826
  %v1828 = vpop.f32.mrf.mxu0
  %v1829 = vadd.f32 %v1810, %v1828
  %1830 = vdwg.mxu0
  %1831 = vmatpush.bf16.msra.mxu0 %v1209
  %1832 = vmatpush.bf16.msra.mxu0 %v1193
  %1833 = vmatpush.bf16.msra.mxu0 %v1177
  %1834 = vmatpush.bf16.msra.mxu0 %v1161
  %1835 = vmatpush.bf16.msra.mxu0 %v1145
  %1836 = vmatpush.bf16.msra.mxu0 %v1129
  %1837 = vmatpush.bf16.msra.mxu0 %v1113
  %1838 = vmatpush.bf16.msra.mxu0 %v1097
  %1839 = vmatmul.bf16.gmra.mxu0 %v63
  %v1840 = vpop.f32.mrf.mxu0
  %v1841 = vadd.f32 0.0, %v1840
  %v1842 = vpop.f32.mrf.mxu0
  %v1843 = vadd.f32 0.0, %v1842
  %1844 = vmatmul.bf16.gmra.mxu0 %v65
  %v1845 = vpop.f32.mrf.mxu0
  %v1846 = vadd.f32 0.0, %v1845
  %v1847 = vpop.f32.mrf.mxu0
  %v1848 = vadd.f32 0.0, %v1847
  %1849 = vdwg.mxu0
  %1850 = vmatpush.bf16.msra.mxu0 %v1337
  %1851 = vmatpush.bf16.msra.mxu0 %v1321
  %1852 = vmatpush.bf16.msra.mxu0 %v1305
  %1853 = vmatpush.bf16.msra.mxu0 %v1289
  %1854 = vmatpush.bf16.msra.mxu0 %v1273
  %1855 = vmatpush.bf16.msra.mxu0 %v1257
  %1856 = vmatpush.bf16.msra.mxu0 %v1241
  %1857 = vmatpush.bf16.msra.mxu0 %v1225
  %1858 = vmatmul.bf16.gmra.mxu0 %v64
  %v1859 = vpop.f32.mrf.mxu0
  %v1860 = vadd.f32 %v1841, %v1859
  %v1861 = vpop.f32.mrf.mxu0
  %v1862 = vadd.f32 %v1843, %v1861
  %1863 = vmatmul.bf16.gmra.mxu0 %v66
  %v1864 = vpop.f32.mrf.mxu0
  %v1865 = vadd.f32 %v1846, %v1864
  %v1866 = vpop.f32.mrf.mxu0
  %v1867 = vadd.f32 %v1848, %v1866
  %1868 = vdwg.mxu0
  %1869 = vmatpush.bf16.msra.mxu0 %v1210
  %1870 = vmatpush.bf16.msra.mxu0 %v1194
  %1871 = vmatpush.bf16.msra.mxu0 %v1178
  %1872 = vmatpush.bf16.msra.mxu0 %v1162
  %1873 = vmatpush.bf16.msra.mxu0 %v1146
  %1874 = vmatpush.bf16.msra.mxu0 %v1130
  %1875 = vmatpush.bf16.msra.mxu0 %v1114
  %1876 = vmatpush.bf16.msra.mxu0 %v1098
  %1877 = vmatmul.bf16.gmra.mxu0 %v63
  %v1878 = vpop.f32.mrf.mxu0
  %v1879 = vadd.f32 0.0, %v1878
  %v1880 = vpop.f32.mrf.mxu0
  %v1881 = vadd.f32 0.0, %v1880
  %1882 = vmatmul.bf16.gmra.mxu0 %v65
  %v1883 = vpop.f32.mrf.mxu0
  %v1884 = vadd.f32 0.0, %v1883
  %v1885 = vpop.f32.mrf.mxu0
  %v1886 = vadd.f32 0.0, %v1885
  %1887 = vdwg.mxu0
  %1888 = vmatpush.bf16.msra.mxu0 %v1338
  %1889 = vmatpush.bf16.msra.mxu0 %v1322
  %1890 = vmatpush.bf16.msra.mxu0 %v1306
  %1891 = vmatpush.bf16.msra.mxu0 %v1290
  %1892 = vmatpush.bf16.msra.mxu0 %v1274
  %1893 = vmatpush.bf16.msra.mxu0 %v1258
  %1894 = vmatpush.bf16.msra.mxu0 %v1242
  %1895 = vmatpush.bf16.msra.mxu0 %v1226
  %1896 = vmatmul.bf16.gmra.mxu0 %v64
  %v1897 = vpop.f32.mrf.mxu0
  %v1898 = vadd.f32 %v1879, %v1897
  %v1899 = vpop.f32.mrf.mxu0
  %v1900 = vadd.f32 %v1881, %v1899
  %1901 = vmatmul.bf16.gmra.mxu0 %v66
  %v1902 = vpop.f32.mrf.mxu0
  %v1903 = vadd.f32 %v1884, %v1902
  %v1904 = vpop.f32.mrf.mxu0
  %v1905 = vadd.f32 %v1886, %v1904
  %1906 = vdwg.mxu0
  %1907 = vmatpush.bf16.msra.mxu0 %v1211
  %1908 = vmatpush.bf16.msra.mxu0 %v1195
  %1909 = vmatpush.bf16.msra.mxu0 %v1179
  %1910 = vmatpush.bf16.msra.mxu0 %v1163
  %1911 = vmatpush.bf16.msra.mxu0 %v1147
  %1912 = vmatpush.bf16.msra.mxu0 %v1131
  %1913 = vmatpush.bf16.msra.mxu0 %v1115
  %1914 = vmatpush.bf16.msra.mxu0 %v1099
  %1915 = vmatmul.bf16.gmra.mxu0 %v63
  %v1916 = vpop.f32.mrf.mxu0
  %v1917 = vadd.f32 0.0, %v1916
  %v1918 = vpop.f32.mrf.mxu0
  %v1919 = vadd.f32 0.0, %v1918
  %1920 = vmatmul.bf16.gmra.mxu0 %v65
  %v1921 = vpop.f32.mrf.mxu0
  %v1922 = vadd.f32 0.0, %v1921
  %v1923 = vpop.f32.mrf.mxu0
  %v1924 = vadd.f32 0.0, %v1923
  %1925 = vdwg.mxu0
  %1926 = vmatpush.bf16.msra.mxu0 %v1339
  %1927 = vmatpush.bf16.msra.mxu0 %v1323
  %1928 = vmatpush.bf16.msra.mxu0 %v1307
  %1929 = vmatpush.bf16.msra.mxu0 %v1291
  %1930 = vmatpush.bf16.msra.mxu0 %v1275
  %1931 = vmatpush.bf16.msra.mxu0 %v1259
  %1932 = vmatpush.bf16.msra.mxu0 %v1243
  %1933 = vmatpush.bf16.msra.mxu0 %v1227
  %1934 = vmatmul.bf16.gmra.mxu0 %v64
  %v1935 = vpop.f32.mrf.mxu0
  %v1936 = vadd.f32 %v1917, %v1935
  %v1937 = vpop.f32.mrf.mxu0
  %v1938 = vadd.f32 %v1919, %v1937
  %1939 = vmatmul.bf16.gmra.mxu0 %v66
  %v1940 = vpop.f32.mrf.mxu0
  %v1941 = vadd.f32 %v1922, %v1940
  %v1942 = vpop.f32.mrf.mxu0
  %v1943 = vadd.f32 %v1924, %v1942
  %1944 = vdwg.mxu0
  %1945 = vmatpush.bf16.msra.mxu0 %v1212
  %1946 = vmatpush.bf16.msra.mxu0 %v1196
  %1947 = vmatpush.bf16.msra.mxu0 %v1180
  %1948 = vmatpush.bf16.msra.mxu0 %v1164
  %1949 = vmatpush.bf16.msra.mxu0 %v1148
  %1950 = vmatpush.bf16.msra.mxu0 %v1132
  %1951 = vmatpush.bf16.msra.mxu0 %v1116
  %1952 = vmatpush.bf16.msra.mxu0 %v1100
  %1953 = vmatmul.bf16.gmra.mxu0 %v63
  %v1954 = vpop.f32.mrf.mxu0
  %v1955 = vadd.f32 0.0, %v1954
  %v1956 = vpop.f32.mrf.mxu0
  %v1957 = vadd.f32 0.0, %v1956
  %1958 = vmatmul.bf16.gmra.mxu0 %v65
  %v1959 = vpop.f32.mrf.mxu0
  %v1960 = vadd.f32 0.0, %v1959
  %v1961 = vpop.f32.mrf.mxu0
  %v1962 = vadd.f32 0.0, %v1961
  %1963 = vdwg.mxu0
  %1964 = vmatpush.bf16.msra.mxu0 %v1340
  %1965 = vmatpush.bf16.msra.mxu0 %v1324
  %1966 = vmatpush.bf16.msra.mxu0 %v1308
  %1967 = vmatpush.bf16.msra.mxu0 %v1292
  %1968 = vmatpush.bf16.msra.mxu0 %v1276
  %1969 = vmatpush.bf16.msra.mxu0 %v1260
  %1970 = vmatpush.bf16.msra.mxu0 %v1244
  %1971 = vmatpush.bf16.msra.mxu0 %v1228
  %1972 = vmatmul.bf16.gmra.mxu0 %v64
  %v1973 = vpop.f32.mrf.mxu0
  %v1974 = vadd.f32 %v1955, %v1973
  %v1975 = vpop.f32.mrf.mxu0
  %v1976 = vadd.f32 %v1957, %v1975
  %1977 = vmatmul.bf16.gmra.mxu0 %v66
  %v1978 = vpop.f32.mrf.mxu0
  %v1979 = vadd.f32 %v1960, %v1978
  %v1980 = vpop.f32.mrf.mxu0
  %v1981 = vadd.f32 %v1962, %v1980
  %1982 = vdwg.mxu0
  %1983 = vmatpush.bf16.msra.mxu0 %v1213
  %1984 = vmatpush.bf16.msra.mxu0 %v1197
  %1985 = vmatpush.bf16.msra.mxu0 %v1181
  %1986 = vmatpush.bf16.msra.mxu0 %v1165
  %1987 = vmatpush.bf16.msra.mxu0 %v1149
  %1988 = vmatpush.bf16.msra.mxu0 %v1133
  %1989 = vmatpush.bf16.msra.mxu0 %v1117
  %1990 = vmatpush.bf16.msra.mxu0 %v1101
  %1991 = vmatmul.bf16.gmra.mxu0 %v63
  %v1992 = vpop.f32.mrf.mxu0
  %v1993 = vadd.f32 0.0, %v1992
  %v1994 = vpop.f32.mrf.mxu0
  %v1995 = vadd.f32 0.0, %v1994
  %1996 = vmatmul.bf16.gmra.mxu0 %v65
  %v1997 = vpop.f32.mrf.mxu0
  %v1998 = vadd.f32 0.0, %v1997
  %v1999 = vpop.f32.mrf.mxu0
  %v2000 = vadd.f32 0.0, %v1999
  %2001 = vdwg.mxu0
  %2002 = vmatpush.bf16.msra.mxu0 %v1341
  %2003 = vmatpush.bf16.msra.mxu0 %v1325
  %2004 = vmatpush.bf16.msra.mxu0 %v1309
  %2005 = vmatpush.bf16.msra.mxu0 %v1293
  %2006 = vmatpush.bf16.msra.mxu0 %v1277
  %2007 = vmatpush.bf16.msra.mxu0 %v1261
  %2008 = vmatpush.bf16.msra.mxu0 %v1245
  %2009 = vmatpush.bf16.msra.mxu0 %v1229
  %2010 = vmatmul.bf16.gmra.mxu0 %v64
  %v2011 = vpop.f32.mrf.mxu0
  %v2012 = vadd.f32 %v1993, %v2011
  %v2013 = vpop.f32.mrf.mxu0
  %v2014 = vadd.f32 %v1995, %v2013
  %2015 = vmatmul.bf16.gmra.mxu0 %v66
  %v2016 = vpop.f32.mrf.mxu0
  %v2017 = vadd.f32 %v1998, %v2016
  %v2018 = vpop.f32.mrf.mxu0
  %v2019 = vadd.f32 %v2000, %v2018
  %2020 = vdwg.mxu0
  %2021 = vmatpush.bf16.msra.mxu0 %v1214
  %2022 = vmatpush.bf16.msra.mxu0 %v1198
  %2023 = vmatpush.bf16.msra.mxu0 %v1182
  %2024 = vmatpush.bf16.msra.mxu0 %v1166
  %2025 = vmatpush.bf16.msra.mxu0 %v1150
  %2026 = vmatpush.bf16.msra.mxu0 %v1134
  %2027 = vmatpush.bf16.msra.mxu0 %v1118
  %2028 = vmatpush.bf16.msra.mxu0 %v1102
  %2029 = vmatmul.bf16.gmra.mxu0 %v63
  %v2030 = vpop.f32.mrf.mxu0
  %v2031 = vadd.f32 0.0, %v2030
  %v2032 = vpop.f32.mrf.mxu0
  %v2033 = vadd.f32 0.0, %v2032
  %2034 = vmatmul.bf16.gmra.mxu0 %v65
  %v2035 = vpop.f32.mrf.mxu0
  %v2036 = vadd.f32 0.0, %v2035
  %v2037 = vpop.f32.mrf.mxu0
  %v2038 = vadd.f32 0.0, %v2037
  %2039 = vdwg.mxu0
  %2040 = vmatpush.bf16.msra.mxu0 %v1342
  %2041 = vmatpush.bf16.msra.mxu0 %v1326
  %2042 = vmatpush.bf16.msra.mxu0 %v1310
  %2043 = vmatpush.bf16.msra.mxu0 %v1294
  %2044 = vmatpush.bf16.msra.mxu0 %v1278
  %2045 = vmatpush.bf16.msra.mxu0 %v1262
  %2046 = vmatpush.bf16.msra.mxu0 %v1246
  %2047 = vmatpush.bf16.msra.mxu0 %v1230
  %2048 = vmatmul.bf16.gmra.mxu0 %v64
  %v2049 = vpop.f32.mrf.mxu0
  %v2050 = vadd.f32 %v2031, %v2049
  %v2051 = vpop.f32.mrf.mxu0
  %v2052 = vadd.f32 %v2033, %v2051
  %2053 = vmatmul.bf16.gmra.mxu0 %v66
  %v2054 = vpop.f32.mrf.mxu0
  %v2055 = vadd.f32 %v2036, %v2054
  %v2056 = vpop.f32.mrf.mxu0
  %v2057 = vadd.f32 %v2038, %v2056
  %2058 = vdwg.mxu0
  %2059 = vmatpush.bf16.msra.mxu0 %v1215
  %2060 = vmatpush.bf16.msra.mxu0 %v1199
  %2061 = vmatpush.bf16.msra.mxu0 %v1183
  %2062 = vmatpush.bf16.msra.mxu0 %v1167
  %2063 = vmatpush.bf16.msra.mxu0 %v1151
  %2064 = vmatpush.bf16.msra.mxu0 %v1135
  %2065 = vmatpush.bf16.msra.mxu0 %v1119
  %2066 = vmatpush.bf16.msra.mxu0 %v1103
  %2067 = vmatmul.bf16.gmra.mxu0 %v63
  %v2068 = vpop.f32.mrf.mxu0
  %v2069 = vadd.f32 0.0, %v2068
  %v2070 = vpop.f32.mrf.mxu0
  %v2071 = vadd.f32 0.0, %v2070
  %2072 = vmatmul.bf16.gmra.mxu0 %v65
  %v2073 = vpop.f32.mrf.mxu0
  %v2074 = vadd.f32 0.0, %v2073
  %v2075 = vpop.f32.mrf.mxu0
  %v2076 = vadd.f32 0.0, %v2075
  %2077 = vdwg.mxu0
  %2078 = vmatpush.bf16.msra.mxu0 %v1343
  %2079 = vmatpush.bf16.msra.mxu0 %v1327
  %2080 = vmatpush.bf16.msra.mxu0 %v1311
  %2081 = vmatpush.bf16.msra.mxu0 %v1295
  %2082 = vmatpush.bf16.msra.mxu0 %v1279
  %2083 = vmatpush.bf16.msra.mxu0 %v1263
  %2084 = vmatpush.bf16.msra.mxu0 %v1247
  %2085 = vmatpush.bf16.msra.mxu0 %v1231
  %2086 = vmatmul.bf16.gmra.mxu0 %v64
  %v2087 = vpop.f32.mrf.mxu0
  %v2088 = vadd.f32 %v2069, %v2087
  %v2089 = vpop.f32.mrf.mxu0
  %v2090 = vadd.f32 %v2071, %v2089
  %2091 = vmatmul.bf16.gmra.mxu0 %v66
  %v2092 = vpop.f32.mrf.mxu0
  %v2093 = vadd.f32 %v2074, %v2092
  %v2094 = vpop.f32.mrf.mxu0
  %v2095 = vadd.f32 %v2076, %v2094
  %2096 = vdwg.mxu0
  %2097 = vmatpush.bf16.msra.mxu0 %v1216
  %2098 = vmatpush.bf16.msra.mxu0 %v1200
  %2099 = vmatpush.bf16.msra.mxu0 %v1184
  %2100 = vmatpush.bf16.msra.mxu0 %v1168
  %2101 = vmatpush.bf16.msra.mxu0 %v1152
  %2102 = vmatpush.bf16.msra.mxu0 %v1136
  %2103 = vmatpush.bf16.msra.mxu0 %v1120
  %2104 = vmatpush.bf16.msra.mxu0 %v1104
  %2105 = vmatmul.bf16.gmra.mxu0 %v63
  %v2106 = vpop.f32.mrf.mxu0
  %v2107 = vadd.f32 0.0, %v2106
  %v2108 = vpop.f32.mrf.mxu0
  %v2109 = vadd.f32 0.0, %v2108
  %2110 = vmatmul.bf16.gmra.mxu0 %v65
  %v2111 = vpop.f32.mrf.mxu0
  %v2112 = vadd.f32 0.0, %v2111
  %v2113 = vpop.f32.mrf.mxu0
  %v2114 = vadd.f32 0.0, %v2113
  %2115 = vdwg.mxu0
  %2116 = vmatpush.bf16.msra.mxu0 %v1344
  %2117 = vmatpush.bf16.msra.mxu0 %v1328
  %2118 = vmatpush.bf16.msra.mxu0 %v1312
  %2119 = vmatpush.bf16.msra.mxu0 %v1296
  %2120 = vmatpush.bf16.msra.mxu0 %v1280
  %2121 = vmatpush.bf16.msra.mxu0 %v1264
  %2122 = vmatpush.bf16.msra.mxu0 %v1248
  %2123 = vmatpush.bf16.msra.mxu0 %v1232
  %2124 = vmatmul.bf16.gmra.mxu0 %v64
  %v2125 = vpop.f32.mrf.mxu0
  %v2126 = vadd.f32 %v2107, %v2125
  %v2127 = vpop.f32.mrf.mxu0
  %v2128 = vadd.f32 %v2109, %v2127
  %2129 = vmatmul.bf16.gmra.mxu0 %v66
  %v2130 = vpop.f32.mrf.mxu0
  %v2131 = vadd.f32 %v2112, %v2130
  %v2132 = vpop.f32.mrf.mxu0
  %v2133 = vadd.f32 %v2114, %v2132
  %2134 = vdwg.mxu0
  %2135 = vmatpush.bf16.msra.mxu0 %v1217
  %2136 = vmatpush.bf16.msra.mxu0 %v1201
  %2137 = vmatpush.bf16.msra.mxu0 %v1185
  %2138 = vmatpush.bf16.msra.mxu0 %v1169
  %2139 = vmatpush.bf16.msra.mxu0 %v1153
  %2140 = vmatpush.bf16.msra.mxu0 %v1137
  %2141 = vmatpush.bf16.msra.mxu0 %v1121
  %2142 = vmatpush.bf16.msra.mxu0 %v1105
  %2143 = vmatmul.bf16.gmra.mxu0 %v63
  %v2144 = vpop.f32.mrf.mxu0
  %v2145 = vadd.f32 0.0, %v2144
  %v2146 = vpop.f32.mrf.mxu0
  %v2147 = vadd.f32 0.0, %v2146
  %2148 = vmatmul.bf16.gmra.mxu0 %v65
  %v2149 = vpop.f32.mrf.mxu0
  %v2150 = vadd.f32 0.0, %v2149
  %v2151 = vpop.f32.mrf.mxu0
  %v2152 = vadd.f32 0.0, %v2151
  %2153 = vdwg.mxu0
  %2154 = vmatpush.bf16.msra.mxu0 %v1345
  %2155 = vmatpush.bf16.msra.mxu0 %v1329
  %2156 = vmatpush.bf16.msra.mxu0 %v1313
  %2157 = vmatpush.bf16.msra.mxu0 %v1297
  %2158 = vmatpush.bf16.msra.mxu0 %v1281
  %2159 = vmatpush.bf16.msra.mxu0 %v1265
  %2160 = vmatpush.bf16.msra.mxu0 %v1249
  %2161 = vmatpush.bf16.msra.mxu0 %v1233
  %2162 = vmatmul.bf16.gmra.mxu0 %v64
  %v2163 = vpop.f32.mrf.mxu0
  %v2164 = vadd.f32 %v2145, %v2163
  %v2165 = vpop.f32.mrf.mxu0
  %v2166 = vadd.f32 %v2147, %v2165
  %2167 = vmatmul.bf16.gmra.mxu0 %v66
  %v2168 = vpop.f32.mrf.mxu0
  %v2169 = vadd.f32 %v2150, %v2168
  %v2170 = vpop.f32.mrf.mxu0
  %v2171 = vadd.f32 %v2152, %v2170
  %2172 = vdwg.mxu0
  %2173 = vmatpush.bf16.msra.mxu0 %v1218
  %2174 = vmatpush.bf16.msra.mxu0 %v1202
  %2175 = vmatpush.bf16.msra.mxu0 %v1186
  %2176 = vmatpush.bf16.msra.mxu0 %v1170
  %2177 = vmatpush.bf16.msra.mxu0 %v1154
  %2178 = vmatpush.bf16.msra.mxu0 %v1138
  %2179 = vmatpush.bf16.msra.mxu0 %v1122
  %2180 = vmatpush.bf16.msra.mxu0 %v1106
  %2181 = vmatmul.bf16.gmra.mxu0 %v63
  %v2182 = vpop.f32.mrf.mxu0
  %v2183 = vadd.f32 0.0, %v2182
  %v2184 = vpop.f32.mrf.mxu0
  %v2185 = vadd.f32 0.0, %v2184
  %2186 = vmatmul.bf16.gmra.mxu0 %v65
  %v2187 = vpop.f32.mrf.mxu0
  %v2188 = vadd.f32 0.0, %v2187
  %v2189 = vpop.f32.mrf.mxu0
  %v2190 = vadd.f32 0.0, %v2189
  %2191 = vdwg.mxu0
  %2192 = vmatpush.bf16.msra.mxu0 %v1346
  %2193 = vmatpush.bf16.msra.mxu0 %v1330
  %2194 = vmatpush.bf16.msra.mxu0 %v1314
  %2195 = vmatpush.bf16.msra.mxu0 %v1298
  %2196 = vmatpush.bf16.msra.mxu0 %v1282
  %2197 = vmatpush.bf16.msra.mxu0 %v1266
  %2198 = vmatpush.bf16.msra.mxu0 %v1250
  %2199 = vmatpush.bf16.msra.mxu0 %v1234
  %2200 = vmatmul.bf16.gmra.mxu0 %v64
  %v2201 = vpop.f32.mrf.mxu0
  %v2202 = vadd.f32 %v2183, %v2201
  %v2203 = vpop.f32.mrf.mxu0
  %v2204 = vadd.f32 %v2185, %v2203
  %2205 = vmatmul.bf16.gmra.mxu0 %v66
  %v2206 = vpop.f32.mrf.mxu0
  %v2207 = vadd.f32 %v2188, %v2206
  %v2208 = vpop.f32.mrf.mxu0
  %v2209 = vadd.f32 %v2190, %v2208
  %2210 = vdwg.mxu0
  %2211 = vst [vmem:[%s4] sm:$0xff] %v1632
  %2212 = vst [vmem:[%s4 + $0x8] sm:$0xff] %v1670
  %2213 = vst [vmem:[%s4 + $0x10] sm:$0xff] %v1708
  %2214 = vst [vmem:[%s4 + $0x18] sm:$0xff] %v1746
  %2215 = vst [vmem:[%s4 + $0x20] sm:$0xff] %v1784
  %2216 = vst [vmem:[%s4 + $0x28] sm:$0xff] %v1822
  %2217 = vst [vmem:[%s4 + $0x30] sm:$0xff] %v1860
  %2218 = vst [vmem:[%s4 + $0x38] sm:$0xff] %v1898
  %2219 = vst [vmem:[%s4 + $0x40] sm:$0xff] %v1936
  %2220 = vst [vmem:[%s4 + $0x48] sm:$0xff] %v1974
  %2221 = vst [vmem:[%s4 + $0x50] sm:$0xff] %v2012
  %2222 = vst [vmem:[%s4 + $0x58] sm:$0xff] %v2050
  %2223 = vst [vmem:[%s4 + $0x60] sm:$0xff] %v2088
  %2224 = vst [vmem:[%s4 + $0x68] sm:$0xff] %v2126
  %2225 = vst [vmem:[%s4 + $0x70] sm:$0xff] %v2164
  %2226 = vst [vmem:[%s4 + $0x78] sm:$0xff] %v2202
  %2227 = vst [vmem:[%s4 + $0x80] sm:$0xff] %v1634
  %2228 = vst [vmem:[%s4 + $0x88] sm:$0xff] %v1672
  %2229 = vst [vmem:[%s4 + $0x90] sm:$0xff] %v1710
  %2230 = vst [vmem:[%s4 + $0x98] sm:$0xff] %v1748
  %2231 = vst [vmem:[%s4 + $0xa0] sm:$0xff] %v1786
  %2232 = vst [vmem:[%s4 + $0xa8] sm:$0xff] %v1824
  %2233 = vst [vmem:[%s4 + $0xb0] sm:$0xff] %v1862
  %2234 = vst [vmem:[%s4 + $0xb8] sm:$0xff] %v1900
  %2235 = vst [vmem:[%s4 + $0xc0] sm:$0xff] %v1938
  %2236 = vst [vmem:[%s4 + $0xc8] sm:$0xff] %v1976
  %2237 = vst [vmem:[%s4 + $0xd0] sm:$0xff] %v2014
  %2238 = vst [vmem:[%s4 + $0xd8] sm:$0xff] %v2052
  %2239 = vst [vmem:[%s4 + $0xe0] sm:$0xff] %v2090
  %2240 = vst [vmem:[%s4 + $0xe8] sm:$0xff] %v2128
  %2241 = vst [vmem:[%s4 + $0xf0] sm:$0xff] %v2166
  %2242 = vst [vmem:[%s4 + $0xf8] sm:$0xff] %v2204
  %2243 = vst [vmem:[%s4 + $0x100] sm:$0xff] %v1637
  %2244 = vst [vmem:[%s4 + $0x108] sm:$0xff] %v1675
  %2245 = vst [vmem:[%s4 + $0x110] sm:$0xff] %v1713
  %2246 = vst [vmem:[%s4 + $0x118] sm:$0xff] %v1751
  %2247 = vst [vmem:[%s4 + $0x120] sm:$0xff] %v1789
  %2248 = vst [vmem:[%s4 + $0x128] sm:$0xff] %v1827
  %2249 = vst [vmem:[%s4 + $0x130] sm:$0xff] %v1865
  %2250 = vst [vmem:[%s4 + $0x138] sm:$0xff] %v1903
  %2251 = vst [vmem:[%s4 + $0x140] sm:$0xff] %v1941
  %2252 = vst [vmem:[%s4 + $0x148] sm:$0xff] %v1979
  %2253 = vst [vmem:[%s4 + $0x150] sm:$0xff] %v2017
  %2254 = vst [vmem:[%s4 + $0x158] sm:$0xff] %v2055
  %2255 = vst [vmem:[%s4 + $0x160] sm:$0xff] %v2093
  %2256 = vst [vmem:[%s4 + $0x168] sm:$0xff] %v2131
  %2257 = vst [vmem:[%s4 + $0x170] sm:$0xff] %v2169
  %2258 = vst [vmem:[%s4 + $0x178] sm:$0xff] %v2207
  %2259 = vst [vmem:[%s4 + $0x180] sm:$0xff] %v1639
  %2260 = vst [vmem:[%s4 + $0x188] sm:$0xff] %v1677
  %2261 = vst [vmem:[%s4 + $0x190] sm:$0xff] %v1715
  %2262 = vst [vmem:[%s4 + $0x198] sm:$0xff] %v1753
  %2263 = vst [vmem:[%s4 + $0x1a0] sm:$0xff] %v1791
  %2264 = vst [vmem:[%s4 + $0x1a8] sm:$0xff] %v1829
  %2265 = vst [vmem:[%s4 + $0x1b0] sm:$0xff] %v1867
  %2266 = vst [vmem:[%s4 + $0x1b8] sm:$0xff] %v1905
  %2267 = vst [vmem:[%s4 + $0x1c0] sm:$0xff] %v1943
  %2268 = vst [vmem:[%s4 + $0x1c8] sm:$0xff] %v1981
  %2269 = vst [vmem:[%s4 + $0x1d0] sm:$0xff] %v2019
  %2270 = vst [vmem:[%s4 + $0x1d8] sm:$0xff] %v2057
  %2271 = vst [vmem:[%s4 + $0x1e0] sm:$0xff] %v2095
  %2272 = vst [vmem:[%s4 + $0x1e8] sm:$0xff] %v2133
  %2273 = vst [vmem:[%s4 + $0x1f0] sm:$0xff] %v2171
  %2274 = vst [vmem:[%s4 + $0x1f8] sm:$0xff] %v2209
  // Predicated region
  $region18: #{generator_forward.12} parent=0 // pred_check
    _
  $region19: #{generator_forward.12} parent=0 // pred_check_branch
    %2276 = sbr.rel (0) target = $region21
  $region20: #{generator_forward.12} parent=0 // pred_region
    _
  $region21: #{generator_forward.12} parent=0 // pred_fallthru
    _
  // Predicated region
  $region22: #{generator_forward.12} parent=0 // pred_check
    _
  $region23: #{generator_forward.12} parent=0 // pred_check_branch
    %2278 = sbr.rel (0) target = $region25
  $region24: #{generator_forward.12} parent=0 // pred_region
    _
  $region25: #{generator_forward.12} parent=0 // pred_fallthru
    _

// kernel: tile.48
$region0: #{tile.48}
  #allocation0 [shape = 's32[1]{0}', space=sflag, size = 0x4, scoped, tag = 'scoped memory for tile.48']
  %s0 = inlined_call_operand.vmem [shape: f32[8], index: 0, kind: input, shape index: {}]
  %s1 = inlined_call_operand.vmem [shape: f32[32,8], index: 1, kind: output, shape index: {}]
  // Predicated region
  $region2: #{tile.48} parent=0 // pred_check
    _
  $region3: #{tile.48} parent=0 // pred_check_branch
    %3 = sbr.rel (0) target = $region5
  $region4: #{tile.48} parent=0 // pred_region
    _
  $region5: #{tile.48} parent=0 // pred_fallthru
    _
  %v4 = vld [vmem:[%s0] ss:$0 sm:$0xff]
  %5 = vst [vmem:[%s1] sm:$0xff] %v4
  %s6 = scalar_lea.vmem %s1, 8
  %7 = vst [vmem:[%s6] sm:$0xff] %v4
  %s8 = scalar_lea.vmem %s1, 16
  %9 = vst [vmem:[%s8] sm:$0xff] %v4
  %s10 = scalar_lea.vmem %s1, 24
  %11 = vst [vmem:[%s10] sm:$0xff] %v4

// kernel: tile.49
$region0: #{tile.49}
  %s0 = inlined_call_operand.vmem [shape: f32[32,8], index: 0, kind: input, shape index: {}]
  %s1 = inlined_call_operand.vmem [shape: f32[1,256], index: 1, kind: output, shape index: {}]
  $region1: #{tile.49} parent=0
    #allocation0 [shape = 'u8[8192]{0}', space=vmem, size = 0x2000, scoped, tag = 'scoped mem for output reshape']
    %s2 = smov 3
    %v3 = vld [vmem:[%s0] ss:$16 sm:%s2]
    %vm4 = vcmask 64512
    %5 = vst.msk [vmem:[#allocation0] ss:$8 sm:$0x3] %vm4, %v3
    %s6 = scalar_lea.vmem %s0, 15
    %s7 = smov 3
    %v8 = vld [vmem:[%s6] ss:$16 sm:%s7]
    %9 = vrot.lane.b32.xlu0 %v8, 120
    %v10 = vpop.permute.xlu0 %9
    %vm11 = vcmask 1048512
    %12 = vst.msk [vmem:[#allocation0] ss:$8 sm:$0x3] %vm11, %v10
    %s13 = scalar_lea.vmem %s0, 14
    %s14 = smov 3
    %v15 = vld [vmem:[%s13] ss:$16 sm:%s14]
    %16 = vrot.lane.b32.xlu0 %v15, 112
    %v17 = vpop.permute.xlu0 %16
    %vm18 = vcmask 982912
    %19 = vst.msk [vmem:[#allocation0] ss:$8 sm:$0x3] %vm18, %v17
    %s20 = scalar_lea.vmem %s0, 13
    %s21 = smov 3
    %v22 = vld [vmem:[%s20] ss:$16 sm:%s21]
    %23 = vrot.lane.b32.xlu0 %v22, 104
    %v24 = vpop.permute.xlu0 %23
    %vm25 = vcmask 917312
    %26 = vst.msk [vmem:[#allocation0] ss:$8 sm:$0x3] %vm25, %v24
    %s27 = scalar_lea.vmem %s0, 12
    %s28 = smov 3
    %v29 = vld [vmem:[%s27] ss:$16 sm:%s28]
    %30 = vrot.lane.b32.xlu0 %v29, 96
    %v31 = vpop.permute.xlu0 %30
    %vm32 = vcmask 851712
    %33 = vst.msk [vmem:[#allocation0] ss:$8 sm:$0x3] %vm32, %v31
    %s34 = scalar_lea.vmem %s0, 11
    %s35 = smov 3
    %v36 = vld [vmem:[%s34] ss:$16 sm:%s35]
    %37 = vrot.lane.b32.xlu0 %v36, 88
    %v38 = vpop.permute.xlu0 %37
    %vm39 = vcmask 786112
    %40 = vst.msk [vmem:[#allocation0] ss:$8 sm:$0x3] %vm39, %v38
    %s41 = scalar_lea.vmem %s0, 10
    %s42 = smov 3
    %v43 = vld [vmem:[%s41] ss:$16 sm:%s42]
    %44 = vrot.lane.b32.xlu0 %v43, 80
    %v45 = vpop.permute.xlu0 %44
    %vm46 = vcmask 720512
    %47 = vst.msk [vmem:[#allocation0] ss:$8 sm:$0x3] %vm46, %v45
    %s48 = scalar_lea.vmem %s0, 9
    %s49 = smov 3
    %v50 = vld [vmem:[%s48] ss:$16 sm:%s49]
    %51 = vrot.lane.b32.xlu0 %v50, 72
    %v52 = vpop.permute.xlu0 %51
    %vm53 = vcmask 654912
    %54 = vst.msk [vmem:[#allocation0] ss:$8 sm:$0x3] %vm53, %v52
    %s55 = scalar_lea.vmem %s0, 8
    %s56 = smov 3
    %v57 = vld [vmem:[%s55] ss:$16 sm:%s56]
    %58 = vrot.lane.b32.xlu0 %v57, 64
    %v59 = vpop.permute.xlu0 %58
    %vm60 = vcmask 589312
    %61 = vst.msk [vmem:[#allocation0] ss:$8 sm:$0x3] %vm60, %v59
    %s62 = scalar_lea.vmem %s0, 7
    %s63 = smov 3
    %v64 = vld [vmem:[%s62] ss:$16 sm:%s63]
    %65 = vrot.lane.b32.xlu0 %v64, 56
    %v66 = vpop.permute.xlu0 %65
    %vm67 = vcmask 523712
    %68 = vst.msk [vmem:[#allocation0] ss:$8 sm:$0x3] %vm67, %v66
    %s69 = scalar_lea.vmem %s0, 6
    %s70 = smov 3
    %v71 = vld [vmem:[%s69] ss:$16 sm:%s70]
    %72 = vrot.lane.b32.xlu0 %v71, 48
    %v73 = vpop.permute.xlu0 %72
    %vm74 = vcmask 458112
    %75 = vst.msk [vmem:[#allocation0] ss:$8 sm:$0x3] %vm74, %v73
    %s76 = scalar_lea.vmem %s0, 5
    %s77 = smov 3
    %v78 = vld [vmem:[%s76] ss:$16 sm:%s77]
    %79 = vrot.lane.b32.xlu0 %v78, 40
    %v80 = vpop.permute.xlu0 %79
    %vm81 = vcmask 392512
    %82 = vst.msk [vmem:[#allocation0] ss:$8 sm:$0x3] %vm81, %v80
    %s83 = scalar_lea.vmem %s0, 4
    %s84 = smov 3
    %v85 = vld [vmem:[%s83] ss:$16 sm:%s84]
    %86 = vrot.lane.b32.xlu0 %v85, 32
    %v87 = vpop.permute.xlu0 %86
    %vm88 = vcmask 326912
    %89 = vst.msk [vmem:[#allocation0] ss:$8 sm:$0x3] %vm88, %v87
    %s90 = scalar_lea.vmem %s0, 3
    %s91 = smov 3
    %v92 = vld [vmem:[%s90] ss:$16 sm:%s91]
    %93 = vrot.lane.b32.xlu0 %v92, 24
    %v94 = vpop.permute.xlu0 %93
    %vm95 = vcmask 261312
    %96 = vst.msk [vmem:[#allocation0] ss:$8 sm:$0x3] %vm95, %v94
    %s97 = scalar_lea.vmem %s0, 2
    %s98 = smov 3
    %v99 = vld [vmem:[%s97] ss:$16 sm:%s98]
    %100 = vrot.lane.b32.xlu0 %v99, 16
    %v101 = vpop.permute.xlu0 %100
    %vm102 = vcmask 195712
    %103 = vst.msk [vmem:[#allocation0] ss:$8 sm:$0x3] %vm102, %v101
    %s104 = scalar_lea.vmem %s0, 1
    %s105 = smov 3
    %v106 = vld [vmem:[%s104] ss:$16 sm:%s105]
    %107 = vrot.lane.b32.xlu0 %v106, 8
    %v108 = vpop.permute.xlu0 %107
    %vm109 = vcmask 130112
    %110 = vst.msk [vmem:[#allocation0] ss:$8 sm:$0x3] %vm109, %v108
    %s112 = ssub.s32 2, 1
    %v113 = vld [vmem:[#allocation0] sm:%s112]
    %s115 = ssub.s32 2, 1
    %116 = vst [vmem:[%s1] sm:%s115] %v113
    %s117 = scalar_lea.vmem [#allocation0], 8
    %v118 = vld [vmem:[%s117] sm:%s112]
    %s120 = ssub.s32 2, 1
    %s121 = scalar_lea.vmem %s1, 1
    %122 = vst [vmem:[%s121] sm:%s120] %v118

// kernel: generator_forward.13
$region0: #{generator_forward.13}
  #allocation0 [shape = 'u32[]', space=smem, size = 0x4, offset = 0x4, fixed_abs, tag = 'smem constant byte address 0x4 - core index']
  #allocation1 [shape = 'u32[72,128]{1,0:T(1,128)}', space=vmem, size = 0x9000, scoped, tag = 'internal scratch']
  %s0 = inlined_call_operand.vmem [shape: f32[64,256], index: 0, kind: input, shape index: {}]
  %s1 = inlined_call_operand.vmem [shape: bf16[256,2048], index: 1, kind: input, shape index: {}]
  %s2 = inlined_call_operand.vmem [shape: f32[1,256], index: 2, kind: input, shape index: {}]
  %s3 = inlined_call_operand.vmem [shape: f32[1,2048], index: 3, kind: input, shape index: {}]
  %s4 = inlined_call_operand.vmem [shape: f32[64,2048], index: 4, kind: output, shape index: {}]
  %s5 = sld [smem:[#allocation0]]
  $region26: #{generator_forward.13} parent=0
    _
  %s7 = ssub.s32 1, %s5
  %s8 = scalar_select 0, %s7, %s5
  // Predicated region
  $region2: #{generator_forward.13} parent=0 // pred_check
    _
  $region3: #{generator_forward.13} parent=0 // pred_check_branch
    %10 = sbr.rel (0) target = $region5
  $region4: #{generator_forward.13} parent=0 // pred_region
    _
  $region5: #{generator_forward.13} parent=0 // pred_fallthru
    _
  // Predicated region
  $region6: #{generator_forward.13} parent=0 // pred_check
    _
  $region7: #{generator_forward.13} parent=0 // pred_check_branch
    %12 = sbr.rel (0) target = $region9
  $region8: #{generator_forward.13} parent=0 // pred_region
    _
  $region9: #{generator_forward.13} parent=0 // pred_fallthru
    _
  // Predicated region
  $region10: #{generator_forward.13} parent=0 // pred_check
    _
  $region11: #{generator_forward.13} parent=0 // pred_check_branch
    %14 = sbr.rel (0) target = $region13
  $region12: #{generator_forward.13} parent=0 // pred_region
    _
  $region13: #{generator_forward.13} parent=0 // pred_fallthru
    _
  // Predicated region
  $region14: #{generator_forward.13} parent=0 // pred_check
    _
  $region15: #{generator_forward.13} parent=0 // pred_check_branch
    %16 = sbr.rel (0) target = $region17
  $region16: #{generator_forward.13} parent=0 // pred_region
    _
  $region17: #{generator_forward.13} parent=0 // pred_fallthru
    _
  %v17 = vld [vmem:[%s0] sm:$0xff]
  %v18 = vld [vmem:[%s0 + $0x8] sm:$0xff]
  %v19 = vld [vmem:[%s0 + $0x10] sm:$0xff]
  %v20 = vld [vmem:[%s0 + $0x18] sm:$0xff]
  %v21 = vld [vmem:[%s0 + $0x20] sm:$0xff]
  %v22 = vld [vmem:[%s0 + $0x28] sm:$0xff]
  %v23 = vld [vmem:[%s0 + $0x30] sm:$0xff]
  %v24 = vld [vmem:[%s0 + $0x38] sm:$0xff]
  %v25 = vld [vmem:[%s0 + $0x40] sm:$0xff]
  %v26 = vld [vmem:[%s0 + $0x48] sm:$0xff]
  %v27 = vld [vmem:[%s0 + $0x50] sm:$0xff]
  %v28 = vld [vmem:[%s0 + $0x58] sm:$0xff]
  %v29 = vld [vmem:[%s0 + $0x60] sm:$0xff]
  %v30 = vld [vmem:[%s0 + $0x68] sm:$0xff]
  %v31 = vld [vmem:[%s0 + $0x70] sm:$0xff]
  %v32 = vld [vmem:[%s0 + $0x78] sm:$0xff]
  %v33 = vld [vmem:[%s2] sm:$0x3]
  %v35 = vperm.slane %v33, 0
  %v36 = vperm.slane %v33, 1
  %v39 = vadd.f32 %v17, %v35
  %v40 = vadd.f32 %v18, %v36
  %v41 = vadd.f32 %v19, %v35
  %v42 = vadd.f32 %v20, %v36
  %v43 = vadd.f32 %v21, %v35
  %v44 = vadd.f32 %v22, %v36
  %v45 = vadd.f32 %v23, %v35
  %v46 = vadd.f32 %v24, %v36
  %v47 = vadd.f32 %v25, %v35
  %v48 = vadd.f32 %v26, %v36
  %v49 = vadd.f32 %v27, %v35
  %v50 = vadd.f32 %v28, %v36
  %v51 = vadd.f32 %v29, %v35
  %v52 = vadd.f32 %v30, %v36
  %v53 = vadd.f32 %v31, %v35
  %v54 = vadd.f32 %v32, %v36
  %vm55 = vcmp.ge.f32.partialorder %v39, 0.0
  %vm56 = vcmp.ge.f32.partialorder %v40, 0.0
  %vm57 = vcmp.ge.f32.partialorder %v41, 0.0
  %vm58 = vcmp.ge.f32.partialorder %v42, 0.0
  %vm59 = vcmp.ge.f32.partialorder %v43, 0.0
  %vm60 = vcmp.ge.f32.partialorder %v44, 0.0
  %vm61 = vcmp.ge.f32.partialorder %v45, 0.0
  %vm62 = vcmp.ge.f32.partialorder %v46, 0.0
  %vm63 = vcmp.ge.f32.partialorder %v47, 0.0
  %vm64 = vcmp.ge.f32.partialorder %v48, 0.0
  %vm65 = vcmp.ge.f32.partialorder %v49, 0.0
  %vm66 = vcmp.ge.f32.partialorder %v50, 0.0
  %vm67 = vcmp.ge.f32.partialorder %v51, 0.0
  %vm68 = vcmp.ge.f32.partialorder %v52, 0.0
  %vm69 = vcmp.ge.f32.partialorder %v53, 0.0
  %vm70 = vcmp.ge.f32.partialorder %v54, 0.0
  %v71 = vmul.f32 %v39, 0.2
  %v72 = vmul.f32 %v40, 0.2
  %v73 = vmul.f32 %v41, 0.2
  %v74 = vmul.f32 %v42, 0.2
  %v75 = vmul.f32 %v43, 0.2
  %v76 = vmul.f32 %v44, 0.2
  %v77 = vmul.f32 %v45, 0.2
  %v78 = vmul.f32 %v46, 0.2
  %v79 = vmul.f32 %v47, 0.2
  %v80 = vmul.f32 %v48, 0.2
  %v81 = vmul.f32 %v49, 0.2
  %v82 = vmul.f32 %v50, 0.2
  %v83 = vmul.f32 %v51, 0.2
  %v84 = vmul.f32 %v52, 0.2
  %v85 = vmul.f32 %v53, 0.2
  %v86 = vmul.f32 %v54, 0.2
  %v87 = vsel %vm55, %v39, %v71
  %v88 = vsel %vm56, %v40, %v72
  %v89 = vsel %vm57, %v41, %v73
  %v90 = vsel %vm58, %v42, %v74
  %v91 = vsel %vm59, %v43, %v75
  %v92 = vsel %vm60, %v44, %v76
  %v93 = vsel %vm61, %v45, %v77
  %v94 = vsel %vm62, %v46, %v78
  %v95 = vsel %vm63, %v47, %v79
  %v96 = vsel %vm64, %v48, %v80
  %v97 = vsel %vm65, %v49, %v81
  %v98 = vsel %vm66, %v50, %v82
  %v99 = vsel %vm67, %v51, %v83
  %v100 = vsel %vm68, %v52, %v84
  %v101 = vsel %vm69, %v53, %v85
  %v102 = vsel %vm70, %v54, %v86
  %v103 = vpack.c.bf16 %v89, %v87
  %v104 = vpack.c.bf16 %v90, %v88
  %v105 = vpack.c.bf16 %v93, %v91
  %v106 = vpack.c.bf16 %v94, %v92
  %v107 = vpack.c.bf16 %v97, %v95
  %v108 = vpack.c.bf16 %v98, %v96
  %v109 = vpack.c.bf16 %v101, %v99
  %v110 = vpack.c.bf16 %v102, %v100
  %v111 = vld [vmem:[%s1] sm:$0xff]
  %v112 = vld [vmem:[%s1 + $0x8] sm:$0xff]
  %v113 = vld [vmem:[%s1 + $0x10] sm:$0xff]
  %v114 = vld [vmem:[%s1 + $0x18] sm:$0xff]
  %v115 = vld [vmem:[%s1 + $0x20] sm:$0xff]
  %v116 = vld [vmem:[%s1 + $0x28] sm:$0xff]
  %v117 = vld [vmem:[%s1 + $0x30] sm:$0xff]
  %v118 = vld [vmem:[%s1 + $0x38] sm:$0xff]
  %v119 = vld [vmem:[%s1 + $0x40] sm:$0xff]
  %v120 = vld [vmem:[%s1 + $0x48] sm:$0xff]
  %v121 = vld [vmem:[%s1 + $0x50] sm:$0xff]
  %v122 = vld [vmem:[%s1 + $0x58] sm:$0xff]
  %v123 = vld [vmem:[%s1 + $0x60] sm:$0xff]
  %v124 = vld [vmem:[%s1 + $0x68] sm:$0xff]
  %v125 = vld [vmem:[%s1 + $0x70] sm:$0xff]
  %v126 = vld [vmem:[%s1 + $0x78] sm:$0xff]
  %v127 = vld [vmem:[%s1 + $0x80] sm:$0xff]
  %v128 = vld [vmem:[%s1 + $0x88] sm:$0xff]
  %v129 = vld [vmem:[%s1 + $0x90] sm:$0xff]
  %v130 = vld [vmem:[%s1 + $0x98] sm:$0xff]
  %v131 = vld [vmem:[%s1 + $0xa0] sm:$0xff]
  %v132 = vld [vmem:[%s1 + $0xa8] sm:$0xff]
  %v133 = vld [vmem:[%s1 + $0xb0] sm:$0xff]
  %v134 = vld [vmem:[%s1 + $0xb8] sm:$0xff]
  %v135 = vld [vmem:[%s1 + $0xc0] sm:$0xff]
  %v136 = vld [vmem:[%s1 + $0xc8] sm:$0xff]
  %v137 = vld [vmem:[%s1 + $0xd0] sm:$0xff]
  %v138 = vld [vmem:[%s1 + $0xd8] sm:$0xff]
  %v139 = vld [vmem:[%s1 + $0xe0] sm:$0xff]
  %v140 = vld [vmem:[%s1 + $0xe8] sm:$0xff]
  %v141 = vld [vmem:[%s1 + $0xf0] sm:$0xff]
  %v142 = vld [vmem:[%s1 + $0xf8] sm:$0xff]
  %v143 = vld [vmem:[%s1 + $0x100] sm:$0xff]
  %v144 = vld [vmem:[%s1 + $0x108] sm:$0xff]
  %v145 = vld [vmem:[%s1 + $0x110] sm:$0xff]
  %v146 = vld [vmem:[%s1 + $0x118] sm:$0xff]
  %v147 = vld [vmem:[%s1 + $0x120] sm:$0xff]
  %v148 = vld [vmem:[%s1 + $0x128] sm:$0xff]
  %v149 = vld [vmem:[%s1 + $0x130] sm:$0xff]
  %v150 = vld [vmem:[%s1 + $0x138] sm:$0xff]
  %v151 = vld [vmem:[%s1 + $0x140] sm:$0xff]
  %v152 = vld [vmem:[%s1 + $0x148] sm:$0xff]
  %v153 = vld [vmem:[%s1 + $0x150] sm:$0xff]
  %v154 = vld [vmem:[%s1 + $0x158] sm:$0xff]
  %v155 = vld [vmem:[%s1 + $0x160] sm:$0xff]
  %v156 = vld [vmem:[%s1 + $0x168] sm:$0xff]
  %v157 = vld [vmem:[%s1 + $0x170] sm:$0xff]
  %v158 = vld [vmem:[%s1 + $0x178] sm:$0xff]
  %v159 = vld [vmem:[%s1 + $0x180] sm:$0xff]
  %v160 = vld [vmem:[%s1 + $0x188] sm:$0xff]
  %v161 = vld [vmem:[%s1 + $0x190] sm:$0xff]
  %v162 = vld [vmem:[%s1 + $0x198] sm:$0xff]
  %v163 = vld [vmem:[%s1 + $0x1a0] sm:$0xff]
  %v164 = vld [vmem:[%s1 + $0x1a8] sm:$0xff]
  %v165 = vld [vmem:[%s1 + $0x1b0] sm:$0xff]
  %v166 = vld [vmem:[%s1 + $0x1b8] sm:$0xff]
  %v167 = vld [vmem:[%s1 + $0x1c0] sm:$0xff]
  %v168 = vld [vmem:[%s1 + $0x1c8] sm:$0xff]
  %v169 = vld [vmem:[%s1 + $0x1d0] sm:$0xff]
  %v170 = vld [vmem:[%s1 + $0x1d8] sm:$0xff]
  %v171 = vld [vmem:[%s1 + $0x1e0] sm:$0xff]
  %v172 = vld [vmem:[%s1 + $0x1e8] sm:$0xff]
  %v173 = vld [vmem:[%s1 + $0x1f0] sm:$0xff]
  %v174 = vld [vmem:[%s1 + $0x1f8] sm:$0xff]
  %v175 = vld [vmem:[%s1 + $0x200] sm:$0xff]
  %v176 = vld [vmem:[%s1 + $0x208] sm:$0xff]
  %v177 = vld [vmem:[%s1 + $0x210] sm:$0xff]
  %v178 = vld [vmem:[%s1 + $0x218] sm:$0xff]
  %v179 = vld [vmem:[%s1 + $0x220] sm:$0xff]
  %v180 = vld [vmem:[%s1 + $0x228] sm:$0xff]
  %v181 = vld [vmem:[%s1 + $0x230] sm:$0xff]
  %v182 = vld [vmem:[%s1 + $0x238] sm:$0xff]
  %v183 = vld [vmem:[%s1 + $0x240] sm:$0xff]
  %v184 = vld [vmem:[%s1 + $0x248] sm:$0xff]
  %v185 = vld [vmem:[%s1 + $0x250] sm:$0xff]
  %v186 = vld [vmem:[%s1 + $0x258] sm:$0xff]
  %v187 = vld [vmem:[%s1 + $0x260] sm:$0xff]
  %v188 = vld [vmem:[%s1 + $0x268] sm:$0xff]
  %v189 = vld [vmem:[%s1 + $0x270] sm:$0xff]
  %v190 = vld [vmem:[%s1 + $0x278] sm:$0xff]
  %v191 = vld [vmem:[%s1 + $0x280] sm:$0xff]
  %v192 = vld [vmem:[%s1 + $0x288] sm:$0xff]
  %v193 = vld [vmem:[%s1 + $0x290] sm:$0xff]
  %v194 = vld [vmem:[%s1 + $0x298] sm:$0xff]
  %v195 = vld [vmem:[%s1 + $0x2a0] sm:$0xff]
  %v196 = vld [vmem:[%s1 + $0x2a8] sm:$0xff]
  %v197 = vld [vmem:[%s1 + $0x2b0] sm:$0xff]
  %v198 = vld [vmem:[%s1 + $0x2b8] sm:$0xff]
  %v199 = vld [vmem:[%s1 + $0x2c0] sm:$0xff]
  %v200 = vld [vmem:[%s1 + $0x2c8] sm:$0xff]
  %v201 = vld [vmem:[%s1 + $0x2d0] sm:$0xff]
  %v202 = vld [vmem:[%s1 + $0x2d8] sm:$0xff]
  %v203 = vld [vmem:[%s1 + $0x2e0] sm:$0xff]
  %v204 = vld [vmem:[%s1 + $0x2e8] sm:$0xff]
  %v205 = vld [vmem:[%s1 + $0x2f0] sm:$0xff]
  %v206 = vld [vmem:[%s1 + $0x2f8] sm:$0xff]
  %v207 = vld [vmem:[%s1 + $0x300] sm:$0xff]
  %v208 = vld [vmem:[%s1 + $0x308] sm:$0xff]
  %v209 = vld [vmem:[%s1 + $0x310] sm:$0xff]
  %v210 = vld [vmem:[%s1 + $0x318] sm:$0xff]
  %v211 = vld [vmem:[%s1 + $0x320] sm:$0xff]
  %v212 = vld [vmem:[%s1 + $0x328] sm:$0xff]
  %v213 = vld [vmem:[%s1 + $0x330] sm:$0xff]
  %v214 = vld [vmem:[%s1 + $0x338] sm:$0xff]
  %v215 = vld [vmem:[%s1 + $0x340] sm:$0xff]
  %v216 = vld [vmem:[%s1 + $0x348] sm:$0xff]
  %v217 = vld [vmem:[%s1 + $0x350] sm:$0xff]
  %v218 = vld [vmem:[%s1 + $0x358] sm:$0xff]
  %v219 = vld [vmem:[%s1 + $0x360] sm:$0xff]
  %v220 = vld [vmem:[%s1 + $0x368] sm:$0xff]
  %v221 = vld [vmem:[%s1 + $0x370] sm:$0xff]
  %v222 = vld [vmem:[%s1 + $0x378] sm:$0xff]
  %v223 = vld [vmem:[%s1 + $0x380] sm:$0xff]
  %v224 = vld [vmem:[%s1 + $0x388] sm:$0xff]
  %v225 = vld [vmem:[%s1 + $0x390] sm:$0xff]
  %v226 = vld [vmem:[%s1 + $0x398] sm:$0xff]
  %v227 = vld [vmem:[%s1 + $0x3a0] sm:$0xff]
  %v228 = vld [vmem:[%s1 + $0x3a8] sm:$0xff]
  %v229 = vld [vmem:[%s1 + $0x3b0] sm:$0xff]
  %v230 = vld [vmem:[%s1 + $0x3b8] sm:$0xff]
  %v231 = vld [vmem:[%s1 + $0x3c0] sm:$0xff]
  %v232 = vld [vmem:[%s1 + $0x3c8] sm:$0xff]
  %v233 = vld [vmem:[%s1 + $0x3d0] sm:$0xff]
  %v234 = vld [vmem:[%s1 + $0x3d8] sm:$0xff]
  %v235 = vld [vmem:[%s1 + $0x3e0] sm:$0xff]
  %v236 = vld [vmem:[%s1 + $0x3e8] sm:$0xff]
  %v237 = vld [vmem:[%s1 + $0x3f0] sm:$0xff]
  %v238 = vld [vmem:[%s1 + $0x3f8] sm:$0xff]
  %v239 = vld [vmem:[%s1 + $0x400] sm:$0xff]
  %v240 = vld [vmem:[%s1 + $0x408] sm:$0xff]
  %v241 = vld [vmem:[%s1 + $0x410] sm:$0xff]
  %v242 = vld [vmem:[%s1 + $0x418] sm:$0xff]
  %v243 = vld [vmem:[%s1 + $0x420] sm:$0xff]
  %v244 = vld [vmem:[%s1 + $0x428] sm:$0xff]
  %v245 = vld [vmem:[%s1 + $0x430] sm:$0xff]
  %v246 = vld [vmem:[%s1 + $0x438] sm:$0xff]
  %v247 = vld [vmem:[%s1 + $0x440] sm:$0xff]
  %v248 = vld [vmem:[%s1 + $0x448] sm:$0xff]
  %v249 = vld [vmem:[%s1 + $0x450] sm:$0xff]
  %v250 = vld [vmem:[%s1 + $0x458] sm:$0xff]
  %v251 = vld [vmem:[%s1 + $0x460] sm:$0xff]
  %v252 = vld [vmem:[%s1 + $0x468] sm:$0xff]
  %v253 = vld [vmem:[%s1 + $0x470] sm:$0xff]
  %v254 = vld [vmem:[%s1 + $0x478] sm:$0xff]
  %v255 = vld [vmem:[%s1 + $0x480] sm:$0xff]
  %v256 = vld [vmem:[%s1 + $0x488] sm:$0xff]
  %v257 = vld [vmem:[%s1 + $0x490] sm:$0xff]
  %v258 = vld [vmem:[%s1 + $0x498] sm:$0xff]
  %v259 = vld [vmem:[%s1 + $0x4a0] sm:$0xff]
  %v260 = vld [vmem:[%s1 + $0x4a8] sm:$0xff]
  %v261 = vld [vmem:[%s1 + $0x4b0] sm:$0xff]
  %v262 = vld [vmem:[%s1 + $0x4b8] sm:$0xff]
  %v263 = vld [vmem:[%s1 + $0x4c0] sm:$0xff]
  %v264 = vld [vmem:[%s1 + $0x4c8] sm:$0xff]
  %v265 = vld [vmem:[%s1 + $0x4d0] sm:$0xff]
  %v266 = vld [vmem:[%s1 + $0x4d8] sm:$0xff]
  %v267 = vld [vmem:[%s1 + $0x4e0] sm:$0xff]
  %v268 = vld [vmem:[%s1 + $0x4e8] sm:$0xff]
  %v269 = vld [vmem:[%s1 + $0x4f0] sm:$0xff]
  %v270 = vld [vmem:[%s1 + $0x4f8] sm:$0xff]
  %v271 = vld [vmem:[%s1 + $0x500] sm:$0xff]
  %v272 = vld [vmem:[%s1 + $0x508] sm:$0xff]
  %v273 = vld [vmem:[%s1 + $0x510] sm:$0xff]
  %v274 = vld [vmem:[%s1 + $0x518] sm:$0xff]
  %v275 = vld [vmem:[%s1 + $0x520] sm:$0xff]
  %v276 = vld [vmem:[%s1 + $0x528] sm:$0xff]
  %v277 = vld [vmem:[%s1 + $0x530] sm:$0xff]
  %v278 = vld [vmem:[%s1 + $0x538] sm:$0xff]
  %v279 = vld [vmem:[%s1 + $0x540] sm:$0xff]
  %v280 = vld [vmem:[%s1 + $0x548] sm:$0xff]
  %v281 = vld [vmem:[%s1 + $0x550] sm:$0xff]
  %v282 = vld [vmem:[%s1 + $0x558] sm:$0xff]
  %v283 = vld [vmem:[%s1 + $0x560] sm:$0xff]
  %v284 = vld [vmem:[%s1 + $0x568] sm:$0xff]
  %v285 = vld [vmem:[%s1 + $0x570] sm:$0xff]
  %v286 = vld [vmem:[%s1 + $0x578] sm:$0xff]
  %v287 = vld [vmem:[%s1 + $0x580] sm:$0xff]
  %v288 = vld [vmem:[%s1 + $0x588] sm:$0xff]
  %v289 = vld [vmem:[%s1 + $0x590] sm:$0xff]
  %v290 = vld [vmem:[%s1 + $0x598] sm:$0xff]
  %v291 = vld [vmem:[%s1 + $0x5a0] sm:$0xff]
  %v292 = vld [vmem:[%s1 + $0x5a8] sm:$0xff]
  %v293 = vld [vmem:[%s1 + $0x5b0] sm:$0xff]
  %v294 = vld [vmem:[%s1 + $0x5b8] sm:$0xff]
  %v295 = vld [vmem:[%s1 + $0x5c0] sm:$0xff]
  %v296 = vld [vmem:[%s1 + $0x5c8] sm:$0xff]
  %v297 = vld [vmem:[%s1 + $0x5d0] sm:$0xff]
  %v298 = vld [vmem:[%s1 + $0x5d8] sm:$0xff]
  %v299 = vld [vmem:[%s1 + $0x5e0] sm:$0xff]
  %v300 = vld [vmem:[%s1 + $0x5e8] sm:$0xff]
  %v301 = vld [vmem:[%s1 + $0x5f0] sm:$0xff]
  %v302 = vld [vmem:[%s1 + $0x5f8] sm:$0xff]
  %v303 = vld [vmem:[%s1 + $0x600] sm:$0xff]
  %v304 = vld [vmem:[%s1 + $0x608] sm:$0xff]
  %v305 = vld [vmem:[%s1 + $0x610] sm:$0xff]
  %v306 = vld [vmem:[%s1 + $0x618] sm:$0xff]
  %v307 = vld [vmem:[%s1 + $0x620] sm:$0xff]
  %v308 = vld [vmem:[%s1 + $0x628] sm:$0xff]
  %v309 = vld [vmem:[%s1 + $0x630] sm:$0xff]
  %v310 = vld [vmem:[%s1 + $0x638] sm:$0xff]
  %v311 = vld [vmem:[%s1 + $0x640] sm:$0xff]
  %v312 = vld [vmem:[%s1 + $0x648] sm:$0xff]
  %v313 = vld [vmem:[%s1 + $0x650] sm:$0xff]
  %v314 = vld [vmem:[%s1 + $0x658] sm:$0xff]
  %v315 = vld [vmem:[%s1 + $0x660] sm:$0xff]
  %v316 = vld [vmem:[%s1 + $0x668] sm:$0xff]
  %v317 = vld [vmem:[%s1 + $0x670] sm:$0xff]
  %v318 = vld [vmem:[%s1 + $0x678] sm:$0xff]
  %v319 = vld [vmem:[%s1 + $0x680] sm:$0xff]
  %v320 = vld [vmem:[%s1 + $0x688] sm:$0xff]
  %v321 = vld [vmem:[%s1 + $0x690] sm:$0xff]
  %v322 = vld [vmem:[%s1 + $0x698] sm:$0xff]
  %v323 = vld [vmem:[%s1 + $0x6a0] sm:$0xff]
  %v324 = vld [vmem:[%s1 + $0x6a8] sm:$0xff]
  %v325 = vld [vmem:[%s1 + $0x6b0] sm:$0xff]
  %v326 = vld [vmem:[%s1 + $0x6b8] sm:$0xff]
  %v327 = vld [vmem:[%s1 + $0x6c0] sm:$0xff]
  %v328 = vld [vmem:[%s1 + $0x6c8] sm:$0xff]
  %v329 = vld [vmem:[%s1 + $0x6d0] sm:$0xff]
  %v330 = vld [vmem:[%s1 + $0x6d8] sm:$0xff]
  %v331 = vld [vmem:[%s1 + $0x6e0] sm:$0xff]
  %v332 = vld [vmem:[%s1 + $0x6e8] sm:$0xff]
  %v333 = vld [vmem:[%s1 + $0x6f0] sm:$0xff]
  %v334 = vld [vmem:[%s1 + $0x6f8] sm:$0xff]
  %v335 = vld [vmem:[%s1 + $0x700] sm:$0xff]
  %v336 = vld [vmem:[%s1 + $0x708] sm:$0xff]
  %v337 = vld [vmem:[%s1 + $0x710] sm:$0xff]
  %v338 = vld [vmem:[%s1 + $0x718] sm:$0xff]
  %v339 = vld [vmem:[%s1 + $0x720] sm:$0xff]
  %v340 = vld [vmem:[%s1 + $0x728] sm:$0xff]
  %v341 = vld [vmem:[%s1 + $0x730] sm:$0xff]
  %v342 = vld [vmem:[%s1 + $0x738] sm:$0xff]
  %v343 = vld [vmem:[%s1 + $0x740] sm:$0xff]
  %v344 = vld [vmem:[%s1 + $0x748] sm:$0xff]
  %v345 = vld [vmem:[%s1 + $0x750] sm:$0xff]
  %v346 = vld [vmem:[%s1 + $0x758] sm:$0xff]
  %v347 = vld [vmem:[%s1 + $0x760] sm:$0xff]
  %v348 = vld [vmem:[%s1 + $0x768] sm:$0xff]
  %v349 = vld [vmem:[%s1 + $0x770] sm:$0xff]
  %v350 = vld [vmem:[%s1 + $0x778] sm:$0xff]
  %v351 = vld [vmem:[%s1 + $0x780] sm:$0xff]
  %v352 = vld [vmem:[%s1 + $0x788] sm:$0xff]
  %v353 = vld [vmem:[%s1 + $0x790] sm:$0xff]
  %v354 = vld [vmem:[%s1 + $0x798] sm:$0xff]
  %v355 = vld [vmem:[%s1 + $0x7a0] sm:$0xff]
  %v356 = vld [vmem:[%s1 + $0x7a8] sm:$0xff]
  %v357 = vld [vmem:[%s1 + $0x7b0] sm:$0xff]
  %v358 = vld [vmem:[%s1 + $0x7b8] sm:$0xff]
  %v359 = vld [vmem:[%s1 + $0x7c0] sm:$0xff]
  %v360 = vld [vmem:[%s1 + $0x7c8] sm:$0xff]
  %v361 = vld [vmem:[%s1 + $0x7d0] sm:$0xff]
  %v362 = vld [vmem:[%s1 + $0x7d8] sm:$0xff]
  %v363 = vld [vmem:[%s1 + $0x7e0] sm:$0xff]
  %v364 = vld [vmem:[%s1 + $0x7e8] sm:$0xff]
  %v365 = vld [vmem:[%s1 + $0x7f0] sm:$0xff]
  %v366 = vld [vmem:[%s1 + $0x7f8] sm:$0xff]
  %v623 = vunpack.c.l.b16 %v111
  %v624 = vunpack.c.h.b16 %v111
  %v625 = vunpack.c.l.b16 %v112
  %v626 = vunpack.c.h.b16 %v112
  %v627 = vunpack.c.l.b16 %v113
  %v628 = vunpack.c.h.b16 %v113
  %v629 = vunpack.c.l.b16 %v114
  %v630 = vunpack.c.h.b16 %v114
  %v631 = vunpack.c.l.b16 %v115
  %v632 = vunpack.c.h.b16 %v115
  %v633 = vunpack.c.l.b16 %v116
  %v634 = vunpack.c.h.b16 %v116
  %v635 = vunpack.c.l.b16 %v117
  %v636 = vunpack.c.h.b16 %v117
  %v637 = vunpack.c.l.b16 %v118
  %v638 = vunpack.c.h.b16 %v118
  %v639 = vunpack.c.l.b16 %v119
  %v640 = vunpack.c.h.b16 %v119
  %v641 = vunpack.c.l.b16 %v120
  %v642 = vunpack.c.h.b16 %v120
  %v643 = vunpack.c.l.b16 %v121
  %v644 = vunpack.c.h.b16 %v121
  %v645 = vunpack.c.l.b16 %v122
  %v646 = vunpack.c.h.b16 %v122
  %v647 = vunpack.c.l.b16 %v123
  %v648 = vunpack.c.h.b16 %v123
  %v649 = vunpack.c.l.b16 %v124
  %v650 = vunpack.c.h.b16 %v124
  %v651 = vunpack.c.l.b16 %v125
  %v652 = vunpack.c.h.b16 %v125
  %v653 = vunpack.c.l.b16 %v126
  %v654 = vunpack.c.h.b16 %v126
  %v655 = vunpack.c.l.b16 %v127
  %v656 = vunpack.c.h.b16 %v127
  %v657 = vunpack.c.l.b16 %v128
  %v658 = vunpack.c.h.b16 %v128
  %v659 = vunpack.c.l.b16 %v129
  %v660 = vunpack.c.h.b16 %v129
  %v661 = vunpack.c.l.b16 %v130
  %v662 = vunpack.c.h.b16 %v130
  %v663 = vunpack.c.l.b16 %v131
  %v664 = vunpack.c.h.b16 %v131
  %v665 = vunpack.c.l.b16 %v132
  %v666 = vunpack.c.h.b16 %v132
  %v667 = vunpack.c.l.b16 %v133
  %v668 = vunpack.c.h.b16 %v133
  %v669 = vunpack.c.l.b16 %v134
  %v670 = vunpack.c.h.b16 %v134
  %v671 = vunpack.c.l.b16 %v135
  %v672 = vunpack.c.h.b16 %v135
  %v673 = vunpack.c.l.b16 %v136
  %v674 = vunpack.c.h.b16 %v136
  %v675 = vunpack.c.l.b16 %v137
  %v676 = vunpack.c.h.b16 %v137
  %v677 = vunpack.c.l.b16 %v138
  %v678 = vunpack.c.h.b16 %v138
  %v679 = vunpack.c.l.b16 %v139
  %v680 = vunpack.c.h.b16 %v139
  %v681 = vunpack.c.l.b16 %v140
  %v682 = vunpack.c.h.b16 %v140
  %v683 = vunpack.c.l.b16 %v141
  %v684 = vunpack.c.h.b16 %v141
  %v685 = vunpack.c.l.b16 %v142
  %v686 = vunpack.c.h.b16 %v142
  %v687 = vunpack.c.l.b16 %v143
  %v688 = vunpack.c.h.b16 %v143
  %v689 = vunpack.c.l.b16 %v144
  %v690 = vunpack.c.h.b16 %v144
  %v691 = vunpack.c.l.b16 %v145
  %v692 = vunpack.c.h.b16 %v145
  %v693 = vunpack.c.l.b16 %v146
  %v694 = vunpack.c.h.b16 %v146
  %v695 = vunpack.c.l.b16 %v147
  %v696 = vunpack.c.h.b16 %v147
  %v697 = vunpack.c.l.b16 %v148
  %v698 = vunpack.c.h.b16 %v148
  %v699 = vunpack.c.l.b16 %v149
  %v700 = vunpack.c.h.b16 %v149
  %v701 = vunpack.c.l.b16 %v150
  %v702 = vunpack.c.h.b16 %v150
  %v703 = vunpack.c.l.b16 %v151
  %v704 = vunpack.c.h.b16 %v151
  %v705 = vunpack.c.l.b16 %v152
  %v706 = vunpack.c.h.b16 %v152
  %v707 = vunpack.c.l.b16 %v153
  %v708 = vunpack.c.h.b16 %v153
  %v709 = vunpack.c.l.b16 %v154
  %v710 = vunpack.c.h.b16 %v154
  %v711 = vunpack.c.l.b16 %v155
  %v712 = vunpack.c.h.b16 %v155
  %v713 = vunpack.c.l.b16 %v156
  %v714 = vunpack.c.h.b16 %v156
  %v715 = vunpack.c.l.b16 %v157
  %v716 = vunpack.c.h.b16 %v157
  %v717 = vunpack.c.l.b16 %v158
  %v718 = vunpack.c.h.b16 %v158
  %v719 = vunpack.c.l.b16 %v159
  %v720 = vunpack.c.h.b16 %v159
  %v721 = vunpack.c.l.b16 %v160
  %v722 = vunpack.c.h.b16 %v160
  %v723 = vunpack.c.l.b16 %v161
  %v724 = vunpack.c.h.b16 %v161
  %v725 = vunpack.c.l.b16 %v162
  %v726 = vunpack.c.h.b16 %v162
  %v727 = vunpack.c.l.b16 %v163
  %v728 = vunpack.c.h.b16 %v163
  %v729 = vunpack.c.l.b16 %v164
  %v730 = vunpack.c.h.b16 %v164
  %v731 = vunpack.c.l.b16 %v165
  %v732 = vunpack.c.h.b16 %v165
  %v733 = vunpack.c.l.b16 %v166
  %v734 = vunpack.c.h.b16 %v166
  %v735 = vunpack.c.l.b16 %v167
  %v736 = vunpack.c.h.b16 %v167
  %v737 = vunpack.c.l.b16 %v168
  %v738 = vunpack.c.h.b16 %v168
  %v739 = vunpack.c.l.b16 %v169
  %v740 = vunpack.c.h.b16 %v169
  %v741 = vunpack.c.l.b16 %v170
  %v742 = vunpack.c.h.b16 %v170
  %v743 = vunpack.c.l.b16 %v171
  %v744 = vunpack.c.h.b16 %v171
  %v745 = vunpack.c.l.b16 %v172
  %v746 = vunpack.c.h.b16 %v172
  %v747 = vunpack.c.l.b16 %v173
  %v748 = vunpack.c.h.b16 %v173
  %v749 = vunpack.c.l.b16 %v174
  %v750 = vunpack.c.h.b16 %v174
  %v751 = vunpack.c.l.b16 %v175
  %v752 = vunpack.c.h.b16 %v175
  %v753 = vunpack.c.l.b16 %v176
  %v754 = vunpack.c.h.b16 %v176
  %v755 = vunpack.c.l.b16 %v177
  %v756 = vunpack.c.h.b16 %v177
  %v757 = vunpack.c.l.b16 %v178
  %v758 = vunpack.c.h.b16 %v178
  %v759 = vunpack.c.l.b16 %v179
  %v760 = vunpack.c.h.b16 %v179
  %v761 = vunpack.c.l.b16 %v180
  %v762 = vunpack.c.h.b16 %v180
  %v763 = vunpack.c.l.b16 %v181
  %v764 = vunpack.c.h.b16 %v181
  %v765 = vunpack.c.l.b16 %v182
  %v766 = vunpack.c.h.b16 %v182
  %v767 = vunpack.c.l.b16 %v183
  %v768 = vunpack.c.h.b16 %v183
  %v769 = vunpack.c.l.b16 %v184
  %v770 = vunpack.c.h.b16 %v184
  %v771 = vunpack.c.l.b16 %v185
  %v772 = vunpack.c.h.b16 %v185
  %v773 = vunpack.c.l.b16 %v186
  %v774 = vunpack.c.h.b16 %v186
  %v775 = vunpack.c.l.b16 %v187
  %v776 = vunpack.c.h.b16 %v187
  %v777 = vunpack.c.l.b16 %v188
  %v778 = vunpack.c.h.b16 %v188
  %v779 = vunpack.c.l.b16 %v189
  %v780 = vunpack.c.h.b16 %v189
  %v781 = vunpack.c.l.b16 %v190
  %v782 = vunpack.c.h.b16 %v190
  %v783 = vunpack.c.l.b16 %v191
  %v784 = vunpack.c.h.b16 %v191
  %v785 = vunpack.c.l.b16 %v192
  %v786 = vunpack.c.h.b16 %v192
  %v787 = vunpack.c.l.b16 %v193
  %v788 = vunpack.c.h.b16 %v193
  %v789 = vunpack.c.l.b16 %v194
  %v790 = vunpack.c.h.b16 %v194
  %v791 = vunpack.c.l.b16 %v195
  %v792 = vunpack.c.h.b16 %v195
  %v793 = vunpack.c.l.b16 %v196
  %v794 = vunpack.c.h.b16 %v196
  %v795 = vunpack.c.l.b16 %v197
  %v796 = vunpack.c.h.b16 %v197
  %v797 = vunpack.c.l.b16 %v198
  %v798 = vunpack.c.h.b16 %v198
  %v799 = vunpack.c.l.b16 %v199
  %v800 = vunpack.c.h.b16 %v199
  %v801 = vunpack.c.l.b16 %v200
  %v802 = vunpack.c.h.b16 %v200
  %v803 = vunpack.c.l.b16 %v201
  %v804 = vunpack.c.h.b16 %v201
  %v805 = vunpack.c.l.b16 %v202
  %v806 = vunpack.c.h.b16 %v202
  %v807 = vunpack.c.l.b16 %v203
  %v808 = vunpack.c.h.b16 %v203
  %v809 = vunpack.c.l.b16 %v204
  %v810 = vunpack.c.h.b16 %v204
  %v811 = vunpack.c.l.b16 %v205
  %v812 = vunpack.c.h.b16 %v205
  %v813 = vunpack.c.l.b16 %v206
  %v814 = vunpack.c.h.b16 %v206
  %v815 = vunpack.c.l.b16 %v207
  %v816 = vunpack.c.h.b16 %v207
  %v817 = vunpack.c.l.b16 %v208
  %v818 = vunpack.c.h.b16 %v208
  %v819 = vunpack.c.l.b16 %v209
  %v820 = vunpack.c.h.b16 %v209
  %v821 = vunpack.c.l.b16 %v210
  %v822 = vunpack.c.h.b16 %v210
  %v823 = vunpack.c.l.b16 %v211
  %v824 = vunpack.c.h.b16 %v211
  %v825 = vunpack.c.l.b16 %v212
  %v826 = vunpack.c.h.b16 %v212
  %v827 = vunpack.c.l.b16 %v213
  %v828 = vunpack.c.h.b16 %v213
  %v829 = vunpack.c.l.b16 %v214
  %v830 = vunpack.c.h.b16 %v214
  %v831 = vunpack.c.l.b16 %v215
  %v832 = vunpack.c.h.b16 %v215
  %v833 = vunpack.c.l.b16 %v216
  %v834 = vunpack.c.h.b16 %v216
  %v835 = vunpack.c.l.b16 %v217
  %v836 = vunpack.c.h.b16 %v217
  %v837 = vunpack.c.l.b16 %v218
  %v838 = vunpack.c.h.b16 %v218
  %v839 = vunpack.c.l.b16 %v219
  %v840 = vunpack.c.h.b16 %v219
  %v841 = vunpack.c.l.b16 %v220
  %v842 = vunpack.c.h.b16 %v220
  %v843 = vunpack.c.l.b16 %v221
  %v844 = vunpack.c.h.b16 %v221
  %v845 = vunpack.c.l.b16 %v222
  %v846 = vunpack.c.h.b16 %v222
  %v847 = vunpack.c.l.b16 %v223
  %v848 = vunpack.c.h.b16 %v223
  %v849 = vunpack.c.l.b16 %v224
  %v850 = vunpack.c.h.b16 %v224
  %v851 = vunpack.c.l.b16 %v225
  %v852 = vunpack.c.h.b16 %v225
  %v853 = vunpack.c.l.b16 %v226
  %v854 = vunpack.c.h.b16 %v226
  %v855 = vunpack.c.l.b16 %v227
  %v856 = vunpack.c.h.b16 %v227
  %v857 = vunpack.c.l.b16 %v228
  %v858 = vunpack.c.h.b16 %v228
  %v859 = vunpack.c.l.b16 %v229
  %v860 = vunpack.c.h.b16 %v229
  %v861 = vunpack.c.l.b16 %v230
  %v862 = vunpack.c.h.b16 %v230
  %v863 = vunpack.c.l.b16 %v231
  %v864 = vunpack.c.h.b16 %v231
  %v865 = vunpack.c.l.b16 %v232
  %v866 = vunpack.c.h.b16 %v232
  %v867 = vunpack.c.l.b16 %v233
  %v868 = vunpack.c.h.b16 %v233
  %v869 = vunpack.c.l.b16 %v234
  %v870 = vunpack.c.h.b16 %v234
  %v871 = vunpack.c.l.b16 %v235
  %v872 = vunpack.c.h.b16 %v235
  %v873 = vunpack.c.l.b16 %v236
  %v874 = vunpack.c.h.b16 %v236
  %v875 = vunpack.c.l.b16 %v237
  %v876 = vunpack.c.h.b16 %v237
  %v877 = vunpack.c.l.b16 %v238
  %v878 = vunpack.c.h.b16 %v238
  %v879 = vunpack.c.l.b16 %v239
  %v880 = vunpack.c.h.b16 %v239
  %v881 = vunpack.c.l.b16 %v240
  %v882 = vunpack.c.h.b16 %v240
  %v883 = vunpack.c.l.b16 %v241
  %v884 = vunpack.c.h.b16 %v241
  %v885 = vunpack.c.l.b16 %v242
  %v886 = vunpack.c.h.b16 %v242
  %v887 = vunpack.c.l.b16 %v243
  %v888 = vunpack.c.h.b16 %v243
  %v889 = vunpack.c.l.b16 %v244
  %v890 = vunpack.c.h.b16 %v244
  %v891 = vunpack.c.l.b16 %v245
  %v892 = vunpack.c.h.b16 %v245
  %v893 = vunpack.c.l.b16 %v246
  %v894 = vunpack.c.h.b16 %v246
  %v895 = vunpack.c.l.b16 %v247
  %v896 = vunpack.c.h.b16 %v247
  %v897 = vunpack.c.l.b16 %v248
  %v898 = vunpack.c.h.b16 %v248
  %v899 = vunpack.c.l.b16 %v249
  %v900 = vunpack.c.h.b16 %v249
  %v901 = vunpack.c.l.b16 %v250
  %v902 = vunpack.c.h.b16 %v250
  %v903 = vunpack.c.l.b16 %v251
  %v904 = vunpack.c.h.b16 %v251
  %v905 = vunpack.c.l.b16 %v252
  %v906 = vunpack.c.h.b16 %v252
  %v907 = vunpack.c.l.b16 %v253
  %v908 = vunpack.c.h.b16 %v253
  %v909 = vunpack.c.l.b16 %v254
  %v910 = vunpack.c.h.b16 %v254
  %v911 = vunpack.c.l.b16 %v255
  %v912 = vunpack.c.h.b16 %v255
  %v913 = vunpack.c.l.b16 %v256
  %v914 = vunpack.c.h.b16 %v256
  %v915 = vunpack.c.l.b16 %v257
  %v916 = vunpack.c.h.b16 %v257
  %v917 = vunpack.c.l.b16 %v258
  %v918 = vunpack.c.h.b16 %v258
  %v919 = vunpack.c.l.b16 %v259
  %v920 = vunpack.c.h.b16 %v259
  %v921 = vunpack.c.l.b16 %v260
  %v922 = vunpack.c.h.b16 %v260
  %v923 = vunpack.c.l.b16 %v261
  %v924 = vunpack.c.h.b16 %v261
  %v925 = vunpack.c.l.b16 %v262
  %v926 = vunpack.c.h.b16 %v262
  %v927 = vunpack.c.l.b16 %v263
  %v928 = vunpack.c.h.b16 %v263
  %v929 = vunpack.c.l.b16 %v264
  %v930 = vunpack.c.h.b16 %v264
  %v931 = vunpack.c.l.b16 %v265
  %v932 = vunpack.c.h.b16 %v265
  %v933 = vunpack.c.l.b16 %v266
  %v934 = vunpack.c.h.b16 %v266
  %v935 = vunpack.c.l.b16 %v267
  %v936 = vunpack.c.h.b16 %v267
  %v937 = vunpack.c.l.b16 %v268
  %v938 = vunpack.c.h.b16 %v268
  %v939 = vunpack.c.l.b16 %v269
  %v940 = vunpack.c.h.b16 %v269
  %v941 = vunpack.c.l.b16 %v270
  %v942 = vunpack.c.h.b16 %v270
  %v943 = vunpack.c.l.b16 %v271
  %v944 = vunpack.c.h.b16 %v271
  %v945 = vunpack.c.l.b16 %v272
  %v946 = vunpack.c.h.b16 %v272
  %v947 = vunpack.c.l.b16 %v273
  %v948 = vunpack.c.h.b16 %v273
  %v949 = vunpack.c.l.b16 %v274
  %v950 = vunpack.c.h.b16 %v274
  %v951 = vunpack.c.l.b16 %v275
  %v952 = vunpack.c.h.b16 %v275
  %v953 = vunpack.c.l.b16 %v276
  %v954 = vunpack.c.h.b16 %v276
  %v955 = vunpack.c.l.b16 %v277
  %v956 = vunpack.c.h.b16 %v277
  %v957 = vunpack.c.l.b16 %v278
  %v958 = vunpack.c.h.b16 %v278
  %v959 = vunpack.c.l.b16 %v279
  %v960 = vunpack.c.h.b16 %v279
  %v961 = vunpack.c.l.b16 %v280
  %v962 = vunpack.c.h.b16 %v280
  %v963 = vunpack.c.l.b16 %v281
  %v964 = vunpack.c.h.b16 %v281
  %v965 = vunpack.c.l.b16 %v282
  %v966 = vunpack.c.h.b16 %v282
  %v967 = vunpack.c.l.b16 %v283
  %v968 = vunpack.c.h.b16 %v283
  %v969 = vunpack.c.l.b16 %v284
  %v970 = vunpack.c.h.b16 %v284
  %v971 = vunpack.c.l.b16 %v285
  %v972 = vunpack.c.h.b16 %v285
  %v973 = vunpack.c.l.b16 %v286
  %v974 = vunpack.c.h.b16 %v286
  %v975 = vunpack.c.l.b16 %v287
  %v976 = vunpack.c.h.b16 %v287
  %v977 = vunpack.c.l.b16 %v288
  %v978 = vunpack.c.h.b16 %v288
  %v979 = vunpack.c.l.b16 %v289
  %v980 = vunpack.c.h.b16 %v289
  %v981 = vunpack.c.l.b16 %v290
  %v982 = vunpack.c.h.b16 %v290
  %v983 = vunpack.c.l.b16 %v291
  %v984 = vunpack.c.h.b16 %v291
  %v985 = vunpack.c.l.b16 %v292
  %v986 = vunpack.c.h.b16 %v292
  %v987 = vunpack.c.l.b16 %v293
  %v988 = vunpack.c.h.b16 %v293
  %v989 = vunpack.c.l.b16 %v294
  %v990 = vunpack.c.h.b16 %v294
  %v991 = vunpack.c.l.b16 %v295
  %v992 = vunpack.c.h.b16 %v295
  %v993 = vunpack.c.l.b16 %v296
  %v994 = vunpack.c.h.b16 %v296
  %v995 = vunpack.c.l.b16 %v297
  %v996 = vunpack.c.h.b16 %v297
  %v997 = vunpack.c.l.b16 %v298
  %v998 = vunpack.c.h.b16 %v298
  %v999 = vunpack.c.l.b16 %v299
  %v1000 = vunpack.c.h.b16 %v299
  %v1001 = vunpack.c.l.b16 %v300
  %v1002 = vunpack.c.h.b16 %v300
  %v1003 = vunpack.c.l.b16 %v301
  %v1004 = vunpack.c.h.b16 %v301
  %v1005 = vunpack.c.l.b16 %v302
  %v1006 = vunpack.c.h.b16 %v302
  %v1007 = vunpack.c.l.b16 %v303
  %v1008 = vunpack.c.h.b16 %v303
  %v1009 = vunpack.c.l.b16 %v304
  %v1010 = vunpack.c.h.b16 %v304
  %v1011 = vunpack.c.l.b16 %v305
  %v1012 = vunpack.c.h.b16 %v305
  %v1013 = vunpack.c.l.b16 %v306
  %v1014 = vunpack.c.h.b16 %v306
  %v1015 = vunpack.c.l.b16 %v307
  %v1016 = vunpack.c.h.b16 %v307
  %v1017 = vunpack.c.l.b16 %v308
  %v1018 = vunpack.c.h.b16 %v308
  %v1019 = vunpack.c.l.b16 %v309
  %v1020 = vunpack.c.h.b16 %v309
  %v1021 = vunpack.c.l.b16 %v310
  %v1022 = vunpack.c.h.b16 %v310
  %v1023 = vunpack.c.l.b16 %v311
  %v1024 = vunpack.c.h.b16 %v311
  %v1025 = vunpack.c.l.b16 %v312
  %v1026 = vunpack.c.h.b16 %v312
  %v1027 = vunpack.c.l.b16 %v313
  %v1028 = vunpack.c.h.b16 %v313
  %v1029 = vunpack.c.l.b16 %v314
  %v1030 = vunpack.c.h.b16 %v314
  %v1031 = vunpack.c.l.b16 %v315
  %v1032 = vunpack.c.h.b16 %v315
  %v1033 = vunpack.c.l.b16 %v316
  %v1034 = vunpack.c.h.b16 %v316
  %v1035 = vunpack.c.l.b16 %v317
  %v1036 = vunpack.c.h.b16 %v317
  %v1037 = vunpack.c.l.b16 %v318
  %v1038 = vunpack.c.h.b16 %v318
  %v1039 = vunpack.c.l.b16 %v319
  %v1040 = vunpack.c.h.b16 %v319
  %v1041 = vunpack.c.l.b16 %v320
  %v1042 = vunpack.c.h.b16 %v320
  %v1043 = vunpack.c.l.b16 %v321
  %v1044 = vunpack.c.h.b16 %v321
  %v1045 = vunpack.c.l.b16 %v322
  %v1046 = vunpack.c.h.b16 %v322
  %v1047 = vunpack.c.l.b16 %v323
  %v1048 = vunpack.c.h.b16 %v323
  %v1049 = vunpack.c.l.b16 %v324
  %v1050 = vunpack.c.h.b16 %v324
  %v1051 = vunpack.c.l.b16 %v325
  %v1052 = vunpack.c.h.b16 %v325
  %v1053 = vunpack.c.l.b16 %v326
  %v1054 = vunpack.c.h.b16 %v326
  %v1055 = vunpack.c.l.b16 %v327
  %v1056 = vunpack.c.h.b16 %v327
  %v1057 = vunpack.c.l.b16 %v328
  %v1058 = vunpack.c.h.b16 %v328
  %v1059 = vunpack.c.l.b16 %v329
  %v1060 = vunpack.c.h.b16 %v329
  %v1061 = vunpack.c.l.b16 %v330
  %v1062 = vunpack.c.h.b16 %v330
  %v1063 = vunpack.c.l.b16 %v331
  %v1064 = vunpack.c.h.b16 %v331
  %v1065 = vunpack.c.l.b16 %v332
  %v1066 = vunpack.c.h.b16 %v332
  %v1067 = vunpack.c.l.b16 %v333
  %v1068 = vunpack.c.h.b16 %v333
  %v1069 = vunpack.c.l.b16 %v334
  %v1070 = vunpack.c.h.b16 %v334
  %v1071 = vunpack.c.l.b16 %v335
  %v1072 = vunpack.c.h.b16 %v335
  %v1073 = vunpack.c.l.b16 %v336
  %v1074 = vunpack.c.h.b16 %v336
  %v1075 = vunpack.c.l.b16 %v337
  %v1076 = vunpack.c.h.b16 %v337
  %v1077 = vunpack.c.l.b16 %v338
  %v1078 = vunpack.c.h.b16 %v338
  %v1079 = vunpack.c.l.b16 %v339
  %v1080 = vunpack.c.h.b16 %v339
  %v1081 = vunpack.c.l.b16 %v340
  %v1082 = vunpack.c.h.b16 %v340
  %v1083 = vunpack.c.l.b16 %v341
  %v1084 = vunpack.c.h.b16 %v341
  %v1085 = vunpack.c.l.b16 %v342
  %v1086 = vunpack.c.h.b16 %v342
  %v1087 = vunpack.c.l.b16 %v343
  %v1088 = vunpack.c.h.b16 %v343
  %v1089 = vunpack.c.l.b16 %v344
  %v1090 = vunpack.c.h.b16 %v344
  %v1091 = vunpack.c.l.b16 %v345
  %v1092 = vunpack.c.h.b16 %v345
  %v1093 = vunpack.c.l.b16 %v346
  %v1094 = vunpack.c.h.b16 %v346
  %v1095 = vunpack.c.l.b16 %v347
  %v1096 = vunpack.c.h.b16 %v347
  %v1097 = vunpack.c.l.b16 %v348
  %v1098 = vunpack.c.h.b16 %v348
  %v1099 = vunpack.c.l.b16 %v349
  %v1100 = vunpack.c.h.b16 %v349
  %v1101 = vunpack.c.l.b16 %v350
  %v1102 = vunpack.c.h.b16 %v350
  %v1103 = vunpack.c.l.b16 %v351
  %v1104 = vunpack.c.h.b16 %v351
  %v1105 = vunpack.c.l.b16 %v352
  %v1106 = vunpack.c.h.b16 %v352
  %v1107 = vunpack.c.l.b16 %v353
  %v1108 = vunpack.c.h.b16 %v353
  %v1109 = vunpack.c.l.b16 %v354
  %v1110 = vunpack.c.h.b16 %v354
  %v1111 = vunpack.c.l.b16 %v355
  %v1112 = vunpack.c.h.b16 %v355
  %v1113 = vunpack.c.l.b16 %v356
  %v1114 = vunpack.c.h.b16 %v356
  %v1115 = vunpack.c.l.b16 %v357
  %v1116 = vunpack.c.h.b16 %v357
  %v1117 = vunpack.c.l.b16 %v358
  %v1118 = vunpack.c.h.b16 %v358
  %v1119 = vunpack.c.l.b16 %v359
  %v1120 = vunpack.c.h.b16 %v359
  %v1121 = vunpack.c.l.b16 %v360
  %v1122 = vunpack.c.h.b16 %v360
  %v1123 = vunpack.c.l.b16 %v361
  %v1124 = vunpack.c.h.b16 %v361
  %v1125 = vunpack.c.l.b16 %v362
  %v1126 = vunpack.c.h.b16 %v362
  %v1127 = vunpack.c.l.b16 %v363
  %v1128 = vunpack.c.h.b16 %v363
  %v1129 = vunpack.c.l.b16 %v364
  %v1130 = vunpack.c.h.b16 %v364
  %v1131 = vunpack.c.l.b16 %v365
  %v1132 = vunpack.c.h.b16 %v365
  %v1133 = vunpack.c.l.b16 %v366
  %v1134 = vunpack.c.h.b16 %v366
  %v1135 = vpack.c.b16 %v639, %v623
  %v1136 = vpack.c.b16 %v640, %v624
  %v1137 = vpack.c.b16 %v641, %v625
  %v1138 = vpack.c.b16 %v642, %v626
  %v1139 = vpack.c.b16 %v643, %v627
  %v1140 = vpack.c.b16 %v644, %v628
  %v1141 = vpack.c.b16 %v645, %v629
  %v1142 = vpack.c.b16 %v646, %v630
  %v1143 = vpack.c.b16 %v647, %v631
  %v1144 = vpack.c.b16 %v648, %v632
  %v1145 = vpack.c.b16 %v649, %v633
  %v1146 = vpack.c.b16 %v650, %v634
  %v1147 = vpack.c.b16 %v651, %v635
  %v1148 = vpack.c.b16 %v652, %v636
  %v1149 = vpack.c.b16 %v653, %v637
  %v1150 = vpack.c.b16 %v654, %v638
  %v1151 = vpack.c.b16 %v671, %v655
  %v1152 = vpack.c.b16 %v672, %v656
  %v1153 = vpack.c.b16 %v673, %v657
  %v1154 = vpack.c.b16 %v674, %v658
  %v1155 = vpack.c.b16 %v675, %v659
  %v1156 = vpack.c.b16 %v676, %v660
  %v1157 = vpack.c.b16 %v677, %v661
  %v1158 = vpack.c.b16 %v678, %v662
  %v1159 = vpack.c.b16 %v679, %v663
  %v1160 = vpack.c.b16 %v680, %v664
  %v1161 = vpack.c.b16 %v681, %v665
  %v1162 = vpack.c.b16 %v682, %v666
  %v1163 = vpack.c.b16 %v683, %v667
  %v1164 = vpack.c.b16 %v684, %v668
  %v1165 = vpack.c.b16 %v685, %v669
  %v1166 = vpack.c.b16 %v686, %v670
  %v1167 = vpack.c.b16 %v703, %v687
  %v1168 = vpack.c.b16 %v704, %v688
  %v1169 = vpack.c.b16 %v705, %v689
  %v1170 = vpack.c.b16 %v706, %v690
  %v1171 = vpack.c.b16 %v707, %v691
  %v1172 = vpack.c.b16 %v708, %v692
  %v1173 = vpack.c.b16 %v709, %v693
  %v1174 = vpack.c.b16 %v710, %v694
  %v1175 = vpack.c.b16 %v711, %v695
  %v1176 = vpack.c.b16 %v712, %v696
  %v1177 = vpack.c.b16 %v713, %v697
  %v1178 = vpack.c.b16 %v714, %v698
  %v1179 = vpack.c.b16 %v715, %v699
  %v1180 = vpack.c.b16 %v716, %v700
  %v1181 = vpack.c.b16 %v717, %v701
  %v1182 = vpack.c.b16 %v718, %v702
  %v1183 = vpack.c.b16 %v735, %v719
  %v1184 = vpack.c.b16 %v736, %v720
  %v1185 = vpack.c.b16 %v737, %v721
  %v1186 = vpack.c.b16 %v738, %v722
  %v1187 = vpack.c.b16 %v739, %v723
  %v1188 = vpack.c.b16 %v740, %v724
  %v1189 = vpack.c.b16 %v741, %v725
  %v1190 = vpack.c.b16 %v742, %v726
  %v1191 = vpack.c.b16 %v743, %v727
  %v1192 = vpack.c.b16 %v744, %v728
  %v1193 = vpack.c.b16 %v745, %v729
  %v1194 = vpack.c.b16 %v746, %v730
  %v1195 = vpack.c.b16 %v747, %v731
  %v1196 = vpack.c.b16 %v748, %v732
  %v1197 = vpack.c.b16 %v749, %v733
  %v1198 = vpack.c.b16 %v750, %v734
  %v1199 = vpack.c.b16 %v767, %v751
  %v1200 = vpack.c.b16 %v768, %v752
  %v1201 = vpack.c.b16 %v769, %v753
  %v1202 = vpack.c.b16 %v770, %v754
  %v1203 = vpack.c.b16 %v771, %v755
  %v1204 = vpack.c.b16 %v772, %v756
  %v1205 = vpack.c.b16 %v773, %v757
  %v1206 = vpack.c.b16 %v774, %v758
  %v1207 = vpack.c.b16 %v775, %v759
  %v1208 = vpack.c.b16 %v776, %v760
  %v1209 = vpack.c.b16 %v777, %v761
  %v1210 = vpack.c.b16 %v778, %v762
  %v1211 = vpack.c.b16 %v779, %v763
  %v1212 = vpack.c.b16 %v780, %v764
  %v1213 = vpack.c.b16 %v781, %v765
  %v1214 = vpack.c.b16 %v782, %v766
  %v1215 = vpack.c.b16 %v799, %v783
  %v1216 = vpack.c.b16 %v800, %v784
  %v1217 = vpack.c.b16 %v801, %v785
  %v1218 = vpack.c.b16 %v802, %v786
  %v1219 = vpack.c.b16 %v803, %v787
  %v1220 = vpack.c.b16 %v804, %v788
  %v1221 = vpack.c.b16 %v805, %v789
  %v1222 = vpack.c.b16 %v806, %v790
  %v1223 = vpack.c.b16 %v807, %v791
  %v1224 = vpack.c.b16 %v808, %v792
  %v1225 = vpack.c.b16 %v809, %v793
  %v1226 = vpack.c.b16 %v810, %v794
  %v1227 = vpack.c.b16 %v811, %v795
  %v1228 = vpack.c.b16 %v812, %v796
  %v1229 = vpack.c.b16 %v813, %v797
  %v1230 = vpack.c.b16 %v814, %v798
  %v1231 = vpack.c.b16 %v831, %v815
  %v1232 = vpack.c.b16 %v832, %v816
  %v1233 = vpack.c.b16 %v833, %v817
  %v1234 = vpack.c.b16 %v834, %v818
  %v1235 = vpack.c.b16 %v835, %v819
  %v1236 = vpack.c.b16 %v836, %v820
  %v1237 = vpack.c.b16 %v837, %v821
  %v1238 = vpack.c.b16 %v838, %v822
  %v1239 = vpack.c.b16 %v839, %v823
  %v1240 = vpack.c.b16 %v840, %v824
  %v1241 = vpack.c.b16 %v841, %v825
  %v1242 = vpack.c.b16 %v842, %v826
  %v1243 = vpack.c.b16 %v843, %v827
  %v1244 = vpack.c.b16 %v844, %v828
  %v1245 = vpack.c.b16 %v845, %v829
  %v1246 = vpack.c.b16 %v846, %v830
  %v1247 = vpack.c.b16 %v863, %v847
  %v1248 = vpack.c.b16 %v864, %v848
  %v1249 = vpack.c.b16 %v865, %v849
  %v1250 = vpack.c.b16 %v866, %v850
  %v1251 = vpack.c.b16 %v867, %v851
  %v1252 = vpack.c.b16 %v868, %v852
  %v1253 = vpack.c.b16 %v869, %v853
  %v1254 = vpack.c.b16 %v870, %v854
  %v1255 = vpack.c.b16 %v871, %v855
  %v1256 = vpack.c.b16 %v872, %v856
  %v1257 = vpack.c.b16 %v873, %v857
  %v1258 = vpack.c.b16 %v874, %v858
  %v1259 = vpack.c.b16 %v875, %v859
  %v1260 = vpack.c.b16 %v876, %v860
  %v1261 = vpack.c.b16 %v877, %v861
  %v1262 = vpack.c.b16 %v878, %v862
  %v1263 = vpack.c.b16 %v895, %v879
  %v1264 = vpack.c.b16 %v896, %v880
  %v1265 = vpack.c.b16 %v897, %v881
  %v1266 = vpack.c.b16 %v898, %v882
  %v1267 = vpack.c.b16 %v899, %v883
  %v1268 = vpack.c.b16 %v900, %v884
  %v1269 = vpack.c.b16 %v901, %v885
  %v1270 = vpack.c.b16 %v902, %v886
  %v1271 = vpack.c.b16 %v903, %v887
  %v1272 = vpack.c.b16 %v904, %v888
  %v1273 = vpack.c.b16 %v905, %v889
  %v1274 = vpack.c.b16 %v906, %v890
  %v1275 = vpack.c.b16 %v907, %v891
  %v1276 = vpack.c.b16 %v908, %v892
  %v1277 = vpack.c.b16 %v909, %v893
  %v1278 = vpack.c.b16 %v910, %v894
  %v1279 = vpack.c.b16 %v927, %v911
  %v1280 = vpack.c.b16 %v928, %v912
  %v1281 = vpack.c.b16 %v929, %v913
  %v1282 = vpack.c.b16 %v930, %v914
  %v1283 = vpack.c.b16 %v931, %v915
  %v1284 = vpack.c.b16 %v932, %v916
  %v1285 = vpack.c.b16 %v933, %v917
  %v1286 = vpack.c.b16 %v934, %v918
  %v1287 = vpack.c.b16 %v935, %v919
  %v1288 = vpack.c.b16 %v936, %v920
  %v1289 = vpack.c.b16 %v937, %v921
  %v1290 = vpack.c.b16 %v938, %v922
  %v1291 = vpack.c.b16 %v939, %v923
  %v1292 = vpack.c.b16 %v940, %v924
  %v1293 = vpack.c.b16 %v941, %v925
  %v1294 = vpack.c.b16 %v942, %v926
  %v1295 = vpack.c.b16 %v959, %v943
  %v1296 = vpack.c.b16 %v960, %v944
  %v1297 = vpack.c.b16 %v961, %v945
  %v1298 = vpack.c.b16 %v962, %v946
  %v1299 = vpack.c.b16 %v963, %v947
  %v1300 = vpack.c.b16 %v964, %v948
  %v1301 = vpack.c.b16 %v965, %v949
  %v1302 = vpack.c.b16 %v966, %v950
  %v1303 = vpack.c.b16 %v967, %v951
  %v1304 = vpack.c.b16 %v968, %v952
  %v1305 = vpack.c.b16 %v969, %v953
  %v1306 = vpack.c.b16 %v970, %v954
  %v1307 = vpack.c.b16 %v971, %v955
  %v1308 = vpack.c.b16 %v972, %v956
  %v1309 = vpack.c.b16 %v973, %v957
  %v1310 = vpack.c.b16 %v974, %v958
  %v1311 = vpack.c.b16 %v991, %v975
  %v1312 = vpack.c.b16 %v992, %v976
  %v1313 = vpack.c.b16 %v993, %v977
  %v1314 = vpack.c.b16 %v994, %v978
  %v1315 = vpack.c.b16 %v995, %v979
  %v1316 = vpack.c.b16 %v996, %v980
  %v1317 = vpack.c.b16 %v997, %v981
  %v1318 = vpack.c.b16 %v998, %v982
  %v1319 = vpack.c.b16 %v999, %v983
  %v1320 = vpack.c.b16 %v1000, %v984
  %v1321 = vpack.c.b16 %v1001, %v985
  %v1322 = vpack.c.b16 %v1002, %v986
  %v1323 = vpack.c.b16 %v1003, %v987
  %v1324 = vpack.c.b16 %v1004, %v988
  %v1325 = vpack.c.b16 %v1005, %v989
  %v1326 = vpack.c.b16 %v1006, %v990
  %v1327 = vpack.c.b16 %v1023, %v1007
  %v1328 = vpack.c.b16 %v1024, %v1008
  %v1329 = vpack.c.b16 %v1025, %v1009
  %v1330 = vpack.c.b16 %v1026, %v1010
  %v1331 = vpack.c.b16 %v1027, %v1011
  %v1332 = vpack.c.b16 %v1028, %v1012
  %v1333 = vpack.c.b16 %v1029, %v1013
  %v1334 = vpack.c.b16 %v1030, %v1014
  %v1335 = vpack.c.b16 %v1031, %v1015
  %v1336 = vpack.c.b16 %v1032, %v1016
  %v1337 = vpack.c.b16 %v1033, %v1017
  %v1338 = vpack.c.b16 %v1034, %v1018
  %v1339 = vpack.c.b16 %v1035, %v1019
  %v1340 = vpack.c.b16 %v1036, %v1020
  %v1341 = vpack.c.b16 %v1037, %v1021
  %v1342 = vpack.c.b16 %v1038, %v1022
  %v1343 = vpack.c.b16 %v1055, %v1039
  %v1344 = vpack.c.b16 %v1056, %v1040
  %v1345 = vpack.c.b16 %v1057, %v1041
  %v1346 = vpack.c.b16 %v1058, %v1042
  %v1347 = vpack.c.b16 %v1059, %v1043
  %v1348 = vpack.c.b16 %v1060, %v1044
  %v1349 = vpack.c.b16 %v1061, %v1045
  %v1350 = vpack.c.b16 %v1062, %v1046
  %v1351 = vpack.c.b16 %v1063, %v1047
  %v1352 = vpack.c.b16 %v1064, %v1048
  %v1353 = vpack.c.b16 %v1065, %v1049
  %v1354 = vpack.c.b16 %v1066, %v1050
  %v1355 = vpack.c.b16 %v1067, %v1051
  %v1356 = vpack.c.b16 %v1068, %v1052
  %v1357 = vpack.c.b16 %v1069, %v1053
  %v1358 = vpack.c.b16 %v1070, %v1054
  %v1359 = vpack.c.b16 %v1087, %v1071
  %v1360 = vpack.c.b16 %v1088, %v1072
  %v1361 = vpack.c.b16 %v1089, %v1073
  %v1362 = vpack.c.b16 %v1090, %v1074
  %v1363 = vpack.c.b16 %v1091, %v1075
  %v1364 = vpack.c.b16 %v1092, %v1076
  %v1365 = vpack.c.b16 %v1093, %v1077
  %v1366 = vpack.c.b16 %v1094, %v1078
  %v1367 = vpack.c.b16 %v1095, %v1079
  %v1368 = vpack.c.b16 %v1096, %v1080
  %v1369 = vpack.c.b16 %v1097, %v1081
  %v1370 = vpack.c.b16 %v1098, %v1082
  %v1371 = vpack.c.b16 %v1099, %v1083
  %v1372 = vpack.c.b16 %v1100, %v1084
  %v1373 = vpack.c.b16 %v1101, %v1085
  %v1374 = vpack.c.b16 %v1102, %v1086
  %v1375 = vpack.c.b16 %v1119, %v1103
  %v1376 = vpack.c.b16 %v1120, %v1104
  %v1377 = vpack.c.b16 %v1121, %v1105
  %v1378 = vpack.c.b16 %v1122, %v1106
  %v1379 = vpack.c.b16 %v1123, %v1107
  %v1380 = vpack.c.b16 %v1124, %v1108
  %v1381 = vpack.c.b16 %v1125, %v1109
  %v1382 = vpack.c.b16 %v1126, %v1110
  %v1383 = vpack.c.b16 %v1127, %v1111
  %v1384 = vpack.c.b16 %v1128, %v1112
  %v1385 = vpack.c.b16 %v1129, %v1113
  %v1386 = vpack.c.b16 %v1130, %v1114
  %v1387 = vpack.c.b16 %v1131, %v1115
  %v1388 = vpack.c.b16 %v1132, %v1116
  %v1389 = vpack.c.b16 %v1133, %v1117
  %v1390 = vpack.c.b16 %v1134, %v1118
  %1647 = vmatpush.bf16.msra.mxu0 %v1247
  %1648 = vmatpush.bf16.msra.mxu0 %v1231
  %1649 = vmatpush.bf16.msra.mxu0 %v1215
  %1650 = vmatpush.bf16.msra.mxu0 %v1199
  %1651 = vmatpush.bf16.msra.mxu0 %v1183
  %1652 = vmatpush.bf16.msra.mxu0 %v1167
  %1653 = vmatpush.bf16.msra.mxu0 %v1151
  %1654 = vmatpush.bf16.msra.mxu0 %v1135
  %1655 = vmatmul.bf16.gmra.mxu0 %v103
  %v1656 = vpop.f32.mrf.mxu0
  %v1657 = vadd.f32 0.0, %v1656
  %v1658 = vpop.f32.mrf.mxu0
  %v1659 = vadd.f32 0.0, %v1658
  %1660 = vmatmul.bf16.gmra.mxu0 %v105
  %v1661 = vpop.f32.mrf.mxu0
  %v1662 = vadd.f32 0.0, %v1661
  %v1663 = vpop.f32.mrf.mxu0
  %v1664 = vadd.f32 0.0, %v1663
  %1665 = vmatmul.bf16.gmra.mxu0 %v107
  %v1666 = vpop.f32.mrf.mxu0
  %v1667 = vadd.f32 0.0, %v1666
  %v1668 = vpop.f32.mrf.mxu0
  %v1669 = vadd.f32 0.0, %v1668
  %1670 = vmatmul.bf16.gmra.mxu0 %v109
  %v1671 = vpop.f32.mrf.mxu0
  %v1672 = vadd.f32 0.0, %v1671
  %v1673 = vpop.f32.mrf.mxu0
  %v1674 = vadd.f32 0.0, %v1673
  %1675 = vdwg.mxu0
  %1676 = vmatpush.bf16.msra.mxu0 %v1375
  %1677 = vmatpush.bf16.msra.mxu0 %v1359
  %1678 = vmatpush.bf16.msra.mxu0 %v1343
  %1679 = vmatpush.bf16.msra.mxu0 %v1327
  %1680 = vmatpush.bf16.msra.mxu0 %v1311
  %1681 = vmatpush.bf16.msra.mxu0 %v1295
  %1682 = vmatpush.bf16.msra.mxu0 %v1279
  %1683 = vmatpush.bf16.msra.mxu0 %v1263
  %1684 = vmatmul.bf16.gmra.mxu0 %v104
  %v1685 = vpop.f32.mrf.mxu0
  %v1686 = vadd.f32 %v1657, %v1685
  %v1687 = vpop.f32.mrf.mxu0
  %v1688 = vadd.f32 %v1659, %v1687
  %1689 = vmatmul.bf16.gmra.mxu0 %v106
  %v1690 = vpop.f32.mrf.mxu0
  %v1691 = vadd.f32 %v1662, %v1690
  %v1692 = vpop.f32.mrf.mxu0
  %v1693 = vadd.f32 %v1664, %v1692
  %1694 = vmatmul.bf16.gmra.mxu0 %v108
  %v1695 = vpop.f32.mrf.mxu0
  %v1696 = vadd.f32 %v1667, %v1695
  %v1697 = vpop.f32.mrf.mxu0
  %v1698 = vadd.f32 %v1669, %v1697
  %1699 = vmatmul.bf16.gmra.mxu0 %v110
  %v1700 = vpop.f32.mrf.mxu0
  %v1701 = vadd.f32 %v1672, %v1700
  %v1702 = vpop.f32.mrf.mxu0
  %v1703 = vadd.f32 %v1674, %v1702
  %1704 = vdwg.mxu0
  %1705 = vmatpush.bf16.msra.mxu0 %v1248
  %1706 = vmatpush.bf16.msra.mxu0 %v1232
  %1707 = vmatpush.bf16.msra.mxu0 %v1216
  %1708 = vmatpush.bf16.msra.mxu0 %v1200
  %1709 = vmatpush.bf16.msra.mxu0 %v1184
  %1710 = vmatpush.bf16.msra.mxu0 %v1168
  %1711 = vmatpush.bf16.msra.mxu0 %v1152
  %1712 = vmatpush.bf16.msra.mxu0 %v1136
  %1713 = vmatmul.bf16.gmra.mxu0 %v103
  %v1714 = vpop.f32.mrf.mxu0
  %v1715 = vadd.f32 0.0, %v1714
  %v1716 = vpop.f32.mrf.mxu0
  %v1717 = vadd.f32 0.0, %v1716
  %1718 = vmatmul.bf16.gmra.mxu0 %v105
  %v1719 = vpop.f32.mrf.mxu0
  %v1720 = vadd.f32 0.0, %v1719
  %v1721 = vpop.f32.mrf.mxu0
  %v1722 = vadd.f32 0.0, %v1721
  %1723 = vmatmul.bf16.gmra.mxu0 %v107
  %v1724 = vpop.f32.mrf.mxu0
  %v1725 = vadd.f32 0.0, %v1724
  %v1726 = vpop.f32.mrf.mxu0
  %v1727 = vadd.f32 0.0, %v1726
  %1728 = vmatmul.bf16.gmra.mxu0 %v109
  %v1729 = vpop.f32.mrf.mxu0
  %v1730 = vadd.f32 0.0, %v1729
  %v1731 = vpop.f32.mrf.mxu0
  %v1732 = vadd.f32 0.0, %v1731
  %1733 = vdwg.mxu0
  %1734 = vmatpush.bf16.msra.mxu0 %v1376
  %1735 = vmatpush.bf16.msra.mxu0 %v1360
  %1736 = vmatpush.bf16.msra.mxu0 %v1344
  %1737 = vmatpush.bf16.msra.mxu0 %v1328
  %1738 = vmatpush.bf16.msra.mxu0 %v1312
  %1739 = vmatpush.bf16.msra.mxu0 %v1296
  %1740 = vmatpush.bf16.msra.mxu0 %v1280
  %1741 = vmatpush.bf16.msra.mxu0 %v1264
  %1742 = vmatmul.bf16.gmra.mxu0 %v104
  %v1743 = vpop.f32.mrf.mxu0
  %v1744 = vadd.f32 %v1715, %v1743
  %v1745 = vpop.f32.mrf.mxu0
  %v1746 = vadd.f32 %v1717, %v1745
  %1747 = vmatmul.bf16.gmra.mxu0 %v106
  %v1748 = vpop.f32.mrf.mxu0
  %v1749 = vadd.f32 %v1720, %v1748
  %v1750 = vpop.f32.mrf.mxu0
  %v1751 = vadd.f32 %v1722, %v1750
  %1752 = vmatmul.bf16.gmra.mxu0 %v108
  %v1753 = vpop.f32.mrf.mxu0
  %v1754 = vadd.f32 %v1725, %v1753
  %v1755 = vpop.f32.mrf.mxu0
  %v1756 = vadd.f32 %v1727, %v1755
  %1757 = vmatmul.bf16.gmra.mxu0 %v110
  %v1758 = vpop.f32.mrf.mxu0
  %v1759 = vadd.f32 %v1730, %v1758
  %v1760 = vpop.f32.mrf.mxu0
  %v1761 = vadd.f32 %v1732, %v1760
  %1762 = vdwg.mxu0
  %1763 = vmatpush.bf16.msra.mxu0 %v1249
  %1764 = vmatpush.bf16.msra.mxu0 %v1233
  %1765 = vmatpush.bf16.msra.mxu0 %v1217
  %1766 = vmatpush.bf16.msra.mxu0 %v1201
  %1767 = vmatpush.bf16.msra.mxu0 %v1185
  %1768 = vmatpush.bf16.msra.mxu0 %v1169
  %1769 = vmatpush.bf16.msra.mxu0 %v1153
  %1770 = vmatpush.bf16.msra.mxu0 %v1137
  %1771 = vmatmul.bf16.gmra.mxu0 %v103
  %v1772 = vpop.f32.mrf.mxu0
  %v1773 = vadd.f32 0.0, %v1772
  %v1774 = vpop.f32.mrf.mxu0
  %v1775 = vadd.f32 0.0, %v1774
  %1776 = vmatmul.bf16.gmra.mxu0 %v105
  %v1777 = vpop.f32.mrf.mxu0
  %v1778 = vadd.f32 0.0, %v1777
  %v1779 = vpop.f32.mrf.mxu0
  %v1780 = vadd.f32 0.0, %v1779
  %1781 = vmatmul.bf16.gmra.mxu0 %v107
  %v1782 = vpop.f32.mrf.mxu0
  %v1783 = vadd.f32 0.0, %v1782
  %v1784 = vpop.f32.mrf.mxu0
  %v1785 = vadd.f32 0.0, %v1784
  %1786 = vmatmul.bf16.gmra.mxu0 %v109
  %v1787 = vpop.f32.mrf.mxu0
  %v1788 = vadd.f32 0.0, %v1787
  %v1789 = vpop.f32.mrf.mxu0
  %v1790 = vadd.f32 0.0, %v1789
  %1791 = vdwg.mxu0
  %1792 = vmatpush.bf16.msra.mxu0 %v1377
  %1793 = vmatpush.bf16.msra.mxu0 %v1361
  %1794 = vmatpush.bf16.msra.mxu0 %v1345
  %1795 = vmatpush.bf16.msra.mxu0 %v1329
  %1796 = vmatpush.bf16.msra.mxu0 %v1313
  %1797 = vmatpush.bf16.msra.mxu0 %v1297
  %1798 = vmatpush.bf16.msra.mxu0 %v1281
  %1799 = vmatpush.bf16.msra.mxu0 %v1265
  %1800 = vmatmul.bf16.gmra.mxu0 %v104
  %v1801 = vpop.f32.mrf.mxu0
  %v1802 = vadd.f32 %v1773, %v1801
  %v1803 = vpop.f32.mrf.mxu0
  %v1804 = vadd.f32 %v1775, %v1803
  %1805 = vmatmul.bf16.gmra.mxu0 %v106
  %v1806 = vpop.f32.mrf.mxu0
  %v1807 = vadd.f32 %v1778, %v1806
  %v1808 = vpop.f32.mrf.mxu0
  %v1809 = vadd.f32 %v1780, %v1808
  %1810 = vmatmul.bf16.gmra.mxu0 %v108
  %v1811 = vpop.f32.mrf.mxu0
  %v1812 = vadd.f32 %v1783, %v1811
  %v1813 = vpop.f32.mrf.mxu0
  %v1814 = vadd.f32 %v1785, %v1813
  %1815 = vmatmul.bf16.gmra.mxu0 %v110
  %v1816 = vpop.f32.mrf.mxu0
  %v1817 = vadd.f32 %v1788, %v1816
  %v1818 = vpop.f32.mrf.mxu0
  %v1819 = vadd.f32 %v1790, %v1818
  %1820 = vdwg.mxu0
  %1821 = vmatpush.bf16.msra.mxu0 %v1250
  %1822 = vmatpush.bf16.msra.mxu0 %v1234
  %1823 = vmatpush.bf16.msra.mxu0 %v1218
  %1824 = vmatpush.bf16.msra.mxu0 %v1202
  %1825 = vmatpush.bf16.msra.mxu0 %v1186
  %1826 = vmatpush.bf16.msra.mxu0 %v1170
  %1827 = vmatpush.bf16.msra.mxu0 %v1154
  %1828 = vmatpush.bf16.msra.mxu0 %v1138
  %1829 = vmatmul.bf16.gmra.mxu0 %v103
  %v1830 = vpop.f32.mrf.mxu0
  %v1831 = vadd.f32 0.0, %v1830
  %v1832 = vpop.f32.mrf.mxu0
  %v1833 = vadd.f32 0.0, %v1832
  %1834 = vmatmul.bf16.gmra.mxu0 %v105
  %v1835 = vpop.f32.mrf.mxu0
  %v1836 = vadd.f32 0.0, %v1835
  %v1837 = vpop.f32.mrf.mxu0
  %v1838 = vadd.f32 0.0, %v1837
  %1839 = vmatmul.bf16.gmra.mxu0 %v107
  %v1840 = vpop.f32.mrf.mxu0
  %v1841 = vadd.f32 0.0, %v1840
  %v1842 = vpop.f32.mrf.mxu0
  %v1843 = vadd.f32 0.0, %v1842
  %1844 = vmatmul.bf16.gmra.mxu0 %v109
  %v1845 = vpop.f32.mrf.mxu0
  %v1846 = vadd.f32 0.0, %v1845
  %v1847 = vpop.f32.mrf.mxu0
  %v1848 = vadd.f32 0.0, %v1847
  %1849 = vdwg.mxu0
  %1850 = vmatpush.bf16.msra.mxu0 %v1378
  %1851 = vmatpush.bf16.msra.mxu0 %v1362
  %1852 = vmatpush.bf16.msra.mxu0 %v1346
  %1853 = vmatpush.bf16.msra.mxu0 %v1330
  %1854 = vmatpush.bf16.msra.mxu0 %v1314
  %1855 = vmatpush.bf16.msra.mxu0 %v1298
  %1856 = vmatpush.bf16.msra.mxu0 %v1282
  %1857 = vmatpush.bf16.msra.mxu0 %v1266
  %1858 = vmatmul.bf16.gmra.mxu0 %v104
  %v1859 = vpop.f32.mrf.mxu0
  %v1860 = vadd.f32 %v1831, %v1859
  %v1861 = vpop.f32.mrf.mxu0
  %v1862 = vadd.f32 %v1833, %v1861
  %1863 = vmatmul.bf16.gmra.mxu0 %v106
  %v1864 = vpop.f32.mrf.mxu0
  %v1865 = vadd.f32 %v1836, %v1864
  %v1866 = vpop.f32.mrf.mxu0
  %v1867 = vadd.f32 %v1838, %v1866
  %1868 = vmatmul.bf16.gmra.mxu0 %v108
  %v1869 = vpop.f32.mrf.mxu0
  %v1870 = vadd.f32 %v1841, %v1869
  %v1871 = vpop.f32.mrf.mxu0
  %v1872 = vadd.f32 %v1843, %v1871
  %1873 = vmatmul.bf16.gmra.mxu0 %v110
  %v1874 = vpop.f32.mrf.mxu0
  %v1875 = vadd.f32 %v1846, %v1874
  %v1876 = vpop.f32.mrf.mxu0
  %v1877 = vadd.f32 %v1848, %v1876
  %1878 = vdwg.mxu0
  %1879 = vmatpush.bf16.msra.mxu0 %v1251
  %1880 = vmatpush.bf16.msra.mxu0 %v1235
  %1881 = vmatpush.bf16.msra.mxu0 %v1219
  %1882 = vmatpush.bf16.msra.mxu0 %v1203
  %1883 = vmatpush.bf16.msra.mxu0 %v1187
  %1884 = vmatpush.bf16.msra.mxu0 %v1171
  %1885 = vmatpush.bf16.msra.mxu0 %v1155
  %1886 = vmatpush.bf16.msra.mxu0 %v1139
  %1887 = vmatmul.bf16.gmra.mxu0 %v103
  %v1888 = vpop.f32.mrf.mxu0
  %v1889 = vadd.f32 0.0, %v1888
  %v1890 = vpop.f32.mrf.mxu0
  %v1891 = vadd.f32 0.0, %v1890
  %1892 = vmatmul.bf16.gmra.mxu0 %v105
  %v1893 = vpop.f32.mrf.mxu0
  %v1894 = vadd.f32 0.0, %v1893
  %v1895 = vpop.f32.mrf.mxu0
  %v1896 = vadd.f32 0.0, %v1895
  %1897 = vmatmul.bf16.gmra.mxu0 %v107
  %v1898 = vpop.f32.mrf.mxu0
  %v1899 = vadd.f32 0.0, %v1898
  %v1900 = vpop.f32.mrf.mxu0
  %v1901 = vadd.f32 0.0, %v1900
  %1902 = vmatmul.bf16.gmra.mxu0 %v109
  %v1903 = vpop.f32.mrf.mxu0
  %v1904 = vadd.f32 0.0, %v1903
  %v1905 = vpop.f32.mrf.mxu0
  %v1906 = vadd.f32 0.0, %v1905
  %1907 = vdwg.mxu0
  %1908 = vmatpush.bf16.msra.mxu0 %v1379
  %1909 = vmatpush.bf16.msra.mxu0 %v1363
  %1910 = vmatpush.bf16.msra.mxu0 %v1347
  %1911 = vmatpush.bf16.msra.mxu0 %v1331
  %1912 = vmatpush.bf16.msra.mxu0 %v1315
  %1913 = vmatpush.bf16.msra.mxu0 %v1299
  %1914 = vmatpush.bf16.msra.mxu0 %v1283
  %1915 = vmatpush.bf16.msra.mxu0 %v1267
  %1916 = vmatmul.bf16.gmra.mxu0 %v104
  %v1917 = vpop.f32.mrf.mxu0
  %v1918 = vadd.f32 %v1889, %v1917
  %v1919 = vpop.f32.mrf.mxu0
  %v1920 = vadd.f32 %v1891, %v1919
  %1921 = vmatmul.bf16.gmra.mxu0 %v106
  %v1922 = vpop.f32.mrf.mxu0
  %v1923 = vadd.f32 %v1894, %v1922
  %v1924 = vpop.f32.mrf.mxu0
  %v1925 = vadd.f32 %v1896, %v1924
  %1926 = vmatmul.bf16.gmra.mxu0 %v108
  %v1927 = vpop.f32.mrf.mxu0
  %v1928 = vadd.f32 %v1899, %v1927
  %v1929 = vpop.f32.mrf.mxu0
  %v1930 = vadd.f32 %v1901, %v1929
  %1931 = vmatmul.bf16.gmra.mxu0 %v110
  %v1932 = vpop.f32.mrf.mxu0
  %v1933 = vadd.f32 %v1904, %v1932
  %v1934 = vpop.f32.mrf.mxu0
  %v1935 = vadd.f32 %v1906, %v1934
  %1936 = vdwg.mxu0
  %1937 = vmatpush.bf16.msra.mxu0 %v1252
  %1938 = vmatpush.bf16.msra.mxu0 %v1236
  %1939 = vmatpush.bf16.msra.mxu0 %v1220
  %1940 = vmatpush.bf16.msra.mxu0 %v1204
  %1941 = vmatpush.bf16.msra.mxu0 %v1188
  %1942 = vmatpush.bf16.msra.mxu0 %v1172
  %1943 = vmatpush.bf16.msra.mxu0 %v1156
  %1944 = vmatpush.bf16.msra.mxu0 %v1140
  %1945 = vmatmul.bf16.gmra.mxu0 %v103
  %v1946 = vpop.f32.mrf.mxu0
  %v1947 = vadd.f32 0.0, %v1946
  %v1948 = vpop.f32.mrf.mxu0
  %v1949 = vadd.f32 0.0, %v1948
  %1950 = vmatmul.bf16.gmra.mxu0 %v105
  %v1951 = vpop.f32.mrf.mxu0
  %v1952 = vadd.f32 0.0, %v1951
  %v1953 = vpop.f32.mrf.mxu0
  %v1954 = vadd.f32 0.0, %v1953
  %1955 = vmatmul.bf16.gmra.mxu0 %v107
  %v1956 = vpop.f32.mrf.mxu0
  %v1957 = vadd.f32 0.0, %v1956
  %v1958 = vpop.f32.mrf.mxu0
  %v1959 = vadd.f32 0.0, %v1958
  %1960 = vmatmul.bf16.gmra.mxu0 %v109
  %v1961 = vpop.f32.mrf.mxu0
  %v1962 = vadd.f32 0.0, %v1961
  %v1963 = vpop.f32.mrf.mxu0
  %v1964 = vadd.f32 0.0, %v1963
  %1965 = vdwg.mxu0
  %1966 = vmatpush.bf16.msra.mxu0 %v1380
  %1967 = vmatpush.bf16.msra.mxu0 %v1364
  %1968 = vmatpush.bf16.msra.mxu0 %v1348
  %1969 = vmatpush.bf16.msra.mxu0 %v1332
  %1970 = vmatpush.bf16.msra.mxu0 %v1316
  %1971 = vmatpush.bf16.msra.mxu0 %v1300
  %1972 = vmatpush.bf16.msra.mxu0 %v1284
  %1973 = vmatpush.bf16.msra.mxu0 %v1268
  %1974 = vmatmul.bf16.gmra.mxu0 %v104
  %v1975 = vpop.f32.mrf.mxu0
  %v1976 = vadd.f32 %v1947, %v1975
  %v1977 = vpop.f32.mrf.mxu0
  %v1978 = vadd.f32 %v1949, %v1977
  %1979 = vmatmul.bf16.gmra.mxu0 %v106
  %v1980 = vpop.f32.mrf.mxu0
  %v1981 = vadd.f32 %v1952, %v1980
  %v1982 = vpop.f32.mrf.mxu0
  %v1983 = vadd.f32 %v1954, %v1982
  %1984 = vmatmul.bf16.gmra.mxu0 %v108
  %v1985 = vpop.f32.mrf.mxu0
  %v1986 = vadd.f32 %v1957, %v1985
  %v1987 = vpop.f32.mrf.mxu0
  %v1988 = vadd.f32 %v1959, %v1987
  %1989 = vmatmul.bf16.gmra.mxu0 %v110
  %v1990 = vpop.f32.mrf.mxu0
  %v1991 = vadd.f32 %v1962, %v1990
  %v1992 = vpop.f32.mrf.mxu0
  %v1993 = vadd.f32 %v1964, %v1992
  %1994 = vdwg.mxu0
  %1995 = vmatpush.bf16.msra.mxu0 %v1253
  %1996 = vmatpush.bf16.msra.mxu0 %v1237
  %1997 = vmatpush.bf16.msra.mxu0 %v1221
  %1998 = vmatpush.bf16.msra.mxu0 %v1205
  %1999 = vmatpush.bf16.msra.mxu0 %v1189
  %2000 = vmatpush.bf16.msra.mxu0 %v1173
  %2001 = vmatpush.bf16.msra.mxu0 %v1157
  %2002 = vmatpush.bf16.msra.mxu0 %v1141
  %2003 = vmatmul.bf16.gmra.mxu0 %v103
  %v2004 = vpop.f32.mrf.mxu0
  %v2005 = vadd.f32 0.0, %v2004
  %v2006 = vpop.f32.mrf.mxu0
  %v2007 = vadd.f32 0.0, %v2006
  %2008 = vmatmul.bf16.gmra.mxu0 %v105
  %v2009 = vpop.f32.mrf.mxu0
  %v2010 = vadd.f32 0.0, %v2009
  %v2011 = vpop.f32.mrf.mxu0
  %v2012 = vadd.f32 0.0, %v2011
  %2013 = vmatmul.bf16.gmra.mxu0 %v107
  %v2014 = vpop.f32.mrf.mxu0
  %v2015 = vadd.f32 0.0, %v2014
  %v2016 = vpop.f32.mrf.mxu0
  %v2017 = vadd.f32 0.0, %v2016
  %2018 = vmatmul.bf16.gmra.mxu0 %v109
  %v2019 = vpop.f32.mrf.mxu0
  %v2020 = vadd.f32 0.0, %v2019
  %v2021 = vpop.f32.mrf.mxu0
  %v2022 = vadd.f32 0.0, %v2021
  %2023 = vdwg.mxu0
  %2024 = vmatpush.bf16.msra.mxu0 %v1381
  %2025 = vmatpush.bf16.msra.mxu0 %v1365
  %2026 = vmatpush.bf16.msra.mxu0 %v1349
  %2027 = vmatpush.bf16.msra.mxu0 %v1333
  %2028 = vmatpush.bf16.msra.mxu0 %v1317
  %2029 = vmatpush.bf16.msra.mxu0 %v1301
  %2030 = vmatpush.bf16.msra.mxu0 %v1285
  %2031 = vmatpush.bf16.msra.mxu0 %v1269
  %2032 = vmatmul.bf16.gmra.mxu0 %v104
  %v2033 = vpop.f32.mrf.mxu0
  %v2034 = vadd.f32 %v2005, %v2033
  %v2035 = vpop.f32.mrf.mxu0
  %v2036 = vadd.f32 %v2007, %v2035
  %2037 = vmatmul.bf16.gmra.mxu0 %v106
  %v2038 = vpop.f32.mrf.mxu0
  %v2039 = vadd.f32 %v2010, %v2038
  %v2040 = vpop.f32.mrf.mxu0
  %v2041 = vadd.f32 %v2012, %v2040
  %2042 = vmatmul.bf16.gmra.mxu0 %v108
  %v2043 = vpop.f32.mrf.mxu0
  %v2044 = vadd.f32 %v2015, %v2043
  %v2045 = vpop.f32.mrf.mxu0
  %v2046 = vadd.f32 %v2017, %v2045
  %2047 = vmatmul.bf16.gmra.mxu0 %v110
  %v2048 = vpop.f32.mrf.mxu0
  %v2049 = vadd.f32 %v2020, %v2048
  %v2050 = vpop.f32.mrf.mxu0
  %v2051 = vadd.f32 %v2022, %v2050
  %2052 = vdwg.mxu0
  %2053 = vmatpush.bf16.msra.mxu0 %v1254
  %2054 = vmatpush.bf16.msra.mxu0 %v1238
  %2055 = vmatpush.bf16.msra.mxu0 %v1222
  %2056 = vmatpush.bf16.msra.mxu0 %v1206
  %2057 = vmatpush.bf16.msra.mxu0 %v1190
  %2058 = vmatpush.bf16.msra.mxu0 %v1174
  %2059 = vmatpush.bf16.msra.mxu0 %v1158
  %2060 = vmatpush.bf16.msra.mxu0 %v1142
  %2061 = vmatmul.bf16.gmra.mxu0 %v103
  %v2062 = vpop.f32.mrf.mxu0
  %v2063 = vadd.f32 0.0, %v2062
  %v2064 = vpop.f32.mrf.mxu0
  %v2065 = vadd.f32 0.0, %v2064
  %2066 = vmatmul.bf16.gmra.mxu0 %v105
  %v2067 = vpop.f32.mrf.mxu0
  %v2068 = vadd.f32 0.0, %v2067
  %v2069 = vpop.f32.mrf.mxu0
  %v2070 = vadd.f32 0.0, %v2069
  %2071 = vmatmul.bf16.gmra.mxu0 %v107
  %v2072 = vpop.f32.mrf.mxu0
  %v2073 = vadd.f32 0.0, %v2072
  %v2074 = vpop.f32.mrf.mxu0
  %v2075 = vadd.f32 0.0, %v2074
  %2076 = vmatmul.bf16.gmra.mxu0 %v109
  %v2077 = vpop.f32.mrf.mxu0
  %v2078 = vadd.f32 0.0, %v2077
  %v2079 = vpop.f32.mrf.mxu0
  %v2080 = vadd.f32 0.0, %v2079
  %2081 = vdwg.mxu0
  %2082 = vmatpush.bf16.msra.mxu0 %v1382
  %2083 = vmatpush.bf16.msra.mxu0 %v1366
  %2084 = vmatpush.bf16.msra.mxu0 %v1350
  %2085 = vmatpush.bf16.msra.mxu0 %v1334
  %2086 = vmatpush.bf16.msra.mxu0 %v1318
  %2087 = vmatpush.bf16.msra.mxu0 %v1302
  %2088 = vmatpush.bf16.msra.mxu0 %v1286
  %2089 = vmatpush.bf16.msra.mxu0 %v1270
  %2090 = vmatmul.bf16.gmra.mxu0 %v104
  %v2091 = vpop.f32.mrf.mxu0
  %v2092 = vadd.f32 %v2063, %v2091
  %v2093 = vpop.f32.mrf.mxu0
  %v2094 = vadd.f32 %v2065, %v2093
  %2095 = vmatmul.bf16.gmra.mxu0 %v106
  %v2096 = vpop.f32.mrf.mxu0
  %v2097 = vadd.f32 %v2068, %v2096
  %v2098 = vpop.f32.mrf.mxu0
  %v2099 = vadd.f32 %v2070, %v2098
  %2100 = vmatmul.bf16.gmra.mxu0 %v108
  %v2101 = vpop.f32.mrf.mxu0
  %v2102 = vadd.f32 %v2073, %v2101
  %v2103 = vpop.f32.mrf.mxu0
  %v2104 = vadd.f32 %v2075, %v2103
  %2105 = vmatmul.bf16.gmra.mxu0 %v110
  %v2106 = vpop.f32.mrf.mxu0
  %v2107 = vadd.f32 %v2078, %v2106
  %v2108 = vpop.f32.mrf.mxu0
  %v2109 = vadd.f32 %v2080, %v2108
  %2110 = vdwg.mxu0
  %2111 = vmatpush.bf16.msra.mxu0 %v1255
  %2112 = vmatpush.bf16.msra.mxu0 %v1239
  %2113 = vmatpush.bf16.msra.mxu0 %v1223
  %2114 = vmatpush.bf16.msra.mxu0 %v1207
  %2115 = vmatpush.bf16.msra.mxu0 %v1191
  %2116 = vmatpush.bf16.msra.mxu0 %v1175
  %2117 = vmatpush.bf16.msra.mxu0 %v1159
  %2118 = vmatpush.bf16.msra.mxu0 %v1143
  %2119 = vmatmul.bf16.gmra.mxu0 %v103
  %v2120 = vpop.f32.mrf.mxu0
  %v2121 = vadd.f32 0.0, %v2120
  %v2122 = vpop.f32.mrf.mxu0
  %v2123 = vadd.f32 0.0, %v2122
  %2124 = vmatmul.bf16.gmra.mxu0 %v105
  %v2125 = vpop.f32.mrf.mxu0
  %v2126 = vadd.f32 0.0, %v2125
  %v2127 = vpop.f32.mrf.mxu0
  %v2128 = vadd.f32 0.0, %v2127
  %2129 = vmatmul.bf16.gmra.mxu0 %v107
  %v2130 = vpop.f32.mrf.mxu0
  %v2131 = vadd.f32 0.0, %v2130
  %v2132 = vpop.f32.mrf.mxu0
  %v2133 = vadd.f32 0.0, %v2132
  %2134 = vmatmul.bf16.gmra.mxu0 %v109
  %v2135 = vpop.f32.mrf.mxu0
  %v2136 = vadd.f32 0.0, %v2135
  %v2137 = vpop.f32.mrf.mxu0
  %v2138 = vadd.f32 0.0, %v2137
  %2139 = vdwg.mxu0
  %2140 = vmatpush.bf16.msra.mxu0 %v1383
  %2141 = vmatpush.bf16.msra.mxu0 %v1367
  %2142 = vmatpush.bf16.msra.mxu0 %v1351
  %2143 = vmatpush.bf16.msra.mxu0 %v1335
  %2144 = vmatpush.bf16.msra.mxu0 %v1319
  %2145 = vmatpush.bf16.msra.mxu0 %v1303
  %2146 = vmatpush.bf16.msra.mxu0 %v1287
  %2147 = vmatpush.bf16.msra.mxu0 %v1271
  %2148 = vmatmul.bf16.gmra.mxu0 %v104
  %v2149 = vpop.f32.mrf.mxu0
  %v2150 = vadd.f32 %v2121, %v2149
  %v2151 = vpop.f32.mrf.mxu0
  %v2152 = vadd.f32 %v2123, %v2151
  %2153 = vmatmul.bf16.gmra.mxu0 %v106
  %v2154 = vpop.f32.mrf.mxu0
  %v2155 = vadd.f32 %v2126, %v2154
  %v2156 = vpop.f32.mrf.mxu0
  %v2157 = vadd.f32 %v2128, %v2156
  %2158 = vmatmul.bf16.gmra.mxu0 %v108
  %v2159 = vpop.f32.mrf.mxu0
  %v2160 = vadd.f32 %v2131, %v2159
  %v2161 = vpop.f32.mrf.mxu0
  %v2162 = vadd.f32 %v2133, %v2161
  %2163 = vmatmul.bf16.gmra.mxu0 %v110
  %v2164 = vpop.f32.mrf.mxu0
  %v2165 = vadd.f32 %v2136, %v2164
  %v2166 = vpop.f32.mrf.mxu0
  %v2167 = vadd.f32 %v2138, %v2166
  %2168 = vdwg.mxu0
  %2169 = vmatpush.bf16.msra.mxu0 %v1256
  %2170 = vmatpush.bf16.msra.mxu0 %v1240
  %2171 = vmatpush.bf16.msra.mxu0 %v1224
  %2172 = vmatpush.bf16.msra.mxu0 %v1208
  %2173 = vmatpush.bf16.msra.mxu0 %v1192
  %2174 = vmatpush.bf16.msra.mxu0 %v1176
  %2175 = vmatpush.bf16.msra.mxu0 %v1160
  %2176 = vmatpush.bf16.msra.mxu0 %v1144
  %2177 = vmatmul.bf16.gmra.mxu0 %v103
  %v2178 = vpop.f32.mrf.mxu0
  %v2179 = vadd.f32 0.0, %v2178
  %v2180 = vpop.f32.mrf.mxu0
  %v2181 = vadd.f32 0.0, %v2180
  %2182 = vmatmul.bf16.gmra.mxu0 %v105
  %v2183 = vpop.f32.mrf.mxu0
  %v2184 = vadd.f32 0.0, %v2183
  %v2185 = vpop.f32.mrf.mxu0
  %v2186 = vadd.f32 0.0, %v2185
  %2187 = vmatmul.bf16.gmra.mxu0 %v107
  %v2188 = vpop.f32.mrf.mxu0
  %v2189 = vadd.f32 0.0, %v2188
  %v2190 = vpop.f32.mrf.mxu0
  %v2191 = vadd.f32 0.0, %v2190
  %2192 = vmatmul.bf16.gmra.mxu0 %v109
  %v2193 = vpop.f32.mrf.mxu0
  %v2194 = vadd.f32 0.0, %v2193
  %v2195 = vpop.f32.mrf.mxu0
  %v2196 = vadd.f32 0.0, %v2195
  %2197 = vdwg.mxu0
  %2198 = vmatpush.bf16.msra.mxu0 %v1384
  %2199 = vmatpush.bf16.msra.mxu0 %v1368
  %2200 = vmatpush.bf16.msra.mxu0 %v1352
  %2201 = vmatpush.bf16.msra.mxu0 %v1336
  %2202 = vmatpush.bf16.msra.mxu0 %v1320
  %2203 = vmatpush.bf16.msra.mxu0 %v1304
  %2204 = vmatpush.bf16.msra.mxu0 %v1288
  %2205 = vmatpush.bf16.msra.mxu0 %v1272
  %2206 = vmatmul.bf16.gmra.mxu0 %v104
  %v2207 = vpop.f32.mrf.mxu0
  %v2208 = vadd.f32 %v2179, %v2207
  %v2209 = vpop.f32.mrf.mxu0
  %v2210 = vadd.f32 %v2181, %v2209
  %2211 = vmatmul.bf16.gmra.mxu0 %v106
  %v2212 = vpop.f32.mrf.mxu0
  %v2213 = vadd.f32 %v2184, %v2212
  %v2214 = vpop.f32.mrf.mxu0
  %v2215 = vadd.f32 %v2186, %v2214
  %2216 = vmatmul.bf16.gmra.mxu0 %v108
  %v2217 = vpop.f32.mrf.mxu0
  %v2218 = vadd.f32 %v2189, %v2217
  %v2219 = vpop.f32.mrf.mxu0
  %v2220 = vadd.f32 %v2191, %v2219
  %2221 = vmatmul.bf16.gmra.mxu0 %v110
  %v2222 = vpop.f32.mrf.mxu0
  %v2223 = vadd.f32 %v2194, %v2222
  %v2224 = vpop.f32.mrf.mxu0
  %v2225 = vadd.f32 %v2196, %v2224
  %2226 = vdwg.mxu0
  %2227 = vmatpush.bf16.msra.mxu0 %v1257
  %2228 = vmatpush.bf16.msra.mxu0 %v1241
  %2229 = vmatpush.bf16.msra.mxu0 %v1225
  %2230 = vmatpush.bf16.msra.mxu0 %v1209
  %2231 = vmatpush.bf16.msra.mxu0 %v1193
  %2232 = vmatpush.bf16.msra.mxu0 %v1177
  %2233 = vmatpush.bf16.msra.mxu0 %v1161
  %2234 = vmatpush.bf16.msra.mxu0 %v1145
  %2235 = vmatmul.bf16.gmra.mxu0 %v103
  %v2236 = vpop.f32.mrf.mxu0
  %v2237 = vadd.f32 0.0, %v2236
  %v2238 = vpop.f32.mrf.mxu0
  %v2239 = vadd.f32 0.0, %v2238
  %2240 = vmatmul.bf16.gmra.mxu0 %v105
  %v2241 = vpop.f32.mrf.mxu0
  %v2242 = vadd.f32 0.0, %v2241
  %v2243 = vpop.f32.mrf.mxu0
  %v2244 = vadd.f32 0.0, %v2243
  %2245 = vmatmul.bf16.gmra.mxu0 %v107
  %v2246 = vpop.f32.mrf.mxu0
  %v2247 = vadd.f32 0.0, %v2246
  %v2248 = vpop.f32.mrf.mxu0
  %v2249 = vadd.f32 0.0, %v2248
  %2250 = vmatmul.bf16.gmra.mxu0 %v109
  %v2251 = vpop.f32.mrf.mxu0
  %v2252 = vadd.f32 0.0, %v2251
  %v2253 = vpop.f32.mrf.mxu0
  %v2254 = vadd.f32 0.0, %v2253
  %2255 = vdwg.mxu0
  %2256 = vmatpush.bf16.msra.mxu0 %v1385
  %2257 = vmatpush.bf16.msra.mxu0 %v1369
  %2258 = vmatpush.bf16.msra.mxu0 %v1353
  %2259 = vmatpush.bf16.msra.mxu0 %v1337
  %2260 = vmatpush.bf16.msra.mxu0 %v1321
  %2261 = vmatpush.bf16.msra.mxu0 %v1305
  %2262 = vmatpush.bf16.msra.mxu0 %v1289
  %2263 = vmatpush.bf16.msra.mxu0 %v1273
  %2264 = vmatmul.bf16.gmra.mxu0 %v104
  %v2265 = vpop.f32.mrf.mxu0
  %v2266 = vadd.f32 %v2237, %v2265
  %v2267 = vpop.f32.mrf.mxu0
  %v2268 = vadd.f32 %v2239, %v2267
  %2269 = vmatmul.bf16.gmra.mxu0 %v106
  %v2270 = vpop.f32.mrf.mxu0
  %v2271 = vadd.f32 %v2242, %v2270
  %v2272 = vpop.f32.mrf.mxu0
  %v2273 = vadd.f32 %v2244, %v2272
  %2274 = vmatmul.bf16.gmra.mxu0 %v108
  %v2275 = vpop.f32.mrf.mxu0
  %v2276 = vadd.f32 %v2247, %v2275
  %v2277 = vpop.f32.mrf.mxu0
  %v2278 = vadd.f32 %v2249, %v2277
  %2279 = vmatmul.bf16.gmra.mxu0 %v110
  %v2280 = vpop.f32.mrf.mxu0
  %v2281 = vadd.f32 %v2252, %v2280
  %v2282 = vpop.f32.mrf.mxu0
  %v2283 = vadd.f32 %v2254, %v2282
  %2284 = vdwg.mxu0
  %2285 = vmatpush.bf16.msra.mxu0 %v1258
  %2286 = vmatpush.bf16.msra.mxu0 %v1242
  %2287 = vmatpush.bf16.msra.mxu0 %v1226
  %2288 = vmatpush.bf16.msra.mxu0 %v1210
  %2289 = vmatpush.bf16.msra.mxu0 %v1194
  %2290 = vmatpush.bf16.msra.mxu0 %v1178
  %2291 = vmatpush.bf16.msra.mxu0 %v1162
  %2292 = vmatpush.bf16.msra.mxu0 %v1146
  %2293 = vmatmul.bf16.gmra.mxu0 %v103
  %v2294 = vpop.f32.mrf.mxu0
  %v2295 = vadd.f32 0.0, %v2294
  %v2296 = vpop.f32.mrf.mxu0
  %v2297 = vadd.f32 0.0, %v2296
  %2298 = vmatmul.bf16.gmra.mxu0 %v105
  %v2299 = vpop.f32.mrf.mxu0
  %v2300 = vadd.f32 0.0, %v2299
  %v2301 = vpop.f32.mrf.mxu0
  %v2302 = vadd.f32 0.0, %v2301
  %2303 = vmatmul.bf16.gmra.mxu0 %v107
  %v2304 = vpop.f32.mrf.mxu0
  %v2305 = vadd.f32 0.0, %v2304
  %v2306 = vpop.f32.mrf.mxu0
  %v2307 = vadd.f32 0.0, %v2306
  %2308 = vmatmul.bf16.gmra.mxu0 %v109
  %v2309 = vpop.f32.mrf.mxu0
  %v2310 = vadd.f32 0.0, %v2309
  %v2311 = vpop.f32.mrf.mxu0
  %v2312 = vadd.f32 0.0, %v2311
  %2313 = vdwg.mxu0
  %2314 = vmatpush.bf16.msra.mxu0 %v1386
  %2315 = vmatpush.bf16.msra.mxu0 %v1370
  %2316 = vmatpush.bf16.msra.mxu0 %v1354
  %2317 = vmatpush.bf16.msra.mxu0 %v1338
  %2318 = vmatpush.bf16.msra.mxu0 %v1322
  %2319 = vmatpush.bf16.msra.mxu0 %v1306
  %2320 = vmatpush.bf16.msra.mxu0 %v1290
  %2321 = vmatpush.bf16.msra.mxu0 %v1274
  %2322 = vmatmul.bf16.gmra.mxu0 %v104
  %v2323 = vpop.f32.mrf.mxu0
  %v2324 = vadd.f32 %v2295, %v2323
  %v2325 = vpop.f32.mrf.mxu0
  %v2326 = vadd.f32 %v2297, %v2325
  %2327 = vmatmul.bf16.gmra.mxu0 %v106
  %v2328 = vpop.f32.mrf.mxu0
  %v2329 = vadd.f32 %v2300, %v2328
  %v2330 = vpop.f32.mrf.mxu0
  %v2331 = vadd.f32 %v2302, %v2330
  %2332 = vmatmul.bf16.gmra.mxu0 %v108
  %v2333 = vpop.f32.mrf.mxu0
  %v2334 = vadd.f32 %v2305, %v2333
  %v2335 = vpop.f32.mrf.mxu0
  %v2336 = vadd.f32 %v2307, %v2335
  %2337 = vmatmul.bf16.gmra.mxu0 %v110
  %v2338 = vpop.f32.mrf.mxu0
  %v2339 = vadd.f32 %v2310, %v2338
  %v2340 = vpop.f32.mrf.mxu0
  %v2341 = vadd.f32 %v2312, %v2340
  %2342 = vdwg.mxu0
  %2343 = vmatpush.bf16.msra.mxu0 %v1259
  %2344 = vmatpush.bf16.msra.mxu0 %v1243
  %2345 = vmatpush.bf16.msra.mxu0 %v1227
  %2346 = vmatpush.bf16.msra.mxu0 %v1211
  %2347 = vmatpush.bf16.msra.mxu0 %v1195
  %2348 = vmatpush.bf16.msra.mxu0 %v1179
  %2349 = vmatpush.bf16.msra.mxu0 %v1163
  %2350 = vmatpush.bf16.msra.mxu0 %v1147
  %2351 = vmatmul.bf16.gmra.mxu0 %v103
  %v2352 = vpop.f32.mrf.mxu0
  %v2353 = vadd.f32 0.0, %v2352
  %v2354 = vpop.f32.mrf.mxu0
  %v2355 = vadd.f32 0.0, %v2354
  %2356 = vmatmul.bf16.gmra.mxu0 %v105
  %v2357 = vpop.f32.mrf.mxu0
  %v2358 = vadd.f32 0.0, %v2357
  %v2359 = vpop.f32.mrf.mxu0
  %v2360 = vadd.f32 0.0, %v2359
  %2361 = vmatmul.bf16.gmra.mxu0 %v107
  %v2362 = vpop.f32.mrf.mxu0
  %v2363 = vadd.f32 0.0, %v2362
  %v2364 = vpop.f32.mrf.mxu0
  %v2365 = vadd.f32 0.0, %v2364
  %2366 = vmatmul.bf16.gmra.mxu0 %v109
  %v2367 = vpop.f32.mrf.mxu0
  %v2368 = vadd.f32 0.0, %v2367
  %v2369 = vpop.f32.mrf.mxu0
  %v2370 = vadd.f32 0.0, %v2369
  %2371 = vdwg.mxu0
  %2372 = vmatpush.bf16.msra.mxu0 %v1387
  %2373 = vmatpush.bf16.msra.mxu0 %v1371
  %2374 = vmatpush.bf16.msra.mxu0 %v1355
  %2375 = vmatpush.bf16.msra.mxu0 %v1339
  %2376 = vmatpush.bf16.msra.mxu0 %v1323
  %2377 = vmatpush.bf16.msra.mxu0 %v1307
  %2378 = vmatpush.bf16.msra.mxu0 %v1291
  %2379 = vmatpush.bf16.msra.mxu0 %v1275
  %2380 = vmatmul.bf16.gmra.mxu0 %v104
  %v2381 = vpop.f32.mrf.mxu0
  %v2382 = vadd.f32 %v2353, %v2381
  %v2383 = vpop.f32.mrf.mxu0
  %v2384 = vadd.f32 %v2355, %v2383
  %2385 = vmatmul.bf16.gmra.mxu0 %v106
  %v2386 = vpop.f32.mrf.mxu0
  %v2387 = vadd.f32 %v2358, %v2386
  %v2388 = vpop.f32.mrf.mxu0
  %v2389 = vadd.f32 %v2360, %v2388
  %2390 = vmatmul.bf16.gmra.mxu0 %v108
  %v2391 = vpop.f32.mrf.mxu0
  %v2392 = vadd.f32 %v2363, %v2391
  %v2393 = vpop.f32.mrf.mxu0
  %v2394 = vadd.f32 %v2365, %v2393
  %2395 = vmatmul.bf16.gmra.mxu0 %v110
  %v2396 = vpop.f32.mrf.mxu0
  %v2397 = vadd.f32 %v2368, %v2396
  %v2398 = vpop.f32.mrf.mxu0
  %v2399 = vadd.f32 %v2370, %v2398
  %2400 = vdwg.mxu0
  %2401 = vmatpush.bf16.msra.mxu0 %v1260
  %2402 = vmatpush.bf16.msra.mxu0 %v1244
  %2403 = vmatpush.bf16.msra.mxu0 %v1228
  %2404 = vmatpush.bf16.msra.mxu0 %v1212
  %2405 = vmatpush.bf16.msra.mxu0 %v1196
  %2406 = vmatpush.bf16.msra.mxu0 %v1180
  %2407 = vmatpush.bf16.msra.mxu0 %v1164
  %2408 = vmatpush.bf16.msra.mxu0 %v1148
  %2409 = vmatmul.bf16.gmra.mxu0 %v103
  %v2410 = vpop.f32.mrf.mxu0
  %v2411 = vadd.f32 0.0, %v2410
  %v2412 = vpop.f32.mrf.mxu0
  %v2413 = vadd.f32 0.0, %v2412
  %2414 = vmatmul.bf16.gmra.mxu0 %v105
  %v2415 = vpop.f32.mrf.mxu0
  %v2416 = vadd.f32 0.0, %v2415
  %v2417 = vpop.f32.mrf.mxu0
  %v2418 = vadd.f32 0.0, %v2417
  %2419 = vmatmul.bf16.gmra.mxu0 %v107
  %v2420 = vpop.f32.mrf.mxu0
  %v2421 = vadd.f32 0.0, %v2420
  %v2422 = vpop.f32.mrf.mxu0
  %v2423 = vadd.f32 0.0, %v2422
  %2424 = vmatmul.bf16.gmra.mxu0 %v109
  %v2425 = vpop.f32.mrf.mxu0
  %v2426 = vadd.f32 0.0, %v2425
  %v2427 = vpop.f32.mrf.mxu0
  %v2428 = vadd.f32 0.0, %v2427
  %2429 = vdwg.mxu0
  %2430 = vmatpush.bf16.msra.mxu0 %v1388
  %2431 = vmatpush.bf16.msra.mxu0 %v1372
  %2432 = vmatpush.bf16.msra.mxu0 %v1356
  %2433 = vmatpush.bf16.msra.mxu0 %v1340
  %2434 = vmatpush.bf16.msra.mxu0 %v1324
  %2435 = vmatpush.bf16.msra.mxu0 %v1308
  %2436 = vmatpush.bf16.msra.mxu0 %v1292
  %2437 = vmatpush.bf16.msra.mxu0 %v1276
  %2438 = vmatmul.bf16.gmra.mxu0 %v104
  %v2439 = vpop.f32.mrf.mxu0
  %v2440 = vadd.f32 %v2411, %v2439
  %v2441 = vpop.f32.mrf.mxu0
  %v2442 = vadd.f32 %v2413, %v2441
  %2443 = vmatmul.bf16.gmra.mxu0 %v106
  %v2444 = vpop.f32.mrf.mxu0
  %v2445 = vadd.f32 %v2416, %v2444
  %v2446 = vpop.f32.mrf.mxu0
  %v2447 = vadd.f32 %v2418, %v2446
  %2448 = vmatmul.bf16.gmra.mxu0 %v108
  %v2449 = vpop.f32.mrf.mxu0
  %v2450 = vadd.f32 %v2421, %v2449
  %v2451 = vpop.f32.mrf.mxu0
  %v2452 = vadd.f32 %v2423, %v2451
  %2453 = vmatmul.bf16.gmra.mxu0 %v110
  %v2454 = vpop.f32.mrf.mxu0
  %v2455 = vadd.f32 %v2426, %v2454
  %v2456 = vpop.f32.mrf.mxu0
  %v2457 = vadd.f32 %v2428, %v2456
  %2458 = vdwg.mxu0
  %2459 = vmatpush.bf16.msra.mxu0 %v1261
  %2460 = vmatpush.bf16.msra.mxu0 %v1245
  %2461 = vmatpush.bf16.msra.mxu0 %v1229
  %2462 = vmatpush.bf16.msra.mxu0 %v1213
  %2463 = vmatpush.bf16.msra.mxu0 %v1197
  %2464 = vmatpush.bf16.msra.mxu0 %v1181
  %2465 = vmatpush.bf16.msra.mxu0 %v1165
  %2466 = vmatpush.bf16.msra.mxu0 %v1149
  %2467 = vmatmul.bf16.gmra.mxu0 %v103
  %v2468 = vpop.f32.mrf.mxu0
  %v2469 = vadd.f32 0.0, %v2468
  %v2470 = vpop.f32.mrf.mxu0
  %v2471 = vadd.f32 0.0, %v2470
  %2472 = vmatmul.bf16.gmra.mxu0 %v105
  %v2473 = vpop.f32.mrf.mxu0
  %v2474 = vadd.f32 0.0, %v2473
  %v2475 = vpop.f32.mrf.mxu0
  %v2476 = vadd.f32 0.0, %v2475
  %2477 = vmatmul.bf16.gmra.mxu0 %v107
  %v2478 = vpop.f32.mrf.mxu0
  %v2479 = vadd.f32 0.0, %v2478
  %v2480 = vpop.f32.mrf.mxu0
  %v2481 = vadd.f32 0.0, %v2480
  %2482 = vmatmul.bf16.gmra.mxu0 %v109
  %v2483 = vpop.f32.mrf.mxu0
  %v2484 = vadd.f32 0.0, %v2483
  %v2485 = vpop.f32.mrf.mxu0
  %v2486 = vadd.f32 0.0, %v2485
  %2487 = vdwg.mxu0
  %2488 = vmatpush.bf16.msra.mxu0 %v1389
  %2489 = vmatpush.bf16.msra.mxu0 %v1373
  %2490 = vmatpush.bf16.msra.mxu0 %v1357
  %2491 = vmatpush.bf16.msra.mxu0 %v1341
  %2492 = vmatpush.bf16.msra.mxu0 %v1325
  %2493 = vmatpush.bf16.msra.mxu0 %v1309
  %2494 = vmatpush.bf16.msra.mxu0 %v1293
  %2495 = vmatpush.bf16.msra.mxu0 %v1277
  %2496 = vmatmul.bf16.gmra.mxu0 %v104
  %v2497 = vpop.f32.mrf.mxu0
  %v2498 = vadd.f32 %v2469, %v2497
  %v2499 = vpop.f32.mrf.mxu0
  %v2500 = vadd.f32 %v2471, %v2499
  %2501 = vmatmul.bf16.gmra.mxu0 %v106
  %v2502 = vpop.f32.mrf.mxu0
  %v2503 = vadd.f32 %v2474, %v2502
  %v2504 = vpop.f32.mrf.mxu0
  %v2505 = vadd.f32 %v2476, %v2504
  %2506 = vmatmul.bf16.gmra.mxu0 %v108
  %v2507 = vpop.f32.mrf.mxu0
  %v2508 = vadd.f32 %v2479, %v2507
  %v2509 = vpop.f32.mrf.mxu0
  %v2510 = vadd.f32 %v2481, %v2509
  %2511 = vmatmul.bf16.gmra.mxu0 %v110
  %v2512 = vpop.f32.mrf.mxu0
  %v2513 = vadd.f32 %v2484, %v2512
  %v2514 = vpop.f32.mrf.mxu0
  %v2515 = vadd.f32 %v2486, %v2514
  %2516 = vdwg.mxu0
  %2517 = vmatpush.bf16.msra.mxu0 %v1262
  %2518 = vmatpush.bf16.msra.mxu0 %v1246
  %2519 = vmatpush.bf16.msra.mxu0 %v1230
  %2520 = vmatpush.bf16.msra.mxu0 %v1214
  %2521 = vmatpush.bf16.msra.mxu0 %v1198
  %2522 = vmatpush.bf16.msra.mxu0 %v1182
  %2523 = vmatpush.bf16.msra.mxu0 %v1166
  %2524 = vmatpush.bf16.msra.mxu0 %v1150
  %2525 = vmatmul.bf16.gmra.mxu0 %v103
  %v2526 = vpop.f32.mrf.mxu0
  %v2527 = vadd.f32 0.0, %v2526
  %v2528 = vpop.f32.mrf.mxu0
  %v2529 = vadd.f32 0.0, %v2528
  %2530 = vmatmul.bf16.gmra.mxu0 %v105
  %v2531 = vpop.f32.mrf.mxu0
  %v2532 = vadd.f32 0.0, %v2531
  %v2533 = vpop.f32.mrf.mxu0
  %v2534 = vadd.f32 0.0, %v2533
  %2535 = vmatmul.bf16.gmra.mxu0 %v107
  %v2536 = vpop.f32.mrf.mxu0
  %v2537 = vadd.f32 0.0, %v2536
  %v2538 = vpop.f32.mrf.mxu0
  %v2539 = vadd.f32 0.0, %v2538
  %2540 = vmatmul.bf16.gmra.mxu0 %v109
  %v2541 = vpop.f32.mrf.mxu0
  %v2542 = vadd.f32 0.0, %v2541
  %v2543 = vpop.f32.mrf.mxu0
  %v2544 = vadd.f32 0.0, %v2543
  %2545 = vdwg.mxu0
  %2546 = vmatpush.bf16.msra.mxu0 %v1390
  %2547 = vmatpush.bf16.msra.mxu0 %v1374
  %2548 = vmatpush.bf16.msra.mxu0 %v1358
  %2549 = vmatpush.bf16.msra.mxu0 %v1342
  %2550 = vmatpush.bf16.msra.mxu0 %v1326
  %2551 = vmatpush.bf16.msra.mxu0 %v1310
  %2552 = vmatpush.bf16.msra.mxu0 %v1294
  %2553 = vmatpush.bf16.msra.mxu0 %v1278
  %2554 = vmatmul.bf16.gmra.mxu0 %v104
  %v2555 = vpop.f32.mrf.mxu0
  %v2556 = vadd.f32 %v2527, %v2555
  %v2557 = vpop.f32.mrf.mxu0
  %v2558 = vadd.f32 %v2529, %v2557
  %2559 = vmatmul.bf16.gmra.mxu0 %v106
  %v2560 = vpop.f32.mrf.mxu0
  %v2561 = vadd.f32 %v2532, %v2560
  %v2562 = vpop.f32.mrf.mxu0
  %v2563 = vadd.f32 %v2534, %v2562
  %2564 = vmatmul.bf16.gmra.mxu0 %v108
  %v2565 = vpop.f32.mrf.mxu0
  %v2566 = vadd.f32 %v2537, %v2565
  %v2567 = vpop.f32.mrf.mxu0
  %v2568 = vadd.f32 %v2539, %v2567
  %2569 = vmatmul.bf16.gmra.mxu0 %v110
  %v2570 = vpop.f32.mrf.mxu0
  %v2571 = vadd.f32 %v2542, %v2570
  %v2572 = vpop.f32.mrf.mxu0
  %v2573 = vadd.f32 %v2544, %v2572
  %2574 = vdwg.mxu0
  %2575 = vst [vmem:[%s4] sm:$0xff] %v1686
  %2576 = vst [vmem:[%s4 + $0x8] sm:$0xff] %v1744
  %2577 = vst [vmem:[%s4 + $0x10] sm:$0xff] %v1802
  %2578 = vst [vmem:[%s4 + $0x18] sm:$0xff] %v1860
  %2579 = vst [vmem:[%s4 + $0x20] sm:$0xff] %v1918
  %2580 = vst [vmem:[%s4 + $0x28] sm:$0xff] %v1976
  %2581 = vst [vmem:[%s4 + $0x30] sm:$0xff] %v2034
  %2582 = vst [vmem:[%s4 + $0x38] sm:$0xff] %v2092
  %2583 = vst [vmem:[%s4 + $0x40] sm:$0xff] %v2150
  %2584 = vst [vmem:[%s4 + $0x48] sm:$0xff] %v2208
  %2585 = vst [vmem:[%s4 + $0x50] sm:$0xff] %v2266
  %2586 = vst [vmem:[%s4 + $0x58] sm:$0xff] %v2324
  %2587 = vst [vmem:[%s4 + $0x60] sm:$0xff] %v2382
  %2588 = vst [vmem:[%s4 + $0x68] sm:$0xff] %v2440
  %2589 = vst [vmem:[%s4 + $0x70] sm:$0xff] %v2498
  %2590 = vst [vmem:[%s4 + $0x78] sm:$0xff] %v2556
  %2591 = vst [vmem:[%s4 + $0x80] sm:$0xff] %v1688
  %2592 = vst [vmem:[%s4 + $0x88] sm:$0xff] %v1746
  %2593 = vst [vmem:[%s4 + $0x90] sm:$0xff] %v1804
  %2594 = vst [vmem:[%s4 + $0x98] sm:$0xff] %v1862
  %2595 = vst [vmem:[%s4 + $0xa0] sm:$0xff] %v1920
  %2596 = vst [vmem:[%s4 + $0xa8] sm:$0xff] %v1978
  %2597 = vst [vmem:[%s4 + $0xb0] sm:$0xff] %v2036
  %2598 = vst [vmem:[%s4 + $0xb8] sm:$0xff] %v2094
  %2599 = vst [vmem:[%s4 + $0xc0] sm:$0xff] %v2152
  %2600 = vst [vmem:[%s4 + $0xc8] sm:$0xff] %v2210
  %2601 = vst [vmem:[%s4 + $0xd0] sm:$0xff] %v2268
  %2602 = vst [vmem:[%s4 + $0xd8] sm:$0xff] %v2326
  %2603 = vst [vmem:[%s4 + $0xe0] sm:$0xff] %v2384
  %2604 = vst [vmem:[%s4 + $0xe8] sm:$0xff] %v2442
  %2605 = vst [vmem:[%s4 + $0xf0] sm:$0xff] %v2500
  %2606 = vst [vmem:[%s4 + $0xf8] sm:$0xff] %v2558
  %2607 = vst [vmem:[%s4 + $0x100] sm:$0xff] %v1691
  %2608 = vst [vmem:[%s4 + $0x108] sm:$0xff] %v1749
  %2609 = vst [vmem:[%s4 + $0x110] sm:$0xff] %v1807
  %2610 = vst [vmem:[%s4 + $0x118] sm:$0xff] %v1865
  %2611 = vst [vmem:[%s4 + $0x120] sm:$0xff] %v1923
  %2612 = vst [vmem:[%s4 + $0x128] sm:$0xff] %v1981
  %2613 = vst [vmem:[%s4 + $0x130] sm:$0xff] %v2039
  %2614 = vst [vmem:[%s4 + $0x138] sm:$0xff] %v2097
  %2615 = vst [vmem:[%s4 + $0x140] sm:$0xff] %v2155
  %2616 = vst [vmem:[%s4 + $0x148] sm:$0xff] %v2213
  %2617 = vst [vmem:[%s4 + $0x150] sm:$0xff] %v2271
  %2618 = vst [vmem:[%s4 + $0x158] sm:$0xff] %v2329
  %2619 = vst [vmem:[%s4 + $0x160] sm:$0xff] %v2387
  %2620 = vst [vmem:[%s4 + $0x168] sm:$0xff] %v2445
  %2621 = vst [vmem:[%s4 + $0x170] sm:$0xff] %v2503
  %2622 = vst [vmem:[%s4 + $0x178] sm:$0xff] %v2561
  %2623 = vst [vmem:[%s4 + $0x180] sm:$0xff] %v1693
  %2624 = vst [vmem:[%s4 + $0x188] sm:$0xff] %v1751
  %2625 = vst [vmem:[%s4 + $0x190] sm:$0xff] %v1809
  %2626 = vst [vmem:[%s4 + $0x198] sm:$0xff] %v1867
  %2627 = vst [vmem:[%s4 + $0x1a0] sm:$0xff] %v1925
  %2628 = vst [vmem:[%s4 + $0x1a8] sm:$0xff] %v1983
  %2629 = vst [vmem:[%s4 + $0x1b0] sm:$0xff] %v2041
  %2630 = vst [vmem:[%s4 + $0x1b8] sm:$0xff] %v2099
  %2631 = vst [vmem:[%s4 + $0x1c0] sm:$0xff] %v2157
  %2632 = vst [vmem:[%s4 + $0x1c8] sm:$0xff] %v2215
  %2633 = vst [vmem:[%s4 + $0x1d0] sm:$0xff] %v2273
  %2634 = vst [vmem:[%s4 + $0x1d8] sm:$0xff] %v2331
  %2635 = vst [vmem:[%s4 + $0x1e0] sm:$0xff] %v2389
  %2636 = vst [vmem:[%s4 + $0x1e8] sm:$0xff] %v2447
  %2637 = vst [vmem:[%s4 + $0x1f0] sm:$0xff] %v2505
  %2638 = vst [vmem:[%s4 + $0x1f8] sm:$0xff] %v2563
  %2639 = vst [vmem:[%s4 + $0x200] sm:$0xff] %v1696
  %2640 = vst [vmem:[%s4 + $0x208] sm:$0xff] %v1754
  %2641 = vst [vmem:[%s4 + $0x210] sm:$0xff] %v1812
  %2642 = vst [vmem:[%s4 + $0x218] sm:$0xff] %v1870
  %2643 = vst [vmem:[%s4 + $0x220] sm:$0xff] %v1928
  %2644 = vst [vmem:[%s4 + $0x228] sm:$0xff] %v1986
  %2645 = vst [vmem:[%s4 + $0x230] sm:$0xff] %v2044
  %2646 = vst [vmem:[%s4 + $0x238] sm:$0xff] %v2102
  %2647 = vst [vmem:[%s4 + $0x240] sm:$0xff] %v2160
  %2648 = vst [vmem:[%s4 + $0x248] sm:$0xff] %v2218
  %2649 = vst [vmem:[%s4 + $0x250] sm:$0xff] %v2276
  %2650 = vst [vmem:[%s4 + $0x258] sm:$0xff] %v2334
  %2651 = vst [vmem:[%s4 + $0x260] sm:$0xff] %v2392
  %2652 = vst [vmem:[%s4 + $0x268] sm:$0xff] %v2450
  %2653 = vst [vmem:[%s4 + $0x270] sm:$0xff] %v2508
  %2654 = vst [vmem:[%s4 + $0x278] sm:$0xff] %v2566
  %2655 = vst [vmem:[%s4 + $0x280] sm:$0xff] %v1698
  %2656 = vst [vmem:[%s4 + $0x288] sm:$0xff] %v1756
  %2657 = vst [vmem:[%s4 + $0x290] sm:$0xff] %v1814
  %2658 = vst [vmem:[%s4 + $0x298] sm:$0xff] %v1872
  %2659 = vst [vmem:[%s4 + $0x2a0] sm:$0xff] %v1930
  %2660 = vst [vmem:[%s4 + $0x2a8] sm:$0xff] %v1988
  %2661 = vst [vmem:[%s4 + $0x2b0] sm:$0xff] %v2046
  %2662 = vst [vmem:[%s4 + $0x2b8] sm:$0xff] %v2104
  %2663 = vst [vmem:[%s4 + $0x2c0] sm:$0xff] %v2162
  %2664 = vst [vmem:[%s4 + $0x2c8] sm:$0xff] %v2220
  %2665 = vst [vmem:[%s4 + $0x2d0] sm:$0xff] %v2278
  %2666 = vst [vmem:[%s4 + $0x2d8] sm:$0xff] %v2336
  %2667 = vst [vmem:[%s4 + $0x2e0] sm:$0xff] %v2394
  %2668 = vst [vmem:[%s4 + $0x2e8] sm:$0xff] %v2452
  %2669 = vst [vmem:[%s4 + $0x2f0] sm:$0xff] %v2510
  %2670 = vst [vmem:[%s4 + $0x2f8] sm:$0xff] %v2568
  %2671 = vst [vmem:[%s4 + $0x300] sm:$0xff] %v1701
  %2672 = vst [vmem:[%s4 + $0x308] sm:$0xff] %v1759
  %2673 = vst [vmem:[%s4 + $0x310] sm:$0xff] %v1817
  %2674 = vst [vmem:[%s4 + $0x318] sm:$0xff] %v1875
  %2675 = vst [vmem:[%s4 + $0x320] sm:$0xff] %v1933
  %2676 = vst [vmem:[%s4 + $0x328] sm:$0xff] %v1991
  %2677 = vst [vmem:[%s4 + $0x330] sm:$0xff] %v2049
  %2678 = vst [vmem:[%s4 + $0x338] sm:$0xff] %v2107
  %2679 = vst [vmem:[%s4 + $0x340] sm:$0xff] %v2165
  %2680 = vst [vmem:[%s4 + $0x348] sm:$0xff] %v2223
  %2681 = vst [vmem:[%s4 + $0x350] sm:$0xff] %v2281
  %2682 = vst [vmem:[%s4 + $0x358] sm:$0xff] %v2339
  %2683 = vst [vmem:[%s4 + $0x360] sm:$0xff] %v2397
  %2684 = vst [vmem:[%s4 + $0x368] sm:$0xff] %v2455
  %2685 = vst [vmem:[%s4 + $0x370] sm:$0xff] %v2513
  %2686 = vst [vmem:[%s4 + $0x378] sm:$0xff] %v2571
  %2687 = vst [vmem:[%s4 + $0x380] sm:$0xff] %v1703
  %2688 = vst [vmem:[%s4 + $0x388] sm:$0xff] %v1761
  %2689 = vst [vmem:[%s4 + $0x390] sm:$0xff] %v1819
  %2690 = vst [vmem:[%s4 + $0x398] sm:$0xff] %v1877
  %2691 = vst [vmem:[%s4 + $0x3a0] sm:$0xff] %v1935
  %2692 = vst [vmem:[%s4 + $0x3a8] sm:$0xff] %v1993
  %2693 = vst [vmem:[%s4 + $0x3b0] sm:$0xff] %v2051
  %2694 = vst [vmem:[%s4 + $0x3b8] sm:$0xff] %v2109
  %2695 = vst [vmem:[%s4 + $0x3c0] sm:$0xff] %v2167
  %2696 = vst [vmem:[%s4 + $0x3c8] sm:$0xff] %v2225
  %2697 = vst [vmem:[%s4 + $0x3d0] sm:$0xff] %v2283
  %2698 = vst [vmem:[%s4 + $0x3d8] sm:$0xff] %v2341
  %2699 = vst [vmem:[%s4 + $0x3e0] sm:$0xff] %v2399
  %2700 = vst [vmem:[%s4 + $0x3e8] sm:$0xff] %v2457
  %2701 = vst [vmem:[%s4 + $0x3f0] sm:$0xff] %v2515
  %2702 = vst [vmem:[%s4 + $0x3f8] sm:$0xff] %v2573
  // Predicated region
  $region18: #{generator_forward.13} parent=0 // pred_check
    _
  $region19: #{generator_forward.13} parent=0 // pred_check_branch
    %2704 = sbr.rel (0) target = $region21
  $region20: #{generator_forward.13} parent=0 // pred_region
    _
  $region21: #{generator_forward.13} parent=0 // pred_fallthru
    _
  // Predicated region
  $region22: #{generator_forward.13} parent=0 // pred_check
    _
  $region23: #{generator_forward.13} parent=0 // pred_check_branch
    %2706 = sbr.rel (0) target = $region25
  $region24: #{generator_forward.13} parent=0 // pred_region
    _
  $region25: #{generator_forward.13} parent=0 // pred_fallthru
    _

// kernel: tile.53
$region0: #{tile.53}
  #allocation0 [shape = 's32[1]{0}', space=sflag, size = 0x4, scoped, tag = 'scoped memory for tile.53']
  %s0 = inlined_call_operand.vmem [shape: f32[4], index: 0, kind: input, shape index: {}]
  %s1 = inlined_call_operand.vmem [shape: f32[64,4], index: 1, kind: output, shape index: {}]
  // Predicated region
  $region2: #{tile.53} parent=0 // pred_check
    _
  $region3: #{tile.53} parent=0 // pred_check_branch
    %3 = sbr.rel (0) target = $region5
  $region4: #{tile.53} parent=0 // pred_region
    _
  $region5: #{tile.53} parent=0 // pred_fallthru
    _
  %v4 = vld [vmem:[%s0] ss:$0 sm:$0xff]
  %5 = vst [vmem:[%s1] sm:$0xff] %v4
  %s6 = scalar_lea.vmem %s1, 8
  %7 = vst [vmem:[%s6] sm:$0xff] %v4
  %s8 = scalar_lea.vmem %s1, 16
  %9 = vst [vmem:[%s8] sm:$0xff] %v4
  %s10 = scalar_lea.vmem %s1, 24
  %11 = vst [vmem:[%s10] sm:$0xff] %v4
  %s12 = scalar_lea.vmem %s1, 32
  %13 = vst [vmem:[%s12] sm:$0xff] %v4
  %s14 = scalar_lea.vmem %s1, 40
  %15 = vst [vmem:[%s14] sm:$0xff] %v4
  %s16 = scalar_lea.vmem %s1, 48
  %17 = vst [vmem:[%s16] sm:$0xff] %v4
  %s18 = scalar_lea.vmem %s1, 56
  %19 = vst [vmem:[%s18] sm:$0xff] %v4

// kernel: tile.54
$region0: #{tile.54}
  %s0 = inlined_call_operand.vmem [shape: f32[64,4], index: 0, kind: input, shape index: {}]
  %s1 = inlined_call_operand.vmem [shape: f32[1,256], index: 1, kind: output, shape index: {}]
  $region1: #{tile.54} parent=0
    #allocation0 [shape = 'u8[8192]{0}', space=vmem, size = 0x2000, scoped, tag = 'scoped mem for output reshape']
    %v2 = vld [vmem:[%s0] sm:$0x1]
    %s3 = scalar_lea.vmem %s0, 31
    %v4 = vld [vmem:[%s3] sm:$0x2]
    %vm5 = vcmask 1041409
    %v6 = vsel %vm5, %v4, %v2
    %vm7 = vcmask 31744
    %8 = vst.msk [vmem:[#allocation0] ss:$8 sm:$0x3] %vm7, %v6
    %s9 = scalar_lea.vmem %s0, 31
    %v10 = vld [vmem:[%s9] sm:$0x1]
    %s11 = scalar_lea.vmem %s0, 62
    %v12 = vld [vmem:[%s11] sm:$0x2]
    %vm13 = vcmask 1041409
    %v14 = vsel %vm13, %v12, %v10
    %15 = vrot.lane.b32.xlu0 %v14, 124
    %v16 = vpop.permute.xlu0 %15
    %vm17 = vcmask 1048544
    %18 = vst.msk [vmem:[#allocation0] ss:$8 sm:$0x3] %vm17, %v16
    %s19 = scalar_lea.vmem %s0, 30
    %v20 = vld [vmem:[%s19] sm:$0x1]
    %s21 = scalar_lea.vmem %s0, 61
    %v22 = vld [vmem:[%s21] sm:$0x2]
    %vm23 = vcmask 1041409
    %v24 = vsel %vm23, %v22, %v20
    %25 = vrot.lane.b32.xlu0 %v24, 120
    %v26 = vpop.permute.xlu0 %25
    %vm27 = vcmask 1015744
    %28 = vst.msk [vmem:[#allocation0] ss:$8 sm:$0x3] %vm27, %v26
    %s29 = scalar_lea.vmem %s0, 29
    %v30 = vld [vmem:[%s29] sm:$0x1]
    %s31 = scalar_lea.vmem %s0, 60
    %v32 = vld [vmem:[%s31] sm:$0x2]
    %vm33 = vcmask 1041409
    %v34 = vsel %vm33, %v32, %v30
    %35 = vrot.lane.b32.xlu0 %v34, 116
    %v36 = vpop.permute.xlu0 %35
    %vm37 = vcmask 982944
    %38 = vst.msk [vmem:[#allocation0] ss:$8 sm:$0x3] %vm37, %v36
    %s39 = scalar_lea.vmem %s0, 28
    %v40 = vld [vmem:[%s39] sm:$0x1]
    %s41 = scalar_lea.vmem %s0, 59
    %v42 = vld [vmem:[%s41] sm:$0x2]
    %vm43 = vcmask 1041409
    %v44 = vsel %vm43, %v42, %v40
    %45 = vrot.lane.b32.xlu0 %v44, 112
    %v46 = vpop.permute.xlu0 %45
    %vm47 = vcmask 950144
    %48 = vst.msk [vmem:[#allocation0] ss:$8 sm:$0x3] %vm47, %v46
    %s49 = scalar_lea.vmem %s0, 27
    %v50 = vld [vmem:[%s49] sm:$0x1]
    %s51 = scalar_lea.vmem %s0, 58
    %v52 = vld [vmem:[%s51] sm:$0x2]
    %vm53 = vcmask 1041409
    %v54 = vsel %vm53, %v52, %v50
    %55 = vrot.lane.b32.xlu0 %v54, 108
    %v56 = vpop.permute.xlu0 %55
    %vm57 = vcmask 917344
    %58 = vst.msk [vmem:[#allocation0] ss:$8 sm:$0x3] %vm57, %v56
    %s59 = scalar_lea.vmem %s0, 26
    %v60 = vld [vmem:[%s59] sm:$0x1]
    %s61 = scalar_lea.vmem %s0, 57
    %v62 = vld [vmem:[%s61] sm:$0x2]
    %vm63 = vcmask 1041409
    %v64 = vsel %vm63, %v62, %v60
    %65 = vrot.lane.b32.xlu0 %v64, 104
    %v66 = vpop.permute.xlu0 %65
    %vm67 = vcmask 884544
    %68 = vst.msk [vmem:[#allocation0] ss:$8 sm:$0x3] %vm67, %v66
    %s69 = scalar_lea.vmem %s0, 25
    %v70 = vld [vmem:[%s69] sm:$0x1]
    %s71 = scalar_lea.vmem %s0, 56
    %v72 = vld [vmem:[%s71] sm:$0x2]
    %vm73 = vcmask 1041409
    %v74 = vsel %vm73, %v72, %v70
    %75 = vrot.lane.b32.xlu0 %v74, 100
    %v76 = vpop.permute.xlu0 %75
    %vm77 = vcmask 851744
    %78 = vst.msk [vmem:[#allocation0] ss:$8 sm:$0x3] %vm77, %v76
    %s79 = scalar_lea.vmem %s0, 24
    %v80 = vld [vmem:[%s79] sm:$0x1]
    %s81 = scalar_lea.vmem %s0, 55
    %v82 = vld [vmem:[%s81] sm:$0x2]
    %vm83 = vcmask 1041409
    %v84 = vsel %vm83, %v82, %v80
    %85 = vrot.lane.b32.xlu0 %v84, 96
    %v86 = vpop.permute.xlu0 %85
    %vm87 = vcmask 818944
    %88 = vst.msk [vmem:[#allocation0] ss:$8 sm:$0x3] %vm87, %v86
    %s89 = scalar_lea.vmem %s0, 23
    %v90 = vld [vmem:[%s89] sm:$0x1]
    %s91 = scalar_lea.vmem %s0, 54
    %v92 = vld [vmem:[%s91] sm:$0x2]
    %vm93 = vcmask 1041409
    %v94 = vsel %vm93, %v92, %v90
    %95 = vrot.lane.b32.xlu0 %v94, 92
    %v96 = vpop.permute.xlu0 %95
    %vm97 = vcmask 786144
    %98 = vst.msk [vmem:[#allocation0] ss:$8 sm:$0x3] %vm97, %v96
    %s99 = scalar_lea.vmem %s0, 22
    %v100 = vld [vmem:[%s99] sm:$0x1]
    %s101 = scalar_lea.vmem %s0, 53
    %v102 = vld [vmem:[%s101] sm:$0x2]
    %vm103 = vcmask 1041409
    %v104 = vsel %vm103, %v102, %v100
    %105 = vrot.lane.b32.xlu0 %v104, 88
    %v106 = vpop.permute.xlu0 %105
    %vm107 = vcmask 753344
    %108 = vst.msk [vmem:[#allocation0] ss:$8 sm:$0x3] %vm107, %v106
    %s109 = scalar_lea.vmem %s0, 21
    %v110 = vld [vmem:[%s109] sm:$0x1]
    %s111 = scalar_lea.vmem %s0, 52
    %v112 = vld [vmem:[%s111] sm:$0x2]
    %vm113 = vcmask 1041409
    %v114 = vsel %vm113, %v112, %v110
    %115 = vrot.lane.b32.xlu0 %v114, 84
    %v116 = vpop.permute.xlu0 %115
    %vm117 = vcmask 720544
    %118 = vst.msk [vmem:[#allocation0] ss:$8 sm:$0x3] %vm117, %v116
    %s119 = scalar_lea.vmem %s0, 20
    %v120 = vld [vmem:[%s119] sm:$0x1]
    %s121 = scalar_lea.vmem %s0, 51
    %v122 = vld [vmem:[%s121] sm:$0x2]
    %vm123 = vcmask 1041409
    %v124 = vsel %vm123, %v122, %v120
    %125 = vrot.lane.b32.xlu0 %v124, 80
    %v126 = vpop.permute.xlu0 %125
    %vm127 = vcmask 687744
    %128 = vst.msk [vmem:[#allocation0] ss:$8 sm:$0x3] %vm127, %v126
    %s129 = scalar_lea.vmem %s0, 19
    %v130 = vld [vmem:[%s129] sm:$0x1]
    %s131 = scalar_lea.vmem %s0, 50
    %v132 = vld [vmem:[%s131] sm:$0x2]
    %vm133 = vcmask 1041409
    %v134 = vsel %vm133, %v132, %v130
    %135 = vrot.lane.b32.xlu0 %v134, 76
    %v136 = vpop.permute.xlu0 %135
    %vm137 = vcmask 654944
    %138 = vst.msk [vmem:[#allocation0] ss:$8 sm:$0x3] %vm137, %v136
    %s139 = scalar_lea.vmem %s0, 18
    %v140 = vld [vmem:[%s139] sm:$0x1]
    %s141 = scalar_lea.vmem %s0, 49
    %v142 = vld [vmem:[%s141] sm:$0x2]
    %vm143 = vcmask 1041409
    %v144 = vsel %vm143, %v142, %v140
    %145 = vrot.lane.b32.xlu0 %v144, 72
    %v146 = vpop.permute.xlu0 %145
    %vm147 = vcmask 622144
    %148 = vst.msk [vmem:[#allocation0] ss:$8 sm:$0x3] %vm147, %v146
    %s149 = scalar_lea.vmem %s0, 17
    %v150 = vld [vmem:[%s149] sm:$0x1]
    %s151 = scalar_lea.vmem %s0, 48
    %v152 = vld [vmem:[%s151] sm:$0x2]
    %vm153 = vcmask 1041409
    %v154 = vsel %vm153, %v152, %v150
    %155 = vrot.lane.b32.xlu0 %v154, 68
    %v156 = vpop.permute.xlu0 %155
    %vm157 = vcmask 589344
    %158 = vst.msk [vmem:[#allocation0] ss:$8 sm:$0x3] %vm157, %v156
    %s159 = scalar_lea.vmem %s0, 16
    %v160 = vld [vmem:[%s159] sm:$0x1]
    %s161 = scalar_lea.vmem %s0, 47
    %v162 = vld [vmem:[%s161] sm:$0x2]
    %vm163 = vcmask 1041409
    %v164 = vsel %vm163, %v162, %v160
    %165 = vrot.lane.b32.xlu0 %v164, 64
    %v166 = vpop.permute.xlu0 %165
    %vm167 = vcmask 556544
    %168 = vst.msk [vmem:[#allocation0] ss:$8 sm:$0x3] %vm167, %v166
    %s169 = scalar_lea.vmem %s0, 15
    %v170 = vld [vmem:[%s169] sm:$0x1]
    %s171 = scalar_lea.vmem %s0, 46
    %v172 = vld [vmem:[%s171] sm:$0x2]
    %vm173 = vcmask 1041409
    %v174 = vsel %vm173, %v172, %v170
    %175 = vrot.lane.b32.xlu0 %v174, 60
    %v176 = vpop.permute.xlu0 %175
    %vm177 = vcmask 523744
    %178 = vst.msk [vmem:[#allocation0] ss:$8 sm:$0x3] %vm177, %v176
    %s179 = scalar_lea.vmem %s0, 14
    %v180 = vld [vmem:[%s179] sm:$0x1]
    %s181 = scalar_lea.vmem %s0, 45
    %v182 = vld [vmem:[%s181] sm:$0x2]
    %vm183 = vcmask 1041409
    %v184 = vsel %vm183, %v182, %v180
    %185 = vrot.lane.b32.xlu0 %v184, 56
    %v186 = vpop.permute.xlu0 %185
    %vm187 = vcmask 490944
    %188 = vst.msk [vmem:[#allocation0] ss:$8 sm:$0x3] %vm187, %v186
    %s189 = scalar_lea.vmem %s0, 13
    %v190 = vld [vmem:[%s189] sm:$0x1]
    %s191 = scalar_lea.vmem %s0, 44
    %v192 = vld [vmem:[%s191] sm:$0x2]
    %vm193 = vcmask 1041409
    %v194 = vsel %vm193, %v192, %v190
    %195 = vrot.lane.b32.xlu0 %v194, 52
    %v196 = vpop.permute.xlu0 %195
    %vm197 = vcmask 458144
    %198 = vst.msk [vmem:[#allocation0] ss:$8 sm:$0x3] %vm197, %v196
    %s199 = scalar_lea.vmem %s0, 12
    %v200 = vld [vmem:[%s199] sm:$0x1]
    %s201 = scalar_lea.vmem %s0, 43
    %v202 = vld [vmem:[%s201] sm:$0x2]
    %vm203 = vcmask 1041409
    %v204 = vsel %vm203, %v202, %v200
    %205 = vrot.lane.b32.xlu0 %v204, 48
    %v206 = vpop.permute.xlu0 %205
    %vm207 = vcmask 425344
    %208 = vst.msk [vmem:[#allocation0] ss:$8 sm:$0x3] %vm207, %v206
    %s209 = scalar_lea.vmem %s0, 11
    %v210 = vld [vmem:[%s209] sm:$0x1]
    %s211 = scalar_lea.vmem %s0, 42
    %v212 = vld [vmem:[%s211] sm:$0x2]
    %vm213 = vcmask 1041409
    %v214 = vsel %vm213, %v212, %v210
    %215 = vrot.lane.b32.xlu0 %v214, 44
    %v216 = vpop.permute.xlu0 %215
    %vm217 = vcmask 392544
    %218 = vst.msk [vmem:[#allocation0] ss:$8 sm:$0x3] %vm217, %v216
    %s219 = scalar_lea.vmem %s0, 10
    %v220 = vld [vmem:[%s219] sm:$0x1]
    %s221 = scalar_lea.vmem %s0, 41
    %v222 = vld [vmem:[%s221] sm:$0x2]
    %vm223 = vcmask 1041409
    %v224 = vsel %vm223, %v222, %v220
    %225 = vrot.lane.b32.xlu0 %v224, 40
    %v226 = vpop.permute.xlu0 %225
    %vm227 = vcmask 359744
    %228 = vst.msk [vmem:[#allocation0] ss:$8 sm:$0x3] %vm227, %v226
    %s229 = scalar_lea.vmem %s0, 9
    %v230 = vld [vmem:[%s229] sm:$0x1]
    %s231 = scalar_lea.vmem %s0, 40
    %v232 = vld [vmem:[%s231] sm:$0x2]
    %vm233 = vcmask 1041409
    %v234 = vsel %vm233, %v232, %v230
    %235 = vrot.lane.b32.xlu0 %v234, 36
    %v236 = vpop.permute.xlu0 %235
    %vm237 = vcmask 326944
    %238 = vst.msk [vmem:[#allocation0] ss:$8 sm:$0x3] %vm237, %v236
    %s239 = scalar_lea.vmem %s0, 8
    %v240 = vld [vmem:[%s239] sm:$0x1]
    %s241 = scalar_lea.vmem %s0, 39
    %v242 = vld [vmem:[%s241] sm:$0x2]
    %vm243 = vcmask 1041409
    %v244 = vsel %vm243, %v242, %v240
    %245 = vrot.lane.b32.xlu0 %v244, 32
    %v246 = vpop.permute.xlu0 %245
    %vm247 = vcmask 294144
    %248 = vst.msk [vmem:[#allocation0] ss:$8 sm:$0x3] %vm247, %v246
    %s249 = scalar_lea.vmem %s0, 7
    %v250 = vld [vmem:[%s249] sm:$0x1]
    %s251 = scalar_lea.vmem %s0, 38
    %v252 = vld [vmem:[%s251] sm:$0x2]
    %vm253 = vcmask 1041409
    %v254 = vsel %vm253, %v252, %v250
    %255 = vrot.lane.b32.xlu0 %v254, 28
    %v256 = vpop.permute.xlu0 %255
    %vm257 = vcmask 261344
    %258 = vst.msk [vmem:[#allocation0] ss:$8 sm:$0x3] %vm257, %v256
    %s259 = scalar_lea.vmem %s0, 6
    %v260 = vld [vmem:[%s259] sm:$0x1]
    %s261 = scalar_lea.vmem %s0, 37
    %v262 = vld [vmem:[%s261] sm:$0x2]
    %vm263 = vcmask 1041409
    %v264 = vsel %vm263, %v262, %v260
    %265 = vrot.lane.b32.xlu0 %v264, 24
    %v266 = vpop.permute.xlu0 %265
    %vm267 = vcmask 228544
    %268 = vst.msk [vmem:[#allocation0] ss:$8 sm:$0x3] %vm267, %v266
    %s269 = scalar_lea.vmem %s0, 5
    %v270 = vld [vmem:[%s269] sm:$0x1]
    %s271 = scalar_lea.vmem %s0, 36
    %v272 = vld [vmem:[%s271] sm:$0x2]
    %vm273 = vcmask 1041409
    %v274 = vsel %vm273, %v272, %v270
    %275 = vrot.lane.b32.xlu0 %v274, 20
    %v276 = vpop.permute.xlu0 %275
    %vm277 = vcmask 195744
    %278 = vst.msk [vmem:[#allocation0] ss:$8 sm:$0x3] %vm277, %v276
    %s279 = scalar_lea.vmem %s0, 4
    %v280 = vld [vmem:[%s279] sm:$0x1]
    %s281 = scalar_lea.vmem %s0, 35
    %v282 = vld [vmem:[%s281] sm:$0x2]
    %vm283 = vcmask 1041409
    %v284 = vsel %vm283, %v282, %v280
    %285 = vrot.lane.b32.xlu0 %v284, 16
    %v286 = vpop.permute.xlu0 %285
    %vm287 = vcmask 162944
    %288 = vst.msk [vmem:[#allocation0] ss:$8 sm:$0x3] %vm287, %v286
    %s289 = scalar_lea.vmem %s0, 3
    %v290 = vld [vmem:[%s289] sm:$0x1]
    %s291 = scalar_lea.vmem %s0, 34
    %v292 = vld [vmem:[%s291] sm:$0x2]
    %vm293 = vcmask 1041409
    %v294 = vsel %vm293, %v292, %v290
    %295 = vrot.lane.b32.xlu0 %v294, 12
    %v296 = vpop.permute.xlu0 %295
    %vm297 = vcmask 130144
    %298 = vst.msk [vmem:[#allocation0] ss:$8 sm:$0x3] %vm297, %v296
    %s299 = scalar_lea.vmem %s0, 2
    %v300 = vld [vmem:[%s299] sm:$0x1]
    %s301 = scalar_lea.vmem %s0, 33
    %v302 = vld [vmem:[%s301] sm:$0x2]
    %vm303 = vcmask 1041409
    %v304 = vsel %vm303, %v302, %v300
    %305 = vrot.lane.b32.xlu0 %v304, 8
    %v306 = vpop.permute.xlu0 %305
    %vm307 = vcmask 97344
    %308 = vst.msk [vmem:[#allocation0] ss:$8 sm:$0x3] %vm307, %v306
    %s309 = scalar_lea.vmem %s0, 1
    %v310 = vld [vmem:[%s309] sm:$0x1]
    %s311 = scalar_lea.vmem %s0, 32
    %v312 = vld [vmem:[%s311] sm:$0x2]
    %vm313 = vcmask 1041409
    %v314 = vsel %vm313, %v312, %v310
    %315 = vrot.lane.b32.xlu0 %v314, 4
    %v316 = vpop.permute.xlu0 %315
    %vm317 = vcmask 64544
    %318 = vst.msk [vmem:[#allocation0] ss:$8 sm:$0x3] %vm317, %v316
    %s320 = ssub.s32 2, 1
    %v321 = vld [vmem:[#allocation0] sm:%s320]
    %s323 = ssub.s32 2, 1
    %324 = vst [vmem:[%s1] sm:%s323] %v321
    %s325 = scalar_lea.vmem [#allocation0], 8
    %v326 = vld [vmem:[%s325] sm:%s320]
    %s328 = ssub.s32 2, 1
    %s329 = scalar_lea.vmem %s1, 1
    %330 = vst [vmem:[%s329] sm:%s328] %v326

// kernel: generator_forward.14
$region0: #{generator_forward.14}
  #allocation0 [shape = 'u32[]', space=smem, size = 0x4, offset = 0x4, fixed_abs, tag = 'smem constant byte address 0x4 - core index']
  #allocation1 [shape = 'u32[72,128]{1,0:T(1,128)}', space=vmem, size = 0x9000, scoped, tag = 'internal scratch']
  %s0 = inlined_call_operand.vmem [shape: f32[128,256], index: 0, kind: input, shape index: {}]
  %s1 = inlined_call_operand.vmem [shape: bf16[256,256], index: 1, kind: input, shape index: {}]
  %s2 = inlined_call_operand.vmem [shape: f32[1,256], index: 2, kind: input, shape index: {}]
  %s3 = inlined_call_operand.vmem [shape: f32[1,256], index: 3, kind: input, shape index: {}]
  %s4 = inlined_call_operand.vmem [shape: f32[128,256], index: 4, kind: output, shape index: {}]
  %s5 = sld [smem:[#allocation0]]
  $region26: #{generator_forward.14} parent=0
    _
  %s7 = ssub.s32 1, %s5
  %s8 = scalar_select 0, %s7, %s5
  // Predicated region
  $region2: #{generator_forward.14} parent=0 // pred_check
    _
  $region3: #{generator_forward.14} parent=0 // pred_check_branch
    %10 = sbr.rel (0) target = $region5
  $region4: #{generator_forward.14} parent=0 // pred_region
    _
  $region5: #{generator_forward.14} parent=0 // pred_fallthru
    _
  // Predicated region
  $region6: #{generator_forward.14} parent=0 // pred_check
    _
  $region7: #{generator_forward.14} parent=0 // pred_check_branch
    %12 = sbr.rel (0) target = $region9
  $region8: #{generator_forward.14} parent=0 // pred_region
    _
  $region9: #{generator_forward.14} parent=0 // pred_fallthru
    _
  // Predicated region
  $region10: #{generator_forward.14} parent=0 // pred_check
    _
  $region11: #{generator_forward.14} parent=0 // pred_check_branch
    %14 = sbr.rel (0) target = $region13
  $region12: #{generator_forward.14} parent=0 // pred_region
    _
  $region13: #{generator_forward.14} parent=0 // pred_fallthru
    _
  // Predicated region
  $region14: #{generator_forward.14} parent=0 // pred_check
    _
  $region15: #{generator_forward.14} parent=0 // pred_check_branch
    %16 = sbr.rel (0) target = $region17
  $region16: #{generator_forward.14} parent=0 // pred_region
    _
  $region17: #{generator_forward.14} parent=0 // pred_fallthru
    _
  %v17 = vld [vmem:[%s0] sm:$0xff]
  %v18 = vld [vmem:[%s0 + $0x8] sm:$0xff]
  %v19 = vld [vmem:[%s0 + $0x10] sm:$0xff]
  %v20 = vld [vmem:[%s0 + $0x18] sm:$0xff]
  %v21 = vld [vmem:[%s0 + $0x20] sm:$0xff]
  %v22 = vld [vmem:[%s0 + $0x28] sm:$0xff]
  %v23 = vld [vmem:[%s0 + $0x30] sm:$0xff]
  %v24 = vld [vmem:[%s0 + $0x38] sm:$0xff]
  %v25 = vld [vmem:[%s0 + $0x40] sm:$0xff]
  %v26 = vld [vmem:[%s0 + $0x48] sm:$0xff]
  %v27 = vld [vmem:[%s0 + $0x50] sm:$0xff]
  %v28 = vld [vmem:[%s0 + $0x58] sm:$0xff]
  %v29 = vld [vmem:[%s0 + $0x60] sm:$0xff]
  %v30 = vld [vmem:[%s0 + $0x68] sm:$0xff]
  %v31 = vld [vmem:[%s0 + $0x70] sm:$0xff]
  %v32 = vld [vmem:[%s0 + $0x78] sm:$0xff]
  %v33 = vld [vmem:[%s0 + $0x80] sm:$0xff]
  %v34 = vld [vmem:[%s0 + $0x88] sm:$0xff]
  %v35 = vld [vmem:[%s0 + $0x90] sm:$0xff]
  %v36 = vld [vmem:[%s0 + $0x98] sm:$0xff]
  %v37 = vld [vmem:[%s0 + $0xa0] sm:$0xff]
  %v38 = vld [vmem:[%s0 + $0xa8] sm:$0xff]
  %v39 = vld [vmem:[%s0 + $0xb0] sm:$0xff]
  %v40 = vld [vmem:[%s0 + $0xb8] sm:$0xff]
  %v41 = vld [vmem:[%s0 + $0xc0] sm:$0xff]
  %v42 = vld [vmem:[%s0 + $0xc8] sm:$0xff]
  %v43 = vld [vmem:[%s0 + $0xd0] sm:$0xff]
  %v44 = vld [vmem:[%s0 + $0xd8] sm:$0xff]
  %v45 = vld [vmem:[%s0 + $0xe0] sm:$0xff]
  %v46 = vld [vmem:[%s0 + $0xe8] sm:$0xff]
  %v47 = vld [vmem:[%s0 + $0xf0] sm:$0xff]
  %v48 = vld [vmem:[%s0 + $0xf8] sm:$0xff]
  %v49 = vld [vmem:[%s2] sm:$0x3]
  %v51 = vperm.slane %v49, 0
  %v52 = vperm.slane %v49, 1
  %v55 = vadd.f32 %v17, %v51
  %v56 = vadd.f32 %v18, %v52
  %v57 = vadd.f32 %v19, %v51
  %v58 = vadd.f32 %v20, %v52
  %v59 = vadd.f32 %v21, %v51
  %v60 = vadd.f32 %v22, %v52
  %v61 = vadd.f32 %v23, %v51
  %v62 = vadd.f32 %v24, %v52
  %v63 = vadd.f32 %v25, %v51
  %v64 = vadd.f32 %v26, %v52
  %v65 = vadd.f32 %v27, %v51
  %v66 = vadd.f32 %v28, %v52
  %v67 = vadd.f32 %v29, %v51
  %v68 = vadd.f32 %v30, %v52
  %v69 = vadd.f32 %v31, %v51
  %v70 = vadd.f32 %v32, %v52
  %v71 = vadd.f32 %v33, %v51
  %v72 = vadd.f32 %v34, %v52
  %v73 = vadd.f32 %v35, %v51
  %v74 = vadd.f32 %v36, %v52
  %v75 = vadd.f32 %v37, %v51
  %v76 = vadd.f32 %v38, %v52
  %v77 = vadd.f32 %v39, %v51
  %v78 = vadd.f32 %v40, %v52
  %v79 = vadd.f32 %v41, %v51
  %v80 = vadd.f32 %v42, %v52
  %v81 = vadd.f32 %v43, %v51
  %v82 = vadd.f32 %v44, %v52
  %v83 = vadd.f32 %v45, %v51
  %v84 = vadd.f32 %v46, %v52
  %v85 = vadd.f32 %v47, %v51
  %v86 = vadd.f32 %v48, %v52
  %vm87 = vcmp.ge.f32.partialorder %v55, 0.0
  %vm88 = vcmp.ge.f32.partialorder %v56, 0.0
  %vm89 = vcmp.ge.f32.partialorder %v57, 0.0
  %vm90 = vcmp.ge.f32.partialorder %v58, 0.0
  %vm91 = vcmp.ge.f32.partialorder %v59, 0.0
  %vm92 = vcmp.ge.f32.partialorder %v60, 0.0
  %vm93 = vcmp.ge.f32.partialorder %v61, 0.0
  %vm94 = vcmp.ge.f32.partialorder %v62, 0.0
  %vm95 = vcmp.ge.f32.partialorder %v63, 0.0
  %vm96 = vcmp.ge.f32.partialorder %v64, 0.0
  %vm97 = vcmp.ge.f32.partialorder %v65, 0.0
  %vm98 = vcmp.ge.f32.partialorder %v66, 0.0
  %vm99 = vcmp.ge.f32.partialorder %v67, 0.0
  %vm100 = vcmp.ge.f32.partialorder %v68, 0.0
  %vm101 = vcmp.ge.f32.partialorder %v69, 0.0
  %vm102 = vcmp.ge.f32.partialorder %v70, 0.0
  %vm103 = vcmp.ge.f32.partialorder %v71, 0.0
  %vm104 = vcmp.ge.f32.partialorder %v72, 0.0
  %vm105 = vcmp.ge.f32.partialorder %v73, 0.0
  %vm106 = vcmp.ge.f32.partialorder %v74, 0.0
  %vm107 = vcmp.ge.f32.partialorder %v75, 0.0
  %vm108 = vcmp.ge.f32.partialorder %v76, 0.0
  %vm109 = vcmp.ge.f32.partialorder %v77, 0.0
  %vm110 = vcmp.ge.f32.partialorder %v78, 0.0
  %vm111 = vcmp.ge.f32.partialorder %v79, 0.0
  %vm112 = vcmp.ge.f32.partialorder %v80, 0.0
  %vm113 = vcmp.ge.f32.partialorder %v81, 0.0
  %vm114 = vcmp.ge.f32.partialorder %v82, 0.0
  %vm115 = vcmp.ge.f32.partialorder %v83, 0.0
  %vm116 = vcmp.ge.f32.partialorder %v84, 0.0
  %vm117 = vcmp.ge.f32.partialorder %v85, 0.0
  %vm118 = vcmp.ge.f32.partialorder %v86, 0.0
  %v119 = vmul.f32 %v55, 0.2
  %v120 = vmul.f32 %v56, 0.2
  %v121 = vmul.f32 %v57, 0.2
  %v122 = vmul.f32 %v58, 0.2
  %v123 = vmul.f32 %v59, 0.2
  %v124 = vmul.f32 %v60, 0.2
  %v125 = vmul.f32 %v61, 0.2
  %v126 = vmul.f32 %v62, 0.2
  %v127 = vmul.f32 %v63, 0.2
  %v128 = vmul.f32 %v64, 0.2
  %v129 = vmul.f32 %v65, 0.2
  %v130 = vmul.f32 %v66, 0.2
  %v131 = vmul.f32 %v67, 0.2
  %v132 = vmul.f32 %v68, 0.2
  %v133 = vmul.f32 %v69, 0.2
  %v134 = vmul.f32 %v70, 0.2
  %v135 = vmul.f32 %v71, 0.2
  %v136 = vmul.f32 %v72, 0.2
  %v137 = vmul.f32 %v73, 0.2
  %v138 = vmul.f32 %v74, 0.2
  %v139 = vmul.f32 %v75, 0.2
  %v140 = vmul.f32 %v76, 0.2
  %v141 = vmul.f32 %v77, 0.2
  %v142 = vmul.f32 %v78, 0.2
  %v143 = vmul.f32 %v79, 0.2
  %v144 = vmul.f32 %v80, 0.2
  %v145 = vmul.f32 %v81, 0.2
  %v146 = vmul.f32 %v82, 0.2
  %v147 = vmul.f32 %v83, 0.2
  %v148 = vmul.f32 %v84, 0.2
  %v149 = vmul.f32 %v85, 0.2
  %v150 = vmul.f32 %v86, 0.2
  %v151 = vsel %vm87, %v55, %v119
  %v152 = vsel %vm88, %v56, %v120
  %v153 = vsel %vm89, %v57, %v121
  %v154 = vsel %vm90, %v58, %v122
  %v155 = vsel %vm91, %v59, %v123
  %v156 = vsel %vm92, %v60, %v124
  %v157 = vsel %vm93, %v61, %v125
  %v158 = vsel %vm94, %v62, %v126
  %v159 = vsel %vm95, %v63, %v127
  %v160 = vsel %vm96, %v64, %v128
  %v161 = vsel %vm97, %v65, %v129
  %v162 = vsel %vm98, %v66, %v130
  %v163 = vsel %vm99, %v67, %v131
  %v164 = vsel %vm100, %v68, %v132
  %v165 = vsel %vm101, %v69, %v133
  %v166 = vsel %vm102, %v70, %v134
  %v167 = vsel %vm103, %v71, %v135
  %v168 = vsel %vm104, %v72, %v136
  %v169 = vsel %vm105, %v73, %v137
  %v170 = vsel %vm106, %v74, %v138
  %v171 = vsel %vm107, %v75, %v139
  %v172 = vsel %vm108, %v76, %v140
  %v173 = vsel %vm109, %v77, %v141
  %v174 = vsel %vm110, %v78, %v142
  %v175 = vsel %vm111, %v79, %v143
  %v176 = vsel %vm112, %v80, %v144
  %v177 = vsel %vm113, %v81, %v145
  %v178 = vsel %vm114, %v82, %v146
  %v179 = vsel %vm115, %v83, %v147
  %v180 = vsel %vm116, %v84, %v148
  %v181 = vsel %vm117, %v85, %v149
  %v182 = vsel %vm118, %v86, %v150
  %v183 = vpack.c.bf16 %v153, %v151
  %v184 = vpack.c.bf16 %v154, %v152
  %v185 = vpack.c.bf16 %v157, %v155
  %v186 = vpack.c.bf16 %v158, %v156
  %v187 = vpack.c.bf16 %v161, %v159
  %v188 = vpack.c.bf16 %v162, %v160
  %v189 = vpack.c.bf16 %v165, %v163
  %v190 = vpack.c.bf16 %v166, %v164
  %v191 = vpack.c.bf16 %v169, %v167
  %v192 = vpack.c.bf16 %v170, %v168
  %v193 = vpack.c.bf16 %v173, %v171
  %v194 = vpack.c.bf16 %v174, %v172
  %v195 = vpack.c.bf16 %v177, %v175
  %v196 = vpack.c.bf16 %v178, %v176
  %v197 = vpack.c.bf16 %v181, %v179
  %v198 = vpack.c.bf16 %v182, %v180
  %v199 = vld [vmem:[%s1] sm:$0xff]
  %v200 = vld [vmem:[%s1 + $0x8] sm:$0xff]
  %v201 = vld [vmem:[%s1 + $0x10] sm:$0xff]
  %v202 = vld [vmem:[%s1 + $0x18] sm:$0xff]
  %v203 = vld [vmem:[%s1 + $0x20] sm:$0xff]
  %v204 = vld [vmem:[%s1 + $0x28] sm:$0xff]
  %v205 = vld [vmem:[%s1 + $0x30] sm:$0xff]
  %v206 = vld [vmem:[%s1 + $0x38] sm:$0xff]
  %v207 = vld [vmem:[%s1 + $0x40] sm:$0xff]
  %v208 = vld [vmem:[%s1 + $0x48] sm:$0xff]
  %v209 = vld [vmem:[%s1 + $0x50] sm:$0xff]
  %v210 = vld [vmem:[%s1 + $0x58] sm:$0xff]
  %v211 = vld [vmem:[%s1 + $0x60] sm:$0xff]
  %v212 = vld [vmem:[%s1 + $0x68] sm:$0xff]
  %v213 = vld [vmem:[%s1 + $0x70] sm:$0xff]
  %v214 = vld [vmem:[%s1 + $0x78] sm:$0xff]
  %v215 = vld [vmem:[%s1 + $0x80] sm:$0xff]
  %v216 = vld [vmem:[%s1 + $0x88] sm:$0xff]
  %v217 = vld [vmem:[%s1 + $0x90] sm:$0xff]
  %v218 = vld [vmem:[%s1 + $0x98] sm:$0xff]
  %v219 = vld [vmem:[%s1 + $0xa0] sm:$0xff]
  %v220 = vld [vmem:[%s1 + $0xa8] sm:$0xff]
  %v221 = vld [vmem:[%s1 + $0xb0] sm:$0xff]
  %v222 = vld [vmem:[%s1 + $0xb8] sm:$0xff]
  %v223 = vld [vmem:[%s1 + $0xc0] sm:$0xff]
  %v224 = vld [vmem:[%s1 + $0xc8] sm:$0xff]
  %v225 = vld [vmem:[%s1 + $0xd0] sm:$0xff]
  %v226 = vld [vmem:[%s1 + $0xd8] sm:$0xff]
  %v227 = vld [vmem:[%s1 + $0xe0] sm:$0xff]
  %v228 = vld [vmem:[%s1 + $0xe8] sm:$0xff]
  %v229 = vld [vmem:[%s1 + $0xf0] sm:$0xff]
  %v230 = vld [vmem:[%s1 + $0xf8] sm:$0xff]
  %v263 = vunpack.c.l.b16 %v199
  %v264 = vunpack.c.h.b16 %v199
  %v265 = vunpack.c.l.b16 %v200
  %v266 = vunpack.c.h.b16 %v200
  %v267 = vunpack.c.l.b16 %v201
  %v268 = vunpack.c.h.b16 %v201
  %v269 = vunpack.c.l.b16 %v202
  %v270 = vunpack.c.h.b16 %v202
  %v271 = vunpack.c.l.b16 %v203
  %v272 = vunpack.c.h.b16 %v203
  %v273 = vunpack.c.l.b16 %v204
  %v274 = vunpack.c.h.b16 %v204
  %v275 = vunpack.c.l.b16 %v205
  %v276 = vunpack.c.h.b16 %v205
  %v277 = vunpack.c.l.b16 %v206
  %v278 = vunpack.c.h.b16 %v206
  %v279 = vunpack.c.l.b16 %v207
  %v280 = vunpack.c.h.b16 %v207
  %v281 = vunpack.c.l.b16 %v208
  %v282 = vunpack.c.h.b16 %v208
  %v283 = vunpack.c.l.b16 %v209
  %v284 = vunpack.c.h.b16 %v209
  %v285 = vunpack.c.l.b16 %v210
  %v286 = vunpack.c.h.b16 %v210
  %v287 = vunpack.c.l.b16 %v211
  %v288 = vunpack.c.h.b16 %v211
  %v289 = vunpack.c.l.b16 %v212
  %v290 = vunpack.c.h.b16 %v212
  %v291 = vunpack.c.l.b16 %v213
  %v292 = vunpack.c.h.b16 %v213
  %v293 = vunpack.c.l.b16 %v214
  %v294 = vunpack.c.h.b16 %v214
  %v295 = vunpack.c.l.b16 %v215
  %v296 = vunpack.c.h.b16 %v215
  %v297 = vunpack.c.l.b16 %v216
  %v298 = vunpack.c.h.b16 %v216
  %v299 = vunpack.c.l.b16 %v217
  %v300 = vunpack.c.h.b16 %v217
  %v301 = vunpack.c.l.b16 %v218
  %v302 = vunpack.c.h.b16 %v218
  %v303 = vunpack.c.l.b16 %v219
  %v304 = vunpack.c.h.b16 %v219
  %v305 = vunpack.c.l.b16 %v220
  %v306 = vunpack.c.h.b16 %v220
  %v307 = vunpack.c.l.b16 %v221
  %v308 = vunpack.c.h.b16 %v221
  %v309 = vunpack.c.l.b16 %v222
  %v310 = vunpack.c.h.b16 %v222
  %v311 = vunpack.c.l.b16 %v223
  %v312 = vunpack.c.h.b16 %v223
  %v313 = vunpack.c.l.b16 %v224
  %v314 = vunpack.c.h.b16 %v224
  %v315 = vunpack.c.l.b16 %v225
  %v316 = vunpack.c.h.b16 %v225
  %v317 = vunpack.c.l.b16 %v226
  %v318 = vunpack.c.h.b16 %v226
  %v319 = vunpack.c.l.b16 %v227
  %v320 = vunpack.c.h.b16 %v227
  %v321 = vunpack.c.l.b16 %v228
  %v322 = vunpack.c.h.b16 %v228
  %v323 = vunpack.c.l.b16 %v229
  %v324 = vunpack.c.h.b16 %v229
  %v325 = vunpack.c.l.b16 %v230
  %v326 = vunpack.c.h.b16 %v230
  %v327 = vpack.c.b16 %v265, %v263
  %v328 = vpack.c.b16 %v266, %v264
  %v329 = vpack.c.b16 %v269, %v267
  %v330 = vpack.c.b16 %v270, %v268
  %v331 = vpack.c.b16 %v273, %v271
  %v332 = vpack.c.b16 %v274, %v272
  %v333 = vpack.c.b16 %v277, %v275
  %v334 = vpack.c.b16 %v278, %v276
  %v335 = vpack.c.b16 %v281, %v279
  %v336 = vpack.c.b16 %v282, %v280
  %v337 = vpack.c.b16 %v285, %v283
  %v338 = vpack.c.b16 %v286, %v284
  %v339 = vpack.c.b16 %v289, %v287
  %v340 = vpack.c.b16 %v290, %v288
  %v341 = vpack.c.b16 %v293, %v291
  %v342 = vpack.c.b16 %v294, %v292
  %v343 = vpack.c.b16 %v297, %v295
  %v344 = vpack.c.b16 %v298, %v296
  %v345 = vpack.c.b16 %v301, %v299
  %v346 = vpack.c.b16 %v302, %v300
  %v347 = vpack.c.b16 %v305, %v303
  %v348 = vpack.c.b16 %v306, %v304
  %v349 = vpack.c.b16 %v309, %v307
  %v350 = vpack.c.b16 %v310, %v308
  %v351 = vpack.c.b16 %v313, %v311
  %v352 = vpack.c.b16 %v314, %v312
  %v353 = vpack.c.b16 %v317, %v315
  %v354 = vpack.c.b16 %v318, %v316
  %v355 = vpack.c.b16 %v321, %v319
  %v356 = vpack.c.b16 %v322, %v320
  %v357 = vpack.c.b16 %v325, %v323
  %v358 = vpack.c.b16 %v326, %v324
  %391 = vmatpush.bf16.msra.mxu0 %v341
  %392 = vmatpush.bf16.msra.mxu0 %v339
  %393 = vmatpush.bf16.msra.mxu0 %v337
  %394 = vmatpush.bf16.msra.mxu0 %v335
  %395 = vmatpush.bf16.msra.mxu0 %v333
  %396 = vmatpush.bf16.msra.mxu0 %v331
  %397 = vmatpush.bf16.msra.mxu0 %v329
  %398 = vmatpush.bf16.msra.mxu0 %v327
  %399 = vmatmul.bf16.gmra.mxu0 %v183
  %v400 = vpop.f32.mrf.mxu0
  %v401 = vadd.f32 0.0, %v400
  %v402 = vpop.f32.mrf.mxu0
  %v403 = vadd.f32 0.0, %v402
  %404 = vmatmul.bf16.gmra.mxu0 %v185
  %v405 = vpop.f32.mrf.mxu0
  %v406 = vadd.f32 0.0, %v405
  %v407 = vpop.f32.mrf.mxu0
  %v408 = vadd.f32 0.0, %v407
  %409 = vmatmul.bf16.gmra.mxu0 %v187
  %v410 = vpop.f32.mrf.mxu0
  %v411 = vadd.f32 0.0, %v410
  %v412 = vpop.f32.mrf.mxu0
  %v413 = vadd.f32 0.0, %v412
  %414 = vmatmul.bf16.gmra.mxu0 %v189
  %v415 = vpop.f32.mrf.mxu0
  %v416 = vadd.f32 0.0, %v415
  %v417 = vpop.f32.mrf.mxu0
  %v418 = vadd.f32 0.0, %v417
  %419 = vmatmul.bf16.gmra.mxu0 %v191
  %v420 = vpop.f32.mrf.mxu0
  %v421 = vadd.f32 0.0, %v420
  %v422 = vpop.f32.mrf.mxu0
  %v423 = vadd.f32 0.0, %v422
  %424 = vmatmul.bf16.gmra.mxu0 %v193
  %v425 = vpop.f32.mrf.mxu0
  %v426 = vadd.f32 0.0, %v425
  %v427 = vpop.f32.mrf.mxu0
  %v428 = vadd.f32 0.0, %v427
  %429 = vmatmul.bf16.gmra.mxu0 %v195
  %v430 = vpop.f32.mrf.mxu0
  %v431 = vadd.f32 0.0, %v430
  %v432 = vpop.f32.mrf.mxu0
  %v433 = vadd.f32 0.0, %v432
  %434 = vmatmul.bf16.gmra.mxu0 %v197
  %v435 = vpop.f32.mrf.mxu0
  %v436 = vadd.f32 0.0, %v435
  %v437 = vpop.f32.mrf.mxu0
  %v438 = vadd.f32 0.0, %v437
  %439 = vdwg.mxu0
  %440 = vmatpush.bf16.msra.mxu0 %v357
  %441 = vmatpush.bf16.msra.mxu0 %v355
  %442 = vmatpush.bf16.msra.mxu0 %v353
  %443 = vmatpush.bf16.msra.mxu0 %v351
  %444 = vmatpush.bf16.msra.mxu0 %v349
  %445 = vmatpush.bf16.msra.mxu0 %v347
  %446 = vmatpush.bf16.msra.mxu0 %v345
  %447 = vmatpush.bf16.msra.mxu0 %v343
  %448 = vmatmul.bf16.gmra.mxu0 %v184
  %v449 = vpop.f32.mrf.mxu0
  %v450 = vadd.f32 %v401, %v449
  %v451 = vpop.f32.mrf.mxu0
  %v452 = vadd.f32 %v403, %v451
  %453 = vmatmul.bf16.gmra.mxu0 %v186
  %v454 = vpop.f32.mrf.mxu0
  %v455 = vadd.f32 %v406, %v454
  %v456 = vpop.f32.mrf.mxu0
  %v457 = vadd.f32 %v408, %v456
  %458 = vmatmul.bf16.gmra.mxu0 %v188
  %v459 = vpop.f32.mrf.mxu0
  %v460 = vadd.f32 %v411, %v459
  %v461 = vpop.f32.mrf.mxu0
  %v462 = vadd.f32 %v413, %v461
  %463 = vmatmul.bf16.gmra.mxu0 %v190
  %v464 = vpop.f32.mrf.mxu0
  %v465 = vadd.f32 %v416, %v464
  %v466 = vpop.f32.mrf.mxu0
  %v467 = vadd.f32 %v418, %v466
  %468 = vmatmul.bf16.gmra.mxu0 %v192
  %v469 = vpop.f32.mrf.mxu0
  %v470 = vadd.f32 %v421, %v469
  %v471 = vpop.f32.mrf.mxu0
  %v472 = vadd.f32 %v423, %v471
  %473 = vmatmul.bf16.gmra.mxu0 %v194
  %v474 = vpop.f32.mrf.mxu0
  %v475 = vadd.f32 %v426, %v474
  %v476 = vpop.f32.mrf.mxu0
  %v477 = vadd.f32 %v428, %v476
  %478 = vmatmul.bf16.gmra.mxu0 %v196
  %v479 = vpop.f32.mrf.mxu0
  %v480 = vadd.f32 %v431, %v479
  %v481 = vpop.f32.mrf.mxu0
  %v482 = vadd.f32 %v433, %v481
  %483 = vmatmul.bf16.gmra.mxu0 %v198
  %v484 = vpop.f32.mrf.mxu0
  %v485 = vadd.f32 %v436, %v484
  %v486 = vpop.f32.mrf.mxu0
  %v487 = vadd.f32 %v438, %v486
  %488 = vdwg.mxu0
  %489 = vmatpush.bf16.msra.mxu0 %v342
  %490 = vmatpush.bf16.msra.mxu0 %v340
  %491 = vmatpush.bf16.msra.mxu0 %v338
  %492 = vmatpush.bf16.msra.mxu0 %v336
  %493 = vmatpush.bf16.msra.mxu0 %v334
  %494 = vmatpush.bf16.msra.mxu0 %v332
  %495 = vmatpush.bf16.msra.mxu0 %v330
  %496 = vmatpush.bf16.msra.mxu0 %v328
  %497 = vmatmul.bf16.gmra.mxu0 %v183
  %v498 = vpop.f32.mrf.mxu0
  %v499 = vadd.f32 0.0, %v498
  %v500 = vpop.f32.mrf.mxu0
  %v501 = vadd.f32 0.0, %v500
  %502 = vmatmul.bf16.gmra.mxu0 %v185
  %v503 = vpop.f32.mrf.mxu0
  %v504 = vadd.f32 0.0, %v503
  %v505 = vpop.f32.mrf.mxu0
  %v506 = vadd.f32 0.0, %v505
  %507 = vmatmul.bf16.gmra.mxu0 %v187
  %v508 = vpop.f32.mrf.mxu0
  %v509 = vadd.f32 0.0, %v508
  %v510 = vpop.f32.mrf.mxu0
  %v511 = vadd.f32 0.0, %v510
  %512 = vmatmul.bf16.gmra.mxu0 %v189
  %v513 = vpop.f32.mrf.mxu0
  %v514 = vadd.f32 0.0, %v513
  %v515 = vpop.f32.mrf.mxu0
  %v516 = vadd.f32 0.0, %v515
  %517 = vmatmul.bf16.gmra.mxu0 %v191
  %v518 = vpop.f32.mrf.mxu0
  %v519 = vadd.f32 0.0, %v518
  %v520 = vpop.f32.mrf.mxu0
  %v521 = vadd.f32 0.0, %v520
  %522 = vmatmul.bf16.gmra.mxu0 %v193
  %v523 = vpop.f32.mrf.mxu0
  %v524 = vadd.f32 0.0, %v523
  %v525 = vpop.f32.mrf.mxu0
  %v526 = vadd.f32 0.0, %v525
  %527 = vmatmul.bf16.gmra.mxu0 %v195
  %v528 = vpop.f32.mrf.mxu0
  %v529 = vadd.f32 0.0, %v528
  %v530 = vpop.f32.mrf.mxu0
  %v531 = vadd.f32 0.0, %v530
  %532 = vmatmul.bf16.gmra.mxu0 %v197
  %v533 = vpop.f32.mrf.mxu0
  %v534 = vadd.f32 0.0, %v533
  %v535 = vpop.f32.mrf.mxu0
  %v536 = vadd.f32 0.0, %v535
  %537 = vdwg.mxu0
  %538 = vmatpush.bf16.msra.mxu0 %v358
  %539 = vmatpush.bf16.msra.mxu0 %v356
  %540 = vmatpush.bf16.msra.mxu0 %v354
  %541 = vmatpush.bf16.msra.mxu0 %v352
  %542 = vmatpush.bf16.msra.mxu0 %v350
  %543 = vmatpush.bf16.msra.mxu0 %v348
  %544 = vmatpush.bf16.msra.mxu0 %v346
  %545 = vmatpush.bf16.msra.mxu0 %v344
  %546 = vmatmul.bf16.gmra.mxu0 %v184
  %v547 = vpop.f32.mrf.mxu0
  %v548 = vadd.f32 %v499, %v547
  %v549 = vpop.f32.mrf.mxu0
  %v550 = vadd.f32 %v501, %v549
  %551 = vmatmul.bf16.gmra.mxu0 %v186
  %v552 = vpop.f32.mrf.mxu0
  %v553 = vadd.f32 %v504, %v552
  %v554 = vpop.f32.mrf.mxu0
  %v555 = vadd.f32 %v506, %v554
  %556 = vmatmul.bf16.gmra.mxu0 %v188
  %v557 = vpop.f32.mrf.mxu0
  %v558 = vadd.f32 %v509, %v557
  %v559 = vpop.f32.mrf.mxu0
  %v560 = vadd.f32 %v511, %v559
  %561 = vmatmul.bf16.gmra.mxu0 %v190
  %v562 = vpop.f32.mrf.mxu0
  %v563 = vadd.f32 %v514, %v562
  %v564 = vpop.f32.mrf.mxu0
  %v565 = vadd.f32 %v516, %v564
  %566 = vmatmul.bf16.gmra.mxu0 %v192
  %v567 = vpop.f32.mrf.mxu0
  %v568 = vadd.f32 %v519, %v567
  %v569 = vpop.f32.mrf.mxu0
  %v570 = vadd.f32 %v521, %v569
  %571 = vmatmul.bf16.gmra.mxu0 %v194
  %v572 = vpop.f32.mrf.mxu0
  %v573 = vadd.f32 %v524, %v572
  %v574 = vpop.f32.mrf.mxu0
  %v575 = vadd.f32 %v526, %v574
  %576 = vmatmul.bf16.gmra.mxu0 %v196
  %v577 = vpop.f32.mrf.mxu0
  %v578 = vadd.f32 %v529, %v577
  %v579 = vpop.f32.mrf.mxu0
  %v580 = vadd.f32 %v531, %v579
  %581 = vmatmul.bf16.gmra.mxu0 %v198
  %v582 = vpop.f32.mrf.mxu0
  %v583 = vadd.f32 %v534, %v582
  %v584 = vpop.f32.mrf.mxu0
  %v585 = vadd.f32 %v536, %v584
  %586 = vdwg.mxu0
  %587 = vst [vmem:[%s4] sm:$0xff] %v450
  %588 = vst [vmem:[%s4 + $0x8] sm:$0xff] %v548
  %589 = vst [vmem:[%s4 + $0x10] sm:$0xff] %v452
  %590 = vst [vmem:[%s4 + $0x18] sm:$0xff] %v550
  %591 = vst [vmem:[%s4 + $0x20] sm:$0xff] %v455
  %592 = vst [vmem:[%s4 + $0x28] sm:$0xff] %v553
  %593 = vst [vmem:[%s4 + $0x30] sm:$0xff] %v457
  %594 = vst [vmem:[%s4 + $0x38] sm:$0xff] %v555
  %595 = vst [vmem:[%s4 + $0x40] sm:$0xff] %v460
  %596 = vst [vmem:[%s4 + $0x48] sm:$0xff] %v558
  %597 = vst [vmem:[%s4 + $0x50] sm:$0xff] %v462
  %598 = vst [vmem:[%s4 + $0x58] sm:$0xff] %v560
  %599 = vst [vmem:[%s4 + $0x60] sm:$0xff] %v465
  %600 = vst [vmem:[%s4 + $0x68] sm:$0xff] %v563
  %601 = vst [vmem:[%s4 + $0x70] sm:$0xff] %v467
  %602 = vst [vmem:[%s4 + $0x78] sm:$0xff] %v565
  %603 = vst [vmem:[%s4 + $0x80] sm:$0xff] %v470
  %604 = vst [vmem:[%s4 + $0x88] sm:$0xff] %v568
  %605 = vst [vmem:[%s4 + $0x90] sm:$0xff] %v472
  %606 = vst [vmem:[%s4 + $0x98] sm:$0xff] %v570
  %607 = vst [vmem:[%s4 + $0xa0] sm:$0xff] %v475
  %608 = vst [vmem:[%s4 + $0xa8] sm:$0xff] %v573
  %609 = vst [vmem:[%s4 + $0xb0] sm:$0xff] %v477
  %610 = vst [vmem:[%s4 + $0xb8] sm:$0xff] %v575
  %611 = vst [vmem:[%s4 + $0xc0] sm:$0xff] %v480
  %612 = vst [vmem:[%s4 + $0xc8] sm:$0xff] %v578
  %613 = vst [vmem:[%s4 + $0xd0] sm:$0xff] %v482
  %614 = vst [vmem:[%s4 + $0xd8] sm:$0xff] %v580
  %615 = vst [vmem:[%s4 + $0xe0] sm:$0xff] %v485
  %616 = vst [vmem:[%s4 + $0xe8] sm:$0xff] %v583
  %617 = vst [vmem:[%s4 + $0xf0] sm:$0xff] %v487
  %618 = vst [vmem:[%s4 + $0xf8] sm:$0xff] %v585
  // Predicated region
  $region18: #{generator_forward.14} parent=0 // pred_check
    _
  $region19: #{generator_forward.14} parent=0 // pred_check_branch
    %620 = sbr.rel (0) target = $region21
  $region20: #{generator_forward.14} parent=0 // pred_region
    _
  $region21: #{generator_forward.14} parent=0 // pred_fallthru
    _
  // Predicated region
  $region22: #{generator_forward.14} parent=0 // pred_check
    _
  $region23: #{generator_forward.14} parent=0 // pred_check_branch
    %622 = sbr.rel (0) target = $region25
  $region24: #{generator_forward.14} parent=0 // pred_region
    _
  $region25: #{generator_forward.14} parent=0 // pred_fallthru
    _

// kernel: generator_forward.15
$region0: #{generator_forward.15}
  #allocation0 [shape = 'u32[]', space=smem, size = 0x4, offset = 0x4, fixed_abs, tag = 'smem constant byte address 0x4 - core index']
  #allocation1 [shape = 'u32[72,128]{1,0:T(1,128)}', space=vmem, size = 0x9000, scoped, tag = 'internal scratch']
  %s0 = inlined_call_operand.vmem [shape: f32[128,128], index: 0, kind: input, shape index: {}]
  %s1 = inlined_call_operand.vmem [shape: bf16[128,256], index: 1, kind: input, shape index: {}]
  %s2 = inlined_call_operand.vmem [shape: f32[1,128], index: 2, kind: input, shape index: {}]
  %s3 = inlined_call_operand.vmem [shape: f32[1,256], index: 3, kind: input, shape index: {}]
  %s4 = inlined_call_operand.vmem [shape: f32[128,256], index: 4, kind: output, shape index: {}]
  %s5 = sld [smem:[#allocation0]]
  $region26: #{generator_forward.15} parent=0
    _
  %s7 = ssub.s32 1, %s5
  %s8 = scalar_select 0, %s7, %s5
  // Predicated region
  $region2: #{generator_forward.15} parent=0 // pred_check
    _
  $region3: #{generator_forward.15} parent=0 // pred_check_branch
    %10 = sbr.rel (0) target = $region5
  $region4: #{generator_forward.15} parent=0 // pred_region
    _
  $region5: #{generator_forward.15} parent=0 // pred_fallthru
    _
  // Predicated region
  $region6: #{generator_forward.15} parent=0 // pred_check
    _
  $region7: #{generator_forward.15} parent=0 // pred_check_branch
    %12 = sbr.rel (0) target = $region9
  $region8: #{generator_forward.15} parent=0 // pred_region
    _
  $region9: #{generator_forward.15} parent=0 // pred_fallthru
    _
  // Predicated region
  $region10: #{generator_forward.15} parent=0 // pred_check
    _
  $region11: #{generator_forward.15} parent=0 // pred_check_branch
    %14 = sbr.rel (0) target = $region13
  $region12: #{generator_forward.15} parent=0 // pred_region
    _
  $region13: #{generator_forward.15} parent=0 // pred_fallthru
    _
  // Predicated region
  $region14: #{generator_forward.15} parent=0 // pred_check
    _
  $region15: #{generator_forward.15} parent=0 // pred_check_branch
    %16 = sbr.rel (0) target = $region17
  $region16: #{generator_forward.15} parent=0 // pred_region
    _
  $region17: #{generator_forward.15} parent=0 // pred_fallthru
    _
  %v17 = vld [vmem:[%s0] sm:$0xff]
  %v18 = vld [vmem:[%s0 + $0x8] sm:$0xff]
  %v19 = vld [vmem:[%s0 + $0x10] sm:$0xff]
  %v20 = vld [vmem:[%s0 + $0x18] sm:$0xff]
  %v21 = vld [vmem:[%s0 + $0x20] sm:$0xff]
  %v22 = vld [vmem:[%s0 + $0x28] sm:$0xff]
  %v23 = vld [vmem:[%s0 + $0x30] sm:$0xff]
  %v24 = vld [vmem:[%s0 + $0x38] sm:$0xff]
  %v25 = vld [vmem:[%s0 + $0x40] sm:$0xff]
  %v26 = vld [vmem:[%s0 + $0x48] sm:$0xff]
  %v27 = vld [vmem:[%s0 + $0x50] sm:$0xff]
  %v28 = vld [vmem:[%s0 + $0x58] sm:$0xff]
  %v29 = vld [vmem:[%s0 + $0x60] sm:$0xff]
  %v30 = vld [vmem:[%s0 + $0x68] sm:$0xff]
  %v31 = vld [vmem:[%s0 + $0x70] sm:$0xff]
  %v32 = vld [vmem:[%s0 + $0x78] sm:$0xff]
  %v33 = vld [vmem:[%s2] sm:$0x1]
  %v35 = vperm.slane %v33, 0
  %v37 = vadd.f32 %v17, %v35
  %v38 = vadd.f32 %v18, %v35
  %v39 = vadd.f32 %v19, %v35
  %v40 = vadd.f32 %v20, %v35
  %v41 = vadd.f32 %v21, %v35
  %v42 = vadd.f32 %v22, %v35
  %v43 = vadd.f32 %v23, %v35
  %v44 = vadd.f32 %v24, %v35
  %v45 = vadd.f32 %v25, %v35
  %v46 = vadd.f32 %v26, %v35
  %v47 = vadd.f32 %v27, %v35
  %v48 = vadd.f32 %v28, %v35
  %v49 = vadd.f32 %v29, %v35
  %v50 = vadd.f32 %v30, %v35
  %v51 = vadd.f32 %v31, %v35
  %v52 = vadd.f32 %v32, %v35
  %vm53 = vcmp.ge.f32.partialorder %v37, 0.0
  %vm54 = vcmp.ge.f32.partialorder %v38, 0.0
  %vm55 = vcmp.ge.f32.partialorder %v39, 0.0
  %vm56 = vcmp.ge.f32.partialorder %v40, 0.0
  %vm57 = vcmp.ge.f32.partialorder %v41, 0.0
  %vm58 = vcmp.ge.f32.partialorder %v42, 0.0
  %vm59 = vcmp.ge.f32.partialorder %v43, 0.0
  %vm60 = vcmp.ge.f32.partialorder %v44, 0.0
  %vm61 = vcmp.ge.f32.partialorder %v45, 0.0
  %vm62 = vcmp.ge.f32.partialorder %v46, 0.0
  %vm63 = vcmp.ge.f32.partialorder %v47, 0.0
  %vm64 = vcmp.ge.f32.partialorder %v48, 0.0
  %vm65 = vcmp.ge.f32.partialorder %v49, 0.0
  %vm66 = vcmp.ge.f32.partialorder %v50, 0.0
  %vm67 = vcmp.ge.f32.partialorder %v51, 0.0
  %vm68 = vcmp.ge.f32.partialorder %v52, 0.0
  %v69 = vmul.f32 %v37, 0.2
  %v70 = vmul.f32 %v38, 0.2
  %v71 = vmul.f32 %v39, 0.2
  %v72 = vmul.f32 %v40, 0.2
  %v73 = vmul.f32 %v41, 0.2
  %v74 = vmul.f32 %v42, 0.2
  %v75 = vmul.f32 %v43, 0.2
  %v76 = vmul.f32 %v44, 0.2
  %v77 = vmul.f32 %v45, 0.2
  %v78 = vmul.f32 %v46, 0.2
  %v79 = vmul.f32 %v47, 0.2
  %v80 = vmul.f32 %v48, 0.2
  %v81 = vmul.f32 %v49, 0.2
  %v82 = vmul.f32 %v50, 0.2
  %v83 = vmul.f32 %v51, 0.2
  %v84 = vmul.f32 %v52, 0.2
  %v85 = vsel %vm53, %v37, %v69
  %v86 = vsel %vm54, %v38, %v70
  %v87 = vsel %vm55, %v39, %v71
  %v88 = vsel %vm56, %v40, %v72
  %v89 = vsel %vm57, %v41, %v73
  %v90 = vsel %vm58, %v42, %v74
  %v91 = vsel %vm59, %v43, %v75
  %v92 = vsel %vm60, %v44, %v76
  %v93 = vsel %vm61, %v45, %v77
  %v94 = vsel %vm62, %v46, %v78
  %v95 = vsel %vm63, %v47, %v79
  %v96 = vsel %vm64, %v48, %v80
  %v97 = vsel %vm65, %v49, %v81
  %v98 = vsel %vm66, %v50, %v82
  %v99 = vsel %vm67, %v51, %v83
  %v100 = vsel %vm68, %v52, %v84
  %v101 = vpack.c.bf16 %v86, %v85
  %v102 = vpack.c.bf16 %v88, %v87
  %v103 = vpack.c.bf16 %v90, %v89
  %v104 = vpack.c.bf16 %v92, %v91
  %v105 = vpack.c.bf16 %v94, %v93
  %v106 = vpack.c.bf16 %v96, %v95
  %v107 = vpack.c.bf16 %v98, %v97
  %v108 = vpack.c.bf16 %v100, %v99
  %v109 = vld [vmem:[%s1] sm:$0xff]
  %v110 = vld [vmem:[%s1 + $0x8] sm:$0xff]
  %v111 = vld [vmem:[%s1 + $0x10] sm:$0xff]
  %v112 = vld [vmem:[%s1 + $0x18] sm:$0xff]
  %v113 = vld [vmem:[%s1 + $0x20] sm:$0xff]
  %v114 = vld [vmem:[%s1 + $0x28] sm:$0xff]
  %v115 = vld [vmem:[%s1 + $0x30] sm:$0xff]
  %v116 = vld [vmem:[%s1 + $0x38] sm:$0xff]
  %v117 = vld [vmem:[%s1 + $0x40] sm:$0xff]
  %v118 = vld [vmem:[%s1 + $0x48] sm:$0xff]
  %v119 = vld [vmem:[%s1 + $0x50] sm:$0xff]
  %v120 = vld [vmem:[%s1 + $0x58] sm:$0xff]
  %v121 = vld [vmem:[%s1 + $0x60] sm:$0xff]
  %v122 = vld [vmem:[%s1 + $0x68] sm:$0xff]
  %v123 = vld [vmem:[%s1 + $0x70] sm:$0xff]
  %v124 = vld [vmem:[%s1 + $0x78] sm:$0xff]
  %v125 = vld [vmem:[%s3] sm:$0x3]
  %v127 = vperm.slane %v125, 0
  %v128 = vperm.slane %v125, 1
  %v147 = vunpack.c.l.b16 %v109
  %v148 = vunpack.c.h.b16 %v109
  %v149 = vunpack.c.l.b16 %v110
  %v150 = vunpack.c.h.b16 %v110
  %v151 = vunpack.c.l.b16 %v111
  %v152 = vunpack.c.h.b16 %v111
  %v153 = vunpack.c.l.b16 %v112
  %v154 = vunpack.c.h.b16 %v112
  %v155 = vunpack.c.l.b16 %v113
  %v156 = vunpack.c.h.b16 %v113
  %v157 = vunpack.c.l.b16 %v114
  %v158 = vunpack.c.h.b16 %v114
  %v159 = vunpack.c.l.b16 %v115
  %v160 = vunpack.c.h.b16 %v115
  %v161 = vunpack.c.l.b16 %v116
  %v162 = vunpack.c.h.b16 %v116
  %v163 = vunpack.c.l.b16 %v117
  %v164 = vunpack.c.h.b16 %v117
  %v165 = vunpack.c.l.b16 %v118
  %v166 = vunpack.c.h.b16 %v118
  %v167 = vunpack.c.l.b16 %v119
  %v168 = vunpack.c.h.b16 %v119
  %v169 = vunpack.c.l.b16 %v120
  %v170 = vunpack.c.h.b16 %v120
  %v171 = vunpack.c.l.b16 %v121
  %v172 = vunpack.c.h.b16 %v121
  %v173 = vunpack.c.l.b16 %v122
  %v174 = vunpack.c.h.b16 %v122
  %v175 = vunpack.c.l.b16 %v123
  %v176 = vunpack.c.h.b16 %v123
  %v177 = vunpack.c.l.b16 %v124
  %v178 = vunpack.c.h.b16 %v124
  %v179 = vpack.c.b16 %v149, %v147
  %v180 = vpack.c.b16 %v150, %v148
  %v181 = vpack.c.b16 %v153, %v151
  %v182 = vpack.c.b16 %v154, %v152
  %v183 = vpack.c.b16 %v157, %v155
  %v184 = vpack.c.b16 %v158, %v156
  %v185 = vpack.c.b16 %v161, %v159
  %v186 = vpack.c.b16 %v162, %v160
  %v187 = vpack.c.b16 %v165, %v163
  %v188 = vpack.c.b16 %v166, %v164
  %v189 = vpack.c.b16 %v169, %v167
  %v190 = vpack.c.b16 %v170, %v168
  %v191 = vpack.c.b16 %v173, %v171
  %v192 = vpack.c.b16 %v174, %v172
  %v193 = vpack.c.b16 %v177, %v175
  %v194 = vpack.c.b16 %v178, %v176
  %211 = vmatpush.bf16.msra.mxu0 %v193
  %212 = vmatpush.bf16.msra.mxu0 %v191
  %213 = vmatpush.bf16.msra.mxu0 %v189
  %214 = vmatpush.bf16.msra.mxu0 %v187
  %215 = vmatpush.bf16.msra.mxu0 %v185
  %216 = vmatpush.bf16.msra.mxu0 %v183
  %217 = vmatpush.bf16.msra.mxu0 %v181
  %218 = vmatpush.bf16.msra.mxu0 %v179
  %219 = vmatmul.bf16.gmra.mxu0 %v101
  %v220 = vpop.f32.mrf.mxu0
  %v221 = vadd.f32 %v127, %v220
  %v222 = vpop.f32.mrf.mxu0
  %v223 = vadd.f32 %v127, %v222
  %224 = vmatmul.bf16.gmra.mxu0 %v102
  %v225 = vpop.f32.mrf.mxu0
  %v226 = vadd.f32 %v127, %v225
  %v227 = vpop.f32.mrf.mxu0
  %v228 = vadd.f32 %v127, %v227
  %229 = vmatmul.bf16.gmra.mxu0 %v103
  %v230 = vpop.f32.mrf.mxu0
  %v231 = vadd.f32 %v127, %v230
  %v232 = vpop.f32.mrf.mxu0
  %v233 = vadd.f32 %v127, %v232
  %234 = vmatmul.bf16.gmra.mxu0 %v104
  %v235 = vpop.f32.mrf.mxu0
  %v236 = vadd.f32 %v127, %v235
  %v237 = vpop.f32.mrf.mxu0
  %v238 = vadd.f32 %v127, %v237
  %239 = vmatmul.bf16.gmra.mxu0 %v105
  %v240 = vpop.f32.mrf.mxu0
  %v241 = vadd.f32 %v127, %v240
  %v242 = vpop.f32.mrf.mxu0
  %v243 = vadd.f32 %v127, %v242
  %244 = vmatmul.bf16.gmra.mxu0 %v106
  %v245 = vpop.f32.mrf.mxu0
  %v246 = vadd.f32 %v127, %v245
  %v247 = vpop.f32.mrf.mxu0
  %v248 = vadd.f32 %v127, %v247
  %249 = vmatmul.bf16.gmra.mxu0 %v107
  %v250 = vpop.f32.mrf.mxu0
  %v251 = vadd.f32 %v127, %v250
  %v252 = vpop.f32.mrf.mxu0
  %v253 = vadd.f32 %v127, %v252
  %254 = vmatmul.bf16.gmra.mxu0 %v108
  %v255 = vpop.f32.mrf.mxu0
  %v256 = vadd.f32 %v127, %v255
  %v257 = vpop.f32.mrf.mxu0
  %v258 = vadd.f32 %v127, %v257
  %259 = vdwg.mxu0
  %260 = vmatpush.bf16.msra.mxu0 %v194
  %261 = vmatpush.bf16.msra.mxu0 %v192
  %262 = vmatpush.bf16.msra.mxu0 %v190
  %263 = vmatpush.bf16.msra.mxu0 %v188
  %264 = vmatpush.bf16.msra.mxu0 %v186
  %265 = vmatpush.bf16.msra.mxu0 %v184
  %266 = vmatpush.bf16.msra.mxu0 %v182
  %267 = vmatpush.bf16.msra.mxu0 %v180
  %268 = vmatmul.bf16.gmra.mxu0 %v101
  %v269 = vpop.f32.mrf.mxu0
  %v270 = vadd.f32 %v128, %v269
  %v271 = vpop.f32.mrf.mxu0
  %v272 = vadd.f32 %v128, %v271
  %273 = vmatmul.bf16.gmra.mxu0 %v102
  %v274 = vpop.f32.mrf.mxu0
  %v275 = vadd.f32 %v128, %v274
  %v276 = vpop.f32.mrf.mxu0
  %v277 = vadd.f32 %v128, %v276
  %278 = vmatmul.bf16.gmra.mxu0 %v103
  %v279 = vpop.f32.mrf.mxu0
  %v280 = vadd.f32 %v128, %v279
  %v281 = vpop.f32.mrf.mxu0
  %v282 = vadd.f32 %v128, %v281
  %283 = vmatmul.bf16.gmra.mxu0 %v104
  %v284 = vpop.f32.mrf.mxu0
  %v285 = vadd.f32 %v128, %v284
  %v286 = vpop.f32.mrf.mxu0
  %v287 = vadd.f32 %v128, %v286
  %288 = vmatmul.bf16.gmra.mxu0 %v105
  %v289 = vpop.f32.mrf.mxu0
  %v290 = vadd.f32 %v128, %v289
  %v291 = vpop.f32.mrf.mxu0
  %v292 = vadd.f32 %v128, %v291
  %293 = vmatmul.bf16.gmra.mxu0 %v106
  %v294 = vpop.f32.mrf.mxu0
  %v295 = vadd.f32 %v128, %v294
  %v296 = vpop.f32.mrf.mxu0
  %v297 = vadd.f32 %v128, %v296
  %298 = vmatmul.bf16.gmra.mxu0 %v107
  %v299 = vpop.f32.mrf.mxu0
  %v300 = vadd.f32 %v128, %v299
  %v301 = vpop.f32.mrf.mxu0
  %v302 = vadd.f32 %v128, %v301
  %303 = vmatmul.bf16.gmra.mxu0 %v108
  %v304 = vpop.f32.mrf.mxu0
  %v305 = vadd.f32 %v128, %v304
  %v306 = vpop.f32.mrf.mxu0
  %v307 = vadd.f32 %v128, %v306
  %308 = vdwg.mxu0
  %309 = vst [vmem:[%s4] sm:$0xff] %v221
  %310 = vst [vmem:[%s4 + $0x8] sm:$0xff] %v270
  %311 = vst [vmem:[%s4 + $0x10] sm:$0xff] %v223
  %312 = vst [vmem:[%s4 + $0x18] sm:$0xff] %v272
  %313 = vst [vmem:[%s4 + $0x20] sm:$0xff] %v226
  %314 = vst [vmem:[%s4 + $0x28] sm:$0xff] %v275
  %315 = vst [vmem:[%s4 + $0x30] sm:$0xff] %v228
  %316 = vst [vmem:[%s4 + $0x38] sm:$0xff] %v277
  %317 = vst [vmem:[%s4 + $0x40] sm:$0xff] %v231
  %318 = vst [vmem:[%s4 + $0x48] sm:$0xff] %v280
  %319 = vst [vmem:[%s4 + $0x50] sm:$0xff] %v233
  %320 = vst [vmem:[%s4 + $0x58] sm:$0xff] %v282
  %321 = vst [vmem:[%s4 + $0x60] sm:$0xff] %v236
  %322 = vst [vmem:[%s4 + $0x68] sm:$0xff] %v285
  %323 = vst [vmem:[%s4 + $0x70] sm:$0xff] %v238
  %324 = vst [vmem:[%s4 + $0x78] sm:$0xff] %v287
  %325 = vst [vmem:[%s4 + $0x80] sm:$0xff] %v241
  %326 = vst [vmem:[%s4 + $0x88] sm:$0xff] %v290
  %327 = vst [vmem:[%s4 + $0x90] sm:$0xff] %v243
  %328 = vst [vmem:[%s4 + $0x98] sm:$0xff] %v292
  %329 = vst [vmem:[%s4 + $0xa0] sm:$0xff] %v246
  %330 = vst [vmem:[%s4 + $0xa8] sm:$0xff] %v295
  %331 = vst [vmem:[%s4 + $0xb0] sm:$0xff] %v248
  %332 = vst [vmem:[%s4 + $0xb8] sm:$0xff] %v297
  %333 = vst [vmem:[%s4 + $0xc0] sm:$0xff] %v251
  %334 = vst [vmem:[%s4 + $0xc8] sm:$0xff] %v300
  %335 = vst [vmem:[%s4 + $0xd0] sm:$0xff] %v253
  %336 = vst [vmem:[%s4 + $0xd8] sm:$0xff] %v302
  %337 = vst [vmem:[%s4 + $0xe0] sm:$0xff] %v256
  %338 = vst [vmem:[%s4 + $0xe8] sm:$0xff] %v305
  %339 = vst [vmem:[%s4 + $0xf0] sm:$0xff] %v258
  %340 = vst [vmem:[%s4 + $0xf8] sm:$0xff] %v307
  // Predicated region
  $region18: #{generator_forward.15} parent=0 // pred_check
    _
  $region19: #{generator_forward.15} parent=0 // pred_check_branch
    %342 = sbr.rel (0) target = $region21
  $region20: #{generator_forward.15} parent=0 // pred_region
    _
  $region21: #{generator_forward.15} parent=0 // pred_fallthru
    _
  // Predicated region
  $region22: #{generator_forward.15} parent=0 // pred_check
    _
  $region23: #{generator_forward.15} parent=0 // pred_check_branch
    %344 = sbr.rel (0) target = $region25
  $region24: #{generator_forward.15} parent=0 // pred_region
    _
  $region25: #{generator_forward.15} parent=0 // pred_fallthru
    _

</llo_original>
